<compile_context>
chip_gen: v7x
topology: tpu7x:2x2x1
jax: 0.10.0
libtpu: 0.0.40
codegen_flags: <defaults>
</compile_context>

<pallas_src>
import jax
import jax.numpy as jnp
from jax.experimental import pallas as pl
from jax.experimental.pallas import tpu as pltpu

# ----------------------------- model hyper-params (small, synthetic) ------------------
B, N, D = 2, 8, 256           # batch, seq len, embed_dim (lane-dense: D % 128 == 0)
TOK = B * N                   # 16 tokens -> one full bf16 (16,128) sublane tile per block
NUM_HEADS = 2
HEAD_DIM = D // NUM_HEADS     # 128 -> every head slice is 128-lane aligned
MLP_RATIO = 4.0
HIDDEN = int(D * MLP_RATIO)   # 1024
DEPTH = 2
SCALE = HEAD_DIM ** -0.5      # qk_scale=None -> head_dim ** -0.5
LN_EPS = 1e-5                 # nn.LayerNorm default eps
GELU_C = 0.7978845608028654   # sqrt(2/pi), hoisted constant


# ----------------------------- shared math helpers (used in-kernel and in ref) --------
def _layernorm(x, w, b):
    mu = jnp.mean(x, axis=-1, keepdims=True)
    var = jnp.mean(jnp.square(x - mu), axis=-1, keepdims=True)
    return (x - mu) * jax.lax.rsqrt(var + LN_EPS) * w + b


def _gelu(x):
    # TODO(synk): PyTorch nn.GELU() is exact erf-GELU; erf has no guaranteed Mosaic
    # lowering, so the tanh approximation is used (max abs deviation ~1e-3).
    return 0.5 * x * (1.0 + jnp.tanh(GELU_C * (x + 0.044715 * x * x * x)))


def _mm(a_f32, w_bf16):
    # bf16 operands on the MXU, f32 accumulation.  Activations are cast to bf16 only at
    # the MXU boundary; the residual stream and all elementwise math stay f32.
    return jnp.dot(a_f32.astype(jnp.bfloat16), w_bf16,
                   preferred_element_type=jnp.float32)


# ----------------------------- fused Pallas kernel ------------------------------------
def vit_fused_kernel(x_ref, pos_ref,
                     ln1w_ref, ln1b_ref, wqkv_ref, wproj_ref, bproj_ref,
                     ln2w_ref, ln2b_ref, wfc1_ref, bfc1_ref, wfc2_ref, bfc2_ref,
                     normw_ref, normb_ref,
                     o_ref, attn_scr):
    """Entire ViT forward for all B*N tokens; weights resident in VMEM, fetched once."""
    x = x_ref[...] + pos_ref[...]                               # (TOK, D) f32; pos_drop=id

    for l in range(DEPTH):                                      # static unroll over layers
        # ---- multi-head self-attention (pre-norm) ------------------------------------
        xn = _layernorm(x, ln1w_ref[l], ln1b_ref[l])
        qkv = _mm(xn, wqkv_ref[l])                              # (TOK, 3D) f32

        # per-(batch, head) static loop; every slice is (8 sublane, 128 lane) aligned,
        # head outputs written straight into their 128-lane slice of the scratch buffer.
        for b in range(B):
            r0 = b * N
            for h in range(NUM_HEADS):
                c = h * HEAD_DIM
                q = qkv[r0:r0 + N, c:c + HEAD_DIM]                       # (N, Hd)
                k = qkv[r0:r0 + N, D + c:D + c + HEAD_DIM]               # (N, Hd)
                v = qkv[r0:r0 + N, 2 * D + c:2 * D + c + HEAD_DIM]       # (N, Hd)

                s = jax.lax.dot_general(q, k, (((1,), (1,)), ((), ())),
                                        preferred_element_type=jnp.float32) * SCALE
                s = s - jnp.max(s, axis=-1, keepdims=True)
                p = jnp.exp(s)
                p = p * pl.reciprocal(jnp.sum(p, axis=-1, keepdims=True), approx=True)
                attn_scr[r0:r0 + N, c:c + HEAD_DIM] = jnp.dot(
                    p, v, preferred_element_type=jnp.float32)

        attn = _mm(attn_scr[...], wproj_ref[l]) + bproj_ref[l]
        x = x + attn                                            # residual (drop_path=0)

        # ---- MLP (pre-norm) ----------------------------------------------------------
        xn2 = _layernorm(x, ln2w_ref[l], ln2b_ref[l])
        h1 = _gelu(_mm(xn2, wfc1_ref[l]) + bfc1_ref[l])
        x = x + _mm(h1, wfc2_ref[l]) + bfc2_ref[l]              # residual

    # ---- final LayerNorm --------------------------------------------------------------
    o_ref[...] = _layernorm(x, normw_ref[...], normb_ref[...])


# ----------------------------- pallas_call wrapper -------------------------------------
_WKEYS = ["ln1_w", "ln1_b", "w_qkv", "w_proj", "b_proj",
          "ln2_w", "ln2_b", "w_fc1", "b_fc1", "w_fc2", "b_fc2",
          "norm_w", "norm_b"]


def vit_forward(x, pos_embed, w):
    weights = [w[k] for k in _WKEYS]

    # layout plumbing only: flatten tokens so the kernel sees one lane/sublane-dense
    # (B*N, D) slab; attention still respects batch boundaries via static row blocks.
    x_flat = x.reshape(TOK, D)
    pos_flat = jnp.broadcast_to(pos_embed, (B, N, D)).reshape(TOK, D)

    n_inputs = 2 + len(weights)
    vmem_spec = pl.BlockSpec(memory_space=pltpu.MemorySpace.VMEM)   # whole array in VMEM

    # cost estimate (advisory) — reflects bf16 weights fetched exactly once.
    mm_flops = DEPTH * TOK * (2 * D * 3 * D + 2 * D * D + 4 * D * HIDDEN)
    attn_flops = DEPTH * B * NUM_HEADS * (4 * N * N * HEAD_DIM)
    transcendentals = DEPTH * (B * NUM_HEADS * N * N + TOK * HIDDEN + 3 * TOK) + TOK
    bytes_accessed = (2 * TOK * D * 4 + TOK * D * 4
                      + sum(int(a.size) * a.dtype.itemsize for a in weights))

    out_flat = pl.pallas_call(
        vit_fused_kernel,
        out_shape=jax.ShapeDtypeStruct((TOK, D), jnp.float32),
        in_specs=[vmem_spec] * n_inputs,
        out_specs=vmem_spec,
        scratch_shapes=[pltpu.VMEM((TOK, D), jnp.float32)],     # per-head attn assembly
        compiler_params=pltpu.CompilerParams(
            vmem_limit_bytes=32 * 1024 * 1024),
        cost_estimate=pl.CostEstimate(flops=mm_flops + attn_flops,
                                      transcendentals=transcendentals,
                                      bytes_accessed=bytes_accessed),
    )(x_flat, pos_flat, *weights)

    return out_flat.reshape(B, N, D)


# ----------------------------- deterministic parameter init ---------------------------
def init_params(key):
    def trunc(k, shape):
        # trunc_normal_(std=0.02); zero bias, unit LN weight per _init_weights
        return jax.random.truncated_normal(k, -2.0, 2.0, shape, jnp.float32) * 0.02

    ks = jax.random.split(key, 4 * DEPTH)
    bf16 = jnp.bfloat16
    w = {
        "ln1_w": jnp.ones((DEPTH, 1, D), jnp.float32),
        "ln1_b": jnp.zeros((DEPTH, 1, D), jnp.float32),
        # big matmul weights stored bf16 -> half the HBM weight DMA (the binding cost)
        "w_qkv": jnp.stack([trunc(ks[4 * i + 0], (D, 3 * D)) for i in range(DEPTH)]).astype(bf16),
        "w_proj": jnp.stack([trunc(ks[4 * i + 1], (D, D)) for i in range(DEPTH)]).astype(bf16),
        "b_proj": jnp.zeros((DEPTH, 1, D), jnp.float32),
        "ln2_w": jnp.ones((DEPTH, 1, D), jnp.float32),
        "ln2_b": jnp.zeros((DEPTH, 1, D), jnp.float32),
        "w_fc1": jnp.stack([trunc(ks[4 * i + 2], (D, HIDDEN)) for i in range(DEPTH)]).astype(bf16),
        "b_fc1": jnp.zeros((DEPTH, 1, HIDDEN), jnp.float32),
        "w_fc2": jnp.stack([trunc(ks[4 * i + 3], (HIDDEN, D)) for i in range(DEPTH)]).astype(bf16),
        "b_fc2": jnp.zeros((DEPTH, 1, D), jnp.float32),
        "norm_w": jnp.ones((1, D), jnp.float32),
        "norm_b": jnp.zeros((1, D), jnp.float32),
    }
    return w


# ----------------------------- pure-JAX reference for validation ----------------------
def ref_forward(x, pos_embed, w):
    # Uses the same bf16-weight / f32-everything-else precision model as the kernel.
    x = x + pos_embed
    for l in range(DEPTH):
        xn = _layernorm(x, w["ln1_w"][l], w["ln1_b"][l])
        qkv = _mm(xn, w["w_qkv"][l])
        q, k, v = jnp.split(qkv, 3, axis=-1)

        def heads(t):
            return t.reshape(B, N, NUM_HEADS, HEAD_DIM).transpose(0, 2, 1, 3)

        qh, kh, vh = heads(q), heads(k), heads(v)
        s = jnp.einsum("bhqd,bhkd->bhqk", qh, kh,
                       preferred_element_type=jnp.float32) * SCALE
        a = jax.nn.softmax(s, axis=-1)
        o = jnp.einsum("bhqk,bhkd->bhqd", a, vh,
                       preferred_element_type=jnp.float32)
        o = o.transpose(0, 2, 1, 3).reshape(B, N, D)
        x = x + (_mm(o, w["w_proj"][l]) + w["b_proj"][l])

        xn2 = _layernorm(x, w["ln2_w"][l], w["ln2_b"][l])
        h = _gelu(_mm(xn2, w["w_fc1"][l]) + w["b_fc1"][l])
        x = x + (_mm(h, w["w_fc2"][l]) + w["b_fc2"][l])
    return _layernorm(x, w["norm_w"], w["norm_b"])


# ----------------------------- main ----------------------------------------------------
if __name__ == "__main__":
    key = jax.random.PRNGKey(0)
    kx, kp, kw = jax.random.split(key, 3)

    x = jax.random.normal(kx, (B, N, D), jnp.float32)
    pos_embed = jax.random.normal(kp, (1, N, D), jnp.float32) * 0.02
    w = init_params(kw)

    out = jax.block_until_ready(vit_forward(x, pos_embed, w))
    ref = ref_forward(x, pos_embed, w)

    assert out.shape == (B, N, D)
    assert bool(jnp.all(jnp.isfinite(out)))
    assert bool(jnp.allclose(out, ref, rtol=2e-2, atol=1e-2))

    print("KERNEL_OK")
</pallas_src>

<mosaic_0001>
module attributes {stable_mosaic.version = 11 : i64} {
  func.func @vit_fused_kernel(%arg0: memref<16x256xf32, #tpu.memory_space<vmem>>, %arg1: memref<16x256xf32, #tpu.memory_space<vmem>>, %arg2: memref<2x1x256xf32, #tpu.memory_space<vmem>>, %arg3: memref<2x1x256xf32, #tpu.memory_space<vmem>>, %arg4: memref<2x256x768xbf16, #tpu.memory_space<vmem>>, %arg5: memref<2x256x256xbf16, #tpu.memory_space<vmem>>, %arg6: memref<2x1x256xf32, #tpu.memory_space<vmem>>, %arg7: memref<2x1x256xf32, #tpu.memory_space<vmem>>, %arg8: memref<2x1x256xf32, #tpu.memory_space<vmem>>, %arg9: memref<2x256x1024xbf16, #tpu.memory_space<vmem>>, %arg10: memref<2x1x1024xf32, #tpu.memory_space<vmem>>, %arg11: memref<2x1024x256xbf16, #tpu.memory_space<vmem>>, %arg12: memref<2x1x256xf32, #tpu.memory_space<vmem>>, %arg13: memref<1x256xf32, #tpu.memory_space<vmem>>, %arg14: memref<1x256xf32, #tpu.memory_space<vmem>>, %arg15: memref<16x256xf32, #tpu.memory_space<vmem>>, %arg16: memref<16x256xf32, #tpu.memory_space<vmem>>) attributes {dimension_semantics = [], scalar_prefetch = 0 : i64, scratch_operands = 1 : i64, tpu.core_type = #tpu.core_type<tc>} {
    %c0 = arith.constant 0 : index
    %c0_0 = arith.constant 0 : index
    %0 = vector.load %arg0[%c0, %c0_0] : memref<16x256xf32, #tpu.memory_space<vmem>>, vector<16x256xf32>
    %c0_1 = arith.constant 0 : index
    %c0_2 = arith.constant 0 : index
    %1 = vector.load %arg1[%c0_1, %c0_2] : memref<16x256xf32, #tpu.memory_space<vmem>>, vector<16x256xf32>
    %2 = arith.addf %0, %1 : vector<16x256xf32>
    %c0_3 = arith.constant 0 : index
    %c0_4 = arith.constant 0 : index
    %c0_5 = arith.constant 0 : index
    %3 = vector.load %arg2[%c0_3, %c0_4, %c0_5] : memref<2x1x256xf32, #tpu.memory_space<vmem>>, vector<1x1x256xf32>
    %4 = vector.shape_cast %3 : vector<1x1x256xf32> to vector<1x256xf32>
    %c0_6 = arith.constant 0 : index
    %c0_7 = arith.constant 0 : index
    %c0_8 = arith.constant 0 : index
    %5 = vector.load %arg3[%c0_6, %c0_7, %c0_8] : memref<2x1x256xf32, #tpu.memory_space<vmem>>, vector<1x1x256xf32>
    %6 = vector.shape_cast %5 : vector<1x1x256xf32> to vector<1x256xf32>
    %cst = arith.constant dense<0.000000e+00> : vector<16xf32>
    %7 = vector.multi_reduction <add>, %2, %cst [1] : vector<16x256xf32> to vector<16xf32>
    %8 = vector.shape_cast %7 : vector<16xf32> to vector<16x1xf32>
    %cst_9 = arith.constant 2.560000e+02 : f32
    %9 = vector.broadcast %cst_9 : f32 to vector<16x1xf32>
    %10 = arith.divf %8, %9 : vector<16x1xf32>
    %11 = vector.broadcast %10 : vector<16x1xf32> to vector<16x256xf32>
    %12 = arith.subf %2, %11 : vector<16x256xf32>
    %13 = arith.mulf %12, %12 : vector<16x256xf32>
    %cst_10 = arith.constant dense<0.000000e+00> : vector<16xf32>
    %14 = vector.multi_reduction <add>, %13, %cst_10 [1] : vector<16x256xf32> to vector<16xf32>
    %15 = vector.shape_cast %14 : vector<16xf32> to vector<16x1xf32>
    %cst_11 = arith.constant 2.560000e+02 : f32
    %16 = vector.broadcast %cst_11 : f32 to vector<16x1xf32>
    %17 = arith.divf %15, %16 : vector<16x1xf32>
    %18 = vector.broadcast %10 : vector<16x1xf32> to vector<16x256xf32>
    %19 = arith.subf %2, %18 : vector<16x256xf32>
    %cst_12 = arith.constant 9.99999974E-6 : f32
    %20 = vector.broadcast %cst_12 : f32 to vector<16x1xf32>
    %21 = arith.addf %17, %20 : vector<16x1xf32>
    %22 = math.rsqrt %21 : vector<16x1xf32>
    %23 = vector.broadcast %22 : vector<16x1xf32> to vector<16x256xf32>
    %24 = arith.mulf %19, %23 : vector<16x256xf32>
    %25 = vector.broadcast %4 : vector<1x256xf32> to vector<16x256xf32>
    %26 = arith.mulf %24, %25 : vector<16x256xf32>
    %27 = vector.broadcast %6 : vector<1x256xf32> to vector<16x256xf32>
    %28 = arith.addf %26, %27 : vector<16x256xf32>
    %c0_13 = arith.constant 0 : index
    %c0_14 = arith.constant 0 : index
    %c0_15 = arith.constant 0 : index
    %29 = vector.load %arg4[%c0_13, %c0_14, %c0_15] : memref<2x256x768xbf16, #tpu.memory_space<vmem>>, vector<1x256x768xbf16>
    %30 = vector.shape_cast %29 : vector<1x256x768xbf16> to vector<256x768xbf16>
    %31 = arith.truncf %28 : vector<16x256xf32> to vector<16x256xbf16>
    %cst_16 = arith.constant dense<0.000000e+00> : vector<16x768xf32>
    %32 = tpu.matmul %31, %30, %cst_16 {dimension_numbers = #tpu.dot_dimension_numbers<[1], [0], [0], [1], [0, 0, 1, 1], [], []>} : vector<16x256xbf16>, vector<256x768xbf16>, vector<16x768xf32> -> vector<16x768xf32>
    %33 = vector.extract_strided_slice %32 {offsets = [0, 0], sizes = [8, 128], strides = [1, 1]} : vector<16x768xf32> to vector<8x128xf32>
    %34 = vector.extract_strided_slice %32 {offsets = [0, 256], sizes = [8, 128], strides = [1, 1]} : vector<16x768xf32> to vector<8x128xf32>
    %35 = vector.extract_strided_slice %32 {offsets = [0, 512], sizes = [8, 128], strides = [1, 1]} : vector<16x768xf32> to vector<8x128xf32>
    %cst_17 = arith.constant dense<0.000000e+00> : vector<8x8xf32>
    %36 = tpu.matmul %33, %34, %cst_17 {dimension_numbers = #tpu.dot_dimension_numbers<[1], [1], [0], [0], [0, 0, 1, 0], [], []>} : vector<8x128xf32>, vector<8x128xf32>, vector<8x8xf32> -> vector<8x8xf32>
    %cst_18 = arith.constant 0.0883883461 : f32
    %37 = vector.broadcast %cst_18 : f32 to vector<8x8xf32>
    %38 = arith.mulf %36, %37 : vector<8x8xf32>
    %cst_19 = arith.constant dense<0xFF800000> : vector<8xf32>
    %39 = vector.multi_reduction <maximumf>, %38, %cst_19 [1] : vector<8x8xf32> to vector<8xf32>
    %40 = vector.shape_cast %39 : vector<8xf32> to vector<8x1xf32>
    %41 = vector.broadcast %40 : vector<8x1xf32> to vector<8x8xf32>
    %42 = arith.subf %38, %41 : vector<8x8xf32>
    %43 = math.exp %42 : vector<8x8xf32>
    %cst_20 = arith.constant dense<0.000000e+00> : vector<8xf32>
    %44 = vector.multi_reduction <add>, %43, %cst_20 [1] : vector<8x8xf32> to vector<8xf32>
    %45 = vector.shape_cast %44 : vector<8xf32> to vector<8x1xf32>
    %46 = tpu.reciprocal %45 {approx = true} : vector<8x1xf32> -> vector<8x1xf32>
    %47 = vector.broadcast %46 : vector<8x1xf32> to vector<8x8xf32>
    %48 = arith.mulf %43, %47 : vector<8x8xf32>
    %cst_21 = arith.constant dense<0.000000e+00> : vector<8x128xf32>
    %49 = tpu.matmul %48, %35, %cst_21 {dimension_numbers = #tpu.dot_dimension_numbers<[1], [0], [0], [1], [0, 0, 1, 1], [], []>} : vector<8x8xf32>, vector<8x128xf32>, vector<8x128xf32> -> vector<8x128xf32>
    %c0_22 = arith.constant 0 : index
    %c0_23 = arith.constant 0 : index
    %50 = vector.load %arg16[%c0_22, %c0_23] : memref<16x256xf32, #tpu.memory_space<vmem>>, vector<8x128xf32>
    tpu.vector_store %arg16[%c0_22, %c0_23], %49 {strides = array<i32>} : memref<16x256xf32, #tpu.memory_space<vmem>>, vector<8x128xf32>,
    %51 = vector.extract_strided_slice %32 {offsets = [0, 128], sizes = [8, 128], strides = [1, 1]} : vector<16x768xf32> to vector<8x128xf32>
    %52 = vector.extract_strided_slice %32 {offsets = [0, 384], sizes = [8, 128], strides = [1, 1]} : vector<16x768xf32> to vector<8x128xf32>
    %53 = vector.extract_strided_slice %32 {offsets = [0, 640], sizes = [8, 128], strides = [1, 1]} : vector<16x768xf32> to vector<8x128xf32>
    %cst_24 = arith.constant dense<0.000000e+00> : vector<8x8xf32>
    %54 = tpu.matmul %51, %52, %cst_24 {dimension_numbers = #tpu.dot_dimension_numbers<[1], [1], [0], [0], [0, 0, 1, 0], [], []>} : vector<8x128xf32>, vector<8x128xf32>, vector<8x8xf32> -> vector<8x8xf32>
    %cst_25 = arith.constant 0.0883883461 : f32
    %55 = vector.broadcast %cst_25 : f32 to vector<8x8xf32>
    %56 = arith.mulf %54, %55 : vector<8x8xf32>
    %cst_26 = arith.constant dense<0xFF800000> : vector<8xf32>
    %57 = vector.multi_reduction <maximumf>, %56, %cst_26 [1] : vector<8x8xf32> to vector<8xf32>
    %58 = vector.shape_cast %57 : vector<8xf32> to vector<8x1xf32>
    %59 = vector.broadcast %58 : vector<8x1xf32> to vector<8x8xf32>
    %60 = arith.subf %56, %59 : vector<8x8xf32>
    %61 = math.exp %60 : vector<8x8xf32>
    %cst_27 = arith.constant dense<0.000000e+00> : vector<8xf32>
    %62 = vector.multi_reduction <add>, %61, %cst_27 [1] : vector<8x8xf32> to vector<8xf32>
    %63 = vector.shape_cast %62 : vector<8xf32> to vector<8x1xf32>
    %64 = tpu.reciprocal %63 {approx = true} : vector<8x1xf32> -> vector<8x1xf32>
    %65 = vector.broadcast %64 : vector<8x1xf32> to vector<8x8xf32>
    %66 = arith.mulf %61, %65 : vector<8x8xf32>
    %cst_28 = arith.constant dense<0.000000e+00> : vector<8x128xf32>
    %67 = tpu.matmul %66, %53, %cst_28 {dimension_numbers = #tpu.dot_dimension_numbers<[1], [0], [0], [1], [0, 0, 1, 1], [], []>} : vector<8x8xf32>, vector<8x128xf32>, vector<8x128xf32> -> vector<8x128xf32>
    %c0_29 = arith.constant 0 : index
    %c128 = arith.constant 128 : index
    %68 = vector.load %arg16[%c0_29, %c128] : memref<16x256xf32, #tpu.memory_space<vmem>>, vector<8x128xf32>
    tpu.vector_store %arg16[%c0_29, %c128], %67 {strides = array<i32>} : memref<16x256xf32, #tpu.memory_space<vmem>>, vector<8x128xf32>,
    %69 = vector.extract_strided_slice %32 {offsets = [8, 0], sizes = [8, 128], strides = [1, 1]} : vector<16x768xf32> to vector<8x128xf32>
    %70 = vector.extract_strided_slice %32 {offsets = [8, 256], sizes = [8, 128], strides = [1, 1]} : vector<16x768xf32> to vector<8x128xf32>
    %71 = vector.extract_strided_slice %32 {offsets = [8, 512], sizes = [8, 128], strides = [1, 1]} : vector<16x768xf32> to vector<8x128xf32>
    %cst_30 = arith.constant dense<0.000000e+00> : vector<8x8xf32>
    %72 = tpu.matmul %69, %70, %cst_30 {dimension_numbers = #tpu.dot_dimension_numbers<[1], [1], [0], [0], [0, 0, 1, 0], [], []>} : vector<8x128xf32>, vector<8x128xf32>, vector<8x8xf32> -> vector<8x8xf32>
    %cst_31 = arith.constant 0.0883883461 : f32
    %73 = vector.broadcast %cst_31 : f32 to vector<8x8xf32>
    %74 = arith.mulf %72, %73 : vector<8x8xf32>
    %cst_32 = arith.constant dense<0xFF800000> : vector<8xf32>
    %75 = vector.multi_reduction <maximumf>, %74, %cst_32 [1] : vector<8x8xf32> to vector<8xf32>
    %76 = vector.shape_cast %75 : vector<8xf32> to vector<8x1xf32>
    %77 = vector.broadcast %76 : vector<8x1xf32> to vector<8x8xf32>
    %78 = arith.subf %74, %77 : vector<8x8xf32>
    %79 = math.exp %78 : vector<8x8xf32>
    %cst_33 = arith.constant dense<0.000000e+00> : vector<8xf32>
    %80 = vector.multi_reduction <add>, %79, %cst_33 [1] : vector<8x8xf32> to vector<8xf32>
    %81 = vector.shape_cast %80 : vector<8xf32> to vector<8x1xf32>
    %82 = tpu.reciprocal %81 {approx = true} : vector<8x1xf32> -> vector<8x1xf32>
    %83 = vector.broadcast %82 : vector<8x1xf32> to vector<8x8xf32>
    %84 = arith.mulf %79, %83 : vector<8x8xf32>
    %cst_34 = arith.constant dense<0.000000e+00> : vector<8x128xf32>
    %85 = tpu.matmul %84, %71, %cst_34 {dimension_numbers = #tpu.dot_dimension_numbers<[1], [0], [0], [1], [0, 0, 1, 1], [], []>} : vector<8x8xf32>, vector<8x128xf32>, vector<8x128xf32> -> vector<8x128xf32>
    %c8 = arith.constant 8 : index
    %c0_35 = arith.constant 0 : index
    %86 = vector.load %arg16[%c8, %c0_35] : memref<16x256xf32, #tpu.memory_space<vmem>>, vector<8x128xf32>
    tpu.vector_store %arg16[%c8, %c0_35], %85 {strides = array<i32>} : memref<16x256xf32, #tpu.memory_space<vmem>>, vector<8x128xf32>,
    %87 = vector.extract_strided_slice %32 {offsets = [8, 128], sizes = [8, 128], strides = [1, 1]} : vector<16x768xf32> to vector<8x128xf32>
    %88 = vector.extract_strided_slice %32 {offsets = [8, 384], sizes = [8, 128], strides = [1, 1]} : vector<16x768xf32> to vector<8x128xf32>
    %89 = vector.extract_strided_slice %32 {offsets = [8, 640], sizes = [8, 128], strides = [1, 1]} : vector<16x768xf32> to vector<8x128xf32>
    %cst_36 = arith.constant dense<0.000000e+00> : vector<8x8xf32>
    %90 = tpu.matmul %87, %88, %cst_36 {dimension_numbers = #tpu.dot_dimension_numbers<[1], [1], [0], [0], [0, 0, 1, 0], [], []>} : vector<8x128xf32>, vector<8x128xf32>, vector<8x8xf32> -> vector<8x8xf32>
    %cst_37 = arith.constant 0.0883883461 : f32
    %91 = vector.broadcast %cst_37 : f32 to vector<8x8xf32>
    %92 = arith.mulf %90, %91 : vector<8x8xf32>
    %cst_38 = arith.constant dense<0xFF800000> : vector<8xf32>
    %93 = vector.multi_reduction <maximumf>, %92, %cst_38 [1] : vector<8x8xf32> to vector<8xf32>
    %94 = vector.shape_cast %93 : vector<8xf32> to vector<8x1xf32>
    %95 = vector.broadcast %94 : vector<8x1xf32> to vector<8x8xf32>
    %96 = arith.subf %92, %95 : vector<8x8xf32>
    %97 = math.exp %96 : vector<8x8xf32>
    %cst_39 = arith.constant dense<0.000000e+00> : vector<8xf32>
    %98 = vector.multi_reduction <add>, %97, %cst_39 [1] : vector<8x8xf32> to vector<8xf32>
    %99 = vector.shape_cast %98 : vector<8xf32> to vector<8x1xf32>
    %100 = tpu.reciprocal %99 {approx = true} : vector<8x1xf32> -> vector<8x1xf32>
    %101 = vector.broadcast %100 : vector<8x1xf32> to vector<8x8xf32>
    %102 = arith.mulf %97, %101 : vector<8x8xf32>
    %cst_40 = arith.constant dense<0.000000e+00> : vector<8x128xf32>
    %103 = tpu.matmul %102, %89, %cst_40 {dimension_numbers = #tpu.dot_dimension_numbers<[1], [0], [0], [1], [0, 0, 1, 1], [], []>} : vector<8x8xf32>, vector<8x128xf32>, vector<8x128xf32> -> vector<8x128xf32>
    %c8_41 = arith.constant 8 : index
    %c128_42 = arith.constant 128 : index
    %104 = vector.load %arg16[%c8_41, %c128_42] : memref<16x256xf32, #tpu.memory_space<vmem>>, vector<8x128xf32>
    tpu.vector_store %arg16[%c8_41, %c128_42], %103 {strides = array<i32>} : memref<16x256xf32, #tpu.memory_space<vmem>>, vector<8x128xf32>,
    %c0_43 = arith.constant 0 : index
    %c0_44 = arith.constant 0 : index
    %105 = vector.load %arg16[%c0_43, %c0_44] : memref<16x256xf32, #tpu.memory_space<vmem>>, vector<16x256xf32>
    %c0_45 = arith.constant 0 : index
    %c0_46 = arith.constant 0 : index
    %c0_47 = arith.constant 0 : index
    %106 = vector.load %arg5[%c0_45, %c0_46, %c0_47] : memref<2x256x256xbf16, #tpu.memory_space<vmem>>, vector<1x256x256xbf16>
    %107 = vector.shape_cast %106 : vector<1x256x256xbf16> to vector<256x256xbf16>
    %108 = arith.truncf %105 : vector<16x256xf32> to vector<16x256xbf16>
    %cst_48 = arith.constant dense<0.000000e+00> : vector<16x256xf32>
    %109 = tpu.matmul %108, %107, %cst_48 {dimension_numbers = #tpu.dot_dimension_numbers<[1], [0], [0], [1], [0, 0, 1, 1], [], []>} : vector<16x256xbf16>, vector<256x256xbf16>, vector<16x256xf32> -> vector<16x256xf32>
    %c0_49 = arith.constant 0 : index
    %c0_50 = arith.constant 0 : index
    %c0_51 = arith.constant 0 : index
    %110 = vector.load %arg6[%c0_49, %c0_50, %c0_51] : memref<2x1x256xf32, #tpu.memory_space<vmem>>, vector<1x1x256xf32>
    %111 = vector.shape_cast %110 : vector<1x1x256xf32> to vector<1x256xf32>
    %112 = vector.broadcast %111 : vector<1x256xf32> to vector<16x256xf32>
    %113 = arith.addf %109, %112 : vector<16x256xf32>
    %114 = arith.addf %2, %113 : vector<16x256xf32>
    %c0_52 = arith.constant 0 : index
    %c0_53 = arith.constant 0 : index
    %c0_54 = arith.constant 0 : index
    %115 = vector.load %arg7[%c0_52, %c0_53, %c0_54] : memref<2x1x256xf32, #tpu.memory_space<vmem>>, vector<1x1x256xf32>
    %116 = vector.shape_cast %115 : vector<1x1x256xf32> to vector<1x256xf32>
    %c0_55 = arith.constant 0 : index
    %c0_56 = arith.constant 0 : index
    %c0_57 = arith.constant 0 : index
    %117 = vector.load %arg8[%c0_55, %c0_56, %c0_57] : memref<2x1x256xf32, #tpu.memory_space<vmem>>, vector<1x1x256xf32>
    %118 = vector.shape_cast %117 : vector<1x1x256xf32> to vector<1x256xf32>
    %cst_58 = arith.constant dense<0.000000e+00> : vector<16xf32>
    %119 = vector.multi_reduction <add>, %114, %cst_58 [1] : vector<16x256xf32> to vector<16xf32>
    %120 = vector.shape_cast %119 : vector<16xf32> to vector<16x1xf32>
    %cst_59 = arith.constant 2.560000e+02 : f32
    %121 = vector.broadcast %cst_59 : f32 to vector<16x1xf32>
    %122 = arith.divf %120, %121 : vector<16x1xf32>
    %123 = vector.broadcast %122 : vector<16x1xf32> to vector<16x256xf32>
    %124 = arith.subf %114, %123 : vector<16x256xf32>
    %125 = arith.mulf %124, %124 : vector<16x256xf32>
    %cst_60 = arith.constant dense<0.000000e+00> : vector<16xf32>
    %126 = vector.multi_reduction <add>, %125, %cst_60 [1] : vector<16x256xf32> to vector<16xf32>
    %127 = vector.shape_cast %126 : vector<16xf32> to vector<16x1xf32>
    %cst_61 = arith.constant 2.560000e+02 : f32
    %128 = vector.broadcast %cst_61 : f32 to vector<16x1xf32>
    %129 = arith.divf %127, %128 : vector<16x1xf32>
    %130 = vector.broadcast %122 : vector<16x1xf32> to vector<16x256xf32>
    %131 = arith.subf %114, %130 : vector<16x256xf32>
    %cst_62 = arith.constant 9.99999974E-6 : f32
    %132 = vector.broadcast %cst_62 : f32 to vector<16x1xf32>
    %133 = arith.addf %129, %132 : vector<16x1xf32>
    %134 = math.rsqrt %133 : vector<16x1xf32>
    %135 = vector.broadcast %134 : vector<16x1xf32> to vector<16x256xf32>
    %136 = arith.mulf %131, %135 : vector<16x256xf32>
    %137 = vector.broadcast %116 : vector<1x256xf32> to vector<16x256xf32>
    %138 = arith.mulf %136, %137 : vector<16x256xf32>
    %139 = vector.broadcast %118 : vector<1x256xf32> to vector<16x256xf32>
    %140 = arith.addf %138, %139 : vector<16x256xf32>
    %c0_63 = arith.constant 0 : index
    %c0_64 = arith.constant 0 : index
    %c0_65 = arith.constant 0 : index
    %141 = vector.load %arg9[%c0_63, %c0_64, %c0_65] : memref<2x256x1024xbf16, #tpu.memory_space<vmem>>, vector<1x256x1024xbf16>
    %142 = vector.shape_cast %141 : vector<1x256x1024xbf16> to vector<256x1024xbf16>
    %143 = arith.truncf %140 : vector<16x256xf32> to vector<16x256xbf16>
    %cst_66 = arith.constant dense<0.000000e+00> : vector<16x1024xf32>
    %144 = tpu.matmul %143, %142, %cst_66 {dimension_numbers = #tpu.dot_dimension_numbers<[1], [0], [0], [1], [0, 0, 1, 1], [], []>} : vector<16x256xbf16>, vector<256x1024xbf16>, vector<16x1024xf32> -> vector<16x1024xf32>
    %c0_67 = arith.constant 0 : index
    %c0_68 = arith.constant 0 : index
    %c0_69 = arith.constant 0 : index
    %145 = vector.load %arg10[%c0_67, %c0_68, %c0_69] : memref<2x1x1024xf32, #tpu.memory_space<vmem>>, vector<1x1x1024xf32>
    %146 = vector.shape_cast %145 : vector<1x1x1024xf32> to vector<1x1024xf32>
    %147 = vector.broadcast %146 : vector<1x1024xf32> to vector<16x1024xf32>
    %148 = arith.addf %144, %147 : vector<16x1024xf32>
    %cst_70 = arith.constant 5.000000e-01 : f32
    %149 = vector.broadcast %cst_70 : f32 to vector<16x1024xf32>
    %150 = arith.mulf %149, %148 : vector<16x1024xf32>
    %cst_71 = arith.constant 4.471500e-02 : f32
    %151 = vector.broadcast %cst_71 : f32 to vector<16x1024xf32>
    %152 = arith.mulf %151, %148 : vector<16x1024xf32>
    %153 = arith.mulf %152, %148 : vector<16x1024xf32>
    %154 = arith.mulf %153, %148 : vector<16x1024xf32>
    %155 = arith.addf %148, %154 : vector<16x1024xf32>
    %cst_72 = arith.constant 0.797884583 : f32
    %156 = vector.broadcast %cst_72 : f32 to vector<16x1024xf32>
    %157 = arith.mulf %156, %155 : vector<16x1024xf32>
    %158 = math.tanh %157 : vector<16x1024xf32>
    %cst_73 = arith.constant 1.000000e+00 : f32
    %159 = vector.broadcast %cst_73 : f32 to vector<16x1024xf32>
    %160 = arith.addf %159, %158 : vector<16x1024xf32>
    %161 = arith.mulf %150, %160 : vector<16x1024xf32>
    %c0_74 = arith.constant 0 : index
    %c0_75 = arith.constant 0 : index
    %c0_76 = arith.constant 0 : index
    %162 = vector.load %arg11[%c0_74, %c0_75, %c0_76] : memref<2x1024x256xbf16, #tpu.memory_space<vmem>>, vector<1x1024x256xbf16>
    %163 = vector.shape_cast %162 : vector<1x1024x256xbf16> to vector<1024x256xbf16>
    %164 = arith.truncf %161 : vector<16x1024xf32> to vector<16x1024xbf16>
    %cst_77 = arith.constant dense<0.000000e+00> : vector<16x256xf32>
    %165 = tpu.matmul %164, %163, %cst_77 {dimension_numbers = #tpu.dot_dimension_numbers<[1], [0], [0], [1], [0, 0, 1, 1], [], []>} : vector<16x1024xbf16>, vector<1024x256xbf16>, vector<16x256xf32> -> vector<16x256xf32>
    %166 = arith.addf %114, %165 : vector<16x256xf32>
    %c0_78 = arith.constant 0 : index
    %c0_79 = arith.constant 0 : index
    %c0_80 = arith.constant 0 : index
    %167 = vector.load %arg12[%c0_78, %c0_79, %c0_80] : memref<2x1x256xf32, #tpu.memory_space<vmem>>, vector<1x1x256xf32>
    %168 = vector.shape_cast %167 : vector<1x1x256xf32> to vector<1x256xf32>
    %169 = vector.broadcast %168 : vector<1x256xf32> to vector<16x256xf32>
    %170 = arith.addf %166, %169 : vector<16x256xf32>
    %c1 = arith.constant 1 : index
    %c0_81 = arith.constant 0 : index
    %c0_82 = arith.constant 0 : index
    %171 = vector.load %arg2[%c1, %c0_81, %c0_82] : memref<2x1x256xf32, #tpu.memory_space<vmem>>, vector<1x1x256xf32>
    %172 = vector.shape_cast %171 : vector<1x1x256xf32> to vector<1x256xf32>
    %c1_83 = arith.constant 1 : index
    %c0_84 = arith.constant 0 : index
    %c0_85 = arith.constant 0 : index
    %173 = vector.load %arg3[%c1_83, %c0_84, %c0_85] : memref<2x1x256xf32, #tpu.memory_space<vmem>>, vector<1x1x256xf32>
    %174 = vector.shape_cast %173 : vector<1x1x256xf32> to vector<1x256xf32>
    %cst_86 = arith.constant dense<0.000000e+00> : vector<16xf32>
    %175 = vector.multi_reduction <add>, %170, %cst_86 [1] : vector<16x256xf32> to vector<16xf32>
    %176 = vector.shape_cast %175 : vector<16xf32> to vector<16x1xf32>
    %cst_87 = arith.constant 2.560000e+02 : f32
    %177 = vector.broadcast %cst_87 : f32 to vector<16x1xf32>
    %178 = arith.divf %176, %177 : vector<16x1xf32>
    %179 = vector.broadcast %178 : vector<16x1xf32> to vector<16x256xf32>
    %180 = arith.subf %170, %179 : vector<16x256xf32>
    %181 = arith.mulf %180, %180 : vector<16x256xf32>
    %cst_88 = arith.constant dense<0.000000e+00> : vector<16xf32>
    %182 = vector.multi_reduction <add>, %181, %cst_88 [1] : vector<16x256xf32> to vector<16xf32>
    %183 = vector.shape_cast %182 : vector<16xf32> to vector<16x1xf32>
    %cst_89 = arith.constant 2.560000e+02 : f32
    %184 = vector.broadcast %cst_89 : f32 to vector<16x1xf32>
    %185 = arith.divf %183, %184 : vector<16x1xf32>
    %186 = vector.broadcast %178 : vector<16x1xf32> to vector<16x256xf32>
    %187 = arith.subf %170, %186 : vector<16x256xf32>
    %cst_90 = arith.constant 9.99999974E-6 : f32
    %188 = vector.broadcast %cst_90 : f32 to vector<16x1xf32>
    %189 = arith.addf %185, %188 : vector<16x1xf32>
    %190 = math.rsqrt %189 : vector<16x1xf32>
    %191 = vector.broadcast %190 : vector<16x1xf32> to vector<16x256xf32>
    %192 = arith.mulf %187, %191 : vector<16x256xf32>
    %193 = vector.broadcast %172 : vector<1x256xf32> to vector<16x256xf32>
    %194 = arith.mulf %192, %193 : vector<16x256xf32>
    %195 = vector.broadcast %174 : vector<1x256xf32> to vector<16x256xf32>
    %196 = arith.addf %194, %195 : vector<16x256xf32>
    %c1_91 = arith.constant 1 : index
    %c0_92 = arith.constant 0 : index
    %c0_93 = arith.constant 0 : index
    %197 = vector.load %arg4[%c1_91, %c0_92, %c0_93] : memref<2x256x768xbf16, #tpu.memory_space<vmem>>, vector<1x256x768xbf16>
    %198 = vector.shape_cast %197 : vector<1x256x768xbf16> to vector<256x768xbf16>
    %199 = arith.truncf %196 : vector<16x256xf32> to vector<16x256xbf16>
    %cst_94 = arith.constant dense<0.000000e+00> : vector<16x768xf32>
    %200 = tpu.matmul %199, %198, %cst_94 {dimension_numbers = #tpu.dot_dimension_numbers<[1], [0], [0], [1], [0, 0, 1, 1], [], []>} : vector<16x256xbf16>, vector<256x768xbf16>, vector<16x768xf32> -> vector<16x768xf32>
    %201 = vector.extract_strided_slice %200 {offsets = [0, 0], sizes = [8, 128], strides = [1, 1]} : vector<16x768xf32> to vector<8x128xf32>
    %202 = vector.extract_strided_slice %200 {offsets = [0, 256], sizes = [8, 128], strides = [1, 1]} : vector<16x768xf32> to vector<8x128xf32>
    %203 = vector.extract_strided_slice %200 {offsets = [0, 512], sizes = [8, 128], strides = [1, 1]} : vector<16x768xf32> to vector<8x128xf32>
    %cst_95 = arith.constant dense<0.000000e+00> : vector<8x8xf32>
    %204 = tpu.matmul %201, %202, %cst_95 {dimension_numbers = #tpu.dot_dimension_numbers<[1], [1], [0], [0], [0, 0, 1, 0], [], []>} : vector<8x128xf32>, vector<8x128xf32>, vector<8x8xf32> -> vector<8x8xf32>
    %cst_96 = arith.constant 0.0883883461 : f32
    %205 = vector.broadcast %cst_96 : f32 to vector<8x8xf32>
    %206 = arith.mulf %204, %205 : vector<8x8xf32>
    %cst_97 = arith.constant dense<0xFF800000> : vector<8xf32>
    %207 = vector.multi_reduction <maximumf>, %206, %cst_97 [1] : vector<8x8xf32> to vector<8xf32>
    %208 = vector.shape_cast %207 : vector<8xf32> to vector<8x1xf32>
    %209 = vector.broadcast %208 : vector<8x1xf32> to vector<8x8xf32>
    %210 = arith.subf %206, %209 : vector<8x8xf32>
    %211 = math.exp %210 : vector<8x8xf32>
    %cst_98 = arith.constant dense<0.000000e+00> : vector<8xf32>
    %212 = vector.multi_reduction <add>, %211, %cst_98 [1] : vector<8x8xf32> to vector<8xf32>
    %213 = vector.shape_cast %212 : vector<8xf32> to vector<8x1xf32>
    %214 = tpu.reciprocal %213 {approx = true} : vector<8x1xf32> -> vector<8x1xf32>
    %215 = vector.broadcast %214 : vector<8x1xf32> to vector<8x8xf32>
    %216 = arith.mulf %211, %215 : vector<8x8xf32>
    %cst_99 = arith.constant dense<0.000000e+00> : vector<8x128xf32>
    %217 = tpu.matmul %216, %203, %cst_99 {dimension_numbers = #tpu.dot_dimension_numbers<[1], [0], [0], [1], [0, 0, 1, 1], [], []>} : vector<8x8xf32>, vector<8x128xf32>, vector<8x128xf32> -> vector<8x128xf32>
    %c0_100 = arith.constant 0 : index
    %c0_101 = arith.constant 0 : index
    %218 = vector.load %arg16[%c0_100, %c0_101] : memref<16x256xf32, #tpu.memory_space<vmem>>, vector<8x128xf32>
    tpu.vector_store %arg16[%c0_100, %c0_101], %217 {strides = array<i32>} : memref<16x256xf32, #tpu.memory_space<vmem>>, vector<8x128xf32>,
    %219 = vector.extract_strided_slice %200 {offsets = [0, 128], sizes = [8, 128], strides = [1, 1]} : vector<16x768xf32> to vector<8x128xf32>
    %220 = vector.extract_strided_slice %200 {offsets = [0, 384], sizes = [8, 128], strides = [1, 1]} : vector<16x768xf32> to vector<8x128xf32>
    %221 = vector.extract_strided_slice %200 {offsets = [0, 640], sizes = [8, 128], strides = [1, 1]} : vector<16x768xf32> to vector<8x128xf32>
    %cst_102 = arith.constant dense<0.000000e+00> : vector<8x8xf32>
    %222 = tpu.matmul %219, %220, %cst_102 {dimension_numbers = #tpu.dot_dimension_numbers<[1], [1], [0], [0], [0, 0, 1, 0], [], []>} : vector<8x128xf32>, vector<8x128xf32>, vector<8x8xf32> -> vector<8x8xf32>
    %cst_103 = arith.constant 0.0883883461 : f32
    %223 = vector.broadcast %cst_103 : f32 to vector<8x8xf32>
    %224 = arith.mulf %222, %223 : vector<8x8xf32>
    %cst_104 = arith.constant dense<0xFF800000> : vector<8xf32>
    %225 = vector.multi_reduction <maximumf>, %224, %cst_104 [1] : vector<8x8xf32> to vector<8xf32>
    %226 = vector.shape_cast %225 : vector<8xf32> to vector<8x1xf32>
    %227 = vector.broadcast %226 : vector<8x1xf32> to vector<8x8xf32>
    %228 = arith.subf %224, %227 : vector<8x8xf32>
    %229 = math.exp %228 : vector<8x8xf32>
    %cst_105 = arith.constant dense<0.000000e+00> : vector<8xf32>
    %230 = vector.multi_reduction <add>, %229, %cst_105 [1] : vector<8x8xf32> to vector<8xf32>
    %231 = vector.shape_cast %230 : vector<8xf32> to vector<8x1xf32>
    %232 = tpu.reciprocal %231 {approx = true} : vector<8x1xf32> -> vector<8x1xf32>
    %233 = vector.broadcast %232 : vector<8x1xf32> to vector<8x8xf32>
    %234 = arith.mulf %229, %233 : vector<8x8xf32>
    %cst_106 = arith.constant dense<0.000000e+00> : vector<8x128xf32>
    %235 = tpu.matmul %234, %221, %cst_106 {dimension_numbers = #tpu.dot_dimension_numbers<[1], [0], [0], [1], [0, 0, 1, 1], [], []>} : vector<8x8xf32>, vector<8x128xf32>, vector<8x128xf32> -> vector<8x128xf32>
    %c0_107 = arith.constant 0 : index
    %c128_108 = arith.constant 128 : index
    %236 = vector.load %arg16[%c0_107, %c128_108] : memref<16x256xf32, #tpu.memory_space<vmem>>, vector<8x128xf32>
    tpu.vector_store %arg16[%c0_107, %c128_108], %235 {strides = array<i32>} : memref<16x256xf32, #tpu.memory_space<vmem>>, vector<8x128xf32>,
    %237 = vector.extract_strided_slice %200 {offsets = [8, 0], sizes = [8, 128], strides = [1, 1]} : vector<16x768xf32> to vector<8x128xf32>
    %238 = vector.extract_strided_slice %200 {offsets = [8, 256], sizes = [8, 128], strides = [1, 1]} : vector<16x768xf32> to vector<8x128xf32>
    %239 = vector.extract_strided_slice %200 {offsets = [8, 512], sizes = [8, 128], strides = [1, 1]} : vector<16x768xf32> to vector<8x128xf32>
    %cst_109 = arith.constant dense<0.000000e+00> : vector<8x8xf32>
    %240 = tpu.matmul %237, %238, %cst_109 {dimension_numbers = #tpu.dot_dimension_numbers<[1], [1], [0], [0], [0, 0, 1, 0], [], []>} : vector<8x128xf32>, vector<8x128xf32>, vector<8x8xf32> -> vector<8x8xf32>
    %cst_110 = arith.constant 0.0883883461 : f32
    %241 = vector.broadcast %cst_110 : f32 to vector<8x8xf32>
    %242 = arith.mulf %240, %241 : vector<8x8xf32>
    %cst_111 = arith.constant dense<0xFF800000> : vector<8xf32>
    %243 = vector.multi_reduction <maximumf>, %242, %cst_111 [1] : vector<8x8xf32> to vector<8xf32>
    %244 = vector.shape_cast %243 : vector<8xf32> to vector<8x1xf32>
    %245 = vector.broadcast %244 : vector<8x1xf32> to vector<8x8xf32>
    %246 = arith.subf %242, %245 : vector<8x8xf32>
    %247 = math.exp %246 : vector<8x8xf32>
    %cst_112 = arith.constant dense<0.000000e+00> : vector<8xf32>
    %248 = vector.multi_reduction <add>, %247, %cst_112 [1] : vector<8x8xf32> to vector<8xf32>
    %249 = vector.shape_cast %248 : vector<8xf32> to vector<8x1xf32>
    %250 = tpu.reciprocal %249 {approx = true} : vector<8x1xf32> -> vector<8x1xf32>
    %251 = vector.broadcast %250 : vector<8x1xf32> to vector<8x8xf32>
    %252 = arith.mulf %247, %251 : vector<8x8xf32>
    %cst_113 = arith.constant dense<0.000000e+00> : vector<8x128xf32>
    %253 = tpu.matmul %252, %239, %cst_113 {dimension_numbers = #tpu.dot_dimension_numbers<[1], [0], [0], [1], [0, 0, 1, 1], [], []>} : vector<8x8xf32>, vector<8x128xf32>, vector<8x128xf32> -> vector<8x128xf32>
    %c8_114 = arith.constant 8 : index
    %c0_115 = arith.constant 0 : index
    %254 = vector.load %arg16[%c8_114, %c0_115] : memref<16x256xf32, #tpu.memory_space<vmem>>, vector<8x128xf32>
    tpu.vector_store %arg16[%c8_114, %c0_115], %253 {strides = array<i32>} : memref<16x256xf32, #tpu.memory_space<vmem>>, vector<8x128xf32>,
    %255 = vector.extract_strided_slice %200 {offsets = [8, 128], sizes = [8, 128], strides = [1, 1]} : vector<16x768xf32> to vector<8x128xf32>
    %256 = vector.extract_strided_slice %200 {offsets = [8, 384], sizes = [8, 128], strides = [1, 1]} : vector<16x768xf32> to vector<8x128xf32>
    %257 = vector.extract_strided_slice %200 {offsets = [8, 640], sizes = [8, 128], strides = [1, 1]} : vector<16x768xf32> to vector<8x128xf32>
    %cst_116 = arith.constant dense<0.000000e+00> : vector<8x8xf32>
    %258 = tpu.matmul %255, %256, %cst_116 {dimension_numbers = #tpu.dot_dimension_numbers<[1], [1], [0], [0], [0, 0, 1, 0], [], []>} : vector<8x128xf32>, vector<8x128xf32>, vector<8x8xf32> -> vector<8x8xf32>
    %cst_117 = arith.constant 0.0883883461 : f32
    %259 = vector.broadcast %cst_117 : f32 to vector<8x8xf32>
    %260 = arith.mulf %258, %259 : vector<8x8xf32>
    %cst_118 = arith.constant dense<0xFF800000> : vector<8xf32>
    %261 = vector.multi_reduction <maximumf>, %260, %cst_118 [1] : vector<8x8xf32> to vector<8xf32>
    %262 = vector.shape_cast %261 : vector<8xf32> to vector<8x1xf32>
    %263 = vector.broadcast %262 : vector<8x1xf32> to vector<8x8xf32>
    %264 = arith.subf %260, %263 : vector<8x8xf32>
    %265 = math.exp %264 : vector<8x8xf32>
    %cst_119 = arith.constant dense<0.000000e+00> : vector<8xf32>
    %266 = vector.multi_reduction <add>, %265, %cst_119 [1] : vector<8x8xf32> to vector<8xf32>
    %267 = vector.shape_cast %266 : vector<8xf32> to vector<8x1xf32>
    %268 = tpu.reciprocal %267 {approx = true} : vector<8x1xf32> -> vector<8x1xf32>
    %269 = vector.broadcast %268 : vector<8x1xf32> to vector<8x8xf32>
    %270 = arith.mulf %265, %269 : vector<8x8xf32>
    %cst_120 = arith.constant dense<0.000000e+00> : vector<8x128xf32>
    %271 = tpu.matmul %270, %257, %cst_120 {dimension_numbers = #tpu.dot_dimension_numbers<[1], [0], [0], [1], [0, 0, 1, 1], [], []>} : vector<8x8xf32>, vector<8x128xf32>, vector<8x128xf32> -> vector<8x128xf32>
    %c8_121 = arith.constant 8 : index
    %c128_122 = arith.constant 128 : index
    %272 = vector.load %arg16[%c8_121, %c128_122] : memref<16x256xf32, #tpu.memory_space<vmem>>, vector<8x128xf32>
    tpu.vector_store %arg16[%c8_121, %c128_122], %271 {strides = array<i32>} : memref<16x256xf32, #tpu.memory_space<vmem>>, vector<8x128xf32>,
    %c0_123 = arith.constant 0 : index
    %c0_124 = arith.constant 0 : index
    %273 = vector.load %arg16[%c0_123, %c0_124] : memref<16x256xf32, #tpu.memory_space<vmem>>, vector<16x256xf32>
    %c1_125 = arith.constant 1 : index
    %c0_126 = arith.constant 0 : index
    %c0_127 = arith.constant 0 : index
    %274 = vector.load %arg5[%c1_125, %c0_126, %c0_127] : memref<2x256x256xbf16, #tpu.memory_space<vmem>>, vector<1x256x256xbf16>
    %275 = vector.shape_cast %274 : vector<1x256x256xbf16> to vector<256x256xbf16>
    %276 = arith.truncf %273 : vector<16x256xf32> to vector<16x256xbf16>
    %cst_128 = arith.constant dense<0.000000e+00> : vector<16x256xf32>
    %277 = tpu.matmul %276, %275, %cst_128 {dimension_numbers = #tpu.dot_dimension_numbers<[1], [0], [0], [1], [0, 0, 1, 1], [], []>} : vector<16x256xbf16>, vector<256x256xbf16>, vector<16x256xf32> -> vector<16x256xf32>
    %c1_129 = arith.constant 1 : index
    %c0_130 = arith.constant 0 : index
    %c0_131 = arith.constant 0 : index
    %278 = vector.load %arg6[%c1_129, %c0_130, %c0_131] : memref<2x1x256xf32, #tpu.memory_space<vmem>>, vector<1x1x256xf32>
    %279 = vector.shape_cast %278 : vector<1x1x256xf32> to vector<1x256xf32>
    %280 = vector.broadcast %279 : vector<1x256xf32> to vector<16x256xf32>
    %281 = arith.addf %277, %280 : vector<16x256xf32>
    %282 = arith.addf %170, %281 : vector<16x256xf32>
    %c1_132 = arith.constant 1 : index
    %c0_133 = arith.constant 0 : index
    %c0_134 = arith.constant 0 : index
    %283 = vector.load %arg7[%c1_132, %c0_133, %c0_134] : memref<2x1x256xf32, #tpu.memory_space<vmem>>, vector<1x1x256xf32>
    %284 = vector.shape_cast %283 : vector<1x1x256xf32> to vector<1x256xf32>
    %c1_135 = arith.constant 1 : index
    %c0_136 = arith.constant 0 : index
    %c0_137 = arith.constant 0 : index
    %285 = vector.load %arg8[%c1_135, %c0_136, %c0_137] : memref<2x1x256xf32, #tpu.memory_space<vmem>>, vector<1x1x256xf32>
    %286 = vector.shape_cast %285 : vector<1x1x256xf32> to vector<1x256xf32>
    %cst_138 = arith.constant dense<0.000000e+00> : vector<16xf32>
    %287 = vector.multi_reduction <add>, %282, %cst_138 [1] : vector<16x256xf32> to vector<16xf32>
    %288 = vector.shape_cast %287 : vector<16xf32> to vector<16x1xf32>
    %cst_139 = arith.constant 2.560000e+02 : f32
    %289 = vector.broadcast %cst_139 : f32 to vector<16x1xf32>
    %290 = arith.divf %288, %289 : vector<16x1xf32>
    %291 = vector.broadcast %290 : vector<16x1xf32> to vector<16x256xf32>
    %292 = arith.subf %282, %291 : vector<16x256xf32>
    %293 = arith.mulf %292, %292 : vector<16x256xf32>
    %cst_140 = arith.constant dense<0.000000e+00> : vector<16xf32>
    %294 = vector.multi_reduction <add>, %293, %cst_140 [1] : vector<16x256xf32> to vector<16xf32>
    %295 = vector.shape_cast %294 : vector<16xf32> to vector<16x1xf32>
    %cst_141 = arith.constant 2.560000e+02 : f32
    %296 = vector.broadcast %cst_141 : f32 to vector<16x1xf32>
    %297 = arith.divf %295, %296 : vector<16x1xf32>
    %298 = vector.broadcast %290 : vector<16x1xf32> to vector<16x256xf32>
    %299 = arith.subf %282, %298 : vector<16x256xf32>
    %cst_142 = arith.constant 9.99999974E-6 : f32
    %300 = vector.broadcast %cst_142 : f32 to vector<16x1xf32>
    %301 = arith.addf %297, %300 : vector<16x1xf32>
    %302 = math.rsqrt %301 : vector<16x1xf32>
    %303 = vector.broadcast %302 : vector<16x1xf32> to vector<16x256xf32>
    %304 = arith.mulf %299, %303 : vector<16x256xf32>
    %305 = vector.broadcast %284 : vector<1x256xf32> to vector<16x256xf32>
    %306 = arith.mulf %304, %305 : vector<16x256xf32>
    %307 = vector.broadcast %286 : vector<1x256xf32> to vector<16x256xf32>
    %308 = arith.addf %306, %307 : vector<16x256xf32>
    %c1_143 = arith.constant 1 : index
    %c0_144 = arith.constant 0 : index
    %c0_145 = arith.constant 0 : index
    %309 = vector.load %arg9[%c1_143, %c0_144, %c0_145] : memref<2x256x1024xbf16, #tpu.memory_space<vmem>>, vector<1x256x1024xbf16>
    %310 = vector.shape_cast %309 : vector<1x256x1024xbf16> to vector<256x1024xbf16>
    %311 = arith.truncf %308 : vector<16x256xf32> to vector<16x256xbf16>
    %cst_146 = arith.constant dense<0.000000e+00> : vector<16x1024xf32>
    %312 = tpu.matmul %311, %310, %cst_146 {dimension_numbers = #tpu.dot_dimension_numbers<[1], [0], [0], [1], [0, 0, 1, 1], [], []>} : vector<16x256xbf16>, vector<256x1024xbf16>, vector<16x1024xf32> -> vector<16x1024xf32>
    %c1_147 = arith.constant 1 : index
    %c0_148 = arith.constant 0 : index
    %c0_149 = arith.constant 0 : index
    %313 = vector.load %arg10[%c1_147, %c0_148, %c0_149] : memref<2x1x1024xf32, #tpu.memory_space<vmem>>, vector<1x1x1024xf32>
    %314 = vector.shape_cast %313 : vector<1x1x1024xf32> to vector<1x1024xf32>
    %315 = vector.broadcast %314 : vector<1x1024xf32> to vector<16x1024xf32>
    %316 = arith.addf %312, %315 : vector<16x1024xf32>
    %cst_150 = arith.constant 5.000000e-01 : f32
    %317 = vector.broadcast %cst_150 : f32 to vector<16x1024xf32>
    %318 = arith.mulf %317, %316 : vector<16x1024xf32>
    %cst_151 = arith.constant 4.471500e-02 : f32
    %319 = vector.broadcast %cst_151 : f32 to vector<16x1024xf32>
    %320 = arith.mulf %319, %316 : vector<16x1024xf32>
    %321 = arith.mulf %320, %316 : vector<16x1024xf32>
    %322 = arith.mulf %321, %316 : vector<16x1024xf32>
    %323 = arith.addf %316, %322 : vector<16x1024xf32>
    %cst_152 = arith.constant 0.797884583 : f32
    %324 = vector.broadcast %cst_152 : f32 to vector<16x1024xf32>
    %325 = arith.mulf %324, %323 : vector<16x1024xf32>
    %326 = math.tanh %325 : vector<16x1024xf32>
    %cst_153 = arith.constant 1.000000e+00 : f32
    %327 = vector.broadcast %cst_153 : f32 to vector<16x1024xf32>
    %328 = arith.addf %327, %326 : vector<16x1024xf32>
    %329 = arith.mulf %318, %328 : vector<16x1024xf32>
    %c1_154 = arith.constant 1 : index
    %c0_155 = arith.constant 0 : index
    %c0_156 = arith.constant 0 : index
    %330 = vector.load %arg11[%c1_154, %c0_155, %c0_156] : memref<2x1024x256xbf16, #tpu.memory_space<vmem>>, vector<1x1024x256xbf16>
    %331 = vector.shape_cast %330 : vector<1x1024x256xbf16> to vector<1024x256xbf16>
    %332 = arith.truncf %329 : vector<16x1024xf32> to vector<16x1024xbf16>
    %cst_157 = arith.constant dense<0.000000e+00> : vector<16x256xf32>
    %333 = tpu.matmul %332, %331, %cst_157 {dimension_numbers = #tpu.dot_dimension_numbers<[1], [0], [0], [1], [0, 0, 1, 1], [], []>} : vector<16x1024xbf16>, vector<1024x256xbf16>, vector<16x256xf32> -> vector<16x256xf32>
    %334 = arith.addf %282, %333 : vector<16x256xf32>
    %c1_158 = arith.constant 1 : index
    %c0_159 = arith.constant 0 : index
    %c0_160 = arith.constant 0 : index
    %335 = vector.load %arg12[%c1_158, %c0_159, %c0_160] : memref<2x1x256xf32, #tpu.memory_space<vmem>>, vector<1x1x256xf32>
    %336 = vector.shape_cast %335 : vector<1x1x256xf32> to vector<1x256xf32>
    %337 = vector.broadcast %336 : vector<1x256xf32> to vector<16x256xf32>
    %338 = arith.addf %334, %337 : vector<16x256xf32>
    %c0_161 = arith.constant 0 : index
    %c0_162 = arith.constant 0 : index
    %339 = vector.load %arg13[%c0_161, %c0_162] : memref<1x256xf32, #tpu.memory_space<vmem>>, vector<1x256xf32>
    %c0_163 = arith.constant 0 : index
    %c0_164 = arith.constant 0 : index
    %340 = vector.load %arg14[%c0_163, %c0_164] : memref<1x256xf32, #tpu.memory_space<vmem>>, vector<1x256xf32>
    %cst_165 = arith.constant dense<0.000000e+00> : vector<16xf32>
    %341 = vector.multi_reduction <add>, %338, %cst_165 [1] : vector<16x256xf32> to vector<16xf32>
    %342 = vector.shape_cast %341 : vector<16xf32> to vector<16x1xf32>
    %cst_166 = arith.constant 2.560000e+02 : f32
    %343 = vector.broadcast %cst_166 : f32 to vector<16x1xf32>
    %344 = arith.divf %342, %343 : vector<16x1xf32>
    %345 = vector.broadcast %344 : vector<16x1xf32> to vector<16x256xf32>
    %346 = arith.subf %338, %345 : vector<16x256xf32>
    %347 = arith.mulf %346, %346 : vector<16x256xf32>
    %cst_167 = arith.constant dense<0.000000e+00> : vector<16xf32>
    %348 = vector.multi_reduction <add>, %347, %cst_167 [1] : vector<16x256xf32> to vector<16xf32>
    %349 = vector.shape_cast %348 : vector<16xf32> to vector<16x1xf32>
    %cst_168 = arith.constant 2.560000e+02 : f32
    %350 = vector.broadcast %cst_168 : f32 to vector<16x1xf32>
    %351 = arith.divf %349, %350 : vector<16x1xf32>
    %352 = vector.broadcast %344 : vector<16x1xf32> to vector<16x256xf32>
    %353 = arith.subf %338, %352 : vector<16x256xf32>
    %cst_169 = arith.constant 9.99999974E-6 : f32
    %354 = vector.broadcast %cst_169 : f32 to vector<16x1xf32>
    %355 = arith.addf %351, %354 : vector<16x1xf32>
    %356 = math.rsqrt %355 : vector<16x1xf32>
    %357 = vector.broadcast %356 : vector<16x1xf32> to vector<16x256xf32>
    %358 = arith.mulf %353, %357 : vector<16x256xf32>
    %359 = vector.broadcast %339 : vector<1x256xf32> to vector<16x256xf32>
    %360 = arith.mulf %358, %359 : vector<16x256xf32>
    %361 = vector.broadcast %340 : vector<1x256xf32> to vector<16x256xf32>
    %362 = arith.addf %360, %361 : vector<16x256xf32>
    %c0_170 = arith.constant 0 : index
    %c0_171 = arith.constant 0 : index
    %363 = vector.load %arg15[%c0_170, %c0_171] : memref<16x256xf32, #tpu.memory_space<vmem>>, vector<16x256xf32>
    tpu.vector_store %arg15[%c0_170, %c0_171], %362 {strides = array<i32>} : memref<16x256xf32, #tpu.memory_space<vmem>>, vector<16x256xf32>,
    return
  }
}

</mosaic_0001>

<llo_original>
// kernel: tpu_custom_call.1
$region0: #{tpu_custom_call.1}
  #allocation0 [shape = 'u32[]', space=smem, size = 0x4, offset = 0x4, fixed_abs, tag = 'smem constant byte address 0x4 - core index']
  #allocation1 [shape = 'u32[144,128]{1,0:T(1,128)}', space=vmem, size = 0x12000, scoped, tag = 'internal scratch']
  #allocation2 [shape = 'f32[16,256]{1,0:T(8,128)}', space=vmem, size = 0x4000, scoped, tag = 'scratch operand']
  %s0 = inlined_call_operand.hbm [shape: f32[16,256], index: 0, kind: input, shape index: {}]
  %s1 = inlined_call_operand.hbm [shape: f32[16,256], index: 1, kind: input, shape index: {}]
  %s2 = inlined_call_operand.vmem [shape: f32[2,1,256], index: 2, kind: input, shape index: {}]
  %s3 = inlined_call_operand.vmem [shape: f32[2,1,256], index: 3, kind: input, shape index: {}]
  %s4 = inlined_call_operand.hbm [shape: bf16[2,256,768], index: 4, kind: input, shape index: {}]
  %s5 = inlined_call_operand.hbm [shape: bf16[2,256,256], index: 5, kind: input, shape index: {}]
  %s6 = inlined_call_operand.vmem [shape: f32[2,1,256], index: 6, kind: input, shape index: {}]
  %s7 = inlined_call_operand.hbm [shape: f32[2,1,256], index: 7, kind: input, shape index: {}]
  %s8 = inlined_call_operand.hbm [shape: f32[2,1,256], index: 8, kind: input, shape index: {}]
  %s9 = inlined_call_operand.hbm [shape: bf16[2,256,1024], index: 9, kind: input, shape index: {}]
  %s10 = inlined_call_operand.vmem [shape: f32[2,1,1024], index: 10, kind: input, shape index: {}]
  %s11 = inlined_call_operand.hbm [shape: bf16[2,1024,256], index: 11, kind: input, shape index: {}]
  %s12 = inlined_call_operand.vmem [shape: f32[2,1,256], index: 12, kind: input, shape index: {}]
  %s13 = inlined_call_operand.vmem [shape: f32[1,256], index: 13, kind: input, shape index: {}]
  %s14 = inlined_call_operand.vmem [shape: f32[1,256], index: 14, kind: input, shape index: {}]
  %s15 = inlined_call_operand.hbm [shape: f32[16,256], index: 15, kind: output, shape index: {}]
  %s16 = sld [smem:[#allocation0]]
  $region102: #{tpu_custom_call.1} parent=0
    _
  %s18 = ssub.s32 1, %s16
  %s19 = scalar_select 0, %s18, %s16
  $region1: #{tpu_custom_call.1} parent=0
    #allocation3 [shape = 'u8[16384]{0}', space=vmem, size = 0x4000, scoped, tag = 'input window, operand 0, single buffered']
    #allocation4 [shape = 's32[1]{0}', space=sflag, size = 0x4, scoped, tag = 'scoped memory for tpu_custom_call.1']
    #allocation5 [shape = 's32[1]{0}', space=sflag, size = 0x4, scoped, tag = 'scoped memory for tpu_custom_call.1']
    #allocation6 [shape = 'u8[16384]{0}', space=vmem, size = 0x4000, scoped, tag = 'input window, operand 1, single buffered']
    #allocation7 [shape = 's32[1]{0}', space=sflag, size = 0x4, scoped, tag = 'scoped memory for tpu_custom_call.1']
    #allocation8 [shape = 'u8[786432]{0}', space=vmem, size = 0xc0000, scoped, tag = 'input window, operand 4, single buffered']
    #allocation9 [shape = 'u8[262144]{0}', space=vmem, size = 0x40000, scoped, tag = 'input window, operand 5, single buffered']
    #allocation10 [shape = 's32[1]{0}', space=sflag, size = 0x4, scoped, tag = 'scoped memory for tpu_custom_call.1']
    #allocation11 [shape = 'u8[2048]{0}', space=vmem, size = 0x800, scoped, tag = 'input window, operand 7, single buffered']
    #allocation12 [shape = 'u8[2048]{0}', space=vmem, size = 0x800, scoped, tag = 'input window, operand 8, single buffered']
    #allocation13 [shape = 's32[1]{0}', space=sflag, size = 0x4, scoped, tag = 'scoped memory for tpu_custom_call.1']
    #allocation14 [shape = 'u8[1048576]{0}', space=vmem, size = 0x100000, scoped, tag = 'input window, operand 9, single buffered']
    #allocation15 [shape = 'u8[1048576]{0}', space=vmem, size = 0x100000, scoped, tag = 'input window, operand 11, single buffered']
    #allocation16 [shape = 's32[1]{0}', space=sflag, size = 0x4, scoped, tag = 'scoped memory for tpu_custom_call.1']
    #allocation17 [shape = 'u8[16384]{0}', space=vmem, size = 0x4000, scoped, tag = 'output window, operand 0, single buffered']
    %20 = vsyncpa [#allocation4], 0
    %21 = vsyncpa [#allocation7], 0
    %22 = vsyncpa [#allocation10], 0
    %23 = vsyncpa [#allocation13], 0
    %24 = vsyncpa [#allocation16], 0
    %25 = vsyncpa [#allocation5], 0
    // Predicated region
    $region2: #{tpu_custom_call.1} parent=1 // pred_check
      _
    $region3: #{tpu_custom_call.1} parent=1 // pred_check_branch
      %27 = sbr.rel (0) target = $region5
    $region4: #{tpu_custom_call.1} parent=1 // pred_region
      %s29 = ssub.s32 512, 512
      %30 = vsyncadd [#allocation4], %s29
      %s31 = sshll.u32 [#allocation3], 4
      %s32 = int_to_ptr.vmem [resolvable:$true] %s31
      %37 = dma.hbm_to_vmem [thread:$0]  %s0, 512, %s32, [#allocation4], 256, 256, 16
    $region5: #{tpu_custom_call.1} parent=1 // pred_fallthru
      _
    // Predicated region
    $region6: #{tpu_custom_call.1} parent=1 // pred_check
      _
    $region7: #{tpu_custom_call.1} parent=1 // pred_check_branch
      %39 = sbr.rel (0) target = $region9
    $region8: #{tpu_custom_call.1} parent=1 // pred_region
      %s41 = ssub.s32 512, 512
      %42 = vsyncadd [#allocation7], %s41
      %s43 = sshll.u32 [#allocation6], 4
      %s44 = int_to_ptr.vmem [resolvable:$true] %s43
      %49 = dma.hbm_to_vmem [thread:$0]  %s1, 512, %s44, [#allocation7], 256, 256, 16
    $region9: #{tpu_custom_call.1} parent=1 // pred_fallthru
      _
    // Predicated region
    $region10: #{tpu_custom_call.1} parent=1 // pred_check
      _
    $region11: #{tpu_custom_call.1} parent=1 // pred_check_branch
      %51 = sbr.rel (0) target = $region13
    $region12: #{tpu_custom_call.1} parent=1 // pred_region
      _
    $region13: #{tpu_custom_call.1} parent=1 // pred_fallthru
      _
    // Predicated region
    $region14: #{tpu_custom_call.1} parent=1 // pred_check
      _
    $region15: #{tpu_custom_call.1} parent=1 // pred_check_branch
      %53 = sbr.rel (0) target = $region17
    $region16: #{tpu_custom_call.1} parent=1 // pred_region
      _
    $region17: #{tpu_custom_call.1} parent=1 // pred_fallthru
      _
    // Predicated region
    $region18: #{tpu_custom_call.1} parent=1 // pred_check
      _
    $region19: #{tpu_custom_call.1} parent=1 // pred_check_branch
      %55 = sbr.rel (0) target = $region21
    $region20: #{tpu_custom_call.1} parent=1 // pred_region
      %s57 = ssub.s32 24576, 24576
      %58 = vsyncadd [#allocation7], %s57
      %s59 = sshll.u32 [#allocation8], 4
      %s60 = int_to_ptr.vmem [resolvable:$true] %s59
      %65 = dma.hbm_to_vmem [thread:$0]  %s4, 24576, %s60, [#allocation7], 384, 384, 24
    $region21: #{tpu_custom_call.1} parent=1 // pred_fallthru
      _
    // Predicated region
    $region22: #{tpu_custom_call.1} parent=1 // pred_check
      _
    $region23: #{tpu_custom_call.1} parent=1 // pred_check_branch
      %67 = sbr.rel (0) target = $region25
    $region24: #{tpu_custom_call.1} parent=1 // pred_region
      %s69 = ssub.s32 8192, 8192
      %70 = vsyncadd [#allocation10], %s69
      %s71 = sshll.u32 [#allocation9], 4
      %s72 = int_to_ptr.vmem [resolvable:$true] %s71
      %77 = dma.hbm_to_vmem [thread:$0]  %s5, 8192, %s72, [#allocation10], 128, 128, 8
    $region25: #{tpu_custom_call.1} parent=1 // pred_fallthru
      _
    // Predicated region
    $region26: #{tpu_custom_call.1} parent=1 // pred_check
      _
    $region27: #{tpu_custom_call.1} parent=1 // pred_check_branch
      %79 = sbr.rel (0) target = $region29
    $region28: #{tpu_custom_call.1} parent=1 // pred_region
      _
    $region29: #{tpu_custom_call.1} parent=1 // pred_fallthru
      _
    // Predicated region
    $region30: #{tpu_custom_call.1} parent=1 // pred_check
      _
    $region31: #{tpu_custom_call.1} parent=1 // pred_check_branch
      %81 = sbr.rel (0) target = $region33
    $region32: #{tpu_custom_call.1} parent=1 // pred_region
      %s83 = ssub.s32 64, 64
      %84 = vsyncadd [#allocation10], %s83
      %s85 = sshll.u32 [#allocation11], 4
      %s86 = int_to_ptr.vmem [resolvable:$true] %s85
      %91 = dma.hbm_to_vmem [thread:$0]  %s7, 64, %s86, [#allocation10], 32, 32, 2
    $region33: #{tpu_custom_call.1} parent=1 // pred_fallthru
      _
    // Predicated region
    $region34: #{tpu_custom_call.1} parent=1 // pred_check
      _
    $region35: #{tpu_custom_call.1} parent=1 // pred_check_branch
      %93 = sbr.rel (0) target = $region37
    $region36: #{tpu_custom_call.1} parent=1 // pred_region
      %s95 = ssub.s32 64, 64
      %96 = vsyncadd [#allocation13], %s95
      %s97 = sshll.u32 [#allocation12], 4
      %s98 = int_to_ptr.vmem [resolvable:$true] %s97
      %103 = dma.hbm_to_vmem [thread:$0]  %s8, 64, %s98, [#allocation13], 32, 32, 2
    $region37: #{tpu_custom_call.1} parent=1 // pred_fallthru
      _
    // Predicated region
    $region38: #{tpu_custom_call.1} parent=1 // pred_check
      _
    $region39: #{tpu_custom_call.1} parent=1 // pred_check_branch
      %105 = sbr.rel (0) target = $region41
    $region40: #{tpu_custom_call.1} parent=1 // pred_region
      %s107 = ssub.s32 32768, 32768
      %108 = vsyncadd [#allocation13], %s107
      %s109 = sshll.u32 [#allocation14], 4
      %s110 = int_to_ptr.vmem [resolvable:$true] %s109
      %115 = dma.hbm_to_vmem [thread:$0]  %s9, 32768, %s110, [#allocation13], 512, 512, 32
    $region41: #{tpu_custom_call.1} parent=1 // pred_fallthru
      _
    // Predicated region
    $region42: #{tpu_custom_call.1} parent=1 // pred_check
      _
    $region43: #{tpu_custom_call.1} parent=1 // pred_check_branch
      %117 = sbr.rel (0) target = $region45
    $region44: #{tpu_custom_call.1} parent=1 // pred_region
      _
    $region45: #{tpu_custom_call.1} parent=1 // pred_fallthru
      _
    // Predicated region
    $region46: #{tpu_custom_call.1} parent=1 // pred_check
      _
    $region47: #{tpu_custom_call.1} parent=1 // pred_check_branch
      %119 = sbr.rel (0) target = $region49
    $region48: #{tpu_custom_call.1} parent=1 // pred_region
      %s121 = ssub.s32 32768, 32768
      %122 = vsyncadd [#allocation16], %s121
      %s123 = sshll.u32 [#allocation15], 4
      %s124 = int_to_ptr.vmem [resolvable:$true] %s123
      %129 = dma.hbm_to_vmem [thread:$0]  %s11, 32768, %s124, [#allocation16], 128, 128, 8
    $region49: #{tpu_custom_call.1} parent=1 // pred_fallthru
      _
    // Predicated region
    $region50: #{tpu_custom_call.1} parent=1 // pred_check
      _
    $region51: #{tpu_custom_call.1} parent=1 // pred_check_branch
      %131 = sbr.rel (0) target = $region53
    $region52: #{tpu_custom_call.1} parent=1 // pred_region
      _
    $region53: #{tpu_custom_call.1} parent=1 // pred_fallthru
      _
    // Predicated region
    $region54: #{tpu_custom_call.1} parent=1 // pred_check
      _
    $region55: #{tpu_custom_call.1} parent=1 // pred_check_branch
      %133 = sbr.rel (0) target = $region57
    $region56: #{tpu_custom_call.1} parent=1 // pred_region
      _
    $region57: #{tpu_custom_call.1} parent=1 // pred_fallthru
      _
    // Predicated region
    $region58: #{tpu_custom_call.1} parent=1 // pred_check
      _
    $region59: #{tpu_custom_call.1} parent=1 // pred_check_branch
      %135 = sbr.rel (0) target = $region61
    $region60: #{tpu_custom_call.1} parent=1 // pred_region
      _
    $region61: #{tpu_custom_call.1} parent=1 // pred_fallthru
      _
    // Predicated region
    $region62: #{tpu_custom_call.1} parent=1 // pred_check
      _
    $region63: #{tpu_custom_call.1} parent=1 // pred_check_branch
      %137 = sbr.rel (0) target = $region65
    $region64: #{tpu_custom_call.1} parent=1 // pred_region
      %138 = dma.done [#allocation4], 512
    $region65: #{tpu_custom_call.1} parent=1 // pred_fallthru
      _
    // Predicated region
    $region66: #{tpu_custom_call.1} parent=1 // pred_check
      _
    $region67: #{tpu_custom_call.1} parent=1 // pred_check_branch
      %140 = sbr.rel (0) target = $region69
    $region68: #{tpu_custom_call.1} parent=1 // pred_region
      %141 = dma.done [#allocation7], 512
    $region69: #{tpu_custom_call.1} parent=1 // pred_fallthru
      _
    // Predicated region
    $region70: #{tpu_custom_call.1} parent=1 // pred_check
      _
    $region71: #{tpu_custom_call.1} parent=1 // pred_check_branch
      %143 = sbr.rel (0) target = $region73
    $region72: #{tpu_custom_call.1} parent=1 // pred_region
      %144 = dma.done [#allocation7], 24576
    $region73: #{tpu_custom_call.1} parent=1 // pred_fallthru
      _
    // Predicated region
    $region74: #{tpu_custom_call.1} parent=1 // pred_check
      _
    $region75: #{tpu_custom_call.1} parent=1 // pred_check_branch
      %146 = sbr.rel (0) target = $region77
    $region76: #{tpu_custom_call.1} parent=1 // pred_region
      %147 = dma.done [#allocation10], 8192
    $region77: #{tpu_custom_call.1} parent=1 // pred_fallthru
      _
    // Predicated region
    $region78: #{tpu_custom_call.1} parent=1 // pred_check
      _
    $region79: #{tpu_custom_call.1} parent=1 // pred_check_branch
      %149 = sbr.rel (0) target = $region81
    $region80: #{tpu_custom_call.1} parent=1 // pred_region
      %150 = dma.done [#allocation10], 64
    $region81: #{tpu_custom_call.1} parent=1 // pred_fallthru
      _
    // Predicated region
    $region82: #{tpu_custom_call.1} parent=1 // pred_check
      _
    $region83: #{tpu_custom_call.1} parent=1 // pred_check_branch
      %152 = sbr.rel (0) target = $region85
    $region84: #{tpu_custom_call.1} parent=1 // pred_region
      %153 = dma.done [#allocation13], 64
    $region85: #{tpu_custom_call.1} parent=1 // pred_fallthru
      _
    // Predicated region
    $region86: #{tpu_custom_call.1} parent=1 // pred_check
      _
    $region87: #{tpu_custom_call.1} parent=1 // pred_check_branch
      %155 = sbr.rel (0) target = $region89
    $region88: #{tpu_custom_call.1} parent=1 // pred_region
      %156 = dma.done [#allocation13], 32768
    $region89: #{tpu_custom_call.1} parent=1 // pred_fallthru
      _
    // Predicated region
    $region90: #{tpu_custom_call.1} parent=1 // pred_check
      _
    $region91: #{tpu_custom_call.1} parent=1 // pred_check_branch
      %158 = sbr.rel (0) target = $region93
    $region92: #{tpu_custom_call.1} parent=1 // pred_region
      %159 = dma.done [#allocation16], 32768
    $region93: #{tpu_custom_call.1} parent=1 // pred_fallthru
      _
    %v160 = vld [vmem:[#allocation3] sm:$0xff]
    %v161 = vld [vmem:[#allocation3 + $0x8] sm:$0xff]
    %v162 = vld [vmem:[#allocation3 + $0x10] sm:$0xff]
    %v163 = vld [vmem:[#allocation3 + $0x18] sm:$0xff]
    %v164 = vld [vmem:[#allocation6] sm:$0xff]
    %v165 = vld [vmem:[#allocation6 + $0x8] sm:$0xff]
    %v166 = vld [vmem:[#allocation6 + $0x10] sm:$0xff]
    %v167 = vld [vmem:[#allocation6 + $0x18] sm:$0xff]
    %v168 = vadd.f32 %v160, %v164
    %v169 = vadd.f32 %v161, %v165
    %v170 = vadd.f32 %v162, %v166
    %v171 = vadd.f32 %v163, %v167
    %v172 = vld [vmem:[%s2] sm:$0x3]
    %v173 = vld [vmem:[%s3] sm:$0x3]
    %v174 = vadd.f32 %v168, %v169
    %175 = vadd.xlane.f32.xlu0 %v174
    %v176 = vpop.xlane.xlu0 %175
    %v177 = vadd.f32 %v170, %v171
    %178 = vadd.xlane.f32.xlu0 %v177
    %v179 = vpop.xlane.xlu0 %178
    %v180 = vrcp.pop 256.0
    %v181 = vmul.f32 %v176, %v180
    %v182 = vmul.f32 %v179, %v180
    %v183 = vsub.f32 %v168, %v181
    %v184 = vsub.f32 %v169, %v181
    %v185 = vsub.f32 %v170, %v182
    %v186 = vsub.f32 %v171, %v182
    %v187 = vmul.f32 %v183, %v183
    %v188 = vmul.f32 %v184, %v184
    %v189 = vmul.f32 %v185, %v185
    %v190 = vmul.f32 %v186, %v186
    %v191 = vadd.f32 %v187, %v188
    %192 = vadd.xlane.f32.xlu0 %v191
    %v193 = vpop.xlane.xlu0 %192
    %v194 = vadd.f32 %v189, %v190
    %195 = vadd.xlane.f32.xlu0 %v194
    %v196 = vpop.xlane.xlu0 %195
    %v197 = vmul.f32 %v193, %v180
    %v198 = vmul.f32 %v196, %v180
    %v199 = vadd.f32 %v197, 1e-05
    %v200 = vadd.f32 %v198, 1e-05
    %v201 = vrsqrt.pop %v199
    %v202 = vrsqrt.pop %v200
    %v203 = vmul.f32 %v183, %v201
    %v204 = vmul.f32 %v184, %v201
    %v205 = vmul.f32 %v185, %v202
    %v206 = vmul.f32 %v186, %v202
    %v208 = vlaneseq
    %v209 = vshrl.u32 %v208, 7
    %v210 = vsub.s32 0, %v209
    %v211 = vrot.slane %v172, %v210
    %v212 = vlaneseq
    %v213 = vshrl.u32 %v212, 7
    %v214 = vsub.s32 1, %v213
    %v215 = vrot.slane %v172, %v214
    %v218 = vmul.f32 %v203, %v211
    %v219 = vmul.f32 %v204, %v215
    %v220 = vmul.f32 %v205, %v211
    %v221 = vmul.f32 %v206, %v215
    %v223 = vlaneseq
    %v224 = vshrl.u32 %v223, 7
    %v225 = vsub.s32 0, %v224
    %v226 = vrot.slane %v173, %v225
    %v227 = vlaneseq
    %v228 = vshrl.u32 %v227, 7
    %v229 = vsub.s32 1, %v228
    %v230 = vrot.slane %v173, %v229
    %v233 = vadd.f32 %v218, %v226
    %v234 = vadd.f32 %v219, %v230
    %v235 = vadd.f32 %v220, %v226
    %v236 = vadd.f32 %v221, %v230
    %v237 = vld [vmem:[#allocation8] sm:$0xff]
    %v238 = vld [vmem:[#allocation8 + $0x8] sm:$0xff]
    %v239 = vld [vmem:[#allocation8 + $0x10] sm:$0xff]
    %v240 = vld [vmem:[#allocation8 + $0x18] sm:$0xff]
    %v241 = vld [vmem:[#allocation8 + $0x20] sm:$0xff]
    %v242 = vld [vmem:[#allocation8 + $0x28] sm:$0xff]
    %v243 = vld [vmem:[#allocation8 + $0x30] sm:$0xff]
    %v244 = vld [vmem:[#allocation8 + $0x38] sm:$0xff]
    %v245 = vld [vmem:[#allocation8 + $0x40] sm:$0xff]
    %v246 = vld [vmem:[#allocation8 + $0x48] sm:$0xff]
    %v247 = vld [vmem:[#allocation8 + $0x50] sm:$0xff]
    %v248 = vld [vmem:[#allocation8 + $0x58] sm:$0xff]
    %v249 = vld [vmem:[#allocation8 + $0x60] sm:$0xff]
    %v250 = vld [vmem:[#allocation8 + $0x68] sm:$0xff]
    %v251 = vld [vmem:[#allocation8 + $0x70] sm:$0xff]
    %v252 = vld [vmem:[#allocation8 + $0x78] sm:$0xff]
    %v253 = vld [vmem:[#allocation8 + $0x80] sm:$0xff]
    %v254 = vld [vmem:[#allocation8 + $0x88] sm:$0xff]
    %v255 = vld [vmem:[#allocation8 + $0x90] sm:$0xff]
    %v256 = vld [vmem:[#allocation8 + $0x98] sm:$0xff]
    %v257 = vld [vmem:[#allocation8 + $0xa0] sm:$0xff]
    %v258 = vld [vmem:[#allocation8 + $0xa8] sm:$0xff]
    %v259 = vld [vmem:[#allocation8 + $0xb0] sm:$0xff]
    %v260 = vld [vmem:[#allocation8 + $0xb8] sm:$0xff]
    %v261 = vld [vmem:[#allocation8 + $0xc0] sm:$0xff]
    %v262 = vld [vmem:[#allocation8 + $0xc8] sm:$0xff]
    %v263 = vld [vmem:[#allocation8 + $0xd0] sm:$0xff]
    %v264 = vld [vmem:[#allocation8 + $0xd8] sm:$0xff]
    %v265 = vld [vmem:[#allocation8 + $0xe0] sm:$0xff]
    %v266 = vld [vmem:[#allocation8 + $0xe8] sm:$0xff]
    %v267 = vld [vmem:[#allocation8 + $0xf0] sm:$0xff]
    %v268 = vld [vmem:[#allocation8 + $0xf8] sm:$0xff]
    %v269 = vld [vmem:[#allocation8 + $0x100] sm:$0xff]
    %v270 = vld [vmem:[#allocation8 + $0x108] sm:$0xff]
    %v271 = vld [vmem:[#allocation8 + $0x110] sm:$0xff]
    %v272 = vld [vmem:[#allocation8 + $0x118] sm:$0xff]
    %v273 = vld [vmem:[#allocation8 + $0x120] sm:$0xff]
    %v274 = vld [vmem:[#allocation8 + $0x128] sm:$0xff]
    %v275 = vld [vmem:[#allocation8 + $0x130] sm:$0xff]
    %v276 = vld [vmem:[#allocation8 + $0x138] sm:$0xff]
    %v277 = vld [vmem:[#allocation8 + $0x140] sm:$0xff]
    %v278 = vld [vmem:[#allocation8 + $0x148] sm:$0xff]
    %v279 = vld [vmem:[#allocation8 + $0x150] sm:$0xff]
    %v280 = vld [vmem:[#allocation8 + $0x158] sm:$0xff]
    %v281 = vld [vmem:[#allocation8 + $0x160] sm:$0xff]
    %v282 = vld [vmem:[#allocation8 + $0x168] sm:$0xff]
    %v283 = vld [vmem:[#allocation8 + $0x170] sm:$0xff]
    %v284 = vld [vmem:[#allocation8 + $0x178] sm:$0xff]
    %v285 = vld [vmem:[#allocation8 + $0x180] sm:$0xff]
    %v286 = vld [vmem:[#allocation8 + $0x188] sm:$0xff]
    %v287 = vld [vmem:[#allocation8 + $0x190] sm:$0xff]
    %v288 = vld [vmem:[#allocation8 + $0x198] sm:$0xff]
    %v289 = vld [vmem:[#allocation8 + $0x1a0] sm:$0xff]
    %v290 = vld [vmem:[#allocation8 + $0x1a8] sm:$0xff]
    %v291 = vld [vmem:[#allocation8 + $0x1b0] sm:$0xff]
    %v292 = vld [vmem:[#allocation8 + $0x1b8] sm:$0xff]
    %v293 = vld [vmem:[#allocation8 + $0x1c0] sm:$0xff]
    %v294 = vld [vmem:[#allocation8 + $0x1c8] sm:$0xff]
    %v295 = vld [vmem:[#allocation8 + $0x1d0] sm:$0xff]
    %v296 = vld [vmem:[#allocation8 + $0x1d8] sm:$0xff]
    %v297 = vld [vmem:[#allocation8 + $0x1e0] sm:$0xff]
    %v298 = vld [vmem:[#allocation8 + $0x1e8] sm:$0xff]
    %v299 = vld [vmem:[#allocation8 + $0x1f0] sm:$0xff]
    %v300 = vld [vmem:[#allocation8 + $0x1f8] sm:$0xff]
    %v301 = vld [vmem:[#allocation8 + $0x200] sm:$0xff]
    %v302 = vld [vmem:[#allocation8 + $0x208] sm:$0xff]
    %v303 = vld [vmem:[#allocation8 + $0x210] sm:$0xff]
    %v304 = vld [vmem:[#allocation8 + $0x218] sm:$0xff]
    %v305 = vld [vmem:[#allocation8 + $0x220] sm:$0xff]
    %v306 = vld [vmem:[#allocation8 + $0x228] sm:$0xff]
    %v307 = vld [vmem:[#allocation8 + $0x230] sm:$0xff]
    %v308 = vld [vmem:[#allocation8 + $0x238] sm:$0xff]
    %v309 = vld [vmem:[#allocation8 + $0x240] sm:$0xff]
    %v310 = vld [vmem:[#allocation8 + $0x248] sm:$0xff]
    %v311 = vld [vmem:[#allocation8 + $0x250] sm:$0xff]
    %v312 = vld [vmem:[#allocation8 + $0x258] sm:$0xff]
    %v313 = vld [vmem:[#allocation8 + $0x260] sm:$0xff]
    %v314 = vld [vmem:[#allocation8 + $0x268] sm:$0xff]
    %v315 = vld [vmem:[#allocation8 + $0x270] sm:$0xff]
    %v316 = vld [vmem:[#allocation8 + $0x278] sm:$0xff]
    %v317 = vld [vmem:[#allocation8 + $0x280] sm:$0xff]
    %v318 = vld [vmem:[#allocation8 + $0x288] sm:$0xff]
    %v319 = vld [vmem:[#allocation8 + $0x290] sm:$0xff]
    %v320 = vld [vmem:[#allocation8 + $0x298] sm:$0xff]
    %v321 = vld [vmem:[#allocation8 + $0x2a0] sm:$0xff]
    %v322 = vld [vmem:[#allocation8 + $0x2a8] sm:$0xff]
    %v323 = vld [vmem:[#allocation8 + $0x2b0] sm:$0xff]
    %v324 = vld [vmem:[#allocation8 + $0x2b8] sm:$0xff]
    %v325 = vld [vmem:[#allocation8 + $0x2c0] sm:$0xff]
    %v326 = vld [vmem:[#allocation8 + $0x2c8] sm:$0xff]
    %v327 = vld [vmem:[#allocation8 + $0x2d0] sm:$0xff]
    %v328 = vld [vmem:[#allocation8 + $0x2d8] sm:$0xff]
    %v329 = vld [vmem:[#allocation8 + $0x2e0] sm:$0xff]
    %v330 = vld [vmem:[#allocation8 + $0x2e8] sm:$0xff]
    %v331 = vld [vmem:[#allocation8 + $0x2f0] sm:$0xff]
    %v332 = vld [vmem:[#allocation8 + $0x2f8] sm:$0xff]
    %v333 = vpack.c.bf16 %v235, %v233
    %v334 = vpack.c.bf16 %v236, %v234
    %v431 = vunpack.c.l.b16 %v237
    %v432 = vunpack.c.h.b16 %v237
    %v433 = vunpack.c.l.b16 %v238
    %v434 = vunpack.c.h.b16 %v238
    %v435 = vunpack.c.l.b16 %v239
    %v436 = vunpack.c.h.b16 %v239
    %v437 = vunpack.c.l.b16 %v240
    %v438 = vunpack.c.h.b16 %v240
    %v439 = vunpack.c.l.b16 %v241
    %v440 = vunpack.c.h.b16 %v241
    %v441 = vunpack.c.l.b16 %v242
    %v442 = vunpack.c.h.b16 %v242
    %v443 = vunpack.c.l.b16 %v243
    %v444 = vunpack.c.h.b16 %v243
    %v445 = vunpack.c.l.b16 %v244
    %v446 = vunpack.c.h.b16 %v244
    %v447 = vunpack.c.l.b16 %v245
    %v448 = vunpack.c.h.b16 %v245
    %v449 = vunpack.c.l.b16 %v246
    %v450 = vunpack.c.h.b16 %v246
    %v451 = vunpack.c.l.b16 %v247
    %v452 = vunpack.c.h.b16 %v247
    %v453 = vunpack.c.l.b16 %v248
    %v454 = vunpack.c.h.b16 %v248
    %v455 = vunpack.c.l.b16 %v249
    %v456 = vunpack.c.h.b16 %v249
    %v457 = vunpack.c.l.b16 %v250
    %v458 = vunpack.c.h.b16 %v250
    %v459 = vunpack.c.l.b16 %v251
    %v460 = vunpack.c.h.b16 %v251
    %v461 = vunpack.c.l.b16 %v252
    %v462 = vunpack.c.h.b16 %v252
    %v463 = vunpack.c.l.b16 %v253
    %v464 = vunpack.c.h.b16 %v253
    %v465 = vunpack.c.l.b16 %v254
    %v466 = vunpack.c.h.b16 %v254
    %v467 = vunpack.c.l.b16 %v255
    %v468 = vunpack.c.h.b16 %v255
    %v469 = vunpack.c.l.b16 %v256
    %v470 = vunpack.c.h.b16 %v256
    %v471 = vunpack.c.l.b16 %v257
    %v472 = vunpack.c.h.b16 %v257
    %v473 = vunpack.c.l.b16 %v258
    %v474 = vunpack.c.h.b16 %v258
    %v475 = vunpack.c.l.b16 %v259
    %v476 = vunpack.c.h.b16 %v259
    %v477 = vunpack.c.l.b16 %v260
    %v478 = vunpack.c.h.b16 %v260
    %v479 = vunpack.c.l.b16 %v261
    %v480 = vunpack.c.h.b16 %v261
    %v481 = vunpack.c.l.b16 %v262
    %v482 = vunpack.c.h.b16 %v262
    %v483 = vunpack.c.l.b16 %v263
    %v484 = vunpack.c.h.b16 %v263
    %v485 = vunpack.c.l.b16 %v264
    %v486 = vunpack.c.h.b16 %v264
    %v487 = vunpack.c.l.b16 %v265
    %v488 = vunpack.c.h.b16 %v265
    %v489 = vunpack.c.l.b16 %v266
    %v490 = vunpack.c.h.b16 %v266
    %v491 = vunpack.c.l.b16 %v267
    %v492 = vunpack.c.h.b16 %v267
    %v493 = vunpack.c.l.b16 %v268
    %v494 = vunpack.c.h.b16 %v268
    %v495 = vunpack.c.l.b16 %v269
    %v496 = vunpack.c.h.b16 %v269
    %v497 = vunpack.c.l.b16 %v270
    %v498 = vunpack.c.h.b16 %v270
    %v499 = vunpack.c.l.b16 %v271
    %v500 = vunpack.c.h.b16 %v271
    %v501 = vunpack.c.l.b16 %v272
    %v502 = vunpack.c.h.b16 %v272
    %v503 = vunpack.c.l.b16 %v273
    %v504 = vunpack.c.h.b16 %v273
    %v505 = vunpack.c.l.b16 %v274
    %v506 = vunpack.c.h.b16 %v274
    %v507 = vunpack.c.l.b16 %v275
    %v508 = vunpack.c.h.b16 %v275
    %v509 = vunpack.c.l.b16 %v276
    %v510 = vunpack.c.h.b16 %v276
    %v511 = vunpack.c.l.b16 %v277
    %v512 = vunpack.c.h.b16 %v277
    %v513 = vunpack.c.l.b16 %v278
    %v514 = vunpack.c.h.b16 %v278
    %v515 = vunpack.c.l.b16 %v279
    %v516 = vunpack.c.h.b16 %v279
    %v517 = vunpack.c.l.b16 %v280
    %v518 = vunpack.c.h.b16 %v280
    %v519 = vunpack.c.l.b16 %v281
    %v520 = vunpack.c.h.b16 %v281
    %v521 = vunpack.c.l.b16 %v282
    %v522 = vunpack.c.h.b16 %v282
    %v523 = vunpack.c.l.b16 %v283
    %v524 = vunpack.c.h.b16 %v283
    %v525 = vunpack.c.l.b16 %v284
    %v526 = vunpack.c.h.b16 %v284
    %v527 = vunpack.c.l.b16 %v285
    %v528 = vunpack.c.h.b16 %v285
    %v529 = vunpack.c.l.b16 %v286
    %v530 = vunpack.c.h.b16 %v286
    %v531 = vunpack.c.l.b16 %v287
    %v532 = vunpack.c.h.b16 %v287
    %v533 = vunpack.c.l.b16 %v288
    %v534 = vunpack.c.h.b16 %v288
    %v535 = vunpack.c.l.b16 %v289
    %v536 = vunpack.c.h.b16 %v289
    %v537 = vunpack.c.l.b16 %v290
    %v538 = vunpack.c.h.b16 %v290
    %v539 = vunpack.c.l.b16 %v291
    %v540 = vunpack.c.h.b16 %v291
    %v541 = vunpack.c.l.b16 %v292
    %v542 = vunpack.c.h.b16 %v292
    %v543 = vunpack.c.l.b16 %v293
    %v544 = vunpack.c.h.b16 %v293
    %v545 = vunpack.c.l.b16 %v294
    %v546 = vunpack.c.h.b16 %v294
    %v547 = vunpack.c.l.b16 %v295
    %v548 = vunpack.c.h.b16 %v295
    %v549 = vunpack.c.l.b16 %v296
    %v550 = vunpack.c.h.b16 %v296
    %v551 = vunpack.c.l.b16 %v297
    %v552 = vunpack.c.h.b16 %v297
    %v553 = vunpack.c.l.b16 %v298
    %v554 = vunpack.c.h.b16 %v298
    %v555 = vunpack.c.l.b16 %v299
    %v556 = vunpack.c.h.b16 %v299
    %v557 = vunpack.c.l.b16 %v300
    %v558 = vunpack.c.h.b16 %v300
    %v559 = vunpack.c.l.b16 %v301
    %v560 = vunpack.c.h.b16 %v301
    %v561 = vunpack.c.l.b16 %v302
    %v562 = vunpack.c.h.b16 %v302
    %v563 = vunpack.c.l.b16 %v303
    %v564 = vunpack.c.h.b16 %v303
    %v565 = vunpack.c.l.b16 %v304
    %v566 = vunpack.c.h.b16 %v304
    %v567 = vunpack.c.l.b16 %v305
    %v568 = vunpack.c.h.b16 %v305
    %v569 = vunpack.c.l.b16 %v306
    %v570 = vunpack.c.h.b16 %v306
    %v571 = vunpack.c.l.b16 %v307
    %v572 = vunpack.c.h.b16 %v307
    %v573 = vunpack.c.l.b16 %v308
    %v574 = vunpack.c.h.b16 %v308
    %v575 = vunpack.c.l.b16 %v309
    %v576 = vunpack.c.h.b16 %v309
    %v577 = vunpack.c.l.b16 %v310
    %v578 = vunpack.c.h.b16 %v310
    %v579 = vunpack.c.l.b16 %v311
    %v580 = vunpack.c.h.b16 %v311
    %v581 = vunpack.c.l.b16 %v312
    %v582 = vunpack.c.h.b16 %v312
    %v583 = vunpack.c.l.b16 %v313
    %v584 = vunpack.c.h.b16 %v313
    %v585 = vunpack.c.l.b16 %v314
    %v586 = vunpack.c.h.b16 %v314
    %v587 = vunpack.c.l.b16 %v315
    %v588 = vunpack.c.h.b16 %v315
    %v589 = vunpack.c.l.b16 %v316
    %v590 = vunpack.c.h.b16 %v316
    %v591 = vunpack.c.l.b16 %v317
    %v592 = vunpack.c.h.b16 %v317
    %v593 = vunpack.c.l.b16 %v318
    %v594 = vunpack.c.h.b16 %v318
    %v595 = vunpack.c.l.b16 %v319
    %v596 = vunpack.c.h.b16 %v319
    %v597 = vunpack.c.l.b16 %v320
    %v598 = vunpack.c.h.b16 %v320
    %v599 = vunpack.c.l.b16 %v321
    %v600 = vunpack.c.h.b16 %v321
    %v601 = vunpack.c.l.b16 %v322
    %v602 = vunpack.c.h.b16 %v322
    %v603 = vunpack.c.l.b16 %v323
    %v604 = vunpack.c.h.b16 %v323
    %v605 = vunpack.c.l.b16 %v324
    %v606 = vunpack.c.h.b16 %v324
    %v607 = vunpack.c.l.b16 %v325
    %v608 = vunpack.c.h.b16 %v325
    %v609 = vunpack.c.l.b16 %v326
    %v610 = vunpack.c.h.b16 %v326
    %v611 = vunpack.c.l.b16 %v327
    %v612 = vunpack.c.h.b16 %v327
    %v613 = vunpack.c.l.b16 %v328
    %v614 = vunpack.c.h.b16 %v328
    %v615 = vunpack.c.l.b16 %v329
    %v616 = vunpack.c.h.b16 %v329
    %v617 = vunpack.c.l.b16 %v330
    %v618 = vunpack.c.h.b16 %v330
    %v619 = vunpack.c.l.b16 %v331
    %v620 = vunpack.c.h.b16 %v331
    %v621 = vunpack.c.l.b16 %v332
    %v622 = vunpack.c.h.b16 %v332
    %v623 = vpack.c.b16 %v437, %v431
    %v624 = vpack.c.b16 %v438, %v432
    %v625 = vpack.c.b16 %v439, %v433
    %v626 = vpack.c.b16 %v440, %v434
    %v627 = vpack.c.b16 %v441, %v435
    %v628 = vpack.c.b16 %v442, %v436
    %v629 = vpack.c.b16 %v449, %v443
    %v630 = vpack.c.b16 %v450, %v444
    %v631 = vpack.c.b16 %v451, %v445
    %v632 = vpack.c.b16 %v452, %v446
    %v633 = vpack.c.b16 %v453, %v447
    %v634 = vpack.c.b16 %v454, %v448
    %v635 = vpack.c.b16 %v461, %v455
    %v636 = vpack.c.b16 %v462, %v456
    %v637 = vpack.c.b16 %v463, %v457
    %v638 = vpack.c.b16 %v464, %v458
    %v639 = vpack.c.b16 %v465, %v459
    %v640 = vpack.c.b16 %v466, %v460
    %v641 = vpack.c.b16 %v473, %v467
    %v642 = vpack.c.b16 %v474, %v468
    %v643 = vpack.c.b16 %v475, %v469
    %v644 = vpack.c.b16 %v476, %v470
    %v645 = vpack.c.b16 %v477, %v471
    %v646 = vpack.c.b16 %v478, %v472
    %v647 = vpack.c.b16 %v485, %v479
    %v648 = vpack.c.b16 %v486, %v480
    %v649 = vpack.c.b16 %v487, %v481
    %v650 = vpack.c.b16 %v488, %v482
    %v651 = vpack.c.b16 %v489, %v483
    %v652 = vpack.c.b16 %v490, %v484
    %v653 = vpack.c.b16 %v497, %v491
    %v654 = vpack.c.b16 %v498, %v492
    %v655 = vpack.c.b16 %v499, %v493
    %v656 = vpack.c.b16 %v500, %v494
    %v657 = vpack.c.b16 %v501, %v495
    %v658 = vpack.c.b16 %v502, %v496
    %v659 = vpack.c.b16 %v509, %v503
    %v660 = vpack.c.b16 %v510, %v504
    %v661 = vpack.c.b16 %v511, %v505
    %v662 = vpack.c.b16 %v512, %v506
    %v663 = vpack.c.b16 %v513, %v507
    %v664 = vpack.c.b16 %v514, %v508
    %v665 = vpack.c.b16 %v521, %v515
    %v666 = vpack.c.b16 %v522, %v516
    %v667 = vpack.c.b16 %v523, %v517
    %v668 = vpack.c.b16 %v524, %v518
    %v669 = vpack.c.b16 %v525, %v519
    %v670 = vpack.c.b16 %v526, %v520
    %v671 = vpack.c.b16 %v533, %v527
    %v672 = vpack.c.b16 %v534, %v528
    %v673 = vpack.c.b16 %v535, %v529
    %v674 = vpack.c.b16 %v536, %v530
    %v675 = vpack.c.b16 %v537, %v531
    %v676 = vpack.c.b16 %v538, %v532
    %v677 = vpack.c.b16 %v545, %v539
    %v678 = vpack.c.b16 %v546, %v540
    %v679 = vpack.c.b16 %v547, %v541
    %v680 = vpack.c.b16 %v548, %v542
    %v681 = vpack.c.b16 %v549, %v543
    %v682 = vpack.c.b16 %v550, %v544
    %v683 = vpack.c.b16 %v557, %v551
    %v684 = vpack.c.b16 %v558, %v552
    %v685 = vpack.c.b16 %v559, %v553
    %v686 = vpack.c.b16 %v560, %v554
    %v687 = vpack.c.b16 %v561, %v555
    %v688 = vpack.c.b16 %v562, %v556
    %v689 = vpack.c.b16 %v569, %v563
    %v690 = vpack.c.b16 %v570, %v564
    %v691 = vpack.c.b16 %v571, %v565
    %v692 = vpack.c.b16 %v572, %v566
    %v693 = vpack.c.b16 %v573, %v567
    %v694 = vpack.c.b16 %v574, %v568
    %v695 = vpack.c.b16 %v581, %v575
    %v696 = vpack.c.b16 %v582, %v576
    %v697 = vpack.c.b16 %v583, %v577
    %v698 = vpack.c.b16 %v584, %v578
    %v699 = vpack.c.b16 %v585, %v579
    %v700 = vpack.c.b16 %v586, %v580
    %v701 = vpack.c.b16 %v593, %v587
    %v702 = vpack.c.b16 %v594, %v588
    %v703 = vpack.c.b16 %v595, %v589
    %v704 = vpack.c.b16 %v596, %v590
    %v705 = vpack.c.b16 %v597, %v591
    %v706 = vpack.c.b16 %v598, %v592
    %v707 = vpack.c.b16 %v605, %v599
    %v708 = vpack.c.b16 %v606, %v600
    %v709 = vpack.c.b16 %v607, %v601
    %v710 = vpack.c.b16 %v608, %v602
    %v711 = vpack.c.b16 %v609, %v603
    %v712 = vpack.c.b16 %v610, %v604
    %v713 = vpack.c.b16 %v617, %v611
    %v714 = vpack.c.b16 %v618, %v612
    %v715 = vpack.c.b16 %v619, %v613
    %v716 = vpack.c.b16 %v620, %v614
    %v717 = vpack.c.b16 %v621, %v615
    %v718 = vpack.c.b16 %v622, %v616
    %815 = vmatprep.subr.bf16.mxu0 %v624
    %816 = vmatpush1.bf16.msra.mxu0 %v623
    %817 = vmatprep.subr.bf16.mxu0 %v630
    %818 = vmatpush1.bf16.msra.mxu0 %v629
    %819 = vmatprep.subr.bf16.mxu0 %v636
    %820 = vmatpush1.bf16.msra.mxu0 %v635
    %821 = vmatprep.subr.bf16.mxu0 %v642
    %822 = vmatpush1.bf16.msra.mxu0 %v641
    %823 = vmatprep.subr.bf16.mxu0 %v648
    %824 = vmatpush1.bf16.msra.mxu0 %v647
    %825 = vmatprep.subr.bf16.mxu0 %v654
    %826 = vmatpush1.bf16.msra.mxu0 %v653
    %827 = vmatprep.subr.bf16.mxu0 %v660
    %828 = vmatpush1.bf16.msra.mxu0 %v659
    %829 = vmatprep.subr.bf16.mxu0 %v666
    %830 = vmatpush1.bf16.msra.mxu0 %v665
    %831 = vmatprep.subr.bf16.mxu0 %v672
    %832 = vmatpush1.bf16.msra.mxu0 %v671
    %833 = vmatprep.subr.bf16.mxu0 %v678
    %834 = vmatpush1.bf16.msra.mxu0 %v677
    %835 = vmatprep.subr.bf16.mxu0 %v684
    %836 = vmatpush1.bf16.msra.mxu0 %v683
    %837 = vmatprep.subr.bf16.mxu0 %v690
    %838 = vmatpush1.bf16.msra.mxu0 %v689
    %839 = vmatprep.subr.bf16.mxu0 %v696
    %840 = vmatpush1.bf16.msra.mxu0 %v695
    %841 = vmatprep.subr.bf16.mxu0 %v702
    %842 = vmatpush1.bf16.msra.mxu0 %v701
    %843 = vmatprep.subr.bf16.mxu0 %v708
    %844 = vmatpush1.bf16.msra.mxu0 %v707
    %845 = vmatprep.subr.bf16.mxu0 %v714
    %846 = vmatpush1.bf16.msra.mxu0 %v713
    %847 = vmatprep.mubr.bf16.mxu0 %v334
    %848 = vmatmul.mubr.bf16.gmra.mrb[0].mxu0 %v333
    %v849 = vpop.f32.mrb[0].mxu0
    %v850 = vadd.f32 0.0, %v849
    %v851 = vpop.f32.mrb[0].mxu0
    %v852 = vadd.f32 0.0, %v851
    %v853 = vpop.f32.mrb[0].mxu0
    %v854 = vadd.f32 0.0, %v853
    %v855 = vpop.f32.mrb[0].mxu0
    %v856 = vadd.f32 0.0, %v855
    %857 = vdwg.mxu0
    %858 = vmatprep.subr.bf16.mxu0 %v626
    %859 = vmatpush1.bf16.msra.mxu0 %v625
    %860 = vmatprep.subr.bf16.mxu0 %v632
    %861 = vmatpush1.bf16.msra.mxu0 %v631
    %862 = vmatprep.subr.bf16.mxu0 %v638
    %863 = vmatpush1.bf16.msra.mxu0 %v637
    %864 = vmatprep.subr.bf16.mxu0 %v644
    %865 = vmatpush1.bf16.msra.mxu0 %v643
    %866 = vmatprep.subr.bf16.mxu0 %v650
    %867 = vmatpush1.bf16.msra.mxu0 %v649
    %868 = vmatprep.subr.bf16.mxu0 %v656
    %869 = vmatpush1.bf16.msra.mxu0 %v655
    %870 = vmatprep.subr.bf16.mxu0 %v662
    %871 = vmatpush1.bf16.msra.mxu0 %v661
    %872 = vmatprep.subr.bf16.mxu0 %v668
    %873 = vmatpush1.bf16.msra.mxu0 %v667
    %874 = vmatprep.subr.bf16.mxu0 %v674
    %875 = vmatpush1.bf16.msra.mxu0 %v673
    %876 = vmatprep.subr.bf16.mxu0 %v680
    %877 = vmatpush1.bf16.msra.mxu0 %v679
    %878 = vmatprep.subr.bf16.mxu0 %v686
    %879 = vmatpush1.bf16.msra.mxu0 %v685
    %880 = vmatprep.subr.bf16.mxu0 %v692
    %881 = vmatpush1.bf16.msra.mxu0 %v691
    %882 = vmatprep.subr.bf16.mxu0 %v698
    %883 = vmatpush1.bf16.msra.mxu0 %v697
    %884 = vmatprep.subr.bf16.mxu0 %v704
    %885 = vmatpush1.bf16.msra.mxu0 %v703
    %886 = vmatprep.subr.bf16.mxu0 %v710
    %887 = vmatpush1.bf16.msra.mxu0 %v709
    %888 = vmatprep.subr.bf16.mxu0 %v716
    %889 = vmatpush1.bf16.msra.mxu0 %v715
    %890 = vmatprep.mubr.bf16.mxu0 %v334
    %891 = vmatmul.mubr.bf16.gmra.mrb[0].mxu0 %v333
    %v892 = vpop.f32.mrb[0].mxu0
    %v893 = vadd.f32 0.0, %v892
    %v894 = vpop.f32.mrb[0].mxu0
    %v895 = vadd.f32 0.0, %v894
    %v896 = vpop.f32.mrb[0].mxu0
    %v897 = vadd.f32 0.0, %v896
    %v898 = vpop.f32.mrb[0].mxu0
    %v899 = vadd.f32 0.0, %v898
    %900 = vdwg.mxu0
    %901 = vmatprep.subr.bf16.mxu0 %v628
    %902 = vmatpush1.bf16.msra.mxu0 %v627
    %903 = vmatprep.subr.bf16.mxu0 %v634
    %904 = vmatpush1.bf16.msra.mxu0 %v633
    %905 = vmatprep.subr.bf16.mxu0 %v640
    %906 = vmatpush1.bf16.msra.mxu0 %v639
    %907 = vmatprep.subr.bf16.mxu0 %v646
    %908 = vmatpush1.bf16.msra.mxu0 %v645
    %909 = vmatprep.subr.bf16.mxu0 %v652
    %910 = vmatpush1.bf16.msra.mxu0 %v651
    %911 = vmatprep.subr.bf16.mxu0 %v658
    %912 = vmatpush1.bf16.msra.mxu0 %v657
    %913 = vmatprep.subr.bf16.mxu0 %v664
    %914 = vmatpush1.bf16.msra.mxu0 %v663
    %915 = vmatprep.subr.bf16.mxu0 %v670
    %916 = vmatpush1.bf16.msra.mxu0 %v669
    %917 = vmatprep.subr.bf16.mxu0 %v676
    %918 = vmatpush1.bf16.msra.mxu0 %v675
    %919 = vmatprep.subr.bf16.mxu0 %v682
    %920 = vmatpush1.bf16.msra.mxu0 %v681
    %921 = vmatprep.subr.bf16.mxu0 %v688
    %922 = vmatpush1.bf16.msra.mxu0 %v687
    %923 = vmatprep.subr.bf16.mxu0 %v694
    %924 = vmatpush1.bf16.msra.mxu0 %v693
    %925 = vmatprep.subr.bf16.mxu0 %v700
    %926 = vmatpush1.bf16.msra.mxu0 %v699
    %927 = vmatprep.subr.bf16.mxu0 %v706
    %928 = vmatpush1.bf16.msra.mxu0 %v705
    %929 = vmatprep.subr.bf16.mxu0 %v712
    %930 = vmatpush1.bf16.msra.mxu0 %v711
    %931 = vmatprep.subr.bf16.mxu0 %v718
    %932 = vmatpush1.bf16.msra.mxu0 %v717
    %933 = vmatprep.mubr.bf16.mxu0 %v334
    %934 = vmatmul.mubr.bf16.gmra.mrb[0].mxu0 %v333
    %v935 = vpop.f32.mrb[0].mxu0
    %v936 = vadd.f32 0.0, %v935
    %v937 = vpop.f32.mrb[0].mxu0
    %v938 = vadd.f32 0.0, %v937
    %v939 = vpop.f32.mrb[0].mxu0
    %v940 = vadd.f32 0.0, %v939
    %v941 = vpop.f32.mrb[0].mxu0
    %v942 = vadd.f32 0.0, %v941
    %943 = vdwg.mxu0
    %944 = vmatprep.subr.mxu0 0.0
    %945 = vmatpush1.xpose.msra.mxu0 %v893
    %946 = vmatprep.subr.mxu0 0.0
    %947 = vmatpush1.xpose.msra.mxu0 0.0
    %948 = vmatprep.subr.mxu0 0.0
    %949 = vmatpush1.xpose.msra.mxu0 0.0
    %950 = vmatprep.subr.mxu0 0.0
    %951 = vmatpush1.xpose.msra.mxu0 0.0
    %952 = vmatprep.subr.mxu0 0.0
    %953 = vmatpush1.xpose.msra.mxu0 0.0
    %954 = vmatprep.subr.mxu0 0.0
    %955 = vmatpush1.xpose.msra.mxu0 0.0
    %956 = vmatprep.subr.mxu0 0.0
    %957 = vmatpush1.xpose.msra.mxu0 0.0
    %958 = vmatprep.subr.mxu0 0.0
    %959 = vmatpush1.xpose.msra.mxu0 0.0
    %960 = vmatprep.subr.mxu0 0.0
    %961 = vmatpush1.xpose.msra.mxu0 0.0
    %962 = vmatprep.subr.mxu0 0.0
    %963 = vmatpush1.xpose.msra.mxu0 0.0
    %964 = vmatprep.subr.mxu0 0.0
    %965 = vmatpush1.xpose.msra.mxu0 0.0
    %966 = vmatprep.subr.mxu0 0.0
    %967 = vmatpush1.xpose.msra.mxu0 0.0
    %968 = vmatprep.subr.mxu0 0.0
    %969 = vmatpush1.xpose.msra.mxu0 0.0
    %970 = vmatprep.subr.mxu0 0.0
    %971 = vmatpush1.xpose.msra.mxu0 0.0
    %972 = vmatprep.subr.mxu0 0.0
    %973 = vmatpush1.xpose.msra.mxu0 0.0
    %974 = vmatprep.subr.mxu0 0.0
    %975 = vmatpush1.xpose.msra.mxu0 0.0
    %976 = vmatprep.subr.mxu0 0.0
    %977 = vmatpush1.xpose.msra.mxu0 0.0
    %978 = vmatprep.subr.mxu0 0.0
    %979 = vmatpush1.xpose.msra.mxu0 0.0
    %980 = vmatprep.subr.mxu0 0.0
    %981 = vmatpush1.xpose.msra.mxu0 0.0
    %982 = vmatprep.subr.mxu0 0.0
    %983 = vmatpush1.xpose.msra.mxu0 0.0
    %984 = vmatprep.subr.mxu0 0.0
    %985 = vmatpush1.xpose.msra.mxu0 0.0
    %986 = vmatprep.subr.mxu0 0.0
    %987 = vmatpush1.xpose.msra.mxu0 0.0
    %988 = vmatprep.subr.mxu0 0.0
    %989 = vmatpush1.xpose.msra.mxu0 0.0
    %990 = vmatprep.subr.mxu0 0.0
    %991 = vmatpush1.xpose.msra.mxu0 0.0
    %992 = vmatprep.subr.mxu0 0.0
    %993 = vmatpush1.xpose.msra.mxu0 0.0
    %994 = vmatprep.subr.mxu0 0.0
    %995 = vmatpush1.xpose.msra.mxu0 0.0
    %996 = vmatprep.subr.mxu0 0.0
    %997 = vmatpush1.xpose.msra.mxu0 0.0
    %998 = vmatprep.subr.mxu0 0.0
    %999 = vmatpush1.xpose.msra.mxu0 0.0
    %1000 = vmatprep.subr.mxu0 0.0
    %1001 = vmatpush1.xpose.msra.mxu0 0.0
    %1002 = vmatprep.subr.mxu0 0.0
    %1003 = vmatpush1.xpose.msra.mxu0 0.0
    %1004 = vmatprep.subr.mxu0 0.0
    %1005 = vmatpush1.xpose.msra.mxu0 0.0
    %1006 = vmatprep.subr.mxu0 0.0
    %1007 = vmatpush1.xpose.msra.mxu0 0.0
    %1008 = vmatprep.mubr.f32.mxu0 0.0
    %1009 = vmatmul.mubr.f32.gmra.mrb[0].mxu0 %v850
    %v1010 = vpop.f32.mrb[0].mxu0
    %v1011 = vadd.f32 0.0, %v1010
    %v1012 = vpop.f32.mrb[0].mxu0
    %1013 = vdwg.mxu0
    %v1014 = vmul.f32 %v1011, 0.088388346
    %vm1015 = vcmask 64512
    %v1016 = vsel %vm1015, %v1014, -inf
    %1017 = vmax.xlane.f32.xlu0 %v1016
    %v1018 = vpop.xlane.xlu0 %1017
    %v1019 = vsub.f32 %v1014, %v1018
    %v1020 = vmul.f32 %v1019, 1.442695
    %v1021 = vpow.pop %v1020
    %v1022 = vsel %vm1015, %v1021, 0.0
    %1023 = vadd.xlane.f32.xlu0 %v1022
    %v1024 = vpop.xlane.xlu0 %1023
    %v1025 = vrcp.pop %v1024
    %v1026 = vmul.f32 %v1021, %v1025
    %v1028 = vsel %vm1015, %v1026, 0
    %1030 = vmatprep.subr.mxu0 0.0
    %1031 = vmatpush1.msra.mxu0 %v936
    %1032 = vmatprep.subr.mxu0 0.0
    %1033 = vmatpush1.msra.mxu0 0.0
    %1034 = vmatprep.subr.mxu0 0.0
    %1035 = vmatpush1.msra.mxu0 0.0
    %1036 = vmatprep.subr.mxu0 0.0
    %1037 = vmatpush1.msra.mxu0 0.0
    %1038 = vmatprep.subr.mxu0 0.0
    %1039 = vmatpush1.msra.mxu0 0.0
    %1040 = vmatprep.subr.mxu0 0.0
    %1041 = vmatpush1.msra.mxu0 0.0
    %1042 = vmatprep.subr.mxu0 0.0
    %1043 = vmatpush1.msra.mxu0 0.0
    %1044 = vmatprep.subr.mxu0 0.0
    %1045 = vmatpush1.msra.mxu0 0.0
    %1046 = vmatprep.subr.mxu0 0.0
    %1047 = vmatpush1.msra.mxu0 0.0
    %1048 = vmatprep.subr.mxu0 0.0
    %1049 = vmatpush1.msra.mxu0 0.0
    %1050 = vmatprep.subr.mxu0 0.0
    %1051 = vmatpush1.msra.mxu0 0.0
    %1052 = vmatprep.subr.mxu0 0.0
    %1053 = vmatpush1.msra.mxu0 0.0
    %1054 = vmatprep.subr.mxu0 0.0
    %1055 = vmatpush1.msra.mxu0 0.0
    %1056 = vmatprep.subr.mxu0 0.0
    %1057 = vmatpush1.msra.mxu0 0.0
    %1058 = vmatprep.subr.mxu0 0.0
    %1059 = vmatpush1.msra.mxu0 0.0
    %1060 = vmatprep.subr.mxu0 0.0
    %1061 = vmatpush1.msra.mxu0 0.0
    %1062 = vmatprep.subr.mxu0 0.0
    %1063 = vmatpush1.msra.mxu0 0.0
    %1064 = vmatprep.subr.mxu0 0.0
    %1065 = vmatpush1.msra.mxu0 0.0
    %1066 = vmatprep.subr.mxu0 0.0
    %1067 = vmatpush1.msra.mxu0 0.0
    %1068 = vmatprep.subr.mxu0 0.0
    %1069 = vmatpush1.msra.mxu0 0.0
    %1070 = vmatprep.subr.mxu0 0.0
    %1071 = vmatpush1.msra.mxu0 0.0
    %1072 = vmatprep.subr.mxu0 0.0
    %1073 = vmatpush1.msra.mxu0 0.0
    %1074 = vmatprep.subr.mxu0 0.0
    %1075 = vmatpush1.msra.mxu0 0.0
    %1076 = vmatprep.subr.mxu0 0.0
    %1077 = vmatpush1.msra.mxu0 0.0
    %1078 = vmatprep.subr.mxu0 0.0
    %1079 = vmatpush1.msra.mxu0 0.0
    %1080 = vmatprep.subr.mxu0 0.0
    %1081 = vmatpush1.msra.mxu0 0.0
    %1082 = vmatprep.subr.mxu0 0.0
    %1083 = vmatpush1.msra.mxu0 0.0
    %1084 = vmatprep.subr.mxu0 0.0
    %1085 = vmatpush1.msra.mxu0 0.0
    %1086 = vmatprep.subr.mxu0 0.0
    %1087 = vmatpush1.msra.mxu0 0.0
    %1088 = vmatprep.subr.mxu0 0.0
    %1089 = vmatpush1.msra.mxu0 0.0
    %1090 = vmatprep.subr.mxu0 0.0
    %1091 = vmatpush1.msra.mxu0 0.0
    %1092 = vmatprep.subr.mxu0 0.0
    %1093 = vmatpush1.msra.mxu0 0.0
    %1094 = vmatprep.mubr.f32.mxu0 0.0
    %1095 = vmatmul.mubr.f32.gmra.mrb[0].mxu0 %v1028
    %v1096 = vpop.f32.mrb[0].mxu0
    %v1097 = vadd.f32 0.0, %v1096
    %v1098 = vpop.f32.mrb[0].mxu0
    %1099 = vdwg.mxu0
    %1100 = vst [vmem:[#allocation2] sm:$0xff] %v1097
    %1101 = vmatprep.subr.mxu0 0.0
    %1102 = vmatpush1.xpose.msra.mxu0 %v895
    %1103 = vmatprep.subr.mxu0 0.0
    %1104 = vmatpush1.xpose.msra.mxu0 0.0
    %1105 = vmatprep.subr.mxu0 0.0
    %1106 = vmatpush1.xpose.msra.mxu0 0.0
    %1107 = vmatprep.subr.mxu0 0.0
    %1108 = vmatpush1.xpose.msra.mxu0 0.0
    %1109 = vmatprep.subr.mxu0 0.0
    %1110 = vmatpush1.xpose.msra.mxu0 0.0
    %1111 = vmatprep.subr.mxu0 0.0
    %1112 = vmatpush1.xpose.msra.mxu0 0.0
    %1113 = vmatprep.subr.mxu0 0.0
    %1114 = vmatpush1.xpose.msra.mxu0 0.0
    %1115 = vmatprep.subr.mxu0 0.0
    %1116 = vmatpush1.xpose.msra.mxu0 0.0
    %1117 = vmatprep.subr.mxu0 0.0
    %1118 = vmatpush1.xpose.msra.mxu0 0.0
    %1119 = vmatprep.subr.mxu0 0.0
    %1120 = vmatpush1.xpose.msra.mxu0 0.0
    %1121 = vmatprep.subr.mxu0 0.0
    %1122 = vmatpush1.xpose.msra.mxu0 0.0
    %1123 = vmatprep.subr.mxu0 0.0
    %1124 = vmatpush1.xpose.msra.mxu0 0.0
    %1125 = vmatprep.subr.mxu0 0.0
    %1126 = vmatpush1.xpose.msra.mxu0 0.0
    %1127 = vmatprep.subr.mxu0 0.0
    %1128 = vmatpush1.xpose.msra.mxu0 0.0
    %1129 = vmatprep.subr.mxu0 0.0
    %1130 = vmatpush1.xpose.msra.mxu0 0.0
    %1131 = vmatprep.subr.mxu0 0.0
    %1132 = vmatpush1.xpose.msra.mxu0 0.0
    %1133 = vmatprep.subr.mxu0 0.0
    %1134 = vmatpush1.xpose.msra.mxu0 0.0
    %1135 = vmatprep.subr.mxu0 0.0
    %1136 = vmatpush1.xpose.msra.mxu0 0.0
    %1137 = vmatprep.subr.mxu0 0.0
    %1138 = vmatpush1.xpose.msra.mxu0 0.0
    %1139 = vmatprep.subr.mxu0 0.0
    %1140 = vmatpush1.xpose.msra.mxu0 0.0
    %1141 = vmatprep.subr.mxu0 0.0
    %1142 = vmatpush1.xpose.msra.mxu0 0.0
    %1143 = vmatprep.subr.mxu0 0.0
    %1144 = vmatpush1.xpose.msra.mxu0 0.0
    %1145 = vmatprep.subr.mxu0 0.0
    %1146 = vmatpush1.xpose.msra.mxu0 0.0
    %1147 = vmatprep.subr.mxu0 0.0
    %1148 = vmatpush1.xpose.msra.mxu0 0.0
    %1149 = vmatprep.subr.mxu0 0.0
    %1150 = vmatpush1.xpose.msra.mxu0 0.0
    %1151 = vmatprep.subr.mxu0 0.0
    %1152 = vmatpush1.xpose.msra.mxu0 0.0
    %1153 = vmatprep.subr.mxu0 0.0
    %1154 = vmatpush1.xpose.msra.mxu0 0.0
    %1155 = vmatprep.subr.mxu0 0.0
    %1156 = vmatpush1.xpose.msra.mxu0 0.0
    %1157 = vmatprep.subr.mxu0 0.0
    %1158 = vmatpush1.xpose.msra.mxu0 0.0
    %1159 = vmatprep.subr.mxu0 0.0
    %1160 = vmatpush1.xpose.msra.mxu0 0.0
    %1161 = vmatprep.subr.mxu0 0.0
    %1162 = vmatpush1.xpose.msra.mxu0 0.0
    %1163 = vmatprep.subr.mxu0 0.0
    %1164 = vmatpush1.xpose.msra.mxu0 0.0
    %1165 = vmatprep.mubr.f32.mxu0 0.0
    %1166 = vmatmul.mubr.f32.gmra.mrb[0].mxu0 %v852
    %v1167 = vpop.f32.mrb[0].mxu0
    %v1168 = vadd.f32 0.0, %v1167
    %v1169 = vpop.f32.mrb[0].mxu0
    %1170 = vdwg.mxu0
    %v1171 = vmul.f32 %v1168, 0.088388346
    %v1172 = vsel %vm1015, %v1171, -inf
    %1173 = vmax.xlane.f32.xlu0 %v1172
    %v1174 = vpop.xlane.xlu0 %1173
    %v1175 = vsub.f32 %v1171, %v1174
    %v1176 = vmul.f32 %v1175, 1.442695
    %v1177 = vpow.pop %v1176
    %v1178 = vsel %vm1015, %v1177, 0.0
    %1179 = vadd.xlane.f32.xlu0 %v1178
    %v1180 = vpop.xlane.xlu0 %1179
    %v1181 = vrcp.pop %v1180
    %v1182 = vmul.f32 %v1177, %v1181
    %v1184 = vsel %vm1015, %v1182, 0
    %1186 = vmatprep.subr.mxu0 0.0
    %1187 = vmatpush1.msra.mxu0 %v938
    %1188 = vmatprep.subr.mxu0 0.0
    %1189 = vmatpush1.msra.mxu0 0.0
    %1190 = vmatprep.subr.mxu0 0.0
    %1191 = vmatpush1.msra.mxu0 0.0
    %1192 = vmatprep.subr.mxu0 0.0
    %1193 = vmatpush1.msra.mxu0 0.0
    %1194 = vmatprep.subr.mxu0 0.0
    %1195 = vmatpush1.msra.mxu0 0.0
    %1196 = vmatprep.subr.mxu0 0.0
    %1197 = vmatpush1.msra.mxu0 0.0
    %1198 = vmatprep.subr.mxu0 0.0
    %1199 = vmatpush1.msra.mxu0 0.0
    %1200 = vmatprep.subr.mxu0 0.0
    %1201 = vmatpush1.msra.mxu0 0.0
    %1202 = vmatprep.subr.mxu0 0.0
    %1203 = vmatpush1.msra.mxu0 0.0
    %1204 = vmatprep.subr.mxu0 0.0
    %1205 = vmatpush1.msra.mxu0 0.0
    %1206 = vmatprep.subr.mxu0 0.0
    %1207 = vmatpush1.msra.mxu0 0.0
    %1208 = vmatprep.subr.mxu0 0.0
    %1209 = vmatpush1.msra.mxu0 0.0
    %1210 = vmatprep.subr.mxu0 0.0
    %1211 = vmatpush1.msra.mxu0 0.0
    %1212 = vmatprep.subr.mxu0 0.0
    %1213 = vmatpush1.msra.mxu0 0.0
    %1214 = vmatprep.subr.mxu0 0.0
    %1215 = vmatpush1.msra.mxu0 0.0
    %1216 = vmatprep.subr.mxu0 0.0
    %1217 = vmatpush1.msra.mxu0 0.0
    %1218 = vmatprep.subr.mxu0 0.0
    %1219 = vmatpush1.msra.mxu0 0.0
    %1220 = vmatprep.subr.mxu0 0.0
    %1221 = vmatpush1.msra.mxu0 0.0
    %1222 = vmatprep.subr.mxu0 0.0
    %1223 = vmatpush1.msra.mxu0 0.0
    %1224 = vmatprep.subr.mxu0 0.0
    %1225 = vmatpush1.msra.mxu0 0.0
    %1226 = vmatprep.subr.mxu0 0.0
    %1227 = vmatpush1.msra.mxu0 0.0
    %1228 = vmatprep.subr.mxu0 0.0
    %1229 = vmatpush1.msra.mxu0 0.0
    %1230 = vmatprep.subr.mxu0 0.0
    %1231 = vmatpush1.msra.mxu0 0.0
    %1232 = vmatprep.subr.mxu0 0.0
    %1233 = vmatpush1.msra.mxu0 0.0
    %1234 = vmatprep.subr.mxu0 0.0
    %1235 = vmatpush1.msra.mxu0 0.0
    %1236 = vmatprep.subr.mxu0 0.0
    %1237 = vmatpush1.msra.mxu0 0.0
    %1238 = vmatprep.subr.mxu0 0.0
    %1239 = vmatpush1.msra.mxu0 0.0
    %1240 = vmatprep.subr.mxu0 0.0
    %1241 = vmatpush1.msra.mxu0 0.0
    %1242 = vmatprep.subr.mxu0 0.0
    %1243 = vmatpush1.msra.mxu0 0.0
    %1244 = vmatprep.subr.mxu0 0.0
    %1245 = vmatpush1.msra.mxu0 0.0
    %1246 = vmatprep.subr.mxu0 0.0
    %1247 = vmatpush1.msra.mxu0 0.0
    %1248 = vmatprep.subr.mxu0 0.0
    %1249 = vmatpush1.msra.mxu0 0.0
    %1250 = vmatprep.mubr.f32.mxu0 0.0
    %1251 = vmatmul.mubr.f32.gmra.mrb[0].mxu0 %v1184
    %v1252 = vpop.f32.mrb[0].mxu0
    %v1253 = vadd.f32 0.0, %v1252
    %v1254 = vpop.f32.mrb[0].mxu0
    %1255 = vdwg.mxu0
    %1256 = vst [vmem:[#allocation2 + $0x8] sm:$0xff] %v1253
    %1257 = vmatprep.subr.mxu0 0.0
    %1258 = vmatpush1.xpose.msra.mxu0 %v897
    %1259 = vmatprep.subr.mxu0 0.0
    %1260 = vmatpush1.xpose.msra.mxu0 0.0
    %1261 = vmatprep.subr.mxu0 0.0
    %1262 = vmatpush1.xpose.msra.mxu0 0.0
    %1263 = vmatprep.subr.mxu0 0.0
    %1264 = vmatpush1.xpose.msra.mxu0 0.0
    %1265 = vmatprep.subr.mxu0 0.0
    %1266 = vmatpush1.xpose.msra.mxu0 0.0
    %1267 = vmatprep.subr.mxu0 0.0
    %1268 = vmatpush1.xpose.msra.mxu0 0.0
    %1269 = vmatprep.subr.mxu0 0.0
    %1270 = vmatpush1.xpose.msra.mxu0 0.0
    %1271 = vmatprep.subr.mxu0 0.0
    %1272 = vmatpush1.xpose.msra.mxu0 0.0
    %1273 = vmatprep.subr.mxu0 0.0
    %1274 = vmatpush1.xpose.msra.mxu0 0.0
    %1275 = vmatprep.subr.mxu0 0.0
    %1276 = vmatpush1.xpose.msra.mxu0 0.0
    %1277 = vmatprep.subr.mxu0 0.0
    %1278 = vmatpush1.xpose.msra.mxu0 0.0
    %1279 = vmatprep.subr.mxu0 0.0
    %1280 = vmatpush1.xpose.msra.mxu0 0.0
    %1281 = vmatprep.subr.mxu0 0.0
    %1282 = vmatpush1.xpose.msra.mxu0 0.0
    %1283 = vmatprep.subr.mxu0 0.0
    %1284 = vmatpush1.xpose.msra.mxu0 0.0
    %1285 = vmatprep.subr.mxu0 0.0
    %1286 = vmatpush1.xpose.msra.mxu0 0.0
    %1287 = vmatprep.subr.mxu0 0.0
    %1288 = vmatpush1.xpose.msra.mxu0 0.0
    %1289 = vmatprep.subr.mxu0 0.0
    %1290 = vmatpush1.xpose.msra.mxu0 0.0
    %1291 = vmatprep.subr.mxu0 0.0
    %1292 = vmatpush1.xpose.msra.mxu0 0.0
    %1293 = vmatprep.subr.mxu0 0.0
    %1294 = vmatpush1.xpose.msra.mxu0 0.0
    %1295 = vmatprep.subr.mxu0 0.0
    %1296 = vmatpush1.xpose.msra.mxu0 0.0
    %1297 = vmatprep.subr.mxu0 0.0
    %1298 = vmatpush1.xpose.msra.mxu0 0.0
    %1299 = vmatprep.subr.mxu0 0.0
    %1300 = vmatpush1.xpose.msra.mxu0 0.0
    %1301 = vmatprep.subr.mxu0 0.0
    %1302 = vmatpush1.xpose.msra.mxu0 0.0
    %1303 = vmatprep.subr.mxu0 0.0
    %1304 = vmatpush1.xpose.msra.mxu0 0.0
    %1305 = vmatprep.subr.mxu0 0.0
    %1306 = vmatpush1.xpose.msra.mxu0 0.0
    %1307 = vmatprep.subr.mxu0 0.0
    %1308 = vmatpush1.xpose.msra.mxu0 0.0
    %1309 = vmatprep.subr.mxu0 0.0
    %1310 = vmatpush1.xpose.msra.mxu0 0.0
    %1311 = vmatprep.subr.mxu0 0.0
    %1312 = vmatpush1.xpose.msra.mxu0 0.0
    %1313 = vmatprep.subr.mxu0 0.0
    %1314 = vmatpush1.xpose.msra.mxu0 0.0
    %1315 = vmatprep.subr.mxu0 0.0
    %1316 = vmatpush1.xpose.msra.mxu0 0.0
    %1317 = vmatprep.subr.mxu0 0.0
    %1318 = vmatpush1.xpose.msra.mxu0 0.0
    %1319 = vmatprep.subr.mxu0 0.0
    %1320 = vmatpush1.xpose.msra.mxu0 0.0
    %1321 = vmatprep.mubr.f32.mxu0 0.0
    %1322 = vmatmul.mubr.f32.gmra.mrb[0].mxu0 %v854
    %v1323 = vpop.f32.mrb[0].mxu0
    %v1324 = vadd.f32 0.0, %v1323
    %v1325 = vpop.f32.mrb[0].mxu0
    %1326 = vdwg.mxu0
    %v1327 = vmul.f32 %v1324, 0.088388346
    %v1328 = vsel %vm1015, %v1327, -inf
    %1329 = vmax.xlane.f32.xlu0 %v1328
    %v1330 = vpop.xlane.xlu0 %1329
    %v1331 = vsub.f32 %v1327, %v1330
    %v1332 = vmul.f32 %v1331, 1.442695
    %v1333 = vpow.pop %v1332
    %v1334 = vsel %vm1015, %v1333, 0.0
    %1335 = vadd.xlane.f32.xlu0 %v1334
    %v1336 = vpop.xlane.xlu0 %1335
    %v1337 = vrcp.pop %v1336
    %v1338 = vmul.f32 %v1333, %v1337
    %v1340 = vsel %vm1015, %v1338, 0
    %1342 = vmatprep.subr.mxu0 0.0
    %1343 = vmatpush1.msra.mxu0 %v940
    %1344 = vmatprep.subr.mxu0 0.0
    %1345 = vmatpush1.msra.mxu0 0.0
    %1346 = vmatprep.subr.mxu0 0.0
    %1347 = vmatpush1.msra.mxu0 0.0
    %1348 = vmatprep.subr.mxu0 0.0
    %1349 = vmatpush1.msra.mxu0 0.0
    %1350 = vmatprep.subr.mxu0 0.0
    %1351 = vmatpush1.msra.mxu0 0.0
    %1352 = vmatprep.subr.mxu0 0.0
    %1353 = vmatpush1.msra.mxu0 0.0
    %1354 = vmatprep.subr.mxu0 0.0
    %1355 = vmatpush1.msra.mxu0 0.0
    %1356 = vmatprep.subr.mxu0 0.0
    %1357 = vmatpush1.msra.mxu0 0.0
    %1358 = vmatprep.subr.mxu0 0.0
    %1359 = vmatpush1.msra.mxu0 0.0
    %1360 = vmatprep.subr.mxu0 0.0
    %1361 = vmatpush1.msra.mxu0 0.0
    %1362 = vmatprep.subr.mxu0 0.0
    %1363 = vmatpush1.msra.mxu0 0.0
    %1364 = vmatprep.subr.mxu0 0.0
    %1365 = vmatpush1.msra.mxu0 0.0
    %1366 = vmatprep.subr.mxu0 0.0
    %1367 = vmatpush1.msra.mxu0 0.0
    %1368 = vmatprep.subr.mxu0 0.0
    %1369 = vmatpush1.msra.mxu0 0.0
    %1370 = vmatprep.subr.mxu0 0.0
    %1371 = vmatpush1.msra.mxu0 0.0
    %1372 = vmatprep.subr.mxu0 0.0
    %1373 = vmatpush1.msra.mxu0 0.0
    %1374 = vmatprep.subr.mxu0 0.0
    %1375 = vmatpush1.msra.mxu0 0.0
    %1376 = vmatprep.subr.mxu0 0.0
    %1377 = vmatpush1.msra.mxu0 0.0
    %1378 = vmatprep.subr.mxu0 0.0
    %1379 = vmatpush1.msra.mxu0 0.0
    %1380 = vmatprep.subr.mxu0 0.0
    %1381 = vmatpush1.msra.mxu0 0.0
    %1382 = vmatprep.subr.mxu0 0.0
    %1383 = vmatpush1.msra.mxu0 0.0
    %1384 = vmatprep.subr.mxu0 0.0
    %1385 = vmatpush1.msra.mxu0 0.0
    %1386 = vmatprep.subr.mxu0 0.0
    %1387 = vmatpush1.msra.mxu0 0.0
    %1388 = vmatprep.subr.mxu0 0.0
    %1389 = vmatpush1.msra.mxu0 0.0
    %1390 = vmatprep.subr.mxu0 0.0
    %1391 = vmatpush1.msra.mxu0 0.0
    %1392 = vmatprep.subr.mxu0 0.0
    %1393 = vmatpush1.msra.mxu0 0.0
    %1394 = vmatprep.subr.mxu0 0.0
    %1395 = vmatpush1.msra.mxu0 0.0
    %1396 = vmatprep.subr.mxu0 0.0
    %1397 = vmatpush1.msra.mxu0 0.0
    %1398 = vmatprep.subr.mxu0 0.0
    %1399 = vmatpush1.msra.mxu0 0.0
    %1400 = vmatprep.subr.mxu0 0.0
    %1401 = vmatpush1.msra.mxu0 0.0
    %1402 = vmatprep.subr.mxu0 0.0
    %1403 = vmatpush1.msra.mxu0 0.0
    %1404 = vmatprep.subr.mxu0 0.0
    %1405 = vmatpush1.msra.mxu0 0.0
    %1406 = vmatprep.mubr.f32.mxu0 0.0
    %1407 = vmatmul.mubr.f32.gmra.mrb[0].mxu0 %v1340
    %v1408 = vpop.f32.mrb[0].mxu0
    %v1409 = vadd.f32 0.0, %v1408
    %v1410 = vpop.f32.mrb[0].mxu0
    %1411 = vdwg.mxu0
    %1412 = vst [vmem:[#allocation2 + $0x10] sm:$0xff] %v1409
    %1413 = vmatprep.subr.mxu0 0.0
    %1414 = vmatpush1.xpose.msra.mxu0 %v899
    %1415 = vmatprep.subr.mxu0 0.0
    %1416 = vmatpush1.xpose.msra.mxu0 0.0
    %1417 = vmatprep.subr.mxu0 0.0
    %1418 = vmatpush1.xpose.msra.mxu0 0.0
    %1419 = vmatprep.subr.mxu0 0.0
    %1420 = vmatpush1.xpose.msra.mxu0 0.0
    %1421 = vmatprep.subr.mxu0 0.0
    %1422 = vmatpush1.xpose.msra.mxu0 0.0
    %1423 = vmatprep.subr.mxu0 0.0
    %1424 = vmatpush1.xpose.msra.mxu0 0.0
    %1425 = vmatprep.subr.mxu0 0.0
    %1426 = vmatpush1.xpose.msra.mxu0 0.0
    %1427 = vmatprep.subr.mxu0 0.0
    %1428 = vmatpush1.xpose.msra.mxu0 0.0
    %1429 = vmatprep.subr.mxu0 0.0
    %1430 = vmatpush1.xpose.msra.mxu0 0.0
    %1431 = vmatprep.subr.mxu0 0.0
    %1432 = vmatpush1.xpose.msra.mxu0 0.0
    %1433 = vmatprep.subr.mxu0 0.0
    %1434 = vmatpush1.xpose.msra.mxu0 0.0
    %1435 = vmatprep.subr.mxu0 0.0
    %1436 = vmatpush1.xpose.msra.mxu0 0.0
    %1437 = vmatprep.subr.mxu0 0.0
    %1438 = vmatpush1.xpose.msra.mxu0 0.0
    %1439 = vmatprep.subr.mxu0 0.0
    %1440 = vmatpush1.xpose.msra.mxu0 0.0
    %1441 = vmatprep.subr.mxu0 0.0
    %1442 = vmatpush1.xpose.msra.mxu0 0.0
    %1443 = vmatprep.subr.mxu0 0.0
    %1444 = vmatpush1.xpose.msra.mxu0 0.0
    %1445 = vmatprep.subr.mxu0 0.0
    %1446 = vmatpush1.xpose.msra.mxu0 0.0
    %1447 = vmatprep.subr.mxu0 0.0
    %1448 = vmatpush1.xpose.msra.mxu0 0.0
    %1449 = vmatprep.subr.mxu0 0.0
    %1450 = vmatpush1.xpose.msra.mxu0 0.0
    %1451 = vmatprep.subr.mxu0 0.0
    %1452 = vmatpush1.xpose.msra.mxu0 0.0
    %1453 = vmatprep.subr.mxu0 0.0
    %1454 = vmatpush1.xpose.msra.mxu0 0.0
    %1455 = vmatprep.subr.mxu0 0.0
    %1456 = vmatpush1.xpose.msra.mxu0 0.0
    %1457 = vmatprep.subr.mxu0 0.0
    %1458 = vmatpush1.xpose.msra.mxu0 0.0
    %1459 = vmatprep.subr.mxu0 0.0
    %1460 = vmatpush1.xpose.msra.mxu0 0.0
    %1461 = vmatprep.subr.mxu0 0.0
    %1462 = vmatpush1.xpose.msra.mxu0 0.0
    %1463 = vmatprep.subr.mxu0 0.0
    %1464 = vmatpush1.xpose.msra.mxu0 0.0
    %1465 = vmatprep.subr.mxu0 0.0
    %1466 = vmatpush1.xpose.msra.mxu0 0.0
    %1467 = vmatprep.subr.mxu0 0.0
    %1468 = vmatpush1.xpose.msra.mxu0 0.0
    %1469 = vmatprep.subr.mxu0 0.0
    %1470 = vmatpush1.xpose.msra.mxu0 0.0
    %1471 = vmatprep.subr.mxu0 0.0
    %1472 = vmatpush1.xpose.msra.mxu0 0.0
    %1473 = vmatprep.subr.mxu0 0.0
    %1474 = vmatpush1.xpose.msra.mxu0 0.0
    %1475 = vmatprep.subr.mxu0 0.0
    %1476 = vmatpush1.xpose.msra.mxu0 0.0
    %1477 = vmatprep.mubr.f32.mxu0 0.0
    %1478 = vmatmul.mubr.f32.gmra.mrb[0].mxu0 %v856
    %v1479 = vpop.f32.mrb[0].mxu0
    %v1480 = vadd.f32 0.0, %v1479
    %v1481 = vpop.f32.mrb[0].mxu0
    %1482 = vdwg.mxu0
    %v1483 = vmul.f32 %v1480, 0.088388346
    %v1484 = vsel %vm1015, %v1483, -inf
    %1485 = vmax.xlane.f32.xlu0 %v1484
    %v1486 = vpop.xlane.xlu0 %1485
    %v1487 = vsub.f32 %v1483, %v1486
    %v1488 = vmul.f32 %v1487, 1.442695
    %v1489 = vpow.pop %v1488
    %v1490 = vsel %vm1015, %v1489, 0.0
    %1491 = vadd.xlane.f32.xlu0 %v1490
    %v1492 = vpop.xlane.xlu0 %1491
    %v1493 = vrcp.pop %v1492
    %v1494 = vmul.f32 %v1489, %v1493
    %v1496 = vsel %vm1015, %v1494, 0
    %1498 = vmatprep.subr.mxu0 0.0
    %1499 = vmatpush1.msra.mxu0 %v942
    %1500 = vmatprep.subr.mxu0 0.0
    %1501 = vmatpush1.msra.mxu0 0.0
    %1502 = vmatprep.subr.mxu0 0.0
    %1503 = vmatpush1.msra.mxu0 0.0
    %1504 = vmatprep.subr.mxu0 0.0
    %1505 = vmatpush1.msra.mxu0 0.0
    %1506 = vmatprep.subr.mxu0 0.0
    %1507 = vmatpush1.msra.mxu0 0.0
    %1508 = vmatprep.subr.mxu0 0.0
    %1509 = vmatpush1.msra.mxu0 0.0
    %1510 = vmatprep.subr.mxu0 0.0
    %1511 = vmatpush1.msra.mxu0 0.0
    %1512 = vmatprep.subr.mxu0 0.0
    %1513 = vmatpush1.msra.mxu0 0.0
    %1514 = vmatprep.subr.mxu0 0.0
    %1515 = vmatpush1.msra.mxu0 0.0
    %1516 = vmatprep.subr.mxu0 0.0
    %1517 = vmatpush1.msra.mxu0 0.0
    %1518 = vmatprep.subr.mxu0 0.0
    %1519 = vmatpush1.msra.mxu0 0.0
    %1520 = vmatprep.subr.mxu0 0.0
    %1521 = vmatpush1.msra.mxu0 0.0
    %1522 = vmatprep.subr.mxu0 0.0
    %1523 = vmatpush1.msra.mxu0 0.0
    %1524 = vmatprep.subr.mxu0 0.0
    %1525 = vmatpush1.msra.mxu0 0.0
    %1526 = vmatprep.subr.mxu0 0.0
    %1527 = vmatpush1.msra.mxu0 0.0
    %1528 = vmatprep.subr.mxu0 0.0
    %1529 = vmatpush1.msra.mxu0 0.0
    %1530 = vmatprep.subr.mxu0 0.0
    %1531 = vmatpush1.msra.mxu0 0.0
    %1532 = vmatprep.subr.mxu0 0.0
    %1533 = vmatpush1.msra.mxu0 0.0
    %1534 = vmatprep.subr.mxu0 0.0
    %1535 = vmatpush1.msra.mxu0 0.0
    %1536 = vmatprep.subr.mxu0 0.0
    %1537 = vmatpush1.msra.mxu0 0.0
    %1538 = vmatprep.subr.mxu0 0.0
    %1539 = vmatpush1.msra.mxu0 0.0
    %1540 = vmatprep.subr.mxu0 0.0
    %1541 = vmatpush1.msra.mxu0 0.0
    %1542 = vmatprep.subr.mxu0 0.0
    %1543 = vmatpush1.msra.mxu0 0.0
    %1544 = vmatprep.subr.mxu0 0.0
    %1545 = vmatpush1.msra.mxu0 0.0
    %1546 = vmatprep.subr.mxu0 0.0
    %1547 = vmatpush1.msra.mxu0 0.0
    %1548 = vmatprep.subr.mxu0 0.0
    %1549 = vmatpush1.msra.mxu0 0.0
    %1550 = vmatprep.subr.mxu0 0.0
    %1551 = vmatpush1.msra.mxu0 0.0
    %1552 = vmatprep.subr.mxu0 0.0
    %1553 = vmatpush1.msra.mxu0 0.0
    %1554 = vmatprep.subr.mxu0 0.0
    %1555 = vmatpush1.msra.mxu0 0.0
    %1556 = vmatprep.subr.mxu0 0.0
    %1557 = vmatpush1.msra.mxu0 0.0
    %1558 = vmatprep.subr.mxu0 0.0
    %1559 = vmatpush1.msra.mxu0 0.0
    %1560 = vmatprep.subr.mxu0 0.0
    %1561 = vmatpush1.msra.mxu0 0.0
    %1562 = vmatprep.mubr.f32.mxu0 0.0
    %1563 = vmatmul.mubr.f32.gmra.mrb[0].mxu0 %v1496
    %v1564 = vpop.f32.mrb[0].mxu0
    %v1565 = vadd.f32 0.0, %v1564
    %v1566 = vpop.f32.mrb[0].mxu0
    %1567 = vdwg.mxu0
    %1568 = vst [vmem:[#allocation2 + $0x18] sm:$0xff] %v1565
    %v1569 = vld [vmem:[#allocation2] sm:$0xff]
    %v1570 = vld [vmem:[#allocation2 + $0x8] sm:$0xff]
    %v1571 = vld [vmem:[#allocation2 + $0x10] sm:$0xff]
    %v1572 = vld [vmem:[#allocation2 + $0x18] sm:$0xff]
    %v1573 = vld [vmem:[#allocation9] sm:$0xff]
    %v1574 = vld [vmem:[#allocation9 + $0x8] sm:$0xff]
    %v1575 = vld [vmem:[#allocation9 + $0x10] sm:$0xff]
    %v1576 = vld [vmem:[#allocation9 + $0x18] sm:$0xff]
    %v1577 = vld [vmem:[#allocation9 + $0x20] sm:$0xff]
    %v1578 = vld [vmem:[#allocation9 + $0x28] sm:$0xff]
    %v1579 = vld [vmem:[#allocation9 + $0x30] sm:$0xff]
    %v1580 = vld [vmem:[#allocation9 + $0x38] sm:$0xff]
    %v1581 = vld [vmem:[#allocation9 + $0x40] sm:$0xff]
    %v1582 = vld [vmem:[#allocation9 + $0x48] sm:$0xff]
    %v1583 = vld [vmem:[#allocation9 + $0x50] sm:$0xff]
    %v1584 = vld [vmem:[#allocation9 + $0x58] sm:$0xff]
    %v1585 = vld [vmem:[#allocation9 + $0x60] sm:$0xff]
    %v1586 = vld [vmem:[#allocation9 + $0x68] sm:$0xff]
    %v1587 = vld [vmem:[#allocation9 + $0x70] sm:$0xff]
    %v1588 = vld [vmem:[#allocation9 + $0x78] sm:$0xff]
    %v1589 = vld [vmem:[#allocation9 + $0x80] sm:$0xff]
    %v1590 = vld [vmem:[#allocation9 + $0x88] sm:$0xff]
    %v1591 = vld [vmem:[#allocation9 + $0x90] sm:$0xff]
    %v1592 = vld [vmem:[#allocation9 + $0x98] sm:$0xff]
    %v1593 = vld [vmem:[#allocation9 + $0xa0] sm:$0xff]
    %v1594 = vld [vmem:[#allocation9 + $0xa8] sm:$0xff]
    %v1595 = vld [vmem:[#allocation9 + $0xb0] sm:$0xff]
    %v1596 = vld [vmem:[#allocation9 + $0xb8] sm:$0xff]
    %v1597 = vld [vmem:[#allocation9 + $0xc0] sm:$0xff]
    %v1598 = vld [vmem:[#allocation9 + $0xc8] sm:$0xff]
    %v1599 = vld [vmem:[#allocation9 + $0xd0] sm:$0xff]
    %v1600 = vld [vmem:[#allocation9 + $0xd8] sm:$0xff]
    %v1601 = vld [vmem:[#allocation9 + $0xe0] sm:$0xff]
    %v1602 = vld [vmem:[#allocation9 + $0xe8] sm:$0xff]
    %v1603 = vld [vmem:[#allocation9 + $0xf0] sm:$0xff]
    %v1604 = vld [vmem:[#allocation9 + $0xf8] sm:$0xff]
    %v1605 = vpack.c.bf16 %v1571, %v1569
    %v1606 = vpack.c.bf16 %v1572, %v1570
    %v1607 = vld [vmem:[%s6] sm:$0x3]
    %v1609 = vlaneseq
    %v1610 = vshrl.u32 %v1609, 7
    %v1611 = vsub.s32 0, %v1610
    %v1612 = vrot.slane %v1607, %v1611
    %v1613 = vlaneseq
    %v1614 = vshrl.u32 %v1613, 7
    %v1615 = vsub.s32 1, %v1614
    %v1616 = vrot.slane %v1607, %v1615
    %v1651 = vunpack.c.l.b16 %v1573
    %v1652 = vunpack.c.h.b16 %v1573
    %v1653 = vunpack.c.l.b16 %v1574
    %v1654 = vunpack.c.h.b16 %v1574
    %v1655 = vunpack.c.l.b16 %v1575
    %v1656 = vunpack.c.h.b16 %v1575
    %v1657 = vunpack.c.l.b16 %v1576
    %v1658 = vunpack.c.h.b16 %v1576
    %v1659 = vunpack.c.l.b16 %v1577
    %v1660 = vunpack.c.h.b16 %v1577
    %v1661 = vunpack.c.l.b16 %v1578
    %v1662 = vunpack.c.h.b16 %v1578
    %v1663 = vunpack.c.l.b16 %v1579
    %v1664 = vunpack.c.h.b16 %v1579
    %v1665 = vunpack.c.l.b16 %v1580
    %v1666 = vunpack.c.h.b16 %v1580
    %v1667 = vunpack.c.l.b16 %v1581
    %v1668 = vunpack.c.h.b16 %v1581
    %v1669 = vunpack.c.l.b16 %v1582
    %v1670 = vunpack.c.h.b16 %v1582
    %v1671 = vunpack.c.l.b16 %v1583
    %v1672 = vunpack.c.h.b16 %v1583
    %v1673 = vunpack.c.l.b16 %v1584
    %v1674 = vunpack.c.h.b16 %v1584
    %v1675 = vunpack.c.l.b16 %v1585
    %v1676 = vunpack.c.h.b16 %v1585
    %v1677 = vunpack.c.l.b16 %v1586
    %v1678 = vunpack.c.h.b16 %v1586
    %v1679 = vunpack.c.l.b16 %v1587
    %v1680 = vunpack.c.h.b16 %v1587
    %v1681 = vunpack.c.l.b16 %v1588
    %v1682 = vunpack.c.h.b16 %v1588
    %v1683 = vunpack.c.l.b16 %v1589
    %v1684 = vunpack.c.h.b16 %v1589
    %v1685 = vunpack.c.l.b16 %v1590
    %v1686 = vunpack.c.h.b16 %v1590
    %v1687 = vunpack.c.l.b16 %v1591
    %v1688 = vunpack.c.h.b16 %v1591
    %v1689 = vunpack.c.l.b16 %v1592
    %v1690 = vunpack.c.h.b16 %v1592
    %v1691 = vunpack.c.l.b16 %v1593
    %v1692 = vunpack.c.h.b16 %v1593
    %v1693 = vunpack.c.l.b16 %v1594
    %v1694 = vunpack.c.h.b16 %v1594
    %v1695 = vunpack.c.l.b16 %v1595
    %v1696 = vunpack.c.h.b16 %v1595
    %v1697 = vunpack.c.l.b16 %v1596
    %v1698 = vunpack.c.h.b16 %v1596
    %v1699 = vunpack.c.l.b16 %v1597
    %v1700 = vunpack.c.h.b16 %v1597
    %v1701 = vunpack.c.l.b16 %v1598
    %v1702 = vunpack.c.h.b16 %v1598
    %v1703 = vunpack.c.l.b16 %v1599
    %v1704 = vunpack.c.h.b16 %v1599
    %v1705 = vunpack.c.l.b16 %v1600
    %v1706 = vunpack.c.h.b16 %v1600
    %v1707 = vunpack.c.l.b16 %v1601
    %v1708 = vunpack.c.h.b16 %v1601
    %v1709 = vunpack.c.l.b16 %v1602
    %v1710 = vunpack.c.h.b16 %v1602
    %v1711 = vunpack.c.l.b16 %v1603
    %v1712 = vunpack.c.h.b16 %v1603
    %v1713 = vunpack.c.l.b16 %v1604
    %v1714 = vunpack.c.h.b16 %v1604
    %v1715 = vpack.c.b16 %v1653, %v1651
    %v1716 = vpack.c.b16 %v1654, %v1652
    %v1717 = vpack.c.b16 %v1657, %v1655
    %v1718 = vpack.c.b16 %v1658, %v1656
    %v1719 = vpack.c.b16 %v1661, %v1659
    %v1720 = vpack.c.b16 %v1662, %v1660
    %v1721 = vpack.c.b16 %v1665, %v1663
    %v1722 = vpack.c.b16 %v1666, %v1664
    %v1723 = vpack.c.b16 %v1669, %v1667
    %v1724 = vpack.c.b16 %v1670, %v1668
    %v1725 = vpack.c.b16 %v1673, %v1671
    %v1726 = vpack.c.b16 %v1674, %v1672
    %v1727 = vpack.c.b16 %v1677, %v1675
    %v1728 = vpack.c.b16 %v1678, %v1676
    %v1729 = vpack.c.b16 %v1681, %v1679
    %v1730 = vpack.c.b16 %v1682, %v1680
    %v1731 = vpack.c.b16 %v1685, %v1683
    %v1732 = vpack.c.b16 %v1686, %v1684
    %v1733 = vpack.c.b16 %v1689, %v1687
    %v1734 = vpack.c.b16 %v1690, %v1688
    %v1735 = vpack.c.b16 %v1693, %v1691
    %v1736 = vpack.c.b16 %v1694, %v1692
    %v1737 = vpack.c.b16 %v1697, %v1695
    %v1738 = vpack.c.b16 %v1698, %v1696
    %v1739 = vpack.c.b16 %v1701, %v1699
    %v1740 = vpack.c.b16 %v1702, %v1700
    %v1741 = vpack.c.b16 %v1705, %v1703
    %v1742 = vpack.c.b16 %v1706, %v1704
    %v1743 = vpack.c.b16 %v1709, %v1707
    %v1744 = vpack.c.b16 %v1710, %v1708
    %v1745 = vpack.c.b16 %v1713, %v1711
    %v1746 = vpack.c.b16 %v1714, %v1712
    %1779 = vmatprep.subr.bf16.mxu0 %v1716
    %1780 = vmatpush1.bf16.msra.mxu0 %v1715
    %1781 = vmatprep.subr.bf16.mxu0 %v1718
    %1782 = vmatpush1.bf16.msra.mxu0 %v1717
    %1783 = vmatprep.subr.bf16.mxu0 %v1720
    %1784 = vmatpush1.bf16.msra.mxu0 %v1719
    %1785 = vmatprep.subr.bf16.mxu0 %v1722
    %1786 = vmatpush1.bf16.msra.mxu0 %v1721
    %1787 = vmatprep.subr.bf16.mxu0 %v1724
    %1788 = vmatpush1.bf16.msra.mxu0 %v1723
    %1789 = vmatprep.subr.bf16.mxu0 %v1726
    %1790 = vmatpush1.bf16.msra.mxu0 %v1725
    %1791 = vmatprep.subr.bf16.mxu0 %v1728
    %1792 = vmatpush1.bf16.msra.mxu0 %v1727
    %1793 = vmatprep.subr.bf16.mxu0 %v1730
    %1794 = vmatpush1.bf16.msra.mxu0 %v1729
    %1795 = vmatprep.subr.bf16.mxu0 %v1732
    %1796 = vmatpush1.bf16.msra.mxu0 %v1731
    %1797 = vmatprep.subr.bf16.mxu0 %v1734
    %1798 = vmatpush1.bf16.msra.mxu0 %v1733
    %1799 = vmatprep.subr.bf16.mxu0 %v1736
    %1800 = vmatpush1.bf16.msra.mxu0 %v1735
    %1801 = vmatprep.subr.bf16.mxu0 %v1738
    %1802 = vmatpush1.bf16.msra.mxu0 %v1737
    %1803 = vmatprep.subr.bf16.mxu0 %v1740
    %1804 = vmatpush1.bf16.msra.mxu0 %v1739
    %1805 = vmatprep.subr.bf16.mxu0 %v1742
    %1806 = vmatpush1.bf16.msra.mxu0 %v1741
    %1807 = vmatprep.subr.bf16.mxu0 %v1744
    %1808 = vmatpush1.bf16.msra.mxu0 %v1743
    %1809 = vmatprep.subr.bf16.mxu0 %v1746
    %1810 = vmatpush1.bf16.msra.mxu0 %v1745
    %1811 = vmatprep.mubr.bf16.mxu0 %v1606
    %1812 = vmatmul.mubr.bf16.gmra.mrb[0].mxu0 %v1605
    %v1813 = vpop.f32.mrb[0].mxu0
    %v1814 = vadd.f32 %v1612, %v1813
    %v1815 = vpop.f32.mrb[0].mxu0
    %v1816 = vadd.f32 %v1616, %v1815
    %v1817 = vpop.f32.mrb[0].mxu0
    %v1818 = vadd.f32 %v1612, %v1817
    %v1819 = vpop.f32.mrb[0].mxu0
    %v1820 = vadd.f32 %v1616, %v1819
    %1821 = vdwg.mxu0
    %v1822 = vadd.f32 %v168, %v1814
    %v1823 = vadd.f32 %v169, %v1816
    %v1824 = vadd.f32 %v170, %v1818
    %v1825 = vadd.f32 %v171, %v1820
    %v1826 = vld [vmem:[#allocation11] sm:$0x3]
    %v1827 = vld [vmem:[#allocation12] sm:$0x3]
    %v1828 = vadd.f32 %v1822, %v1823
    %1829 = vadd.xlane.f32.xlu0 %v1828
    %v1830 = vpop.xlane.xlu0 %1829
    %v1831 = vadd.f32 %v1824, %v1825
    %1832 = vadd.xlane.f32.xlu0 %v1831
    %v1833 = vpop.xlane.xlu0 %1832
    %v1834 = vmul.f32 %v1830, %v180
    %v1835 = vmul.f32 %v1833, %v180
    %v1836 = vsub.f32 %v1822, %v1834
    %v1837 = vsub.f32 %v1823, %v1834
    %v1838 = vsub.f32 %v1824, %v1835
    %v1839 = vsub.f32 %v1825, %v1835
    %v1840 = vmul.f32 %v1836, %v1836
    %v1841 = vmul.f32 %v1837, %v1837
    %v1842 = vmul.f32 %v1838, %v1838
    %v1843 = vmul.f32 %v1839, %v1839
    %v1844 = vadd.f32 %v1840, %v1841
    %1845 = vadd.xlane.f32.xlu0 %v1844
    %v1846 = vpop.xlane.xlu0 %1845
    %v1847 = vadd.f32 %v1842, %v1843
    %1848 = vadd.xlane.f32.xlu0 %v1847
    %v1849 = vpop.xlane.xlu0 %1848
    %v1850 = vmul.f32 %v1846, %v180
    %v1851 = vmul.f32 %v1849, %v180
    %v1852 = vadd.f32 %v1850, 1e-05
    %v1853 = vadd.f32 %v1851, 1e-05
    %v1854 = vrsqrt.pop %v1852
    %v1855 = vrsqrt.pop %v1853
    %v1856 = vmul.f32 %v1836, %v1854
    %v1857 = vmul.f32 %v1837, %v1854
    %v1858 = vmul.f32 %v1838, %v1855
    %v1859 = vmul.f32 %v1839, %v1855
    %v1861 = vlaneseq
    %v1862 = vshrl.u32 %v1861, 7
    %v1863 = vsub.s32 0, %v1862
    %v1864 = vrot.slane %v1826, %v1863
    %v1865 = vlaneseq
    %v1866 = vshrl.u32 %v1865, 7
    %v1867 = vsub.s32 1, %v1866
    %v1868 = vrot.slane %v1826, %v1867
    %v1871 = vmul.f32 %v1856, %v1864
    %v1872 = vmul.f32 %v1857, %v1868
    %v1873 = vmul.f32 %v1858, %v1864
    %v1874 = vmul.f32 %v1859, %v1868
    %v1876 = vlaneseq
    %v1877 = vshrl.u32 %v1876, 7
    %v1878 = vsub.s32 0, %v1877
    %v1879 = vrot.slane %v1827, %v1878
    %v1880 = vlaneseq
    %v1881 = vshrl.u32 %v1880, 7
    %v1882 = vsub.s32 1, %v1881
    %v1883 = vrot.slane %v1827, %v1882
    %v1886 = vadd.f32 %v1871, %v1879
    %v1887 = vadd.f32 %v1872, %v1883
    %v1888 = vadd.f32 %v1873, %v1879
    %v1889 = vadd.f32 %v1874, %v1883
    %v1890 = vld [vmem:[#allocation14] sm:$0xff]
    %v1891 = vld [vmem:[#allocation14 + $0x8] sm:$0xff]
    %v1892 = vld [vmem:[#allocation14 + $0x10] sm:$0xff]
    %v1893 = vld [vmem:[#allocation14 + $0x18] sm:$0xff]
    %v1894 = vld [vmem:[#allocation14 + $0x20] sm:$0xff]
    %v1895 = vld [vmem:[#allocation14 + $0x28] sm:$0xff]
    %v1896 = vld [vmem:[#allocation14 + $0x30] sm:$0xff]
    %v1897 = vld [vmem:[#allocation14 + $0x38] sm:$0xff]
    %v1898 = vld [vmem:[#allocation14 + $0x40] sm:$0xff]
    %v1899 = vld [vmem:[#allocation14 + $0x48] sm:$0xff]
    %v1900 = vld [vmem:[#allocation14 + $0x50] sm:$0xff]
    %v1901 = vld [vmem:[#allocation14 + $0x58] sm:$0xff]
    %v1902 = vld [vmem:[#allocation14 + $0x60] sm:$0xff]
    %v1903 = vld [vmem:[#allocation14 + $0x68] sm:$0xff]
    %v1904 = vld [vmem:[#allocation14 + $0x70] sm:$0xff]
    %v1905 = vld [vmem:[#allocation14 + $0x78] sm:$0xff]
    %v1906 = vld [vmem:[#allocation14 + $0x80] sm:$0xff]
    %v1907 = vld [vmem:[#allocation14 + $0x88] sm:$0xff]
    %v1908 = vld [vmem:[#allocation14 + $0x90] sm:$0xff]
    %v1909 = vld [vmem:[#allocation14 + $0x98] sm:$0xff]
    %v1910 = vld [vmem:[#allocation14 + $0xa0] sm:$0xff]
    %v1911 = vld [vmem:[#allocation14 + $0xa8] sm:$0xff]
    %v1912 = vld [vmem:[#allocation14 + $0xb0] sm:$0xff]
    %v1913 = vld [vmem:[#allocation14 + $0xb8] sm:$0xff]
    %v1914 = vld [vmem:[#allocation14 + $0xc0] sm:$0xff]
    %v1915 = vld [vmem:[#allocation14 + $0xc8] sm:$0xff]
    %v1916 = vld [vmem:[#allocation14 + $0xd0] sm:$0xff]
    %v1917 = vld [vmem:[#allocation14 + $0xd8] sm:$0xff]
    %v1918 = vld [vmem:[#allocation14 + $0xe0] sm:$0xff]
    %v1919 = vld [vmem:[#allocation14 + $0xe8] sm:$0xff]
    %v1920 = vld [vmem:[#allocation14 + $0xf0] sm:$0xff]
    %v1921 = vld [vmem:[#allocation14 + $0xf8] sm:$0xff]
    %v1922 = vld [vmem:[#allocation14 + $0x100] sm:$0xff]
    %v1923 = vld [vmem:[#allocation14 + $0x108] sm:$0xff]
    %v1924 = vld [vmem:[#allocation14 + $0x110] sm:$0xff]
    %v1925 = vld [vmem:[#allocation14 + $0x118] sm:$0xff]
    %v1926 = vld [vmem:[#allocation14 + $0x120] sm:$0xff]
    %v1927 = vld [vmem:[#allocation14 + $0x128] sm:$0xff]
    %v1928 = vld [vmem:[#allocation14 + $0x130] sm:$0xff]
    %v1929 = vld [vmem:[#allocation14 + $0x138] sm:$0xff]
    %v1930 = vld [vmem:[#allocation14 + $0x140] sm:$0xff]
    %v1931 = vld [vmem:[#allocation14 + $0x148] sm:$0xff]
    %v1932 = vld [vmem:[#allocation14 + $0x150] sm:$0xff]
    %v1933 = vld [vmem:[#allocation14 + $0x158] sm:$0xff]
    %v1934 = vld [vmem:[#allocation14 + $0x160] sm:$0xff]
    %v1935 = vld [vmem:[#allocation14 + $0x168] sm:$0xff]
    %v1936 = vld [vmem:[#allocation14 + $0x170] sm:$0xff]
    %v1937 = vld [vmem:[#allocation14 + $0x178] sm:$0xff]
    %v1938 = vld [vmem:[#allocation14 + $0x180] sm:$0xff]
    %v1939 = vld [vmem:[#allocation14 + $0x188] sm:$0xff]
    %v1940 = vld [vmem:[#allocation14 + $0x190] sm:$0xff]
    %v1941 = vld [vmem:[#allocation14 + $0x198] sm:$0xff]
    %v1942 = vld [vmem:[#allocation14 + $0x1a0] sm:$0xff]
    %v1943 = vld [vmem:[#allocation14 + $0x1a8] sm:$0xff]
    %v1944 = vld [vmem:[#allocation14 + $0x1b0] sm:$0xff]
    %v1945 = vld [vmem:[#allocation14 + $0x1b8] sm:$0xff]
    %v1946 = vld [vmem:[#allocation14 + $0x1c0] sm:$0xff]
    %v1947 = vld [vmem:[#allocation14 + $0x1c8] sm:$0xff]
    %v1948 = vld [vmem:[#allocation14 + $0x1d0] sm:$0xff]
    %v1949 = vld [vmem:[#allocation14 + $0x1d8] sm:$0xff]
    %v1950 = vld [vmem:[#allocation14 + $0x1e0] sm:$0xff]
    %v1951 = vld [vmem:[#allocation14 + $0x1e8] sm:$0xff]
    %v1952 = vld [vmem:[#allocation14 + $0x1f0] sm:$0xff]
    %v1953 = vld [vmem:[#allocation14 + $0x1f8] sm:$0xff]
    %v1954 = vld [vmem:[#allocation14 + $0x200] sm:$0xff]
    %v1955 = vld [vmem:[#allocation14 + $0x208] sm:$0xff]
    %v1956 = vld [vmem:[#allocation14 + $0x210] sm:$0xff]
    %v1957 = vld [vmem:[#allocation14 + $0x218] sm:$0xff]
    %v1958 = vld [vmem:[#allocation14 + $0x220] sm:$0xff]
    %v1959 = vld [vmem:[#allocation14 + $0x228] sm:$0xff]
    %v1960 = vld [vmem:[#allocation14 + $0x230] sm:$0xff]
    %v1961 = vld [vmem:[#allocation14 + $0x238] sm:$0xff]
    %v1962 = vld [vmem:[#allocation14 + $0x240] sm:$0xff]
    %v1963 = vld [vmem:[#allocation14 + $0x248] sm:$0xff]
    %v1964 = vld [vmem:[#allocation14 + $0x250] sm:$0xff]
    %v1965 = vld [vmem:[#allocation14 + $0x258] sm:$0xff]
    %v1966 = vld [vmem:[#allocation14 + $0x260] sm:$0xff]
    %v1967 = vld [vmem:[#allocation14 + $0x268] sm:$0xff]
    %v1968 = vld [vmem:[#allocation14 + $0x270] sm:$0xff]
    %v1969 = vld [vmem:[#allocation14 + $0x278] sm:$0xff]
    %v1970 = vld [vmem:[#allocation14 + $0x280] sm:$0xff]
    %v1971 = vld [vmem:[#allocation14 + $0x288] sm:$0xff]
    %v1972 = vld [vmem:[#allocation14 + $0x290] sm:$0xff]
    %v1973 = vld [vmem:[#allocation14 + $0x298] sm:$0xff]
    %v1974 = vld [vmem:[#allocation14 + $0x2a0] sm:$0xff]
    %v1975 = vld [vmem:[#allocation14 + $0x2a8] sm:$0xff]
    %v1976 = vld [vmem:[#allocation14 + $0x2b0] sm:$0xff]
    %v1977 = vld [vmem:[#allocation14 + $0x2b8] sm:$0xff]
    %v1978 = vld [vmem:[#allocation14 + $0x2c0] sm:$0xff]
    %v1979 = vld [vmem:[#allocation14 + $0x2c8] sm:$0xff]
    %v1980 = vld [vmem:[#allocation14 + $0x2d0] sm:$0xff]
    %v1981 = vld [vmem:[#allocation14 + $0x2d8] sm:$0xff]
    %v1982 = vld [vmem:[#allocation14 + $0x2e0] sm:$0xff]
    %v1983 = vld [vmem:[#allocation14 + $0x2e8] sm:$0xff]
    %v1984 = vld [vmem:[#allocation14 + $0x2f0] sm:$0xff]
    %v1985 = vld [vmem:[#allocation14 + $0x2f8] sm:$0xff]
    %v1986 = vld [vmem:[#allocation14 + $0x300] sm:$0xff]
    %v1987 = vld [vmem:[#allocation14 + $0x308] sm:$0xff]
    %v1988 = vld [vmem:[#allocation14 + $0x310] sm:$0xff]
    %v1989 = vld [vmem:[#allocation14 + $0x318] sm:$0xff]
    %v1990 = vld [vmem:[#allocation14 + $0x320] sm:$0xff]
    %v1991 = vld [vmem:[#allocation14 + $0x328] sm:$0xff]
    %v1992 = vld [vmem:[#allocation14 + $0x330] sm:$0xff]
    %v1993 = vld [vmem:[#allocation14 + $0x338] sm:$0xff]
    %v1994 = vld [vmem:[#allocation14 + $0x340] sm:$0xff]
    %v1995 = vld [vmem:[#allocation14 + $0x348] sm:$0xff]
    %v1996 = vld [vmem:[#allocation14 + $0x350] sm:$0xff]
    %v1997 = vld [vmem:[#allocation14 + $0x358] sm:$0xff]
    %v1998 = vld [vmem:[#allocation14 + $0x360] sm:$0xff]
    %v1999 = vld [vmem:[#allocation14 + $0x368] sm:$0xff]
    %v2000 = vld [vmem:[#allocation14 + $0x370] sm:$0xff]
    %v2001 = vld [vmem:[#allocation14 + $0x378] sm:$0xff]
    %v2002 = vld [vmem:[#allocation14 + $0x380] sm:$0xff]
    %v2003 = vld [vmem:[#allocation14 + $0x388] sm:$0xff]
    %v2004 = vld [vmem:[#allocation14 + $0x390] sm:$0xff]
    %v2005 = vld [vmem:[#allocation14 + $0x398] sm:$0xff]
    %v2006 = vld [vmem:[#allocation14 + $0x3a0] sm:$0xff]
    %v2007 = vld [vmem:[#allocation14 + $0x3a8] sm:$0xff]
    %v2008 = vld [vmem:[#allocation14 + $0x3b0] sm:$0xff]
    %v2009 = vld [vmem:[#allocation14 + $0x3b8] sm:$0xff]
    %v2010 = vld [vmem:[#allocation14 + $0x3c0] sm:$0xff]
    %v2011 = vld [vmem:[#allocation14 + $0x3c8] sm:$0xff]
    %v2012 = vld [vmem:[#allocation14 + $0x3d0] sm:$0xff]
    %v2013 = vld [vmem:[#allocation14 + $0x3d8] sm:$0xff]
    %v2014 = vld [vmem:[#allocation14 + $0x3e0] sm:$0xff]
    %v2015 = vld [vmem:[#allocation14 + $0x3e8] sm:$0xff]
    %v2016 = vld [vmem:[#allocation14 + $0x3f0] sm:$0xff]
    %v2017 = vld [vmem:[#allocation14 + $0x3f8] sm:$0xff]
    %v2018 = vpack.c.bf16 %v1888, %v1886
    %v2019 = vpack.c.bf16 %v1889, %v1887
    %v2020 = vld [vmem:[%s10] sm:$0xff]
    %v2022 = vlaneseq
    %v2023 = vshrl.u32 %v2022, 7
    %v2024 = vsub.s32 0, %v2023
    %v2025 = vrot.slane %v2020, %v2024
    %v2026 = vlaneseq
    %v2027 = vshrl.u32 %v2026, 7
    %v2028 = vsub.s32 1, %v2027
    %v2029 = vrot.slane %v2020, %v2028
    %v2030 = vlaneseq
    %v2031 = vshrl.u32 %v2030, 7
    %v2032 = vsub.s32 2, %v2031
    %v2033 = vrot.slane %v2020, %v2032
    %v2034 = vlaneseq
    %v2035 = vshrl.u32 %v2034, 7
    %v2036 = vsub.s32 3, %v2035
    %v2037 = vrot.slane %v2020, %v2036
    %v2038 = vlaneseq
    %v2039 = vshrl.u32 %v2038, 7
    %v2040 = vsub.s32 4, %v2039
    %v2041 = vrot.slane %v2020, %v2040
    %v2042 = vlaneseq
    %v2043 = vshrl.u32 %v2042, 7
    %v2044 = vsub.s32 5, %v2043
    %v2045 = vrot.slane %v2020, %v2044
    %v2046 = vlaneseq
    %v2047 = vshrl.u32 %v2046, 7
    %v2048 = vsub.s32 6, %v2047
    %v2049 = vrot.slane %v2020, %v2048
    %v2050 = vlaneseq
    %v2051 = vshrl.u32 %v2050, 7
    %v2052 = vsub.s32 7, %v2051
    %v2053 = vrot.slane %v2020, %v2052
    %v2190 = vunpack.c.l.b16 %v1890
    %v2191 = vunpack.c.h.b16 %v1890
    %v2192 = vunpack.c.l.b16 %v1891
    %v2193 = vunpack.c.h.b16 %v1891
    %v2194 = vunpack.c.l.b16 %v1892
    %v2195 = vunpack.c.h.b16 %v1892
    %v2196 = vunpack.c.l.b16 %v1893
    %v2197 = vunpack.c.h.b16 %v1893
    %v2198 = vunpack.c.l.b16 %v1894
    %v2199 = vunpack.c.h.b16 %v1894
    %v2200 = vunpack.c.l.b16 %v1895
    %v2201 = vunpack.c.h.b16 %v1895
    %v2202 = vunpack.c.l.b16 %v1896
    %v2203 = vunpack.c.h.b16 %v1896
    %v2204 = vunpack.c.l.b16 %v1897
    %v2205 = vunpack.c.h.b16 %v1897
    %v2206 = vunpack.c.l.b16 %v1898
    %v2207 = vunpack.c.h.b16 %v1898
    %v2208 = vunpack.c.l.b16 %v1899
    %v2209 = vunpack.c.h.b16 %v1899
    %v2210 = vunpack.c.l.b16 %v1900
    %v2211 = vunpack.c.h.b16 %v1900
    %v2212 = vunpack.c.l.b16 %v1901
    %v2213 = vunpack.c.h.b16 %v1901
    %v2214 = vunpack.c.l.b16 %v1902
    %v2215 = vunpack.c.h.b16 %v1902
    %v2216 = vunpack.c.l.b16 %v1903
    %v2217 = vunpack.c.h.b16 %v1903
    %v2218 = vunpack.c.l.b16 %v1904
    %v2219 = vunpack.c.h.b16 %v1904
    %v2220 = vunpack.c.l.b16 %v1905
    %v2221 = vunpack.c.h.b16 %v1905
    %v2222 = vunpack.c.l.b16 %v1906
    %v2223 = vunpack.c.h.b16 %v1906
    %v2224 = vunpack.c.l.b16 %v1907
    %v2225 = vunpack.c.h.b16 %v1907
    %v2226 = vunpack.c.l.b16 %v1908
    %v2227 = vunpack.c.h.b16 %v1908
    %v2228 = vunpack.c.l.b16 %v1909
    %v2229 = vunpack.c.h.b16 %v1909
    %v2230 = vunpack.c.l.b16 %v1910
    %v2231 = vunpack.c.h.b16 %v1910
    %v2232 = vunpack.c.l.b16 %v1911
    %v2233 = vunpack.c.h.b16 %v1911
    %v2234 = vunpack.c.l.b16 %v1912
    %v2235 = vunpack.c.h.b16 %v1912
    %v2236 = vunpack.c.l.b16 %v1913
    %v2237 = vunpack.c.h.b16 %v1913
    %v2238 = vunpack.c.l.b16 %v1914
    %v2239 = vunpack.c.h.b16 %v1914
    %v2240 = vunpack.c.l.b16 %v1915
    %v2241 = vunpack.c.h.b16 %v1915
    %v2242 = vunpack.c.l.b16 %v1916
    %v2243 = vunpack.c.h.b16 %v1916
    %v2244 = vunpack.c.l.b16 %v1917
    %v2245 = vunpack.c.h.b16 %v1917
    %v2246 = vunpack.c.l.b16 %v1918
    %v2247 = vunpack.c.h.b16 %v1918
    %v2248 = vunpack.c.l.b16 %v1919
    %v2249 = vunpack.c.h.b16 %v1919
    %v2250 = vunpack.c.l.b16 %v1920
    %v2251 = vunpack.c.h.b16 %v1920
    %v2252 = vunpack.c.l.b16 %v1921
    %v2253 = vunpack.c.h.b16 %v1921
    %v2254 = vunpack.c.l.b16 %v1922
    %v2255 = vunpack.c.h.b16 %v1922
    %v2256 = vunpack.c.l.b16 %v1923
    %v2257 = vunpack.c.h.b16 %v1923
    %v2258 = vunpack.c.l.b16 %v1924
    %v2259 = vunpack.c.h.b16 %v1924
    %v2260 = vunpack.c.l.b16 %v1925
    %v2261 = vunpack.c.h.b16 %v1925
    %v2262 = vunpack.c.l.b16 %v1926
    %v2263 = vunpack.c.h.b16 %v1926
    %v2264 = vunpack.c.l.b16 %v1927
    %v2265 = vunpack.c.h.b16 %v1927
    %v2266 = vunpack.c.l.b16 %v1928
    %v2267 = vunpack.c.h.b16 %v1928
    %v2268 = vunpack.c.l.b16 %v1929
    %v2269 = vunpack.c.h.b16 %v1929
    %v2270 = vunpack.c.l.b16 %v1930
    %v2271 = vunpack.c.h.b16 %v1930
    %v2272 = vunpack.c.l.b16 %v1931
    %v2273 = vunpack.c.h.b16 %v1931
    %v2274 = vunpack.c.l.b16 %v1932
    %v2275 = vunpack.c.h.b16 %v1932
    %v2276 = vunpack.c.l.b16 %v1933
    %v2277 = vunpack.c.h.b16 %v1933
    %v2278 = vunpack.c.l.b16 %v1934
    %v2279 = vunpack.c.h.b16 %v1934
    %v2280 = vunpack.c.l.b16 %v1935
    %v2281 = vunpack.c.h.b16 %v1935
    %v2282 = vunpack.c.l.b16 %v1936
    %v2283 = vunpack.c.h.b16 %v1936
    %v2284 = vunpack.c.l.b16 %v1937
    %v2285 = vunpack.c.h.b16 %v1937
    %v2286 = vunpack.c.l.b16 %v1938
    %v2287 = vunpack.c.h.b16 %v1938
    %v2288 = vunpack.c.l.b16 %v1939
    %v2289 = vunpack.c.h.b16 %v1939
    %v2290 = vunpack.c.l.b16 %v1940
    %v2291 = vunpack.c.h.b16 %v1940
    %v2292 = vunpack.c.l.b16 %v1941
    %v2293 = vunpack.c.h.b16 %v1941
    %v2294 = vunpack.c.l.b16 %v1942
    %v2295 = vunpack.c.h.b16 %v1942
    %v2296 = vunpack.c.l.b16 %v1943
    %v2297 = vunpack.c.h.b16 %v1943
    %v2298 = vunpack.c.l.b16 %v1944
    %v2299 = vunpack.c.h.b16 %v1944
    %v2300 = vunpack.c.l.b16 %v1945
    %v2301 = vunpack.c.h.b16 %v1945
    %v2302 = vunpack.c.l.b16 %v1946
    %v2303 = vunpack.c.h.b16 %v1946
    %v2304 = vunpack.c.l.b16 %v1947
    %v2305 = vunpack.c.h.b16 %v1947
    %v2306 = vunpack.c.l.b16 %v1948
    %v2307 = vunpack.c.h.b16 %v1948
    %v2308 = vunpack.c.l.b16 %v1949
    %v2309 = vunpack.c.h.b16 %v1949
    %v2310 = vunpack.c.l.b16 %v1950
    %v2311 = vunpack.c.h.b16 %v1950
    %v2312 = vunpack.c.l.b16 %v1951
    %v2313 = vunpack.c.h.b16 %v1951
    %v2314 = vunpack.c.l.b16 %v1952
    %v2315 = vunpack.c.h.b16 %v1952
    %v2316 = vunpack.c.l.b16 %v1953
    %v2317 = vunpack.c.h.b16 %v1953
    %v2318 = vunpack.c.l.b16 %v1954
    %v2319 = vunpack.c.h.b16 %v1954
    %v2320 = vunpack.c.l.b16 %v1955
    %v2321 = vunpack.c.h.b16 %v1955
    %v2322 = vunpack.c.l.b16 %v1956
    %v2323 = vunpack.c.h.b16 %v1956
    %v2324 = vunpack.c.l.b16 %v1957
    %v2325 = vunpack.c.h.b16 %v1957
    %v2326 = vunpack.c.l.b16 %v1958
    %v2327 = vunpack.c.h.b16 %v1958
    %v2328 = vunpack.c.l.b16 %v1959
    %v2329 = vunpack.c.h.b16 %v1959
    %v2330 = vunpack.c.l.b16 %v1960
    %v2331 = vunpack.c.h.b16 %v1960
    %v2332 = vunpack.c.l.b16 %v1961
    %v2333 = vunpack.c.h.b16 %v1961
    %v2334 = vunpack.c.l.b16 %v1962
    %v2335 = vunpack.c.h.b16 %v1962
    %v2336 = vunpack.c.l.b16 %v1963
    %v2337 = vunpack.c.h.b16 %v1963
    %v2338 = vunpack.c.l.b16 %v1964
    %v2339 = vunpack.c.h.b16 %v1964
    %v2340 = vunpack.c.l.b16 %v1965
    %v2341 = vunpack.c.h.b16 %v1965
    %v2342 = vunpack.c.l.b16 %v1966
    %v2343 = vunpack.c.h.b16 %v1966
    %v2344 = vunpack.c.l.b16 %v1967
    %v2345 = vunpack.c.h.b16 %v1967
    %v2346 = vunpack.c.l.b16 %v1968
    %v2347 = vunpack.c.h.b16 %v1968
    %v2348 = vunpack.c.l.b16 %v1969
    %v2349 = vunpack.c.h.b16 %v1969
    %v2350 = vunpack.c.l.b16 %v1970
    %v2351 = vunpack.c.h.b16 %v1970
    %v2352 = vunpack.c.l.b16 %v1971
    %v2353 = vunpack.c.h.b16 %v1971
    %v2354 = vunpack.c.l.b16 %v1972
    %v2355 = vunpack.c.h.b16 %v1972
    %v2356 = vunpack.c.l.b16 %v1973
    %v2357 = vunpack.c.h.b16 %v1973
    %v2358 = vunpack.c.l.b16 %v1974
    %v2359 = vunpack.c.h.b16 %v1974
    %v2360 = vunpack.c.l.b16 %v1975
    %v2361 = vunpack.c.h.b16 %v1975
    %v2362 = vunpack.c.l.b16 %v1976
    %v2363 = vunpack.c.h.b16 %v1976
    %v2364 = vunpack.c.l.b16 %v1977
    %v2365 = vunpack.c.h.b16 %v1977
    %v2366 = vunpack.c.l.b16 %v1978
    %v2367 = vunpack.c.h.b16 %v1978
    %v2368 = vunpack.c.l.b16 %v1979
    %v2369 = vunpack.c.h.b16 %v1979
    %v2370 = vunpack.c.l.b16 %v1980
    %v2371 = vunpack.c.h.b16 %v1980
    %v2372 = vunpack.c.l.b16 %v1981
    %v2373 = vunpack.c.h.b16 %v1981
    %v2374 = vunpack.c.l.b16 %v1982
    %v2375 = vunpack.c.h.b16 %v1982
    %v2376 = vunpack.c.l.b16 %v1983
    %v2377 = vunpack.c.h.b16 %v1983
    %v2378 = vunpack.c.l.b16 %v1984
    %v2379 = vunpack.c.h.b16 %v1984
    %v2380 = vunpack.c.l.b16 %v1985
    %v2381 = vunpack.c.h.b16 %v1985
    %v2382 = vunpack.c.l.b16 %v1986
    %v2383 = vunpack.c.h.b16 %v1986
    %v2384 = vunpack.c.l.b16 %v1987
    %v2385 = vunpack.c.h.b16 %v1987
    %v2386 = vunpack.c.l.b16 %v1988
    %v2387 = vunpack.c.h.b16 %v1988
    %v2388 = vunpack.c.l.b16 %v1989
    %v2389 = vunpack.c.h.b16 %v1989
    %v2390 = vunpack.c.l.b16 %v1990
    %v2391 = vunpack.c.h.b16 %v1990
    %v2392 = vunpack.c.l.b16 %v1991
    %v2393 = vunpack.c.h.b16 %v1991
    %v2394 = vunpack.c.l.b16 %v1992
    %v2395 = vunpack.c.h.b16 %v1992
    %v2396 = vunpack.c.l.b16 %v1993
    %v2397 = vunpack.c.h.b16 %v1993
    %v2398 = vunpack.c.l.b16 %v1994
    %v2399 = vunpack.c.h.b16 %v1994
    %v2400 = vunpack.c.l.b16 %v1995
    %v2401 = vunpack.c.h.b16 %v1995
    %v2402 = vunpack.c.l.b16 %v1996
    %v2403 = vunpack.c.h.b16 %v1996
    %v2404 = vunpack.c.l.b16 %v1997
    %v2405 = vunpack.c.h.b16 %v1997
    %v2406 = vunpack.c.l.b16 %v1998
    %v2407 = vunpack.c.h.b16 %v1998
    %v2408 = vunpack.c.l.b16 %v1999
    %v2409 = vunpack.c.h.b16 %v1999
    %v2410 = vunpack.c.l.b16 %v2000
    %v2411 = vunpack.c.h.b16 %v2000
    %v2412 = vunpack.c.l.b16 %v2001
    %v2413 = vunpack.c.h.b16 %v2001
    %v2414 = vunpack.c.l.b16 %v2002
    %v2415 = vunpack.c.h.b16 %v2002
    %v2416 = vunpack.c.l.b16 %v2003
    %v2417 = vunpack.c.h.b16 %v2003
    %v2418 = vunpack.c.l.b16 %v2004
    %v2419 = vunpack.c.h.b16 %v2004
    %v2420 = vunpack.c.l.b16 %v2005
    %v2421 = vunpack.c.h.b16 %v2005
    %v2422 = vunpack.c.l.b16 %v2006
    %v2423 = vunpack.c.h.b16 %v2006
    %v2424 = vunpack.c.l.b16 %v2007
    %v2425 = vunpack.c.h.b16 %v2007
    %v2426 = vunpack.c.l.b16 %v2008
    %v2427 = vunpack.c.h.b16 %v2008
    %v2428 = vunpack.c.l.b16 %v2009
    %v2429 = vunpack.c.h.b16 %v2009
    %v2430 = vunpack.c.l.b16 %v2010
    %v2431 = vunpack.c.h.b16 %v2010
    %v2432 = vunpack.c.l.b16 %v2011
    %v2433 = vunpack.c.h.b16 %v2011
    %v2434 = vunpack.c.l.b16 %v2012
    %v2435 = vunpack.c.h.b16 %v2012
    %v2436 = vunpack.c.l.b16 %v2013
    %v2437 = vunpack.c.h.b16 %v2013
    %v2438 = vunpack.c.l.b16 %v2014
    %v2439 = vunpack.c.h.b16 %v2014
    %v2440 = vunpack.c.l.b16 %v2015
    %v2441 = vunpack.c.h.b16 %v2015
    %v2442 = vunpack.c.l.b16 %v2016
    %v2443 = vunpack.c.h.b16 %v2016
    %v2444 = vunpack.c.l.b16 %v2017
    %v2445 = vunpack.c.h.b16 %v2017
    %v2446 = vpack.c.b16 %v2198, %v2190
    %v2447 = vpack.c.b16 %v2199, %v2191
    %v2448 = vpack.c.b16 %v2200, %v2192
    %v2449 = vpack.c.b16 %v2201, %v2193
    %v2450 = vpack.c.b16 %v2202, %v2194
    %v2451 = vpack.c.b16 %v2203, %v2195
    %v2452 = vpack.c.b16 %v2204, %v2196
    %v2453 = vpack.c.b16 %v2205, %v2197
    %v2454 = vpack.c.b16 %v2214, %v2206
    %v2455 = vpack.c.b16 %v2215, %v2207
    %v2456 = vpack.c.b16 %v2216, %v2208
    %v2457 = vpack.c.b16 %v2217, %v2209
    %v2458 = vpack.c.b16 %v2218, %v2210
    %v2459 = vpack.c.b16 %v2219, %v2211
    %v2460 = vpack.c.b16 %v2220, %v2212
    %v2461 = vpack.c.b16 %v2221, %v2213
    %v2462 = vpack.c.b16 %v2230, %v2222
    %v2463 = vpack.c.b16 %v2231, %v2223
    %v2464 = vpack.c.b16 %v2232, %v2224
    %v2465 = vpack.c.b16 %v2233, %v2225
    %v2466 = vpack.c.b16 %v2234, %v2226
    %v2467 = vpack.c.b16 %v2235, %v2227
    %v2468 = vpack.c.b16 %v2236, %v2228
    %v2469 = vpack.c.b16 %v2237, %v2229
    %v2470 = vpack.c.b16 %v2246, %v2238
    %v2471 = vpack.c.b16 %v2247, %v2239
    %v2472 = vpack.c.b16 %v2248, %v2240
    %v2473 = vpack.c.b16 %v2249, %v2241
    %v2474 = vpack.c.b16 %v2250, %v2242
    %v2475 = vpack.c.b16 %v2251, %v2243
    %v2476 = vpack.c.b16 %v2252, %v2244
    %v2477 = vpack.c.b16 %v2253, %v2245
    %v2478 = vpack.c.b16 %v2262, %v2254
    %v2479 = vpack.c.b16 %v2263, %v2255
    %v2480 = vpack.c.b16 %v2264, %v2256
    %v2481 = vpack.c.b16 %v2265, %v2257
    %v2482 = vpack.c.b16 %v2266, %v2258
    %v2483 = vpack.c.b16 %v2267, %v2259
    %v2484 = vpack.c.b16 %v2268, %v2260
    %v2485 = vpack.c.b16 %v2269, %v2261
    %v2486 = vpack.c.b16 %v2278, %v2270
    %v2487 = vpack.c.b16 %v2279, %v2271
    %v2488 = vpack.c.b16 %v2280, %v2272
    %v2489 = vpack.c.b16 %v2281, %v2273
    %v2490 = vpack.c.b16 %v2282, %v2274
    %v2491 = vpack.c.b16 %v2283, %v2275
    %v2492 = vpack.c.b16 %v2284, %v2276
    %v2493 = vpack.c.b16 %v2285, %v2277
    %v2494 = vpack.c.b16 %v2294, %v2286
    %v2495 = vpack.c.b16 %v2295, %v2287
    %v2496 = vpack.c.b16 %v2296, %v2288
    %v2497 = vpack.c.b16 %v2297, %v2289
    %v2498 = vpack.c.b16 %v2298, %v2290
    %v2499 = vpack.c.b16 %v2299, %v2291
    %v2500 = vpack.c.b16 %v2300, %v2292
    %v2501 = vpack.c.b16 %v2301, %v2293
    %v2502 = vpack.c.b16 %v2310, %v2302
    %v2503 = vpack.c.b16 %v2311, %v2303
    %v2504 = vpack.c.b16 %v2312, %v2304
    %v2505 = vpack.c.b16 %v2313, %v2305
    %v2506 = vpack.c.b16 %v2314, %v2306
    %v2507 = vpack.c.b16 %v2315, %v2307
    %v2508 = vpack.c.b16 %v2316, %v2308
    %v2509 = vpack.c.b16 %v2317, %v2309
    %v2510 = vpack.c.b16 %v2326, %v2318
    %v2511 = vpack.c.b16 %v2327, %v2319
    %v2512 = vpack.c.b16 %v2328, %v2320
    %v2513 = vpack.c.b16 %v2329, %v2321
    %v2514 = vpack.c.b16 %v2330, %v2322
    %v2515 = vpack.c.b16 %v2331, %v2323
    %v2516 = vpack.c.b16 %v2332, %v2324
    %v2517 = vpack.c.b16 %v2333, %v2325
    %v2518 = vpack.c.b16 %v2342, %v2334
    %v2519 = vpack.c.b16 %v2343, %v2335
    %v2520 = vpack.c.b16 %v2344, %v2336
    %v2521 = vpack.c.b16 %v2345, %v2337
    %v2522 = vpack.c.b16 %v2346, %v2338
    %v2523 = vpack.c.b16 %v2347, %v2339
    %v2524 = vpack.c.b16 %v2348, %v2340
    %v2525 = vpack.c.b16 %v2349, %v2341
    %v2526 = vpack.c.b16 %v2358, %v2350
    %v2527 = vpack.c.b16 %v2359, %v2351
    %v2528 = vpack.c.b16 %v2360, %v2352
    %v2529 = vpack.c.b16 %v2361, %v2353
    %v2530 = vpack.c.b16 %v2362, %v2354
    %v2531 = vpack.c.b16 %v2363, %v2355
    %v2532 = vpack.c.b16 %v2364, %v2356
    %v2533 = vpack.c.b16 %v2365, %v2357
    %v2534 = vpack.c.b16 %v2374, %v2366
    %v2535 = vpack.c.b16 %v2375, %v2367
    %v2536 = vpack.c.b16 %v2376, %v2368
    %v2537 = vpack.c.b16 %v2377, %v2369
    %v2538 = vpack.c.b16 %v2378, %v2370
    %v2539 = vpack.c.b16 %v2379, %v2371
    %v2540 = vpack.c.b16 %v2380, %v2372
    %v2541 = vpack.c.b16 %v2381, %v2373
    %v2542 = vpack.c.b16 %v2390, %v2382
    %v2543 = vpack.c.b16 %v2391, %v2383
    %v2544 = vpack.c.b16 %v2392, %v2384
    %v2545 = vpack.c.b16 %v2393, %v2385
    %v2546 = vpack.c.b16 %v2394, %v2386
    %v2547 = vpack.c.b16 %v2395, %v2387
    %v2548 = vpack.c.b16 %v2396, %v2388
    %v2549 = vpack.c.b16 %v2397, %v2389
    %v2550 = vpack.c.b16 %v2406, %v2398
    %v2551 = vpack.c.b16 %v2407, %v2399
    %v2552 = vpack.c.b16 %v2408, %v2400
    %v2553 = vpack.c.b16 %v2409, %v2401
    %v2554 = vpack.c.b16 %v2410, %v2402
    %v2555 = vpack.c.b16 %v2411, %v2403
    %v2556 = vpack.c.b16 %v2412, %v2404
    %v2557 = vpack.c.b16 %v2413, %v2405
    %v2558 = vpack.c.b16 %v2422, %v2414
    %v2559 = vpack.c.b16 %v2423, %v2415
    %v2560 = vpack.c.b16 %v2424, %v2416
    %v2561 = vpack.c.b16 %v2425, %v2417
    %v2562 = vpack.c.b16 %v2426, %v2418
    %v2563 = vpack.c.b16 %v2427, %v2419
    %v2564 = vpack.c.b16 %v2428, %v2420
    %v2565 = vpack.c.b16 %v2429, %v2421
    %v2566 = vpack.c.b16 %v2438, %v2430
    %v2567 = vpack.c.b16 %v2439, %v2431
    %v2568 = vpack.c.b16 %v2440, %v2432
    %v2569 = vpack.c.b16 %v2441, %v2433
    %v2570 = vpack.c.b16 %v2442, %v2434
    %v2571 = vpack.c.b16 %v2443, %v2435
    %v2572 = vpack.c.b16 %v2444, %v2436
    %v2573 = vpack.c.b16 %v2445, %v2437
    %2702 = vmatprep.subr.bf16.mxu0 %v2447
    %2703 = vmatpush1.bf16.msra.mxu0 %v2446
    %2704 = vmatprep.subr.bf16.mxu0 %v2455
    %2705 = vmatpush1.bf16.msra.mxu0 %v2454
    %2706 = vmatprep.subr.bf16.mxu0 %v2463
    %2707 = vmatpush1.bf16.msra.mxu0 %v2462
    %2708 = vmatprep.subr.bf16.mxu0 %v2471
    %2709 = vmatpush1.bf16.msra.mxu0 %v2470
    %2710 = vmatprep.subr.bf16.mxu0 %v2479
    %2711 = vmatpush1.bf16.msra.mxu0 %v2478
    %2712 = vmatprep.subr.bf16.mxu0 %v2487
    %2713 = vmatpush1.bf16.msra.mxu0 %v2486
    %2714 = vmatprep.subr.bf16.mxu0 %v2495
    %2715 = vmatpush1.bf16.msra.mxu0 %v2494
    %2716 = vmatprep.subr.bf16.mxu0 %v2503
    %2717 = vmatpush1.bf16.msra.mxu0 %v2502
    %2718 = vmatprep.subr.bf16.mxu0 %v2511
    %2719 = vmatpush1.bf16.msra.mxu0 %v2510
    %2720 = vmatprep.subr.bf16.mxu0 %v2519
    %2721 = vmatpush1.bf16.msra.mxu0 %v2518
    %2722 = vmatprep.subr.bf16.mxu0 %v2527
    %2723 = vmatpush1.bf16.msra.mxu0 %v2526
    %2724 = vmatprep.subr.bf16.mxu0 %v2535
    %2725 = vmatpush1.bf16.msra.mxu0 %v2534
    %2726 = vmatprep.subr.bf16.mxu0 %v2543
    %2727 = vmatpush1.bf16.msra.mxu0 %v2542
    %2728 = vmatprep.subr.bf16.mxu0 %v2551
    %2729 = vmatpush1.bf16.msra.mxu0 %v2550
    %2730 = vmatprep.subr.bf16.mxu0 %v2559
    %2731 = vmatpush1.bf16.msra.mxu0 %v2558
    %2732 = vmatprep.subr.bf16.mxu0 %v2567
    %2733 = vmatpush1.bf16.msra.mxu0 %v2566
    %2734 = vmatprep.mubr.bf16.mxu0 %v2019
    %2735 = vmatmul.mubr.bf16.gmra.mrb[0].mxu0 %v2018
    %v2736 = vpop.f32.mrb[0].mxu0
    %v2737 = vadd.f32 %v2025, %v2736
    %v2738 = vpop.f32.mrb[0].mxu0
    %v2739 = vadd.f32 %v2029, %v2738
    %v2740 = vpop.f32.mrb[0].mxu0
    %v2741 = vadd.f32 %v2025, %v2740
    %v2742 = vpop.f32.mrb[0].mxu0
    %v2743 = vadd.f32 %v2029, %v2742
    %2744 = vdwg.mxu0
    %2745 = vmatprep.subr.bf16.mxu0 %v2449
    %2746 = vmatpush1.bf16.msra.mxu0 %v2448
    %2747 = vmatprep.subr.bf16.mxu0 %v2457
    %2748 = vmatpush1.bf16.msra.mxu0 %v2456
    %2749 = vmatprep.subr.bf16.mxu0 %v2465
    %2750 = vmatpush1.bf16.msra.mxu0 %v2464
    %2751 = vmatprep.subr.bf16.mxu0 %v2473
    %2752 = vmatpush1.bf16.msra.mxu0 %v2472
    %2753 = vmatprep.subr.bf16.mxu0 %v2481
    %2754 = vmatpush1.bf16.msra.mxu0 %v2480
    %2755 = vmatprep.subr.bf16.mxu0 %v2489
    %2756 = vmatpush1.bf16.msra.mxu0 %v2488
    %2757 = vmatprep.subr.bf16.mxu0 %v2497
    %2758 = vmatpush1.bf16.msra.mxu0 %v2496
    %2759 = vmatprep.subr.bf16.mxu0 %v2505
    %2760 = vmatpush1.bf16.msra.mxu0 %v2504
    %2761 = vmatprep.subr.bf16.mxu0 %v2513
    %2762 = vmatpush1.bf16.msra.mxu0 %v2512
    %2763 = vmatprep.subr.bf16.mxu0 %v2521
    %2764 = vmatpush1.bf16.msra.mxu0 %v2520
    %2765 = vmatprep.subr.bf16.mxu0 %v2529
    %2766 = vmatpush1.bf16.msra.mxu0 %v2528
    %2767 = vmatprep.subr.bf16.mxu0 %v2537
    %2768 = vmatpush1.bf16.msra.mxu0 %v2536
    %2769 = vmatprep.subr.bf16.mxu0 %v2545
    %2770 = vmatpush1.bf16.msra.mxu0 %v2544
    %2771 = vmatprep.subr.bf16.mxu0 %v2553
    %2772 = vmatpush1.bf16.msra.mxu0 %v2552
    %2773 = vmatprep.subr.bf16.mxu0 %v2561
    %2774 = vmatpush1.bf16.msra.mxu0 %v2560
    %2775 = vmatprep.subr.bf16.mxu0 %v2569
    %2776 = vmatpush1.bf16.msra.mxu0 %v2568
    %2777 = vmatprep.mubr.bf16.mxu0 %v2019
    %2778 = vmatmul.mubr.bf16.gmra.mrb[0].mxu0 %v2018
    %v2779 = vpop.f32.mrb[0].mxu0
    %v2780 = vadd.f32 %v2033, %v2779
    %v2781 = vpop.f32.mrb[0].mxu0
    %v2782 = vadd.f32 %v2037, %v2781
    %v2783 = vpop.f32.mrb[0].mxu0
    %v2784 = vadd.f32 %v2033, %v2783
    %v2785 = vpop.f32.mrb[0].mxu0
    %v2786 = vadd.f32 %v2037, %v2785
    %2787 = vdwg.mxu0
    %2788 = vmatprep.subr.bf16.mxu0 %v2451
    %2789 = vmatpush1.bf16.msra.mxu0 %v2450
    %2790 = vmatprep.subr.bf16.mxu0 %v2459
    %2791 = vmatpush1.bf16.msra.mxu0 %v2458
    %2792 = vmatprep.subr.bf16.mxu0 %v2467
    %2793 = vmatpush1.bf16.msra.mxu0 %v2466
    %2794 = vmatprep.subr.bf16.mxu0 %v2475
    %2795 = vmatpush1.bf16.msra.mxu0 %v2474
    %2796 = vmatprep.subr.bf16.mxu0 %v2483
    %2797 = vmatpush1.bf16.msra.mxu0 %v2482
    %2798 = vmatprep.subr.bf16.mxu0 %v2491
    %2799 = vmatpush1.bf16.msra.mxu0 %v2490
    %2800 = vmatprep.subr.bf16.mxu0 %v2499
    %2801 = vmatpush1.bf16.msra.mxu0 %v2498
    %2802 = vmatprep.subr.bf16.mxu0 %v2507
    %2803 = vmatpush1.bf16.msra.mxu0 %v2506
    %2804 = vmatprep.subr.bf16.mxu0 %v2515
    %2805 = vmatpush1.bf16.msra.mxu0 %v2514
    %2806 = vmatprep.subr.bf16.mxu0 %v2523
    %2807 = vmatpush1.bf16.msra.mxu0 %v2522
    %2808 = vmatprep.subr.bf16.mxu0 %v2531
    %2809 = vmatpush1.bf16.msra.mxu0 %v2530
    %2810 = vmatprep.subr.bf16.mxu0 %v2539
    %2811 = vmatpush1.bf16.msra.mxu0 %v2538
    %2812 = vmatprep.subr.bf16.mxu0 %v2547
    %2813 = vmatpush1.bf16.msra.mxu0 %v2546
    %2814 = vmatprep.subr.bf16.mxu0 %v2555
    %2815 = vmatpush1.bf16.msra.mxu0 %v2554
    %2816 = vmatprep.subr.bf16.mxu0 %v2563
    %2817 = vmatpush1.bf16.msra.mxu0 %v2562
    %2818 = vmatprep.subr.bf16.mxu0 %v2571
    %2819 = vmatpush1.bf16.msra.mxu0 %v2570
    %2820 = vmatprep.mubr.bf16.mxu0 %v2019
    %2821 = vmatmul.mubr.bf16.gmra.mrb[0].mxu0 %v2018
    %v2822 = vpop.f32.mrb[0].mxu0
    %v2823 = vadd.f32 %v2041, %v2822
    %v2824 = vpop.f32.mrb[0].mxu0
    %v2825 = vadd.f32 %v2045, %v2824
    %v2826 = vpop.f32.mrb[0].mxu0
    %v2827 = vadd.f32 %v2041, %v2826
    %v2828 = vpop.f32.mrb[0].mxu0
    %v2829 = vadd.f32 %v2045, %v2828
    %2830 = vdwg.mxu0
    %2831 = vmatprep.subr.bf16.mxu0 %v2453
    %2832 = vmatpush1.bf16.msra.mxu0 %v2452
    %2833 = vmatprep.subr.bf16.mxu0 %v2461
    %2834 = vmatpush1.bf16.msra.mxu0 %v2460
    %2835 = vmatprep.subr.bf16.mxu0 %v2469
    %2836 = vmatpush1.bf16.msra.mxu0 %v2468
    %2837 = vmatprep.subr.bf16.mxu0 %v2477
    %2838 = vmatpush1.bf16.msra.mxu0 %v2476
    %2839 = vmatprep.subr.bf16.mxu0 %v2485
    %2840 = vmatpush1.bf16.msra.mxu0 %v2484
    %2841 = vmatprep.subr.bf16.mxu0 %v2493
    %2842 = vmatpush1.bf16.msra.mxu0 %v2492
    %2843 = vmatprep.subr.bf16.mxu0 %v2501
    %2844 = vmatpush1.bf16.msra.mxu0 %v2500
    %2845 = vmatprep.subr.bf16.mxu0 %v2509
    %2846 = vmatpush1.bf16.msra.mxu0 %v2508
    %2847 = vmatprep.subr.bf16.mxu0 %v2517
    %2848 = vmatpush1.bf16.msra.mxu0 %v2516
    %2849 = vmatprep.subr.bf16.mxu0 %v2525
    %2850 = vmatpush1.bf16.msra.mxu0 %v2524
    %2851 = vmatprep.subr.bf16.mxu0 %v2533
    %2852 = vmatpush1.bf16.msra.mxu0 %v2532
    %2853 = vmatprep.subr.bf16.mxu0 %v2541
    %2854 = vmatpush1.bf16.msra.mxu0 %v2540
    %2855 = vmatprep.subr.bf16.mxu0 %v2549
    %2856 = vmatpush1.bf16.msra.mxu0 %v2548
    %2857 = vmatprep.subr.bf16.mxu0 %v2557
    %2858 = vmatpush1.bf16.msra.mxu0 %v2556
    %2859 = vmatprep.subr.bf16.mxu0 %v2565
    %2860 = vmatpush1.bf16.msra.mxu0 %v2564
    %2861 = vmatprep.subr.bf16.mxu0 %v2573
    %2862 = vmatpush1.bf16.msra.mxu0 %v2572
    %2863 = vmatprep.mubr.bf16.mxu0 %v2019
    %2864 = vmatmul.mubr.bf16.gmra.mrb[0].mxu0 %v2018
    %v2865 = vpop.f32.mrb[0].mxu0
    %v2866 = vadd.f32 %v2049, %v2865
    %v2867 = vpop.f32.mrb[0].mxu0
    %v2868 = vadd.f32 %v2053, %v2867
    %v2869 = vpop.f32.mrb[0].mxu0
    %v2870 = vadd.f32 %v2049, %v2869
    %v2871 = vpop.f32.mrb[0].mxu0
    %v2872 = vadd.f32 %v2053, %v2871
    %2873 = vdwg.mxu0
    %v2874 = vmul.f32 %v2737, 0.5
    %v2875 = vmul.f32 %v2739, 0.5
    %v2876 = vmul.f32 %v2780, 0.5
    %v2877 = vmul.f32 %v2782, 0.5
    %v2878 = vmul.f32 %v2823, 0.5
    %v2879 = vmul.f32 %v2825, 0.5
    %v2880 = vmul.f32 %v2866, 0.5
    %v2881 = vmul.f32 %v2868, 0.5
    %v2882 = vmul.f32 %v2741, 0.5
    %v2883 = vmul.f32 %v2743, 0.5
    %v2884 = vmul.f32 %v2784, 0.5
    %v2885 = vmul.f32 %v2786, 0.5
    %v2886 = vmul.f32 %v2827, 0.5
    %v2887 = vmul.f32 %v2829, 0.5
    %v2888 = vmul.f32 %v2870, 0.5
    %v2889 = vmul.f32 %v2872, 0.5
    %v2890 = vmul.f32 %v2737, 0.044715
    %v2891 = vmul.f32 %v2739, 0.044715
    %v2892 = vmul.f32 %v2780, 0.044715
    %v2893 = vmul.f32 %v2782, 0.044715
    %v2894 = vmul.f32 %v2823, 0.044715
    %v2895 = vmul.f32 %v2825, 0.044715
    %v2896 = vmul.f32 %v2866, 0.044715
    %v2897 = vmul.f32 %v2868, 0.044715
    %v2898 = vmul.f32 %v2741, 0.044715
    %v2899 = vmul.f32 %v2743, 0.044715
    %v2900 = vmul.f32 %v2784, 0.044715
    %v2901 = vmul.f32 %v2786, 0.044715
    %v2902 = vmul.f32 %v2827, 0.044715
    %v2903 = vmul.f32 %v2829, 0.044715
    %v2904 = vmul.f32 %v2870, 0.044715
    %v2905 = vmul.f32 %v2872, 0.044715
    %v2906 = vmul.f32 %v2890, %v2737
    %v2907 = vmul.f32 %v2891, %v2739
    %v2908 = vmul.f32 %v2892, %v2780
    %v2909 = vmul.f32 %v2893, %v2782
    %v2910 = vmul.f32 %v2894, %v2823
    %v2911 = vmul.f32 %v2895, %v2825
    %v2912 = vmul.f32 %v2896, %v2866
    %v2913 = vmul.f32 %v2897, %v2868
    %v2914 = vmul.f32 %v2898, %v2741
    %v2915 = vmul.f32 %v2899, %v2743
    %v2916 = vmul.f32 %v2900, %v2784
    %v2917 = vmul.f32 %v2901, %v2786
    %v2918 = vmul.f32 %v2902, %v2827
    %v2919 = vmul.f32 %v2903, %v2829
    %v2920 = vmul.f32 %v2904, %v2870
    %v2921 = vmul.f32 %v2905, %v2872
    %v2922 = vmul.f32 %v2906, %v2737
    %v2923 = vmul.f32 %v2907, %v2739
    %v2924 = vmul.f32 %v2908, %v2780
    %v2925 = vmul.f32 %v2909, %v2782
    %v2926 = vmul.f32 %v2910, %v2823
    %v2927 = vmul.f32 %v2911, %v2825
    %v2928 = vmul.f32 %v2912, %v2866
    %v2929 = vmul.f32 %v2913, %v2868
    %v2930 = vmul.f32 %v2914, %v2741
    %v2931 = vmul.f32 %v2915, %v2743
    %v2932 = vmul.f32 %v2916, %v2784
    %v2933 = vmul.f32 %v2917, %v2786
    %v2934 = vmul.f32 %v2918, %v2827
    %v2935 = vmul.f32 %v2919, %v2829
    %v2936 = vmul.f32 %v2920, %v2870
    %v2937 = vmul.f32 %v2921, %v2872
    %v2938 = vadd.f32 %v2737, %v2922
    %v2939 = vadd.f32 %v2739, %v2923
    %v2940 = vadd.f32 %v2780, %v2924
    %v2941 = vadd.f32 %v2782, %v2925
    %v2942 = vadd.f32 %v2823, %v2926
    %v2943 = vadd.f32 %v2825, %v2927
    %v2944 = vadd.f32 %v2866, %v2928
    %v2945 = vadd.f32 %v2868, %v2929
    %v2946 = vadd.f32 %v2741, %v2930
    %v2947 = vadd.f32 %v2743, %v2931
    %v2948 = vadd.f32 %v2784, %v2932
    %v2949 = vadd.f32 %v2786, %v2933
    %v2950 = vadd.f32 %v2827, %v2934
    %v2951 = vadd.f32 %v2829, %v2935
    %v2952 = vadd.f32 %v2870, %v2936
    %v2953 = vadd.f32 %v2872, %v2937
    %v2954 = vmul.f32 %v2938, 0.7978846
    %v2955 = vmul.f32 %v2939, 0.7978846
    %v2956 = vmul.f32 %v2940, 0.7978846
    %v2957 = vmul.f32 %v2941, 0.7978846
    %v2958 = vmul.f32 %v2942, 0.7978846
    %v2959 = vmul.f32 %v2943, 0.7978846
    %v2960 = vmul.f32 %v2944, 0.7978846
    %v2961 = vmul.f32 %v2945, 0.7978846
    %v2962 = vmul.f32 %v2946, 0.7978846
    %v2963 = vmul.f32 %v2947, 0.7978846
    %v2964 = vmul.f32 %v2948, 0.7978846
    %v2965 = vmul.f32 %v2949, 0.7978846
    %v2966 = vmul.f32 %v2950, 0.7978846
    %v2967 = vmul.f32 %v2951, 0.7978846
    %v2968 = vmul.f32 %v2952, 0.7978846
    %v2969 = vmul.f32 %v2953, 0.7978846
    %v2970 = vtanh.pop %v2954
    %v2971 = vtanh.pop %v2955
    %v2972 = vtanh.pop %v2956
    %v2973 = vtanh.pop %v2957
    %v2974 = vtanh.pop %v2958
    %v2975 = vtanh.pop %v2959
    %v2976 = vtanh.pop %v2960
    %v2977 = vtanh.pop %v2961
    %v2978 = vtanh.pop %v2962
    %v2979 = vtanh.pop %v2963
    %v2980 = vtanh.pop %v2964
    %v2981 = vtanh.pop %v2965
    %v2982 = vtanh.pop %v2966
    %v2983 = vtanh.pop %v2967
    %v2984 = vtanh.pop %v2968
    %v2985 = vtanh.pop %v2969
    %v2986 = vadd.f32 %v2970, 1.0
    %v2987 = vadd.f32 %v2971, 1.0
    %v2988 = vadd.f32 %v2972, 1.0
    %v2989 = vadd.f32 %v2973, 1.0
    %v2990 = vadd.f32 %v2974, 1.0
    %v2991 = vadd.f32 %v2975, 1.0
    %v2992 = vadd.f32 %v2976, 1.0
    %v2993 = vadd.f32 %v2977, 1.0
    %v2994 = vadd.f32 %v2978, 1.0
    %v2995 = vadd.f32 %v2979, 1.0
    %v2996 = vadd.f32 %v2980, 1.0
    %v2997 = vadd.f32 %v2981, 1.0
    %v2998 = vadd.f32 %v2982, 1.0
    %v2999 = vadd.f32 %v2983, 1.0
    %v3000 = vadd.f32 %v2984, 1.0
    %v3001 = vadd.f32 %v2985, 1.0
    %v3002 = vmul.f32 %v2874, %v2986
    %v3003 = vmul.f32 %v2875, %v2987
    %v3004 = vmul.f32 %v2876, %v2988
    %v3005 = vmul.f32 %v2877, %v2989
    %v3006 = vmul.f32 %v2878, %v2990
    %v3007 = vmul.f32 %v2879, %v2991
    %v3008 = vmul.f32 %v2880, %v2992
    %v3009 = vmul.f32 %v2881, %v2993
    %v3010 = vmul.f32 %v2882, %v2994
    %v3011 = vmul.f32 %v2883, %v2995
    %v3012 = vmul.f32 %v2884, %v2996
    %v3013 = vmul.f32 %v2885, %v2997
    %v3014 = vmul.f32 %v2886, %v2998
    %v3015 = vmul.f32 %v2887, %v2999
    %v3016 = vmul.f32 %v2888, %v3000
    %v3017 = vmul.f32 %v2889, %v3001
    %v3018 = vld [vmem:[#allocation15] sm:$0xff]
    %v3019 = vld [vmem:[#allocation15 + $0x8] sm:$0xff]
    %v3020 = vld [vmem:[#allocation15 + $0x10] sm:$0xff]
    %v3021 = vld [vmem:[#allocation15 + $0x18] sm:$0xff]
    %v3022 = vld [vmem:[#allocation15 + $0x20] sm:$0xff]
    %v3023 = vld [vmem:[#allocation15 + $0x28] sm:$0xff]
    %v3024 = vld [vmem:[#allocation15 + $0x30] sm:$0xff]
    %v3025 = vld [vmem:[#allocation15 + $0x38] sm:$0xff]
    %v3026 = vld [vmem:[#allocation15 + $0x40] sm:$0xff]
    %v3027 = vld [vmem:[#allocation15 + $0x48] sm:$0xff]
    %v3028 = vld [vmem:[#allocation15 + $0x50] sm:$0xff]
    %v3029 = vld [vmem:[#allocation15 + $0x58] sm:$0xff]
    %v3030 = vld [vmem:[#allocation15 + $0x60] sm:$0xff]
    %v3031 = vld [vmem:[#allocation15 + $0x68] sm:$0xff]
    %v3032 = vld [vmem:[#allocation15 + $0x70] sm:$0xff]
    %v3033 = vld [vmem:[#allocation15 + $0x78] sm:$0xff]
    %v3034 = vld [vmem:[#allocation15 + $0x80] sm:$0xff]
    %v3035 = vld [vmem:[#allocation15 + $0x88] sm:$0xff]
    %v3036 = vld [vmem:[#allocation15 + $0x90] sm:$0xff]
    %v3037 = vld [vmem:[#allocation15 + $0x98] sm:$0xff]
    %v3038 = vld [vmem:[#allocation15 + $0xa0] sm:$0xff]
    %v3039 = vld [vmem:[#allocation15 + $0xa8] sm:$0xff]
    %v3040 = vld [vmem:[#allocation15 + $0xb0] sm:$0xff]
    %v3041 = vld [vmem:[#allocation15 + $0xb8] sm:$0xff]
    %v3042 = vld [vmem:[#allocation15 + $0xc0] sm:$0xff]
    %v3043 = vld [vmem:[#allocation15 + $0xc8] sm:$0xff]
    %v3044 = vld [vmem:[#allocation15 + $0xd0] sm:$0xff]
    %v3045 = vld [vmem:[#allocation15 + $0xd8] sm:$0xff]
    %v3046 = vld [vmem:[#allocation15 + $0xe0] sm:$0xff]
    %v3047 = vld [vmem:[#allocation15 + $0xe8] sm:$0xff]
    %v3048 = vld [vmem:[#allocation15 + $0xf0] sm:$0xff]
    %v3049 = vld [vmem:[#allocation15 + $0xf8] sm:$0xff]
    %v3050 = vld [vmem:[#allocation15 + $0x100] sm:$0xff]
    %v3051 = vld [vmem:[#allocation15 + $0x108] sm:$0xff]
    %v3052 = vld [vmem:[#allocation15 + $0x110] sm:$0xff]
    %v3053 = vld [vmem:[#allocation15 + $0x118] sm:$0xff]
    %v3054 = vld [vmem:[#allocation15 + $0x120] sm:$0xff]
    %v3055 = vld [vmem:[#allocation15 + $0x128] sm:$0xff]
    %v3056 = vld [vmem:[#allocation15 + $0x130] sm:$0xff]
    %v3057 = vld [vmem:[#allocation15 + $0x138] sm:$0xff]
    %v3058 = vld [vmem:[#allocation15 + $0x140] sm:$0xff]
    %v3059 = vld [vmem:[#allocation15 + $0x148] sm:$0xff]
    %v3060 = vld [vmem:[#allocation15 + $0x150] sm:$0xff]
    %v3061 = vld [vmem:[#allocation15 + $0x158] sm:$0xff]
    %v3062 = vld [vmem:[#allocation15 + $0x160] sm:$0xff]
    %v3063 = vld [vmem:[#allocation15 + $0x168] sm:$0xff]
    %v3064 = vld [vmem:[#allocation15 + $0x170] sm:$0xff]
    %v3065 = vld [vmem:[#allocation15 + $0x178] sm:$0xff]
    %v3066 = vld [vmem:[#allocation15 + $0x180] sm:$0xff]
    %v3067 = vld [vmem:[#allocation15 + $0x188] sm:$0xff]
    %v3068 = vld [vmem:[#allocation15 + $0x190] sm:$0xff]
    %v3069 = vld [vmem:[#allocation15 + $0x198] sm:$0xff]
    %v3070 = vld [vmem:[#allocation15 + $0x1a0] sm:$0xff]
    %v3071 = vld [vmem:[#allocation15 + $0x1a8] sm:$0xff]
    %v3072 = vld [vmem:[#allocation15 + $0x1b0] sm:$0xff]
    %v3073 = vld [vmem:[#allocation15 + $0x1b8] sm:$0xff]
    %v3074 = vld [vmem:[#allocation15 + $0x1c0] sm:$0xff]
    %v3075 = vld [vmem:[#allocation15 + $0x1c8] sm:$0xff]
    %v3076 = vld [vmem:[#allocation15 + $0x1d0] sm:$0xff]
    %v3077 = vld [vmem:[#allocation15 + $0x1d8] sm:$0xff]
    %v3078 = vld [vmem:[#allocation15 + $0x1e0] sm:$0xff]
    %v3079 = vld [vmem:[#allocation15 + $0x1e8] sm:$0xff]
    %v3080 = vld [vmem:[#allocation15 + $0x1f0] sm:$0xff]
    %v3081 = vld [vmem:[#allocation15 + $0x1f8] sm:$0xff]
    %v3082 = vld [vmem:[#allocation15 + $0x200] sm:$0xff]
    %v3083 = vld [vmem:[#allocation15 + $0x208] sm:$0xff]
    %v3084 = vld [vmem:[#allocation15 + $0x210] sm:$0xff]
    %v3085 = vld [vmem:[#allocation15 + $0x218] sm:$0xff]
    %v3086 = vld [vmem:[#allocation15 + $0x220] sm:$0xff]
    %v3087 = vld [vmem:[#allocation15 + $0x228] sm:$0xff]
    %v3088 = vld [vmem:[#allocation15 + $0x230] sm:$0xff]
    %v3089 = vld [vmem:[#allocation15 + $0x238] sm:$0xff]
    %v3090 = vld [vmem:[#allocation15 + $0x240] sm:$0xff]
    %v3091 = vld [vmem:[#allocation15 + $0x248] sm:$0xff]
    %v3092 = vld [vmem:[#allocation15 + $0x250] sm:$0xff]
    %v3093 = vld [vmem:[#allocation15 + $0x258] sm:$0xff]
    %v3094 = vld [vmem:[#allocation15 + $0x260] sm:$0xff]
    %v3095 = vld [vmem:[#allocation15 + $0x268] sm:$0xff]
    %v3096 = vld [vmem:[#allocation15 + $0x270] sm:$0xff]
    %v3097 = vld [vmem:[#allocation15 + $0x278] sm:$0xff]
    %v3098 = vld [vmem:[#allocation15 + $0x280] sm:$0xff]
    %v3099 = vld [vmem:[#allocation15 + $0x288] sm:$0xff]
    %v3100 = vld [vmem:[#allocation15 + $0x290] sm:$0xff]
    %v3101 = vld [vmem:[#allocation15 + $0x298] sm:$0xff]
    %v3102 = vld [vmem:[#allocation15 + $0x2a0] sm:$0xff]
    %v3103 = vld [vmem:[#allocation15 + $0x2a8] sm:$0xff]
    %v3104 = vld [vmem:[#allocation15 + $0x2b0] sm:$0xff]
    %v3105 = vld [vmem:[#allocation15 + $0x2b8] sm:$0xff]
    %v3106 = vld [vmem:[#allocation15 + $0x2c0] sm:$0xff]
    %v3107 = vld [vmem:[#allocation15 + $0x2c8] sm:$0xff]
    %v3108 = vld [vmem:[#allocation15 + $0x2d0] sm:$0xff]
    %v3109 = vld [vmem:[#allocation15 + $0x2d8] sm:$0xff]
    %v3110 = vld [vmem:[#allocation15 + $0x2e0] sm:$0xff]
    %v3111 = vld [vmem:[#allocation15 + $0x2e8] sm:$0xff]
    %v3112 = vld [vmem:[#allocation15 + $0x2f0] sm:$0xff]
    %v3113 = vld [vmem:[#allocation15 + $0x2f8] sm:$0xff]
    %v3114 = vld [vmem:[#allocation15 + $0x300] sm:$0xff]
    %v3115 = vld [vmem:[#allocation15 + $0x308] sm:$0xff]
    %v3116 = vld [vmem:[#allocation15 + $0x310] sm:$0xff]
    %v3117 = vld [vmem:[#allocation15 + $0x318] sm:$0xff]
    %v3118 = vld [vmem:[#allocation15 + $0x320] sm:$0xff]
    %v3119 = vld [vmem:[#allocation15 + $0x328] sm:$0xff]
    %v3120 = vld [vmem:[#allocation15 + $0x330] sm:$0xff]
    %v3121 = vld [vmem:[#allocation15 + $0x338] sm:$0xff]
    %v3122 = vld [vmem:[#allocation15 + $0x340] sm:$0xff]
    %v3123 = vld [vmem:[#allocation15 + $0x348] sm:$0xff]
    %v3124 = vld [vmem:[#allocation15 + $0x350] sm:$0xff]
    %v3125 = vld [vmem:[#allocation15 + $0x358] sm:$0xff]
    %v3126 = vld [vmem:[#allocation15 + $0x360] sm:$0xff]
    %v3127 = vld [vmem:[#allocation15 + $0x368] sm:$0xff]
    %v3128 = vld [vmem:[#allocation15 + $0x370] sm:$0xff]
    %v3129 = vld [vmem:[#allocation15 + $0x378] sm:$0xff]
    %v3130 = vld [vmem:[#allocation15 + $0x380] sm:$0xff]
    %v3131 = vld [vmem:[#allocation15 + $0x388] sm:$0xff]
    %v3132 = vld [vmem:[#allocation15 + $0x390] sm:$0xff]
    %v3133 = vld [vmem:[#allocation15 + $0x398] sm:$0xff]
    %v3134 = vld [vmem:[#allocation15 + $0x3a0] sm:$0xff]
    %v3135 = vld [vmem:[#allocation15 + $0x3a8] sm:$0xff]
    %v3136 = vld [vmem:[#allocation15 + $0x3b0] sm:$0xff]
    %v3137 = vld [vmem:[#allocation15 + $0x3b8] sm:$0xff]
    %v3138 = vld [vmem:[#allocation15 + $0x3c0] sm:$0xff]
    %v3139 = vld [vmem:[#allocation15 + $0x3c8] sm:$0xff]
    %v3140 = vld [vmem:[#allocation15 + $0x3d0] sm:$0xff]
    %v3141 = vld [vmem:[#allocation15 + $0x3d8] sm:$0xff]
    %v3142 = vld [vmem:[#allocation15 + $0x3e0] sm:$0xff]
    %v3143 = vld [vmem:[#allocation15 + $0x3e8] sm:$0xff]
    %v3144 = vld [vmem:[#allocation15 + $0x3f0] sm:$0xff]
    %v3145 = vld [vmem:[#allocation15 + $0x3f8] sm:$0xff]
    %v3146 = vpack.c.bf16 %v3010, %v3002
    %v3147 = vpack.c.bf16 %v3011, %v3003
    %v3148 = vpack.c.bf16 %v3012, %v3004
    %v3149 = vpack.c.bf16 %v3013, %v3005
    %v3150 = vpack.c.bf16 %v3014, %v3006
    %v3151 = vpack.c.bf16 %v3015, %v3007
    %v3152 = vpack.c.bf16 %v3016, %v3008
    %v3153 = vpack.c.bf16 %v3017, %v3009
    %v3282 = vunpack.c.l.b16 %v3018
    %v3283 = vunpack.c.h.b16 %v3018
    %v3284 = vunpack.c.l.b16 %v3019
    %v3285 = vunpack.c.h.b16 %v3019
    %v3286 = vunpack.c.l.b16 %v3020
    %v3287 = vunpack.c.h.b16 %v3020
    %v3288 = vunpack.c.l.b16 %v3021
    %v3289 = vunpack.c.h.b16 %v3021
    %v3290 = vunpack.c.l.b16 %v3022
    %v3291 = vunpack.c.h.b16 %v3022
    %v3292 = vunpack.c.l.b16 %v3023
    %v3293 = vunpack.c.h.b16 %v3023
    %v3294 = vunpack.c.l.b16 %v3024
    %v3295 = vunpack.c.h.b16 %v3024
    %v3296 = vunpack.c.l.b16 %v3025
    %v3297 = vunpack.c.h.b16 %v3025
    %v3298 = vunpack.c.l.b16 %v3026
    %v3299 = vunpack.c.h.b16 %v3026
    %v3300 = vunpack.c.l.b16 %v3027
    %v3301 = vunpack.c.h.b16 %v3027
    %v3302 = vunpack.c.l.b16 %v3028
    %v3303 = vunpack.c.h.b16 %v3028
    %v3304 = vunpack.c.l.b16 %v3029
    %v3305 = vunpack.c.h.b16 %v3029
    %v3306 = vunpack.c.l.b16 %v3030
    %v3307 = vunpack.c.h.b16 %v3030
    %v3308 = vunpack.c.l.b16 %v3031
    %v3309 = vunpack.c.h.b16 %v3031
    %v3310 = vunpack.c.l.b16 %v3032
    %v3311 = vunpack.c.h.b16 %v3032
    %v3312 = vunpack.c.l.b16 %v3033
    %v3313 = vunpack.c.h.b16 %v3033
    %v3314 = vunpack.c.l.b16 %v3034
    %v3315 = vunpack.c.h.b16 %v3034
    %v3316 = vunpack.c.l.b16 %v3035
    %v3317 = vunpack.c.h.b16 %v3035
    %v3318 = vunpack.c.l.b16 %v3036
    %v3319 = vunpack.c.h.b16 %v3036
    %v3320 = vunpack.c.l.b16 %v3037
    %v3321 = vunpack.c.h.b16 %v3037
    %v3322 = vunpack.c.l.b16 %v3038
    %v3323 = vunpack.c.h.b16 %v3038
    %v3324 = vunpack.c.l.b16 %v3039
    %v3325 = vunpack.c.h.b16 %v3039
    %v3326 = vunpack.c.l.b16 %v3040
    %v3327 = vunpack.c.h.b16 %v3040
    %v3328 = vunpack.c.l.b16 %v3041
    %v3329 = vunpack.c.h.b16 %v3041
    %v3330 = vunpack.c.l.b16 %v3042
    %v3331 = vunpack.c.h.b16 %v3042
    %v3332 = vunpack.c.l.b16 %v3043
    %v3333 = vunpack.c.h.b16 %v3043
    %v3334 = vunpack.c.l.b16 %v3044
    %v3335 = vunpack.c.h.b16 %v3044
    %v3336 = vunpack.c.l.b16 %v3045
    %v3337 = vunpack.c.h.b16 %v3045
    %v3338 = vunpack.c.l.b16 %v3046
    %v3339 = vunpack.c.h.b16 %v3046
    %v3340 = vunpack.c.l.b16 %v3047
    %v3341 = vunpack.c.h.b16 %v3047
    %v3342 = vunpack.c.l.b16 %v3048
    %v3343 = vunpack.c.h.b16 %v3048
    %v3344 = vunpack.c.l.b16 %v3049
    %v3345 = vunpack.c.h.b16 %v3049
    %v3346 = vunpack.c.l.b16 %v3050
    %v3347 = vunpack.c.h.b16 %v3050
    %v3348 = vunpack.c.l.b16 %v3051
    %v3349 = vunpack.c.h.b16 %v3051
    %v3350 = vunpack.c.l.b16 %v3052
    %v3351 = vunpack.c.h.b16 %v3052
    %v3352 = vunpack.c.l.b16 %v3053
    %v3353 = vunpack.c.h.b16 %v3053
    %v3354 = vunpack.c.l.b16 %v3054
    %v3355 = vunpack.c.h.b16 %v3054
    %v3356 = vunpack.c.l.b16 %v3055
    %v3357 = vunpack.c.h.b16 %v3055
    %v3358 = vunpack.c.l.b16 %v3056
    %v3359 = vunpack.c.h.b16 %v3056
    %v3360 = vunpack.c.l.b16 %v3057
    %v3361 = vunpack.c.h.b16 %v3057
    %v3362 = vunpack.c.l.b16 %v3058
    %v3363 = vunpack.c.h.b16 %v3058
    %v3364 = vunpack.c.l.b16 %v3059
    %v3365 = vunpack.c.h.b16 %v3059
    %v3366 = vunpack.c.l.b16 %v3060
    %v3367 = vunpack.c.h.b16 %v3060
    %v3368 = vunpack.c.l.b16 %v3061
    %v3369 = vunpack.c.h.b16 %v3061
    %v3370 = vunpack.c.l.b16 %v3062
    %v3371 = vunpack.c.h.b16 %v3062
    %v3372 = vunpack.c.l.b16 %v3063
    %v3373 = vunpack.c.h.b16 %v3063
    %v3374 = vunpack.c.l.b16 %v3064
    %v3375 = vunpack.c.h.b16 %v3064
    %v3376 = vunpack.c.l.b16 %v3065
    %v3377 = vunpack.c.h.b16 %v3065
    %v3378 = vunpack.c.l.b16 %v3066
    %v3379 = vunpack.c.h.b16 %v3066
    %v3380 = vunpack.c.l.b16 %v3067
    %v3381 = vunpack.c.h.b16 %v3067
    %v3382 = vunpack.c.l.b16 %v3068
    %v3383 = vunpack.c.h.b16 %v3068
    %v3384 = vunpack.c.l.b16 %v3069
    %v3385 = vunpack.c.h.b16 %v3069
    %v3386 = vunpack.c.l.b16 %v3070
    %v3387 = vunpack.c.h.b16 %v3070
    %v3388 = vunpack.c.l.b16 %v3071
    %v3389 = vunpack.c.h.b16 %v3071
    %v3390 = vunpack.c.l.b16 %v3072
    %v3391 = vunpack.c.h.b16 %v3072
    %v3392 = vunpack.c.l.b16 %v3073
    %v3393 = vunpack.c.h.b16 %v3073
    %v3394 = vunpack.c.l.b16 %v3074
    %v3395 = vunpack.c.h.b16 %v3074
    %v3396 = vunpack.c.l.b16 %v3075
    %v3397 = vunpack.c.h.b16 %v3075
    %v3398 = vunpack.c.l.b16 %v3076
    %v3399 = vunpack.c.h.b16 %v3076
    %v3400 = vunpack.c.l.b16 %v3077
    %v3401 = vunpack.c.h.b16 %v3077
    %v3402 = vunpack.c.l.b16 %v3078
    %v3403 = vunpack.c.h.b16 %v3078
    %v3404 = vunpack.c.l.b16 %v3079
    %v3405 = vunpack.c.h.b16 %v3079
    %v3406 = vunpack.c.l.b16 %v3080
    %v3407 = vunpack.c.h.b16 %v3080
    %v3408 = vunpack.c.l.b16 %v3081
    %v3409 = vunpack.c.h.b16 %v3081
    %v3410 = vunpack.c.l.b16 %v3082
    %v3411 = vunpack.c.h.b16 %v3082
    %v3412 = vunpack.c.l.b16 %v3083
    %v3413 = vunpack.c.h.b16 %v3083
    %v3414 = vunpack.c.l.b16 %v3084
    %v3415 = vunpack.c.h.b16 %v3084
    %v3416 = vunpack.c.l.b16 %v3085
    %v3417 = vunpack.c.h.b16 %v3085
    %v3418 = vunpack.c.l.b16 %v3086
    %v3419 = vunpack.c.h.b16 %v3086
    %v3420 = vunpack.c.l.b16 %v3087
    %v3421 = vunpack.c.h.b16 %v3087
    %v3422 = vunpack.c.l.b16 %v3088
    %v3423 = vunpack.c.h.b16 %v3088
    %v3424 = vunpack.c.l.b16 %v3089
    %v3425 = vunpack.c.h.b16 %v3089
    %v3426 = vunpack.c.l.b16 %v3090
    %v3427 = vunpack.c.h.b16 %v3090
    %v3428 = vunpack.c.l.b16 %v3091
    %v3429 = vunpack.c.h.b16 %v3091
    %v3430 = vunpack.c.l.b16 %v3092
    %v3431 = vunpack.c.h.b16 %v3092
    %v3432 = vunpack.c.l.b16 %v3093
    %v3433 = vunpack.c.h.b16 %v3093
    %v3434 = vunpack.c.l.b16 %v3094
    %v3435 = vunpack.c.h.b16 %v3094
    %v3436 = vunpack.c.l.b16 %v3095
    %v3437 = vunpack.c.h.b16 %v3095
    %v3438 = vunpack.c.l.b16 %v3096
    %v3439 = vunpack.c.h.b16 %v3096
    %v3440 = vunpack.c.l.b16 %v3097
    %v3441 = vunpack.c.h.b16 %v3097
    %v3442 = vunpack.c.l.b16 %v3098
    %v3443 = vunpack.c.h.b16 %v3098
    %v3444 = vunpack.c.l.b16 %v3099
    %v3445 = vunpack.c.h.b16 %v3099
    %v3446 = vunpack.c.l.b16 %v3100
    %v3447 = vunpack.c.h.b16 %v3100
    %v3448 = vunpack.c.l.b16 %v3101
    %v3449 = vunpack.c.h.b16 %v3101
    %v3450 = vunpack.c.l.b16 %v3102
    %v3451 = vunpack.c.h.b16 %v3102
    %v3452 = vunpack.c.l.b16 %v3103
    %v3453 = vunpack.c.h.b16 %v3103
    %v3454 = vunpack.c.l.b16 %v3104
    %v3455 = vunpack.c.h.b16 %v3104
    %v3456 = vunpack.c.l.b16 %v3105
    %v3457 = vunpack.c.h.b16 %v3105
    %v3458 = vunpack.c.l.b16 %v3106
    %v3459 = vunpack.c.h.b16 %v3106
    %v3460 = vunpack.c.l.b16 %v3107
    %v3461 = vunpack.c.h.b16 %v3107
    %v3462 = vunpack.c.l.b16 %v3108
    %v3463 = vunpack.c.h.b16 %v3108
    %v3464 = vunpack.c.l.b16 %v3109
    %v3465 = vunpack.c.h.b16 %v3109
    %v3466 = vunpack.c.l.b16 %v3110
    %v3467 = vunpack.c.h.b16 %v3110
    %v3468 = vunpack.c.l.b16 %v3111
    %v3469 = vunpack.c.h.b16 %v3111
    %v3470 = vunpack.c.l.b16 %v3112
    %v3471 = vunpack.c.h.b16 %v3112
    %v3472 = vunpack.c.l.b16 %v3113
    %v3473 = vunpack.c.h.b16 %v3113
    %v3474 = vunpack.c.l.b16 %v3114
    %v3475 = vunpack.c.h.b16 %v3114
    %v3476 = vunpack.c.l.b16 %v3115
    %v3477 = vunpack.c.h.b16 %v3115
    %v3478 = vunpack.c.l.b16 %v3116
    %v3479 = vunpack.c.h.b16 %v3116
    %v3480 = vunpack.c.l.b16 %v3117
    %v3481 = vunpack.c.h.b16 %v3117
    %v3482 = vunpack.c.l.b16 %v3118
    %v3483 = vunpack.c.h.b16 %v3118
    %v3484 = vunpack.c.l.b16 %v3119
    %v3485 = vunpack.c.h.b16 %v3119
    %v3486 = vunpack.c.l.b16 %v3120
    %v3487 = vunpack.c.h.b16 %v3120
    %v3488 = vunpack.c.l.b16 %v3121
    %v3489 = vunpack.c.h.b16 %v3121
    %v3490 = vunpack.c.l.b16 %v3122
    %v3491 = vunpack.c.h.b16 %v3122
    %v3492 = vunpack.c.l.b16 %v3123
    %v3493 = vunpack.c.h.b16 %v3123
    %v3494 = vunpack.c.l.b16 %v3124
    %v3495 = vunpack.c.h.b16 %v3124
    %v3496 = vunpack.c.l.b16 %v3125
    %v3497 = vunpack.c.h.b16 %v3125
    %v3498 = vunpack.c.l.b16 %v3126
    %v3499 = vunpack.c.h.b16 %v3126
    %v3500 = vunpack.c.l.b16 %v3127
    %v3501 = vunpack.c.h.b16 %v3127
    %v3502 = vunpack.c.l.b16 %v3128
    %v3503 = vunpack.c.h.b16 %v3128
    %v3504 = vunpack.c.l.b16 %v3129
    %v3505 = vunpack.c.h.b16 %v3129
    %v3506 = vunpack.c.l.b16 %v3130
    %v3507 = vunpack.c.h.b16 %v3130
    %v3508 = vunpack.c.l.b16 %v3131
    %v3509 = vunpack.c.h.b16 %v3131
    %v3510 = vunpack.c.l.b16 %v3132
    %v3511 = vunpack.c.h.b16 %v3132
    %v3512 = vunpack.c.l.b16 %v3133
    %v3513 = vunpack.c.h.b16 %v3133
    %v3514 = vunpack.c.l.b16 %v3134
    %v3515 = vunpack.c.h.b16 %v3134
    %v3516 = vunpack.c.l.b16 %v3135
    %v3517 = vunpack.c.h.b16 %v3135
    %v3518 = vunpack.c.l.b16 %v3136
    %v3519 = vunpack.c.h.b16 %v3136
    %v3520 = vunpack.c.l.b16 %v3137
    %v3521 = vunpack.c.h.b16 %v3137
    %v3522 = vunpack.c.l.b16 %v3138
    %v3523 = vunpack.c.h.b16 %v3138
    %v3524 = vunpack.c.l.b16 %v3139
    %v3525 = vunpack.c.h.b16 %v3139
    %v3526 = vunpack.c.l.b16 %v3140
    %v3527 = vunpack.c.h.b16 %v3140
    %v3528 = vunpack.c.l.b16 %v3141
    %v3529 = vunpack.c.h.b16 %v3141
    %v3530 = vunpack.c.l.b16 %v3142
    %v3531 = vunpack.c.h.b16 %v3142
    %v3532 = vunpack.c.l.b16 %v3143
    %v3533 = vunpack.c.h.b16 %v3143
    %v3534 = vunpack.c.l.b16 %v3144
    %v3535 = vunpack.c.h.b16 %v3144
    %v3536 = vunpack.c.l.b16 %v3145
    %v3537 = vunpack.c.h.b16 %v3145
    %v3538 = vpack.c.b16 %v3284, %v3282
    %v3539 = vpack.c.b16 %v3285, %v3283
    %v3540 = vpack.c.b16 %v3288, %v3286
    %v3541 = vpack.c.b16 %v3289, %v3287
    %v3542 = vpack.c.b16 %v3292, %v3290
    %v3543 = vpack.c.b16 %v3293, %v3291
    %v3544 = vpack.c.b16 %v3296, %v3294
    %v3545 = vpack.c.b16 %v3297, %v3295
    %v3546 = vpack.c.b16 %v3300, %v3298
    %v3547 = vpack.c.b16 %v3301, %v3299
    %v3548 = vpack.c.b16 %v3304, %v3302
    %v3549 = vpack.c.b16 %v3305, %v3303
    %v3550 = vpack.c.b16 %v3308, %v3306
    %v3551 = vpack.c.b16 %v3309, %v3307
    %v3552 = vpack.c.b16 %v3312, %v3310
    %v3553 = vpack.c.b16 %v3313, %v3311
    %v3554 = vpack.c.b16 %v3316, %v3314
    %v3555 = vpack.c.b16 %v3317, %v3315
    %v3556 = vpack.c.b16 %v3320, %v3318
    %v3557 = vpack.c.b16 %v3321, %v3319
    %v3558 = vpack.c.b16 %v3324, %v3322
    %v3559 = vpack.c.b16 %v3325, %v3323
    %v3560 = vpack.c.b16 %v3328, %v3326
    %v3561 = vpack.c.b16 %v3329, %v3327
    %v3562 = vpack.c.b16 %v3332, %v3330
    %v3563 = vpack.c.b16 %v3333, %v3331
    %v3564 = vpack.c.b16 %v3336, %v3334
    %v3565 = vpack.c.b16 %v3337, %v3335
    %v3566 = vpack.c.b16 %v3340, %v3338
    %v3567 = vpack.c.b16 %v3341, %v3339
    %v3568 = vpack.c.b16 %v3344, %v3342
    %v3569 = vpack.c.b16 %v3345, %v3343
    %v3570 = vpack.c.b16 %v3348, %v3346
    %v3571 = vpack.c.b16 %v3349, %v3347
    %v3572 = vpack.c.b16 %v3352, %v3350
    %v3573 = vpack.c.b16 %v3353, %v3351
    %v3574 = vpack.c.b16 %v3356, %v3354
    %v3575 = vpack.c.b16 %v3357, %v3355
    %v3576 = vpack.c.b16 %v3360, %v3358
    %v3577 = vpack.c.b16 %v3361, %v3359
    %v3578 = vpack.c.b16 %v3364, %v3362
    %v3579 = vpack.c.b16 %v3365, %v3363
    %v3580 = vpack.c.b16 %v3368, %v3366
    %v3581 = vpack.c.b16 %v3369, %v3367
    %v3582 = vpack.c.b16 %v3372, %v3370
    %v3583 = vpack.c.b16 %v3373, %v3371
    %v3584 = vpack.c.b16 %v3376, %v3374
    %v3585 = vpack.c.b16 %v3377, %v3375
    %v3586 = vpack.c.b16 %v3380, %v3378
    %v3587 = vpack.c.b16 %v3381, %v3379
    %v3588 = vpack.c.b16 %v3384, %v3382
    %v3589 = vpack.c.b16 %v3385, %v3383
    %v3590 = vpack.c.b16 %v3388, %v3386
    %v3591 = vpack.c.b16 %v3389, %v3387
    %v3592 = vpack.c.b16 %v3392, %v3390
    %v3593 = vpack.c.b16 %v3393, %v3391
    %v3594 = vpack.c.b16 %v3396, %v3394
    %v3595 = vpack.c.b16 %v3397, %v3395
    %v3596 = vpack.c.b16 %v3400, %v3398
    %v3597 = vpack.c.b16 %v3401, %v3399
    %v3598 = vpack.c.b16 %v3404, %v3402
    %v3599 = vpack.c.b16 %v3405, %v3403
    %v3600 = vpack.c.b16 %v3408, %v3406
    %v3601 = vpack.c.b16 %v3409, %v3407
    %v3602 = vpack.c.b16 %v3412, %v3410
    %v3603 = vpack.c.b16 %v3413, %v3411
    %v3604 = vpack.c.b16 %v3416, %v3414
    %v3605 = vpack.c.b16 %v3417, %v3415
    %v3606 = vpack.c.b16 %v3420, %v3418
    %v3607 = vpack.c.b16 %v3421, %v3419
    %v3608 = vpack.c.b16 %v3424, %v3422
    %v3609 = vpack.c.b16 %v3425, %v3423
    %v3610 = vpack.c.b16 %v3428, %v3426
    %v3611 = vpack.c.b16 %v3429, %v3427
    %v3612 = vpack.c.b16 %v3432, %v3430
    %v3613 = vpack.c.b16 %v3433, %v3431
    %v3614 = vpack.c.b16 %v3436, %v3434
    %v3615 = vpack.c.b16 %v3437, %v3435
    %v3616 = vpack.c.b16 %v3440, %v3438
    %v3617 = vpack.c.b16 %v3441, %v3439
    %v3618 = vpack.c.b16 %v3444, %v3442
    %v3619 = vpack.c.b16 %v3445, %v3443
    %v3620 = vpack.c.b16 %v3448, %v3446
    %v3621 = vpack.c.b16 %v3449, %v3447
    %v3622 = vpack.c.b16 %v3452, %v3450
    %v3623 = vpack.c.b16 %v3453, %v3451
    %v3624 = vpack.c.b16 %v3456, %v3454
    %v3625 = vpack.c.b16 %v3457, %v3455
    %v3626 = vpack.c.b16 %v3460, %v3458
    %v3627 = vpack.c.b16 %v3461, %v3459
    %v3628 = vpack.c.b16 %v3464, %v3462
    %v3629 = vpack.c.b16 %v3465, %v3463
    %v3630 = vpack.c.b16 %v3468, %v3466
    %v3631 = vpack.c.b16 %v3469, %v3467
    %v3632 = vpack.c.b16 %v3472, %v3470
    %v3633 = vpack.c.b16 %v3473, %v3471
    %v3634 = vpack.c.b16 %v3476, %v3474
    %v3635 = vpack.c.b16 %v3477, %v3475
    %v3636 = vpack.c.b16 %v3480, %v3478
    %v3637 = vpack.c.b16 %v3481, %v3479
    %v3638 = vpack.c.b16 %v3484, %v3482
    %v3639 = vpack.c.b16 %v3485, %v3483
    %v3640 = vpack.c.b16 %v3488, %v3486
    %v3641 = vpack.c.b16 %v3489, %v3487
    %v3642 = vpack.c.b16 %v3492, %v3490
    %v3643 = vpack.c.b16 %v3493, %v3491
    %v3644 = vpack.c.b16 %v3496, %v3494
    %v3645 = vpack.c.b16 %v3497, %v3495
    %v3646 = vpack.c.b16 %v3500, %v3498
    %v3647 = vpack.c.b16 %v3501, %v3499
    %v3648 = vpack.c.b16 %v3504, %v3502
    %v3649 = vpack.c.b16 %v3505, %v3503
    %v3650 = vpack.c.b16 %v3508, %v3506
    %v3651 = vpack.c.b16 %v3509, %v3507
    %v3652 = vpack.c.b16 %v3512, %v3510
    %v3653 = vpack.c.b16 %v3513, %v3511
    %v3654 = vpack.c.b16 %v3516, %v3514
    %v3655 = vpack.c.b16 %v3517, %v3515
    %v3656 = vpack.c.b16 %v3520, %v3518
    %v3657 = vpack.c.b16 %v3521, %v3519
    %v3658 = vpack.c.b16 %v3524, %v3522
    %v3659 = vpack.c.b16 %v3525, %v3523
    %v3660 = vpack.c.b16 %v3528, %v3526
    %v3661 = vpack.c.b16 %v3529, %v3527
    %v3662 = vpack.c.b16 %v3532, %v3530
    %v3663 = vpack.c.b16 %v3533, %v3531
    %v3664 = vpack.c.b16 %v3536, %v3534
    %v3665 = vpack.c.b16 %v3537, %v3535
    %3794 = vmatprep.subr.bf16.mxu0 %v3539
    %3795 = vmatpush1.bf16.msra.mxu0 %v3538
    %3796 = vmatprep.subr.bf16.mxu0 %v3541
    %3797 = vmatpush1.bf16.msra.mxu0 %v3540
    %3798 = vmatprep.subr.bf16.mxu0 %v3543
    %3799 = vmatpush1.bf16.msra.mxu0 %v3542
    %3800 = vmatprep.subr.bf16.mxu0 %v3545
    %3801 = vmatpush1.bf16.msra.mxu0 %v3544
    %3802 = vmatprep.subr.bf16.mxu0 %v3547
    %3803 = vmatpush1.bf16.msra.mxu0 %v3546
    %3804 = vmatprep.subr.bf16.mxu0 %v3549
    %3805 = vmatpush1.bf16.msra.mxu0 %v3548
    %3806 = vmatprep.subr.bf16.mxu0 %v3551
    %3807 = vmatpush1.bf16.msra.mxu0 %v3550
    %3808 = vmatprep.subr.bf16.mxu0 %v3553
    %3809 = vmatpush1.bf16.msra.mxu0 %v3552
    %3810 = vmatprep.subr.bf16.mxu0 %v3555
    %3811 = vmatpush1.bf16.msra.mxu0 %v3554
    %3812 = vmatprep.subr.bf16.mxu0 %v3557
    %3813 = vmatpush1.bf16.msra.mxu0 %v3556
    %3814 = vmatprep.subr.bf16.mxu0 %v3559
    %3815 = vmatpush1.bf16.msra.mxu0 %v3558
    %3816 = vmatprep.subr.bf16.mxu0 %v3561
    %3817 = vmatpush1.bf16.msra.mxu0 %v3560
    %3818 = vmatprep.subr.bf16.mxu0 %v3563
    %3819 = vmatpush1.bf16.msra.mxu0 %v3562
    %3820 = vmatprep.subr.bf16.mxu0 %v3565
    %3821 = vmatpush1.bf16.msra.mxu0 %v3564
    %3822 = vmatprep.subr.bf16.mxu0 %v3567
    %3823 = vmatpush1.bf16.msra.mxu0 %v3566
    %3824 = vmatprep.subr.bf16.mxu0 %v3569
    %3825 = vmatpush1.bf16.msra.mxu0 %v3568
    %3826 = vmatprep.mubr.bf16.mxu0 %v3147
    %3827 = vmatmul.mubr.bf16.gmra.mrb[0].mxu0 %v3146
    %v3828 = vpop.f32.mrb[0].mxu0
    %v3829 = vadd.f32 0.0, %v3828
    %v3830 = vpop.f32.mrb[0].mxu0
    %v3831 = vadd.f32 0.0, %v3830
    %v3832 = vpop.f32.mrb[0].mxu0
    %v3833 = vadd.f32 0.0, %v3832
    %v3834 = vpop.f32.mrb[0].mxu0
    %v3835 = vadd.f32 0.0, %v3834
    %3836 = vdwg.mxu0
    %3837 = vmatprep.subr.bf16.mxu0 %v3571
    %3838 = vmatpush1.bf16.msra.mxu0 %v3570
    %3839 = vmatprep.subr.bf16.mxu0 %v3573
    %3840 = vmatpush1.bf16.msra.mxu0 %v3572
    %3841 = vmatprep.subr.bf16.mxu0 %v3575
    %3842 = vmatpush1.bf16.msra.mxu0 %v3574
    %3843 = vmatprep.subr.bf16.mxu0 %v3577
    %3844 = vmatpush1.bf16.msra.mxu0 %v3576
    %3845 = vmatprep.subr.bf16.mxu0 %v3579
    %3846 = vmatpush1.bf16.msra.mxu0 %v3578
    %3847 = vmatprep.subr.bf16.mxu0 %v3581
    %3848 = vmatpush1.bf16.msra.mxu0 %v3580
    %3849 = vmatprep.subr.bf16.mxu0 %v3583
    %3850 = vmatpush1.bf16.msra.mxu0 %v3582
    %3851 = vmatprep.subr.bf16.mxu0 %v3585
    %3852 = vmatpush1.bf16.msra.mxu0 %v3584
    %3853 = vmatprep.subr.bf16.mxu0 %v3587
    %3854 = vmatpush1.bf16.msra.mxu0 %v3586
    %3855 = vmatprep.subr.bf16.mxu0 %v3589
    %3856 = vmatpush1.bf16.msra.mxu0 %v3588
    %3857 = vmatprep.subr.bf16.mxu0 %v3591
    %3858 = vmatpush1.bf16.msra.mxu0 %v3590
    %3859 = vmatprep.subr.bf16.mxu0 %v3593
    %3860 = vmatpush1.bf16.msra.mxu0 %v3592
    %3861 = vmatprep.subr.bf16.mxu0 %v3595
    %3862 = vmatpush1.bf16.msra.mxu0 %v3594
    %3863 = vmatprep.subr.bf16.mxu0 %v3597
    %3864 = vmatpush1.bf16.msra.mxu0 %v3596
    %3865 = vmatprep.subr.bf16.mxu0 %v3599
    %3866 = vmatpush1.bf16.msra.mxu0 %v3598
    %3867 = vmatprep.subr.bf16.mxu0 %v3601
    %3868 = vmatpush1.bf16.msra.mxu0 %v3600
    %3869 = vmatprep.mubr.bf16.mxu0 %v3149
    %3870 = vmatmul.mubr.bf16.gmra.mrb[0].mxu0 %v3148
    %v3871 = vpop.f32.mrb[0].mxu0
    %v3872 = vadd.f32 %v3829, %v3871
    %v3873 = vpop.f32.mrb[0].mxu0
    %v3874 = vadd.f32 %v3831, %v3873
    %v3875 = vpop.f32.mrb[0].mxu0
    %v3876 = vadd.f32 %v3833, %v3875
    %v3877 = vpop.f32.mrb[0].mxu0
    %v3878 = vadd.f32 %v3835, %v3877
    %3879 = vdwg.mxu0
    %3880 = vmatprep.subr.bf16.mxu0 %v3603
    %3881 = vmatpush1.bf16.msra.mxu0 %v3602
    %3882 = vmatprep.subr.bf16.mxu0 %v3605
    %3883 = vmatpush1.bf16.msra.mxu0 %v3604
    %3884 = vmatprep.subr.bf16.mxu0 %v3607
    %3885 = vmatpush1.bf16.msra.mxu0 %v3606
    %3886 = vmatprep.subr.bf16.mxu0 %v3609
    %3887 = vmatpush1.bf16.msra.mxu0 %v3608
    %3888 = vmatprep.subr.bf16.mxu0 %v3611
    %3889 = vmatpush1.bf16.msra.mxu0 %v3610
    %3890 = vmatprep.subr.bf16.mxu0 %v3613
    %3891 = vmatpush1.bf16.msra.mxu0 %v3612
    %3892 = vmatprep.subr.bf16.mxu0 %v3615
    %3893 = vmatpush1.bf16.msra.mxu0 %v3614
    %3894 = vmatprep.subr.bf16.mxu0 %v3617
    %3895 = vmatpush1.bf16.msra.mxu0 %v3616
    %3896 = vmatprep.subr.bf16.mxu0 %v3619
    %3897 = vmatpush1.bf16.msra.mxu0 %v3618
    %3898 = vmatprep.subr.bf16.mxu0 %v3621
    %3899 = vmatpush1.bf16.msra.mxu0 %v3620
    %3900 = vmatprep.subr.bf16.mxu0 %v3623
    %3901 = vmatpush1.bf16.msra.mxu0 %v3622
    %3902 = vmatprep.subr.bf16.mxu0 %v3625
    %3903 = vmatpush1.bf16.msra.mxu0 %v3624
    %3904 = vmatprep.subr.bf16.mxu0 %v3627
    %3905 = vmatpush1.bf16.msra.mxu0 %v3626
    %3906 = vmatprep.subr.bf16.mxu0 %v3629
    %3907 = vmatpush1.bf16.msra.mxu0 %v3628
    %3908 = vmatprep.subr.bf16.mxu0 %v3631
    %3909 = vmatpush1.bf16.msra.mxu0 %v3630
    %3910 = vmatprep.subr.bf16.mxu0 %v3633
    %3911 = vmatpush1.bf16.msra.mxu0 %v3632
    %3912 = vmatprep.mubr.bf16.mxu0 %v3151
    %3913 = vmatmul.mubr.bf16.gmra.mrb[0].mxu0 %v3150
    %v3914 = vpop.f32.mrb[0].mxu0
    %v3915 = vadd.f32 %v3872, %v3914
    %v3916 = vpop.f32.mrb[0].mxu0
    %v3917 = vadd.f32 %v3874, %v3916
    %v3918 = vpop.f32.mrb[0].mxu0
    %v3919 = vadd.f32 %v3876, %v3918
    %v3920 = vpop.f32.mrb[0].mxu0
    %v3921 = vadd.f32 %v3878, %v3920
    %3922 = vdwg.mxu0
    %3923 = vmatprep.subr.bf16.mxu0 %v3635
    %3924 = vmatpush1.bf16.msra.mxu0 %v3634
    %3925 = vmatprep.subr.bf16.mxu0 %v3637
    %3926 = vmatpush1.bf16.msra.mxu0 %v3636
    %3927 = vmatprep.subr.bf16.mxu0 %v3639
    %3928 = vmatpush1.bf16.msra.mxu0 %v3638
    %3929 = vmatprep.subr.bf16.mxu0 %v3641
    %3930 = vmatpush1.bf16.msra.mxu0 %v3640
    %3931 = vmatprep.subr.bf16.mxu0 %v3643
    %3932 = vmatpush1.bf16.msra.mxu0 %v3642
    %3933 = vmatprep.subr.bf16.mxu0 %v3645
    %3934 = vmatpush1.bf16.msra.mxu0 %v3644
    %3935 = vmatprep.subr.bf16.mxu0 %v3647
    %3936 = vmatpush1.bf16.msra.mxu0 %v3646
    %3937 = vmatprep.subr.bf16.mxu0 %v3649
    %3938 = vmatpush1.bf16.msra.mxu0 %v3648
    %3939 = vmatprep.subr.bf16.mxu0 %v3651
    %3940 = vmatpush1.bf16.msra.mxu0 %v3650
    %3941 = vmatprep.subr.bf16.mxu0 %v3653
    %3942 = vmatpush1.bf16.msra.mxu0 %v3652
    %3943 = vmatprep.subr.bf16.mxu0 %v3655
    %3944 = vmatpush1.bf16.msra.mxu0 %v3654
    %3945 = vmatprep.subr.bf16.mxu0 %v3657
    %3946 = vmatpush1.bf16.msra.mxu0 %v3656
    %3947 = vmatprep.subr.bf16.mxu0 %v3659
    %3948 = vmatpush1.bf16.msra.mxu0 %v3658
    %3949 = vmatprep.subr.bf16.mxu0 %v3661
    %3950 = vmatpush1.bf16.msra.mxu0 %v3660
    %3951 = vmatprep.subr.bf16.mxu0 %v3663
    %3952 = vmatpush1.bf16.msra.mxu0 %v3662
    %3953 = vmatprep.subr.bf16.mxu0 %v3665
    %3954 = vmatpush1.bf16.msra.mxu0 %v3664
    %3955 = vmatprep.mubr.bf16.mxu0 %v3153
    %3956 = vmatmul.mubr.bf16.gmra.mrb[0].mxu0 %v3152
    %v3957 = vpop.f32.mrb[0].mxu0
    %v3958 = vadd.f32 %v3915, %v3957
    %v3959 = vpop.f32.mrb[0].mxu0
    %v3960 = vadd.f32 %v3917, %v3959
    %v3961 = vpop.f32.mrb[0].mxu0
    %v3962 = vadd.f32 %v3919, %v3961
    %v3963 = vpop.f32.mrb[0].mxu0
    %v3964 = vadd.f32 %v3921, %v3963
    %3965 = vdwg.mxu0
    %v3966 = vadd.f32 %v1822, %v3958
    %v3967 = vadd.f32 %v1823, %v3960
    %v3968 = vadd.f32 %v1824, %v3962
    %v3969 = vadd.f32 %v1825, %v3964
    %v3970 = vld [vmem:[%s12] sm:$0x3]
    %v3972 = vlaneseq
    %v3973 = vshrl.u32 %v3972, 7
    %v3974 = vsub.s32 0, %v3973
    %v3975 = vrot.slane %v3970, %v3974
    %v3976 = vlaneseq
    %v3977 = vshrl.u32 %v3976, 7
    %v3978 = vsub.s32 1, %v3977
    %v3979 = vrot.slane %v3970, %v3978
    %v3982 = vadd.f32 %v3966, %v3975
    %v3983 = vadd.f32 %v3967, %v3979
    %v3984 = vadd.f32 %v3968, %v3975
    %v3985 = vadd.f32 %v3969, %v3979
    %s3986 = scalar_lea.vmem %s2, 2
    %v3987 = vld [vmem:[%s3986] sm:$0x3]
    %s3988 = scalar_lea.vmem %s3, 2
    %v3989 = vld [vmem:[%s3988] sm:$0x3]
    %v3990 = vadd.f32 %v3982, %v3983
    %3991 = vadd.xlane.f32.xlu0 %v3990
    %v3992 = vpop.xlane.xlu0 %3991
    %v3993 = vadd.f32 %v3984, %v3985
    %3994 = vadd.xlane.f32.xlu0 %v3993
    %v3995 = vpop.xlane.xlu0 %3994
    %v3996 = vmul.f32 %v3992, %v180
    %v3997 = vmul.f32 %v3995, %v180
    %v3998 = vsub.f32 %v3982, %v3996
    %v3999 = vsub.f32 %v3983, %v3996
    %v4000 = vsub.f32 %v3984, %v3997
    %v4001 = vsub.f32 %v3985, %v3997
    %v4002 = vmul.f32 %v3998, %v3998
    %v4003 = vmul.f32 %v3999, %v3999
    %v4004 = vmul.f32 %v4000, %v4000
    %v4005 = vmul.f32 %v4001, %v4001
    %v4006 = vadd.f32 %v4002, %v4003
    %4007 = vadd.xlane.f32.xlu0 %v4006
    %v4008 = vpop.xlane.xlu0 %4007
    %v4009 = vadd.f32 %v4004, %v4005
    %4010 = vadd.xlane.f32.xlu0 %v4009
    %v4011 = vpop.xlane.xlu0 %4010
    %v4012 = vmul.f32 %v4008, %v180
    %v4013 = vmul.f32 %v4011, %v180
    %v4014 = vadd.f32 %v4012, 1e-05
    %v4015 = vadd.f32 %v4013, 1e-05
    %v4016 = vrsqrt.pop %v4014
    %v4017 = vrsqrt.pop %v4015
    %v4018 = vmul.f32 %v3998, %v4016
    %v4019 = vmul.f32 %v3999, %v4016
    %v4020 = vmul.f32 %v4000, %v4017
    %v4021 = vmul.f32 %v4001, %v4017
    %v4023 = vlaneseq
    %v4024 = vshrl.u32 %v4023, 7
    %v4025 = vsub.s32 0, %v4024
    %v4026 = vrot.slane %v3987, %v4025
    %v4027 = vlaneseq
    %v4028 = vshrl.u32 %v4027, 7
    %v4029 = vsub.s32 1, %v4028
    %v4030 = vrot.slane %v3987, %v4029
    %v4033 = vmul.f32 %v4018, %v4026
    %v4034 = vmul.f32 %v4019, %v4030
    %v4035 = vmul.f32 %v4020, %v4026
    %v4036 = vmul.f32 %v4021, %v4030
    %v4038 = vlaneseq
    %v4039 = vshrl.u32 %v4038, 7
    %v4040 = vsub.s32 0, %v4039
    %v4041 = vrot.slane %v3989, %v4040
    %v4042 = vlaneseq
    %v4043 = vshrl.u32 %v4042, 7
    %v4044 = vsub.s32 1, %v4043
    %v4045 = vrot.slane %v3989, %v4044
    %v4048 = vadd.f32 %v4033, %v4041
    %v4049 = vadd.f32 %v4034, %v4045
    %v4050 = vadd.f32 %v4035, %v4041
    %v4051 = vadd.f32 %v4036, %v4045
    %s4052 = scalar_lea.vmem [#allocation8], 768
    %v4053 = vld [vmem:[%s4052] sm:$0xff]
    %v4054 = vld [vmem:[%s4052 + $0x8] sm:$0xff]
    %v4055 = vld [vmem:[%s4052 + $0x10] sm:$0xff]
    %v4056 = vld [vmem:[%s4052 + $0x18] sm:$0xff]
    %v4057 = vld [vmem:[%s4052 + $0x20] sm:$0xff]
    %v4058 = vld [vmem:[%s4052 + $0x28] sm:$0xff]
    %v4059 = vld [vmem:[%s4052 + $0x30] sm:$0xff]
    %v4060 = vld [vmem:[%s4052 + $0x38] sm:$0xff]
    %v4061 = vld [vmem:[%s4052 + $0x40] sm:$0xff]
    %v4062 = vld [vmem:[%s4052 + $0x48] sm:$0xff]
    %v4063 = vld [vmem:[%s4052 + $0x50] sm:$0xff]
    %v4064 = vld [vmem:[%s4052 + $0x58] sm:$0xff]
    %v4065 = vld [vmem:[%s4052 + $0x60] sm:$0xff]
    %v4066 = vld [vmem:[%s4052 + $0x68] sm:$0xff]
    %v4067 = vld [vmem:[%s4052 + $0x70] sm:$0xff]
    %v4068 = vld [vmem:[%s4052 + $0x78] sm:$0xff]
    %v4069 = vld [vmem:[%s4052 + $0x80] sm:$0xff]
    %v4070 = vld [vmem:[%s4052 + $0x88] sm:$0xff]
    %v4071 = vld [vmem:[%s4052 + $0x90] sm:$0xff]
    %v4072 = vld [vmem:[%s4052 + $0x98] sm:$0xff]
    %v4073 = vld [vmem:[%s4052 + $0xa0] sm:$0xff]
    %v4074 = vld [vmem:[%s4052 + $0xa8] sm:$0xff]
    %v4075 = vld [vmem:[%s4052 + $0xb0] sm:$0xff]
    %v4076 = vld [vmem:[%s4052 + $0xb8] sm:$0xff]
    %v4077 = vld [vmem:[%s4052 + $0xc0] sm:$0xff]
    %v4078 = vld [vmem:[%s4052 + $0xc8] sm:$0xff]
    %v4079 = vld [vmem:[%s4052 + $0xd0] sm:$0xff]
    %v4080 = vld [vmem:[%s4052 + $0xd8] sm:$0xff]
    %v4081 = vld [vmem:[%s4052 + $0xe0] sm:$0xff]
    %v4082 = vld [vmem:[%s4052 + $0xe8] sm:$0xff]
    %v4083 = vld [vmem:[%s4052 + $0xf0] sm:$0xff]
    %v4084 = vld [vmem:[%s4052 + $0xf8] sm:$0xff]
    %v4085 = vld [vmem:[%s4052 + $0x100] sm:$0xff]
    %v4086 = vld [vmem:[%s4052 + $0x108] sm:$0xff]
    %v4087 = vld [vmem:[%s4052 + $0x110] sm:$0xff]
    %v4088 = vld [vmem:[%s4052 + $0x118] sm:$0xff]
    %v4089 = vld [vmem:[%s4052 + $0x120] sm:$0xff]
    %v4090 = vld [vmem:[%s4052 + $0x128] sm:$0xff]
    %v4091 = vld [vmem:[%s4052 + $0x130] sm:$0xff]
    %v4092 = vld [vmem:[%s4052 + $0x138] sm:$0xff]
    %v4093 = vld [vmem:[%s4052 + $0x140] sm:$0xff]
    %v4094 = vld [vmem:[%s4052 + $0x148] sm:$0xff]
    %v4095 = vld [vmem:[%s4052 + $0x150] sm:$0xff]
    %v4096 = vld [vmem:[%s4052 + $0x158] sm:$0xff]
    %v4097 = vld [vmem:[%s4052 + $0x160] sm:$0xff]
    %v4098 = vld [vmem:[%s4052 + $0x168] sm:$0xff]
    %v4099 = vld [vmem:[%s4052 + $0x170] sm:$0xff]
    %v4100 = vld [vmem:[%s4052 + $0x178] sm:$0xff]
    %v4101 = vld [vmem:[%s4052 + $0x180] sm:$0xff]
    %v4102 = vld [vmem:[%s4052 + $0x188] sm:$0xff]
    %v4103 = vld [vmem:[%s4052 + $0x190] sm:$0xff]
    %v4104 = vld [vmem:[%s4052 + $0x198] sm:$0xff]
    %v4105 = vld [vmem:[%s4052 + $0x1a0] sm:$0xff]
    %v4106 = vld [vmem:[%s4052 + $0x1a8] sm:$0xff]
    %v4107 = vld [vmem:[%s4052 + $0x1b0] sm:$0xff]
    %v4108 = vld [vmem:[%s4052 + $0x1b8] sm:$0xff]
    %v4109 = vld [vmem:[%s4052 + $0x1c0] sm:$0xff]
    %v4110 = vld [vmem:[%s4052 + $0x1c8] sm:$0xff]
    %v4111 = vld [vmem:[%s4052 + $0x1d0] sm:$0xff]
    %v4112 = vld [vmem:[%s4052 + $0x1d8] sm:$0xff]
    %v4113 = vld [vmem:[%s4052 + $0x1e0] sm:$0xff]
    %v4114 = vld [vmem:[%s4052 + $0x1e8] sm:$0xff]
    %v4115 = vld [vmem:[%s4052 + $0x1f0] sm:$0xff]
    %v4116 = vld [vmem:[%s4052 + $0x1f8] sm:$0xff]
    %v4117 = vld [vmem:[%s4052 + $0x200] sm:$0xff]
    %v4118 = vld [vmem:[%s4052 + $0x208] sm:$0xff]
    %v4119 = vld [vmem:[%s4052 + $0x210] sm:$0xff]
    %v4120 = vld [vmem:[%s4052 + $0x218] sm:$0xff]
    %v4121 = vld [vmem:[%s4052 + $0x220] sm:$0xff]
    %v4122 = vld [vmem:[%s4052 + $0x228] sm:$0xff]
    %v4123 = vld [vmem:[%s4052 + $0x230] sm:$0xff]
    %v4124 = vld [vmem:[%s4052 + $0x238] sm:$0xff]
    %v4125 = vld [vmem:[%s4052 + $0x240] sm:$0xff]
    %v4126 = vld [vmem:[%s4052 + $0x248] sm:$0xff]
    %v4127 = vld [vmem:[%s4052 + $0x250] sm:$0xff]
    %v4128 = vld [vmem:[%s4052 + $0x258] sm:$0xff]
    %v4129 = vld [vmem:[%s4052 + $0x260] sm:$0xff]
    %v4130 = vld [vmem:[%s4052 + $0x268] sm:$0xff]
    %v4131 = vld [vmem:[%s4052 + $0x270] sm:$0xff]
    %v4132 = vld [vmem:[%s4052 + $0x278] sm:$0xff]
    %v4133 = vld [vmem:[%s4052 + $0x280] sm:$0xff]
    %v4134 = vld [vmem:[%s4052 + $0x288] sm:$0xff]
    %v4135 = vld [vmem:[%s4052 + $0x290] sm:$0xff]
    %v4136 = vld [vmem:[%s4052 + $0x298] sm:$0xff]
    %v4137 = vld [vmem:[%s4052 + $0x2a0] sm:$0xff]
    %v4138 = vld [vmem:[%s4052 + $0x2a8] sm:$0xff]
    %v4139 = vld [vmem:[%s4052 + $0x2b0] sm:$0xff]
    %v4140 = vld [vmem:[%s4052 + $0x2b8] sm:$0xff]
    %v4141 = vld [vmem:[%s4052 + $0x2c0] sm:$0xff]
    %v4142 = vld [vmem:[%s4052 + $0x2c8] sm:$0xff]
    %v4143 = vld [vmem:[%s4052 + $0x2d0] sm:$0xff]
    %v4144 = vld [vmem:[%s4052 + $0x2d8] sm:$0xff]
    %v4145 = vld [vmem:[%s4052 + $0x2e0] sm:$0xff]
    %v4146 = vld [vmem:[%s4052 + $0x2e8] sm:$0xff]
    %v4147 = vld [vmem:[%s4052 + $0x2f0] sm:$0xff]
    %v4148 = vld [vmem:[%s4052 + $0x2f8] sm:$0xff]
    %v4149 = vpack.c.bf16 %v4050, %v4048
    %v4150 = vpack.c.bf16 %v4051, %v4049
    %v4247 = vunpack.c.l.b16 %v4053
    %v4248 = vunpack.c.h.b16 %v4053
    %v4249 = vunpack.c.l.b16 %v4054
    %v4250 = vunpack.c.h.b16 %v4054
    %v4251 = vunpack.c.l.b16 %v4055
    %v4252 = vunpack.c.h.b16 %v4055
    %v4253 = vunpack.c.l.b16 %v4056
    %v4254 = vunpack.c.h.b16 %v4056
    %v4255 = vunpack.c.l.b16 %v4057
    %v4256 = vunpack.c.h.b16 %v4057
    %v4257 = vunpack.c.l.b16 %v4058
    %v4258 = vunpack.c.h.b16 %v4058
    %v4259 = vunpack.c.l.b16 %v4059
    %v4260 = vunpack.c.h.b16 %v4059
    %v4261 = vunpack.c.l.b16 %v4060
    %v4262 = vunpack.c.h.b16 %v4060
    %v4263 = vunpack.c.l.b16 %v4061
    %v4264 = vunpack.c.h.b16 %v4061
    %v4265 = vunpack.c.l.b16 %v4062
    %v4266 = vunpack.c.h.b16 %v4062
    %v4267 = vunpack.c.l.b16 %v4063
    %v4268 = vunpack.c.h.b16 %v4063
    %v4269 = vunpack.c.l.b16 %v4064
    %v4270 = vunpack.c.h.b16 %v4064
    %v4271 = vunpack.c.l.b16 %v4065
    %v4272 = vunpack.c.h.b16 %v4065
    %v4273 = vunpack.c.l.b16 %v4066
    %v4274 = vunpack.c.h.b16 %v4066
    %v4275 = vunpack.c.l.b16 %v4067
    %v4276 = vunpack.c.h.b16 %v4067
    %v4277 = vunpack.c.l.b16 %v4068
    %v4278 = vunpack.c.h.b16 %v4068
    %v4279 = vunpack.c.l.b16 %v4069
    %v4280 = vunpack.c.h.b16 %v4069
    %v4281 = vunpack.c.l.b16 %v4070
    %v4282 = vunpack.c.h.b16 %v4070
    %v4283 = vunpack.c.l.b16 %v4071
    %v4284 = vunpack.c.h.b16 %v4071
    %v4285 = vunpack.c.l.b16 %v4072
    %v4286 = vunpack.c.h.b16 %v4072
    %v4287 = vunpack.c.l.b16 %v4073
    %v4288 = vunpack.c.h.b16 %v4073
    %v4289 = vunpack.c.l.b16 %v4074
    %v4290 = vunpack.c.h.b16 %v4074
    %v4291 = vunpack.c.l.b16 %v4075
    %v4292 = vunpack.c.h.b16 %v4075
    %v4293 = vunpack.c.l.b16 %v4076
    %v4294 = vunpack.c.h.b16 %v4076
    %v4295 = vunpack.c.l.b16 %v4077
    %v4296 = vunpack.c.h.b16 %v4077
    %v4297 = vunpack.c.l.b16 %v4078
    %v4298 = vunpack.c.h.b16 %v4078
    %v4299 = vunpack.c.l.b16 %v4079
    %v4300 = vunpack.c.h.b16 %v4079
    %v4301 = vunpack.c.l.b16 %v4080
    %v4302 = vunpack.c.h.b16 %v4080
    %v4303 = vunpack.c.l.b16 %v4081
    %v4304 = vunpack.c.h.b16 %v4081
    %v4305 = vunpack.c.l.b16 %v4082
    %v4306 = vunpack.c.h.b16 %v4082
    %v4307 = vunpack.c.l.b16 %v4083
    %v4308 = vunpack.c.h.b16 %v4083
    %v4309 = vunpack.c.l.b16 %v4084
    %v4310 = vunpack.c.h.b16 %v4084
    %v4311 = vunpack.c.l.b16 %v4085
    %v4312 = vunpack.c.h.b16 %v4085
    %v4313 = vunpack.c.l.b16 %v4086
    %v4314 = vunpack.c.h.b16 %v4086
    %v4315 = vunpack.c.l.b16 %v4087
    %v4316 = vunpack.c.h.b16 %v4087
    %v4317 = vunpack.c.l.b16 %v4088
    %v4318 = vunpack.c.h.b16 %v4088
    %v4319 = vunpack.c.l.b16 %v4089
    %v4320 = vunpack.c.h.b16 %v4089
    %v4321 = vunpack.c.l.b16 %v4090
    %v4322 = vunpack.c.h.b16 %v4090
    %v4323 = vunpack.c.l.b16 %v4091
    %v4324 = vunpack.c.h.b16 %v4091
    %v4325 = vunpack.c.l.b16 %v4092
    %v4326 = vunpack.c.h.b16 %v4092
    %v4327 = vunpack.c.l.b16 %v4093
    %v4328 = vunpack.c.h.b16 %v4093
    %v4329 = vunpack.c.l.b16 %v4094
    %v4330 = vunpack.c.h.b16 %v4094
    %v4331 = vunpack.c.l.b16 %v4095
    %v4332 = vunpack.c.h.b16 %v4095
    %v4333 = vunpack.c.l.b16 %v4096
    %v4334 = vunpack.c.h.b16 %v4096
    %v4335 = vunpack.c.l.b16 %v4097
    %v4336 = vunpack.c.h.b16 %v4097
    %v4337 = vunpack.c.l.b16 %v4098
    %v4338 = vunpack.c.h.b16 %v4098
    %v4339 = vunpack.c.l.b16 %v4099
    %v4340 = vunpack.c.h.b16 %v4099
    %v4341 = vunpack.c.l.b16 %v4100
    %v4342 = vunpack.c.h.b16 %v4100
    %v4343 = vunpack.c.l.b16 %v4101
    %v4344 = vunpack.c.h.b16 %v4101
    %v4345 = vunpack.c.l.b16 %v4102
    %v4346 = vunpack.c.h.b16 %v4102
    %v4347 = vunpack.c.l.b16 %v4103
    %v4348 = vunpack.c.h.b16 %v4103
    %v4349 = vunpack.c.l.b16 %v4104
    %v4350 = vunpack.c.h.b16 %v4104
    %v4351 = vunpack.c.l.b16 %v4105
    %v4352 = vunpack.c.h.b16 %v4105
    %v4353 = vunpack.c.l.b16 %v4106
    %v4354 = vunpack.c.h.b16 %v4106
    %v4355 = vunpack.c.l.b16 %v4107
    %v4356 = vunpack.c.h.b16 %v4107
    %v4357 = vunpack.c.l.b16 %v4108
    %v4358 = vunpack.c.h.b16 %v4108
    %v4359 = vunpack.c.l.b16 %v4109
    %v4360 = vunpack.c.h.b16 %v4109
    %v4361 = vunpack.c.l.b16 %v4110
    %v4362 = vunpack.c.h.b16 %v4110
    %v4363 = vunpack.c.l.b16 %v4111
    %v4364 = vunpack.c.h.b16 %v4111
    %v4365 = vunpack.c.l.b16 %v4112
    %v4366 = vunpack.c.h.b16 %v4112
    %v4367 = vunpack.c.l.b16 %v4113
    %v4368 = vunpack.c.h.b16 %v4113
    %v4369 = vunpack.c.l.b16 %v4114
    %v4370 = vunpack.c.h.b16 %v4114
    %v4371 = vunpack.c.l.b16 %v4115
    %v4372 = vunpack.c.h.b16 %v4115
    %v4373 = vunpack.c.l.b16 %v4116
    %v4374 = vunpack.c.h.b16 %v4116
    %v4375 = vunpack.c.l.b16 %v4117
    %v4376 = vunpack.c.h.b16 %v4117
    %v4377 = vunpack.c.l.b16 %v4118
    %v4378 = vunpack.c.h.b16 %v4118
    %v4379 = vunpack.c.l.b16 %v4119
    %v4380 = vunpack.c.h.b16 %v4119
    %v4381 = vunpack.c.l.b16 %v4120
    %v4382 = vunpack.c.h.b16 %v4120
    %v4383 = vunpack.c.l.b16 %v4121
    %v4384 = vunpack.c.h.b16 %v4121
    %v4385 = vunpack.c.l.b16 %v4122
    %v4386 = vunpack.c.h.b16 %v4122
    %v4387 = vunpack.c.l.b16 %v4123
    %v4388 = vunpack.c.h.b16 %v4123
    %v4389 = vunpack.c.l.b16 %v4124
    %v4390 = vunpack.c.h.b16 %v4124
    %v4391 = vunpack.c.l.b16 %v4125
    %v4392 = vunpack.c.h.b16 %v4125
    %v4393 = vunpack.c.l.b16 %v4126
    %v4394 = vunpack.c.h.b16 %v4126
    %v4395 = vunpack.c.l.b16 %v4127
    %v4396 = vunpack.c.h.b16 %v4127
    %v4397 = vunpack.c.l.b16 %v4128
    %v4398 = vunpack.c.h.b16 %v4128
    %v4399 = vunpack.c.l.b16 %v4129
    %v4400 = vunpack.c.h.b16 %v4129
    %v4401 = vunpack.c.l.b16 %v4130
    %v4402 = vunpack.c.h.b16 %v4130
    %v4403 = vunpack.c.l.b16 %v4131
    %v4404 = vunpack.c.h.b16 %v4131
    %v4405 = vunpack.c.l.b16 %v4132
    %v4406 = vunpack.c.h.b16 %v4132
    %v4407 = vunpack.c.l.b16 %v4133
    %v4408 = vunpack.c.h.b16 %v4133
    %v4409 = vunpack.c.l.b16 %v4134
    %v4410 = vunpack.c.h.b16 %v4134
    %v4411 = vunpack.c.l.b16 %v4135
    %v4412 = vunpack.c.h.b16 %v4135
    %v4413 = vunpack.c.l.b16 %v4136
    %v4414 = vunpack.c.h.b16 %v4136
    %v4415 = vunpack.c.l.b16 %v4137
    %v4416 = vunpack.c.h.b16 %v4137
    %v4417 = vunpack.c.l.b16 %v4138
    %v4418 = vunpack.c.h.b16 %v4138
    %v4419 = vunpack.c.l.b16 %v4139
    %v4420 = vunpack.c.h.b16 %v4139
    %v4421 = vunpack.c.l.b16 %v4140
    %v4422 = vunpack.c.h.b16 %v4140
    %v4423 = vunpack.c.l.b16 %v4141
    %v4424 = vunpack.c.h.b16 %v4141
    %v4425 = vunpack.c.l.b16 %v4142
    %v4426 = vunpack.c.h.b16 %v4142
    %v4427 = vunpack.c.l.b16 %v4143
    %v4428 = vunpack.c.h.b16 %v4143
    %v4429 = vunpack.c.l.b16 %v4144
    %v4430 = vunpack.c.h.b16 %v4144
    %v4431 = vunpack.c.l.b16 %v4145
    %v4432 = vunpack.c.h.b16 %v4145
    %v4433 = vunpack.c.l.b16 %v4146
    %v4434 = vunpack.c.h.b16 %v4146
    %v4435 = vunpack.c.l.b16 %v4147
    %v4436 = vunpack.c.h.b16 %v4147
    %v4437 = vunpack.c.l.b16 %v4148
    %v4438 = vunpack.c.h.b16 %v4148
    %v4439 = vpack.c.b16 %v4253, %v4247
    %v4440 = vpack.c.b16 %v4254, %v4248
    %v4441 = vpack.c.b16 %v4255, %v4249
    %v4442 = vpack.c.b16 %v4256, %v4250
    %v4443 = vpack.c.b16 %v4257, %v4251
    %v4444 = vpack.c.b16 %v4258, %v4252
    %v4445 = vpack.c.b16 %v4265, %v4259
    %v4446 = vpack.c.b16 %v4266, %v4260
    %v4447 = vpack.c.b16 %v4267, %v4261
    %v4448 = vpack.c.b16 %v4268, %v4262
    %v4449 = vpack.c.b16 %v4269, %v4263
    %v4450 = vpack.c.b16 %v4270, %v4264
    %v4451 = vpack.c.b16 %v4277, %v4271
    %v4452 = vpack.c.b16 %v4278, %v4272
    %v4453 = vpack.c.b16 %v4279, %v4273
    %v4454 = vpack.c.b16 %v4280, %v4274
    %v4455 = vpack.c.b16 %v4281, %v4275
    %v4456 = vpack.c.b16 %v4282, %v4276
    %v4457 = vpack.c.b16 %v4289, %v4283
    %v4458 = vpack.c.b16 %v4290, %v4284
    %v4459 = vpack.c.b16 %v4291, %v4285
    %v4460 = vpack.c.b16 %v4292, %v4286
    %v4461 = vpack.c.b16 %v4293, %v4287
    %v4462 = vpack.c.b16 %v4294, %v4288
    %v4463 = vpack.c.b16 %v4301, %v4295
    %v4464 = vpack.c.b16 %v4302, %v4296
    %v4465 = vpack.c.b16 %v4303, %v4297
    %v4466 = vpack.c.b16 %v4304, %v4298
    %v4467 = vpack.c.b16 %v4305, %v4299
    %v4468 = vpack.c.b16 %v4306, %v4300
    %v4469 = vpack.c.b16 %v4313, %v4307
    %v4470 = vpack.c.b16 %v4314, %v4308
    %v4471 = vpack.c.b16 %v4315, %v4309
    %v4472 = vpack.c.b16 %v4316, %v4310
    %v4473 = vpack.c.b16 %v4317, %v4311
    %v4474 = vpack.c.b16 %v4318, %v4312
    %v4475 = vpack.c.b16 %v4325, %v4319
    %v4476 = vpack.c.b16 %v4326, %v4320
    %v4477 = vpack.c.b16 %v4327, %v4321
    %v4478 = vpack.c.b16 %v4328, %v4322
    %v4479 = vpack.c.b16 %v4329, %v4323
    %v4480 = vpack.c.b16 %v4330, %v4324
    %v4481 = vpack.c.b16 %v4337, %v4331
    %v4482 = vpack.c.b16 %v4338, %v4332
    %v4483 = vpack.c.b16 %v4339, %v4333
    %v4484 = vpack.c.b16 %v4340, %v4334
    %v4485 = vpack.c.b16 %v4341, %v4335
    %v4486 = vpack.c.b16 %v4342, %v4336
    %v4487 = vpack.c.b16 %v4349, %v4343
    %v4488 = vpack.c.b16 %v4350, %v4344
    %v4489 = vpack.c.b16 %v4351, %v4345
    %v4490 = vpack.c.b16 %v4352, %v4346
    %v4491 = vpack.c.b16 %v4353, %v4347
    %v4492 = vpack.c.b16 %v4354, %v4348
    %v4493 = vpack.c.b16 %v4361, %v4355
    %v4494 = vpack.c.b16 %v4362, %v4356
    %v4495 = vpack.c.b16 %v4363, %v4357
    %v4496 = vpack.c.b16 %v4364, %v4358
    %v4497 = vpack.c.b16 %v4365, %v4359
    %v4498 = vpack.c.b16 %v4366, %v4360
    %v4499 = vpack.c.b16 %v4373, %v4367
    %v4500 = vpack.c.b16 %v4374, %v4368
    %v4501 = vpack.c.b16 %v4375, %v4369
    %v4502 = vpack.c.b16 %v4376, %v4370
    %v4503 = vpack.c.b16 %v4377, %v4371
    %v4504 = vpack.c.b16 %v4378, %v4372
    %v4505 = vpack.c.b16 %v4385, %v4379
    %v4506 = vpack.c.b16 %v4386, %v4380
    %v4507 = vpack.c.b16 %v4387, %v4381
    %v4508 = vpack.c.b16 %v4388, %v4382
    %v4509 = vpack.c.b16 %v4389, %v4383
    %v4510 = vpack.c.b16 %v4390, %v4384
    %v4511 = vpack.c.b16 %v4397, %v4391
    %v4512 = vpack.c.b16 %v4398, %v4392
    %v4513 = vpack.c.b16 %v4399, %v4393
    %v4514 = vpack.c.b16 %v4400, %v4394
    %v4515 = vpack.c.b16 %v4401, %v4395
    %v4516 = vpack.c.b16 %v4402, %v4396
    %v4517 = vpack.c.b16 %v4409, %v4403
    %v4518 = vpack.c.b16 %v4410, %v4404
    %v4519 = vpack.c.b16 %v4411, %v4405
    %v4520 = vpack.c.b16 %v4412, %v4406
    %v4521 = vpack.c.b16 %v4413, %v4407
    %v4522 = vpack.c.b16 %v4414, %v4408
    %v4523 = vpack.c.b16 %v4421, %v4415
    %v4524 = vpack.c.b16 %v4422, %v4416
    %v4525 = vpack.c.b16 %v4423, %v4417
    %v4526 = vpack.c.b16 %v4424, %v4418
    %v4527 = vpack.c.b16 %v4425, %v4419
    %v4528 = vpack.c.b16 %v4426, %v4420
    %v4529 = vpack.c.b16 %v4433, %v4427
    %v4530 = vpack.c.b16 %v4434, %v4428
    %v4531 = vpack.c.b16 %v4435, %v4429
    %v4532 = vpack.c.b16 %v4436, %v4430
    %v4533 = vpack.c.b16 %v4437, %v4431
    %v4534 = vpack.c.b16 %v4438, %v4432
    %4631 = vmatprep.subr.bf16.mxu0 %v4440
    %4632 = vmatpush1.bf16.msra.mxu0 %v4439
    %4633 = vmatprep.subr.bf16.mxu0 %v4446
    %4634 = vmatpush1.bf16.msra.mxu0 %v4445
    %4635 = vmatprep.subr.bf16.mxu0 %v4452
    %4636 = vmatpush1.bf16.msra.mxu0 %v4451
    %4637 = vmatprep.subr.bf16.mxu0 %v4458
    %4638 = vmatpush1.bf16.msra.mxu0 %v4457
    %4639 = vmatprep.subr.bf16.mxu0 %v4464
    %4640 = vmatpush1.bf16.msra.mxu0 %v4463
    %4641 = vmatprep.subr.bf16.mxu0 %v4470
    %4642 = vmatpush1.bf16.msra.mxu0 %v4469
    %4643 = vmatprep.subr.bf16.mxu0 %v4476
    %4644 = vmatpush1.bf16.msra.mxu0 %v4475
    %4645 = vmatprep.subr.bf16.mxu0 %v4482
    %4646 = vmatpush1.bf16.msra.mxu0 %v4481
    %4647 = vmatprep.subr.bf16.mxu0 %v4488
    %4648 = vmatpush1.bf16.msra.mxu0 %v4487
    %4649 = vmatprep.subr.bf16.mxu0 %v4494
    %4650 = vmatpush1.bf16.msra.mxu0 %v4493
    %4651 = vmatprep.subr.bf16.mxu0 %v4500
    %4652 = vmatpush1.bf16.msra.mxu0 %v4499
    %4653 = vmatprep.subr.bf16.mxu0 %v4506
    %4654 = vmatpush1.bf16.msra.mxu0 %v4505
    %4655 = vmatprep.subr.bf16.mxu0 %v4512
    %4656 = vmatpush1.bf16.msra.mxu0 %v4511
    %4657 = vmatprep.subr.bf16.mxu0 %v4518
    %4658 = vmatpush1.bf16.msra.mxu0 %v4517
    %4659 = vmatprep.subr.bf16.mxu0 %v4524
    %4660 = vmatpush1.bf16.msra.mxu0 %v4523
    %4661 = vmatprep.subr.bf16.mxu0 %v4530
    %4662 = vmatpush1.bf16.msra.mxu0 %v4529
    %4663 = vmatprep.mubr.bf16.mxu0 %v4150
    %4664 = vmatmul.mubr.bf16.gmra.mrb[0].mxu0 %v4149
    %v4665 = vpop.f32.mrb[0].mxu0
    %v4666 = vadd.f32 0.0, %v4665
    %v4667 = vpop.f32.mrb[0].mxu0
    %v4668 = vadd.f32 0.0, %v4667
    %v4669 = vpop.f32.mrb[0].mxu0
    %v4670 = vadd.f32 0.0, %v4669
    %v4671 = vpop.f32.mrb[0].mxu0
    %v4672 = vadd.f32 0.0, %v4671
    %4673 = vdwg.mxu0
    %4674 = vmatprep.subr.bf16.mxu0 %v4442
    %4675 = vmatpush1.bf16.msra.mxu0 %v4441
    %4676 = vmatprep.subr.bf16.mxu0 %v4448
    %4677 = vmatpush1.bf16.msra.mxu0 %v4447
    %4678 = vmatprep.subr.bf16.mxu0 %v4454
    %4679 = vmatpush1.bf16.msra.mxu0 %v4453
    %4680 = vmatprep.subr.bf16.mxu0 %v4460
    %4681 = vmatpush1.bf16.msra.mxu0 %v4459
    %4682 = vmatprep.subr.bf16.mxu0 %v4466
    %4683 = vmatpush1.bf16.msra.mxu0 %v4465
    %4684 = vmatprep.subr.bf16.mxu0 %v4472
    %4685 = vmatpush1.bf16.msra.mxu0 %v4471
    %4686 = vmatprep.subr.bf16.mxu0 %v4478
    %4687 = vmatpush1.bf16.msra.mxu0 %v4477
    %4688 = vmatprep.subr.bf16.mxu0 %v4484
    %4689 = vmatpush1.bf16.msra.mxu0 %v4483
    %4690 = vmatprep.subr.bf16.mxu0 %v4490
    %4691 = vmatpush1.bf16.msra.mxu0 %v4489
    %4692 = vmatprep.subr.bf16.mxu0 %v4496
    %4693 = vmatpush1.bf16.msra.mxu0 %v4495
    %4694 = vmatprep.subr.bf16.mxu0 %v4502
    %4695 = vmatpush1.bf16.msra.mxu0 %v4501
    %4696 = vmatprep.subr.bf16.mxu0 %v4508
    %4697 = vmatpush1.bf16.msra.mxu0 %v4507
    %4698 = vmatprep.subr.bf16.mxu0 %v4514
    %4699 = vmatpush1.bf16.msra.mxu0 %v4513
    %4700 = vmatprep.subr.bf16.mxu0 %v4520
    %4701 = vmatpush1.bf16.msra.mxu0 %v4519
    %4702 = vmatprep.subr.bf16.mxu0 %v4526
    %4703 = vmatpush1.bf16.msra.mxu0 %v4525
    %4704 = vmatprep.subr.bf16.mxu0 %v4532
    %4705 = vmatpush1.bf16.msra.mxu0 %v4531
    %4706 = vmatprep.mubr.bf16.mxu0 %v4150
    %4707 = vmatmul.mubr.bf16.gmra.mrb[0].mxu0 %v4149
    %v4708 = vpop.f32.mrb[0].mxu0
    %v4709 = vadd.f32 0.0, %v4708
    %v4710 = vpop.f32.mrb[0].mxu0
    %v4711 = vadd.f32 0.0, %v4710
    %v4712 = vpop.f32.mrb[0].mxu0
    %v4713 = vadd.f32 0.0, %v4712
    %v4714 = vpop.f32.mrb[0].mxu0
    %v4715 = vadd.f32 0.0, %v4714
    %4716 = vdwg.mxu0
    %4717 = vmatprep.subr.bf16.mxu0 %v4444
    %4718 = vmatpush1.bf16.msra.mxu0 %v4443
    %4719 = vmatprep.subr.bf16.mxu0 %v4450
    %4720 = vmatpush1.bf16.msra.mxu0 %v4449
    %4721 = vmatprep.subr.bf16.mxu0 %v4456
    %4722 = vmatpush1.bf16.msra.mxu0 %v4455
    %4723 = vmatprep.subr.bf16.mxu0 %v4462
    %4724 = vmatpush1.bf16.msra.mxu0 %v4461
    %4725 = vmatprep.subr.bf16.mxu0 %v4468
    %4726 = vmatpush1.bf16.msra.mxu0 %v4467
    %4727 = vmatprep.subr.bf16.mxu0 %v4474
    %4728 = vmatpush1.bf16.msra.mxu0 %v4473
    %4729 = vmatprep.subr.bf16.mxu0 %v4480
    %4730 = vmatpush1.bf16.msra.mxu0 %v4479
    %4731 = vmatprep.subr.bf16.mxu0 %v4486
    %4732 = vmatpush1.bf16.msra.mxu0 %v4485
    %4733 = vmatprep.subr.bf16.mxu0 %v4492
    %4734 = vmatpush1.bf16.msra.mxu0 %v4491
    %4735 = vmatprep.subr.bf16.mxu0 %v4498
    %4736 = vmatpush1.bf16.msra.mxu0 %v4497
    %4737 = vmatprep.subr.bf16.mxu0 %v4504
    %4738 = vmatpush1.bf16.msra.mxu0 %v4503
    %4739 = vmatprep.subr.bf16.mxu0 %v4510
    %4740 = vmatpush1.bf16.msra.mxu0 %v4509
    %4741 = vmatprep.subr.bf16.mxu0 %v4516
    %4742 = vmatpush1.bf16.msra.mxu0 %v4515
    %4743 = vmatprep.subr.bf16.mxu0 %v4522
    %4744 = vmatpush1.bf16.msra.mxu0 %v4521
    %4745 = vmatprep.subr.bf16.mxu0 %v4528
    %4746 = vmatpush1.bf16.msra.mxu0 %v4527
    %4747 = vmatprep.subr.bf16.mxu0 %v4534
    %4748 = vmatpush1.bf16.msra.mxu0 %v4533
    %4749 = vmatprep.mubr.bf16.mxu0 %v4150
    %4750 = vmatmul.mubr.bf16.gmra.mrb[0].mxu0 %v4149
    %v4751 = vpop.f32.mrb[0].mxu0
    %v4752 = vadd.f32 0.0, %v4751
    %v4753 = vpop.f32.mrb[0].mxu0
    %v4754 = vadd.f32 0.0, %v4753
    %v4755 = vpop.f32.mrb[0].mxu0
    %v4756 = vadd.f32 0.0, %v4755
    %v4757 = vpop.f32.mrb[0].mxu0
    %v4758 = vadd.f32 0.0, %v4757
    %4759 = vdwg.mxu0
    %4760 = vmatprep.subr.mxu0 0.0
    %4761 = vmatpush1.xpose.msra.mxu0 %v4709
    %4762 = vmatprep.subr.mxu0 0.0
    %4763 = vmatpush1.xpose.msra.mxu0 0.0
    %4764 = vmatprep.subr.mxu0 0.0
    %4765 = vmatpush1.xpose.msra.mxu0 0.0
    %4766 = vmatprep.subr.mxu0 0.0
    %4767 = vmatpush1.xpose.msra.mxu0 0.0
    %4768 = vmatprep.subr.mxu0 0.0
    %4769 = vmatpush1.xpose.msra.mxu0 0.0
    %4770 = vmatprep.subr.mxu0 0.0
    %4771 = vmatpush1.xpose.msra.mxu0 0.0
    %4772 = vmatprep.subr.mxu0 0.0
    %4773 = vmatpush1.xpose.msra.mxu0 0.0
    %4774 = vmatprep.subr.mxu0 0.0
    %4775 = vmatpush1.xpose.msra.mxu0 0.0
    %4776 = vmatprep.subr.mxu0 0.0
    %4777 = vmatpush1.xpose.msra.mxu0 0.0
    %4778 = vmatprep.subr.mxu0 0.0
    %4779 = vmatpush1.xpose.msra.mxu0 0.0
    %4780 = vmatprep.subr.mxu0 0.0
    %4781 = vmatpush1.xpose.msra.mxu0 0.0
    %4782 = vmatprep.subr.mxu0 0.0
    %4783 = vmatpush1.xpose.msra.mxu0 0.0
    %4784 = vmatprep.subr.mxu0 0.0
    %4785 = vmatpush1.xpose.msra.mxu0 0.0
    %4786 = vmatprep.subr.mxu0 0.0
    %4787 = vmatpush1.xpose.msra.mxu0 0.0
    %4788 = vmatprep.subr.mxu0 0.0
    %4789 = vmatpush1.xpose.msra.mxu0 0.0
    %4790 = vmatprep.subr.mxu0 0.0
    %4791 = vmatpush1.xpose.msra.mxu0 0.0
    %4792 = vmatprep.subr.mxu0 0.0
    %4793 = vmatpush1.xpose.msra.mxu0 0.0
    %4794 = vmatprep.subr.mxu0 0.0
    %4795 = vmatpush1.xpose.msra.mxu0 0.0
    %4796 = vmatprep.subr.mxu0 0.0
    %4797 = vmatpush1.xpose.msra.mxu0 0.0
    %4798 = vmatprep.subr.mxu0 0.0
    %4799 = vmatpush1.xpose.msra.mxu0 0.0
    %4800 = vmatprep.subr.mxu0 0.0
    %4801 = vmatpush1.xpose.msra.mxu0 0.0
    %4802 = vmatprep.subr.mxu0 0.0
    %4803 = vmatpush1.xpose.msra.mxu0 0.0
    %4804 = vmatprep.subr.mxu0 0.0
    %4805 = vmatpush1.xpose.msra.mxu0 0.0
    %4806 = vmatprep.subr.mxu0 0.0
    %4807 = vmatpush1.xpose.msra.mxu0 0.0
    %4808 = vmatprep.subr.mxu0 0.0
    %4809 = vmatpush1.xpose.msra.mxu0 0.0
    %4810 = vmatprep.subr.mxu0 0.0
    %4811 = vmatpush1.xpose.msra.mxu0 0.0
    %4812 = vmatprep.subr.mxu0 0.0
    %4813 = vmatpush1.xpose.msra.mxu0 0.0
    %4814 = vmatprep.subr.mxu0 0.0
    %4815 = vmatpush1.xpose.msra.mxu0 0.0
    %4816 = vmatprep.subr.mxu0 0.0
    %4817 = vmatpush1.xpose.msra.mxu0 0.0
    %4818 = vmatprep.subr.mxu0 0.0
    %4819 = vmatpush1.xpose.msra.mxu0 0.0
    %4820 = vmatprep.subr.mxu0 0.0
    %4821 = vmatpush1.xpose.msra.mxu0 0.0
    %4822 = vmatprep.subr.mxu0 0.0
    %4823 = vmatpush1.xpose.msra.mxu0 0.0
    %4824 = vmatprep.mubr.f32.mxu0 0.0
    %4825 = vmatmul.mubr.f32.gmra.mrb[0].mxu0 %v4666
    %v4826 = vpop.f32.mrb[0].mxu0
    %v4827 = vadd.f32 0.0, %v4826
    %v4828 = vpop.f32.mrb[0].mxu0
    %4829 = vdwg.mxu0
    %v4830 = vmul.f32 %v4827, 0.088388346
    %v4831 = vsel %vm1015, %v4830, -inf
    %4832 = vmax.xlane.f32.xlu0 %v4831
    %v4833 = vpop.xlane.xlu0 %4832
    %v4834 = vsub.f32 %v4830, %v4833
    %v4835 = vmul.f32 %v4834, 1.442695
    %v4836 = vpow.pop %v4835
    %v4837 = vsel %vm1015, %v4836, 0.0
    %4838 = vadd.xlane.f32.xlu0 %v4837
    %v4839 = vpop.xlane.xlu0 %4838
    %v4840 = vrcp.pop %v4839
    %v4841 = vmul.f32 %v4836, %v4840
    %v4843 = vsel %vm1015, %v4841, 0
    %4845 = vmatprep.subr.mxu0 0.0
    %4846 = vmatpush1.msra.mxu0 %v4752
    %4847 = vmatprep.subr.mxu0 0.0
    %4848 = vmatpush1.msra.mxu0 0.0
    %4849 = vmatprep.subr.mxu0 0.0
    %4850 = vmatpush1.msra.mxu0 0.0
    %4851 = vmatprep.subr.mxu0 0.0
    %4852 = vmatpush1.msra.mxu0 0.0
    %4853 = vmatprep.subr.mxu0 0.0
    %4854 = vmatpush1.msra.mxu0 0.0
    %4855 = vmatprep.subr.mxu0 0.0
    %4856 = vmatpush1.msra.mxu0 0.0
    %4857 = vmatprep.subr.mxu0 0.0
    %4858 = vmatpush1.msra.mxu0 0.0
    %4859 = vmatprep.subr.mxu0 0.0
    %4860 = vmatpush1.msra.mxu0 0.0
    %4861 = vmatprep.subr.mxu0 0.0
    %4862 = vmatpush1.msra.mxu0 0.0
    %4863 = vmatprep.subr.mxu0 0.0
    %4864 = vmatpush1.msra.mxu0 0.0
    %4865 = vmatprep.subr.mxu0 0.0
    %4866 = vmatpush1.msra.mxu0 0.0
    %4867 = vmatprep.subr.mxu0 0.0
    %4868 = vmatpush1.msra.mxu0 0.0
    %4869 = vmatprep.subr.mxu0 0.0
    %4870 = vmatpush1.msra.mxu0 0.0
    %4871 = vmatprep.subr.mxu0 0.0
    %4872 = vmatpush1.msra.mxu0 0.0
    %4873 = vmatprep.subr.mxu0 0.0
    %4874 = vmatpush1.msra.mxu0 0.0
    %4875 = vmatprep.subr.mxu0 0.0
    %4876 = vmatpush1.msra.mxu0 0.0
    %4877 = vmatprep.subr.mxu0 0.0
    %4878 = vmatpush1.msra.mxu0 0.0
    %4879 = vmatprep.subr.mxu0 0.0
    %4880 = vmatpush1.msra.mxu0 0.0
    %4881 = vmatprep.subr.mxu0 0.0
    %4882 = vmatpush1.msra.mxu0 0.0
    %4883 = vmatprep.subr.mxu0 0.0
    %4884 = vmatpush1.msra.mxu0 0.0
    %4885 = vmatprep.subr.mxu0 0.0
    %4886 = vmatpush1.msra.mxu0 0.0
    %4887 = vmatprep.subr.mxu0 0.0
    %4888 = vmatpush1.msra.mxu0 0.0
    %4889 = vmatprep.subr.mxu0 0.0
    %4890 = vmatpush1.msra.mxu0 0.0
    %4891 = vmatprep.subr.mxu0 0.0
    %4892 = vmatpush1.msra.mxu0 0.0
    %4893 = vmatprep.subr.mxu0 0.0
    %4894 = vmatpush1.msra.mxu0 0.0
    %4895 = vmatprep.subr.mxu0 0.0
    %4896 = vmatpush1.msra.mxu0 0.0
    %4897 = vmatprep.subr.mxu0 0.0
    %4898 = vmatpush1.msra.mxu0 0.0
    %4899 = vmatprep.subr.mxu0 0.0
    %4900 = vmatpush1.msra.mxu0 0.0
    %4901 = vmatprep.subr.mxu0 0.0
    %4902 = vmatpush1.msra.mxu0 0.0
    %4903 = vmatprep.subr.mxu0 0.0
    %4904 = vmatpush1.msra.mxu0 0.0
    %4905 = vmatprep.subr.mxu0 0.0
    %4906 = vmatpush1.msra.mxu0 0.0
    %4907 = vmatprep.subr.mxu0 0.0
    %4908 = vmatpush1.msra.mxu0 0.0
    %4909 = vmatprep.mubr.f32.mxu0 0.0
    %4910 = vmatmul.mubr.f32.gmra.mrb[0].mxu0 %v4843
    %v4911 = vpop.f32.mrb[0].mxu0
    %v4912 = vadd.f32 0.0, %v4911
    %v4913 = vpop.f32.mrb[0].mxu0
    %4914 = vdwg.mxu0
    %4915 = vst [vmem:[#allocation2] sm:$0xff] %v4912
    %4916 = vmatprep.subr.mxu0 0.0
    %4917 = vmatpush1.xpose.msra.mxu0 %v4711
    %4918 = vmatprep.subr.mxu0 0.0
    %4919 = vmatpush1.xpose.msra.mxu0 0.0
    %4920 = vmatprep.subr.mxu0 0.0
    %4921 = vmatpush1.xpose.msra.mxu0 0.0
    %4922 = vmatprep.subr.mxu0 0.0
    %4923 = vmatpush1.xpose.msra.mxu0 0.0
    %4924 = vmatprep.subr.mxu0 0.0
    %4925 = vmatpush1.xpose.msra.mxu0 0.0
    %4926 = vmatprep.subr.mxu0 0.0
    %4927 = vmatpush1.xpose.msra.mxu0 0.0
    %4928 = vmatprep.subr.mxu0 0.0
    %4929 = vmatpush1.xpose.msra.mxu0 0.0
    %4930 = vmatprep.subr.mxu0 0.0
    %4931 = vmatpush1.xpose.msra.mxu0 0.0
    %4932 = vmatprep.subr.mxu0 0.0
    %4933 = vmatpush1.xpose.msra.mxu0 0.0
    %4934 = vmatprep.subr.mxu0 0.0
    %4935 = vmatpush1.xpose.msra.mxu0 0.0
    %4936 = vmatprep.subr.mxu0 0.0
    %4937 = vmatpush1.xpose.msra.mxu0 0.0
    %4938 = vmatprep.subr.mxu0 0.0
    %4939 = vmatpush1.xpose.msra.mxu0 0.0
    %4940 = vmatprep.subr.mxu0 0.0
    %4941 = vmatpush1.xpose.msra.mxu0 0.0
    %4942 = vmatprep.subr.mxu0 0.0
    %4943 = vmatpush1.xpose.msra.mxu0 0.0
    %4944 = vmatprep.subr.mxu0 0.0
    %4945 = vmatpush1.xpose.msra.mxu0 0.0
    %4946 = vmatprep.subr.mxu0 0.0
    %4947 = vmatpush1.xpose.msra.mxu0 0.0
    %4948 = vmatprep.subr.mxu0 0.0
    %4949 = vmatpush1.xpose.msra.mxu0 0.0
    %4950 = vmatprep.subr.mxu0 0.0
    %4951 = vmatpush1.xpose.msra.mxu0 0.0
    %4952 = vmatprep.subr.mxu0 0.0
    %4953 = vmatpush1.xpose.msra.mxu0 0.0
    %4954 = vmatprep.subr.mxu0 0.0
    %4955 = vmatpush1.xpose.msra.mxu0 0.0
    %4956 = vmatprep.subr.mxu0 0.0
    %4957 = vmatpush1.xpose.msra.mxu0 0.0
    %4958 = vmatprep.subr.mxu0 0.0
    %4959 = vmatpush1.xpose.msra.mxu0 0.0
    %4960 = vmatprep.subr.mxu0 0.0
    %4961 = vmatpush1.xpose.msra.mxu0 0.0
    %4962 = vmatprep.subr.mxu0 0.0
    %4963 = vmatpush1.xpose.msra.mxu0 0.0
    %4964 = vmatprep.subr.mxu0 0.0
    %4965 = vmatpush1.xpose.msra.mxu0 0.0
    %4966 = vmatprep.subr.mxu0 0.0
    %4967 = vmatpush1.xpose.msra.mxu0 0.0
    %4968 = vmatprep.subr.mxu0 0.0
    %4969 = vmatpush1.xpose.msra.mxu0 0.0
    %4970 = vmatprep.subr.mxu0 0.0
    %4971 = vmatpush1.xpose.msra.mxu0 0.0
    %4972 = vmatprep.subr.mxu0 0.0
    %4973 = vmatpush1.xpose.msra.mxu0 0.0
    %4974 = vmatprep.subr.mxu0 0.0
    %4975 = vmatpush1.xpose.msra.mxu0 0.0
    %4976 = vmatprep.subr.mxu0 0.0
    %4977 = vmatpush1.xpose.msra.mxu0 0.0
    %4978 = vmatprep.subr.mxu0 0.0
    %4979 = vmatpush1.xpose.msra.mxu0 0.0
    %4980 = vmatprep.mubr.f32.mxu0 0.0
    %4981 = vmatmul.mubr.f32.gmra.mrb[0].mxu0 %v4668
    %v4982 = vpop.f32.mrb[0].mxu0
    %v4983 = vadd.f32 0.0, %v4982
    %v4984 = vpop.f32.mrb[0].mxu0
    %4985 = vdwg.mxu0
    %v4986 = vmul.f32 %v4983, 0.088388346
    %v4987 = vsel %vm1015, %v4986, -inf
    %4988 = vmax.xlane.f32.xlu0 %v4987
    %v4989 = vpop.xlane.xlu0 %4988
    %v4990 = vsub.f32 %v4986, %v4989
    %v4991 = vmul.f32 %v4990, 1.442695
    %v4992 = vpow.pop %v4991
    %v4993 = vsel %vm1015, %v4992, 0.0
    %4994 = vadd.xlane.f32.xlu0 %v4993
    %v4995 = vpop.xlane.xlu0 %4994
    %v4996 = vrcp.pop %v4995
    %v4997 = vmul.f32 %v4992, %v4996
    %v4999 = vsel %vm1015, %v4997, 0
    %5001 = vmatprep.subr.mxu0 0.0
    %5002 = vmatpush1.msra.mxu0 %v4754
    %5003 = vmatprep.subr.mxu0 0.0
    %5004 = vmatpush1.msra.mxu0 0.0
    %5005 = vmatprep.subr.mxu0 0.0
    %5006 = vmatpush1.msra.mxu0 0.0
    %5007 = vmatprep.subr.mxu0 0.0
    %5008 = vmatpush1.msra.mxu0 0.0
    %5009 = vmatprep.subr.mxu0 0.0
    %5010 = vmatpush1.msra.mxu0 0.0
    %5011 = vmatprep.subr.mxu0 0.0
    %5012 = vmatpush1.msra.mxu0 0.0
    %5013 = vmatprep.subr.mxu0 0.0
    %5014 = vmatpush1.msra.mxu0 0.0
    %5015 = vmatprep.subr.mxu0 0.0
    %5016 = vmatpush1.msra.mxu0 0.0
    %5017 = vmatprep.subr.mxu0 0.0
    %5018 = vmatpush1.msra.mxu0 0.0
    %5019 = vmatprep.subr.mxu0 0.0
    %5020 = vmatpush1.msra.mxu0 0.0
    %5021 = vmatprep.subr.mxu0 0.0
    %5022 = vmatpush1.msra.mxu0 0.0
    %5023 = vmatprep.subr.mxu0 0.0
    %5024 = vmatpush1.msra.mxu0 0.0
    %5025 = vmatprep.subr.mxu0 0.0
    %5026 = vmatpush1.msra.mxu0 0.0
    %5027 = vmatprep.subr.mxu0 0.0
    %5028 = vmatpush1.msra.mxu0 0.0
    %5029 = vmatprep.subr.mxu0 0.0
    %5030 = vmatpush1.msra.mxu0 0.0
    %5031 = vmatprep.subr.mxu0 0.0
    %5032 = vmatpush1.msra.mxu0 0.0
    %5033 = vmatprep.subr.mxu0 0.0
    %5034 = vmatpush1.msra.mxu0 0.0
    %5035 = vmatprep.subr.mxu0 0.0
    %5036 = vmatpush1.msra.mxu0 0.0
    %5037 = vmatprep.subr.mxu0 0.0
    %5038 = vmatpush1.msra.mxu0 0.0
    %5039 = vmatprep.subr.mxu0 0.0
    %5040 = vmatpush1.msra.mxu0 0.0
    %5041 = vmatprep.subr.mxu0 0.0
    %5042 = vmatpush1.msra.mxu0 0.0
    %5043 = vmatprep.subr.mxu0 0.0
    %5044 = vmatpush1.msra.mxu0 0.0
    %5045 = vmatprep.subr.mxu0 0.0
    %5046 = vmatpush1.msra.mxu0 0.0
    %5047 = vmatprep.subr.mxu0 0.0
    %5048 = vmatpush1.msra.mxu0 0.0
    %5049 = vmatprep.subr.mxu0 0.0
    %5050 = vmatpush1.msra.mxu0 0.0
    %5051 = vmatprep.subr.mxu0 0.0
    %5052 = vmatpush1.msra.mxu0 0.0
    %5053 = vmatprep.subr.mxu0 0.0
    %5054 = vmatpush1.msra.mxu0 0.0
    %5055 = vmatprep.subr.mxu0 0.0
    %5056 = vmatpush1.msra.mxu0 0.0
    %5057 = vmatprep.subr.mxu0 0.0
    %5058 = vmatpush1.msra.mxu0 0.0
    %5059 = vmatprep.subr.mxu0 0.0
    %5060 = vmatpush1.msra.mxu0 0.0
    %5061 = vmatprep.subr.mxu0 0.0
    %5062 = vmatpush1.msra.mxu0 0.0
    %5063 = vmatprep.subr.mxu0 0.0
    %5064 = vmatpush1.msra.mxu0 0.0
    %5065 = vmatprep.mubr.f32.mxu0 0.0
    %5066 = vmatmul.mubr.f32.gmra.mrb[0].mxu0 %v4999
    %v5067 = vpop.f32.mrb[0].mxu0
    %v5068 = vadd.f32 0.0, %v5067
    %v5069 = vpop.f32.mrb[0].mxu0
    %5070 = vdwg.mxu0
    %5071 = vst [vmem:[#allocation2 + $0x8] sm:$0xff] %v5068
    %5072 = vmatprep.subr.mxu0 0.0
    %5073 = vmatpush1.xpose.msra.mxu0 %v4713
    %5074 = vmatprep.subr.mxu0 0.0
    %5075 = vmatpush1.xpose.msra.mxu0 0.0
    %5076 = vmatprep.subr.mxu0 0.0
    %5077 = vmatpush1.xpose.msra.mxu0 0.0
    %5078 = vmatprep.subr.mxu0 0.0
    %5079 = vmatpush1.xpose.msra.mxu0 0.0
    %5080 = vmatprep.subr.mxu0 0.0
    %5081 = vmatpush1.xpose.msra.mxu0 0.0
    %5082 = vmatprep.subr.mxu0 0.0
    %5083 = vmatpush1.xpose.msra.mxu0 0.0
    %5084 = vmatprep.subr.mxu0 0.0
    %5085 = vmatpush1.xpose.msra.mxu0 0.0
    %5086 = vmatprep.subr.mxu0 0.0
    %5087 = vmatpush1.xpose.msra.mxu0 0.0
    %5088 = vmatprep.subr.mxu0 0.0
    %5089 = vmatpush1.xpose.msra.mxu0 0.0
    %5090 = vmatprep.subr.mxu0 0.0
    %5091 = vmatpush1.xpose.msra.mxu0 0.0
    %5092 = vmatprep.subr.mxu0 0.0
    %5093 = vmatpush1.xpose.msra.mxu0 0.0
    %5094 = vmatprep.subr.mxu0 0.0
    %5095 = vmatpush1.xpose.msra.mxu0 0.0
    %5096 = vmatprep.subr.mxu0 0.0
    %5097 = vmatpush1.xpose.msra.mxu0 0.0
    %5098 = vmatprep.subr.mxu0 0.0
    %5099 = vmatpush1.xpose.msra.mxu0 0.0
    %5100 = vmatprep.subr.mxu0 0.0
    %5101 = vmatpush1.xpose.msra.mxu0 0.0
    %5102 = vmatprep.subr.mxu0 0.0
    %5103 = vmatpush1.xpose.msra.mxu0 0.0
    %5104 = vmatprep.subr.mxu0 0.0
    %5105 = vmatpush1.xpose.msra.mxu0 0.0
    %5106 = vmatprep.subr.mxu0 0.0
    %5107 = vmatpush1.xpose.msra.mxu0 0.0
    %5108 = vmatprep.subr.mxu0 0.0
    %5109 = vmatpush1.xpose.msra.mxu0 0.0
    %5110 = vmatprep.subr.mxu0 0.0
    %5111 = vmatpush1.xpose.msra.mxu0 0.0
    %5112 = vmatprep.subr.mxu0 0.0
    %5113 = vmatpush1.xpose.msra.mxu0 0.0
    %5114 = vmatprep.subr.mxu0 0.0
    %5115 = vmatpush1.xpose.msra.mxu0 0.0
    %5116 = vmatprep.subr.mxu0 0.0
    %5117 = vmatpush1.xpose.msra.mxu0 0.0
    %5118 = vmatprep.subr.mxu0 0.0
    %5119 = vmatpush1.xpose.msra.mxu0 0.0
    %5120 = vmatprep.subr.mxu0 0.0
    %5121 = vmatpush1.xpose.msra.mxu0 0.0
    %5122 = vmatprep.subr.mxu0 0.0
    %5123 = vmatpush1.xpose.msra.mxu0 0.0
    %5124 = vmatprep.subr.mxu0 0.0
    %5125 = vmatpush1.xpose.msra.mxu0 0.0
    %5126 = vmatprep.subr.mxu0 0.0
    %5127 = vmatpush1.xpose.msra.mxu0 0.0
    %5128 = vmatprep.subr.mxu0 0.0
    %5129 = vmatpush1.xpose.msra.mxu0 0.0
    %5130 = vmatprep.subr.mxu0 0.0
    %5131 = vmatpush1.xpose.msra.mxu0 0.0
    %5132 = vmatprep.subr.mxu0 0.0
    %5133 = vmatpush1.xpose.msra.mxu0 0.0
    %5134 = vmatprep.subr.mxu0 0.0
    %5135 = vmatpush1.xpose.msra.mxu0 0.0
    %5136 = vmatprep.mubr.f32.mxu0 0.0
    %5137 = vmatmul.mubr.f32.gmra.mrb[0].mxu0 %v4670
    %v5138 = vpop.f32.mrb[0].mxu0
    %v5139 = vadd.f32 0.0, %v5138
    %v5140 = vpop.f32.mrb[0].mxu0
    %5141 = vdwg.mxu0
    %v5142 = vmul.f32 %v5139, 0.088388346
    %v5143 = vsel %vm1015, %v5142, -inf
    %5144 = vmax.xlane.f32.xlu0 %v5143
    %v5145 = vpop.xlane.xlu0 %5144
    %v5146 = vsub.f32 %v5142, %v5145
    %v5147 = vmul.f32 %v5146, 1.442695
    %v5148 = vpow.pop %v5147
    %v5149 = vsel %vm1015, %v5148, 0.0
    %5150 = vadd.xlane.f32.xlu0 %v5149
    %v5151 = vpop.xlane.xlu0 %5150
    %v5152 = vrcp.pop %v5151
    %v5153 = vmul.f32 %v5148, %v5152
    %v5155 = vsel %vm1015, %v5153, 0
    %5157 = vmatprep.subr.mxu0 0.0
    %5158 = vmatpush1.msra.mxu0 %v4756
    %5159 = vmatprep.subr.mxu0 0.0
    %5160 = vmatpush1.msra.mxu0 0.0
    %5161 = vmatprep.subr.mxu0 0.0
    %5162 = vmatpush1.msra.mxu0 0.0
    %5163 = vmatprep.subr.mxu0 0.0
    %5164 = vmatpush1.msra.mxu0 0.0
    %5165 = vmatprep.subr.mxu0 0.0
    %5166 = vmatpush1.msra.mxu0 0.0
    %5167 = vmatprep.subr.mxu0 0.0
    %5168 = vmatpush1.msra.mxu0 0.0
    %5169 = vmatprep.subr.mxu0 0.0
    %5170 = vmatpush1.msra.mxu0 0.0
    %5171 = vmatprep.subr.mxu0 0.0
    %5172 = vmatpush1.msra.mxu0 0.0
    %5173 = vmatprep.subr.mxu0 0.0
    %5174 = vmatpush1.msra.mxu0 0.0
    %5175 = vmatprep.subr.mxu0 0.0
    %5176 = vmatpush1.msra.mxu0 0.0
    %5177 = vmatprep.subr.mxu0 0.0
    %5178 = vmatpush1.msra.mxu0 0.0
    %5179 = vmatprep.subr.mxu0 0.0
    %5180 = vmatpush1.msra.mxu0 0.0
    %5181 = vmatprep.subr.mxu0 0.0
    %5182 = vmatpush1.msra.mxu0 0.0
    %5183 = vmatprep.subr.mxu0 0.0
    %5184 = vmatpush1.msra.mxu0 0.0
    %5185 = vmatprep.subr.mxu0 0.0
    %5186 = vmatpush1.msra.mxu0 0.0
    %5187 = vmatprep.subr.mxu0 0.0
    %5188 = vmatpush1.msra.mxu0 0.0
    %5189 = vmatprep.subr.mxu0 0.0
    %5190 = vmatpush1.msra.mxu0 0.0
    %5191 = vmatprep.subr.mxu0 0.0
    %5192 = vmatpush1.msra.mxu0 0.0
    %5193 = vmatprep.subr.mxu0 0.0
    %5194 = vmatpush1.msra.mxu0 0.0
    %5195 = vmatprep.subr.mxu0 0.0
    %5196 = vmatpush1.msra.mxu0 0.0
    %5197 = vmatprep.subr.mxu0 0.0
    %5198 = vmatpush1.msra.mxu0 0.0
    %5199 = vmatprep.subr.mxu0 0.0
    %5200 = vmatpush1.msra.mxu0 0.0
    %5201 = vmatprep.subr.mxu0 0.0
    %5202 = vmatpush1.msra.mxu0 0.0
    %5203 = vmatprep.subr.mxu0 0.0
    %5204 = vmatpush1.msra.mxu0 0.0
    %5205 = vmatprep.subr.mxu0 0.0
    %5206 = vmatpush1.msra.mxu0 0.0
    %5207 = vmatprep.subr.mxu0 0.0
    %5208 = vmatpush1.msra.mxu0 0.0
    %5209 = vmatprep.subr.mxu0 0.0
    %5210 = vmatpush1.msra.mxu0 0.0
    %5211 = vmatprep.subr.mxu0 0.0
    %5212 = vmatpush1.msra.mxu0 0.0
    %5213 = vmatprep.subr.mxu0 0.0
    %5214 = vmatpush1.msra.mxu0 0.0
    %5215 = vmatprep.subr.mxu0 0.0
    %5216 = vmatpush1.msra.mxu0 0.0
    %5217 = vmatprep.subr.mxu0 0.0
    %5218 = vmatpush1.msra.mxu0 0.0
    %5219 = vmatprep.subr.mxu0 0.0
    %5220 = vmatpush1.msra.mxu0 0.0
    %5221 = vmatprep.mubr.f32.mxu0 0.0
    %5222 = vmatmul.mubr.f32.gmra.mrb[0].mxu0 %v5155
    %v5223 = vpop.f32.mrb[0].mxu0
    %v5224 = vadd.f32 0.0, %v5223
    %v5225 = vpop.f32.mrb[0].mxu0
    %5226 = vdwg.mxu0
    %5227 = vst [vmem:[#allocation2 + $0x10] sm:$0xff] %v5224
    %5228 = vmatprep.subr.mxu0 0.0
    %5229 = vmatpush1.xpose.msra.mxu0 %v4715
    %5230 = vmatprep.subr.mxu0 0.0
    %5231 = vmatpush1.xpose.msra.mxu0 0.0
    %5232 = vmatprep.subr.mxu0 0.0
    %5233 = vmatpush1.xpose.msra.mxu0 0.0
    %5234 = vmatprep.subr.mxu0 0.0
    %5235 = vmatpush1.xpose.msra.mxu0 0.0
    %5236 = vmatprep.subr.mxu0 0.0
    %5237 = vmatpush1.xpose.msra.mxu0 0.0
    %5238 = vmatprep.subr.mxu0 0.0
    %5239 = vmatpush1.xpose.msra.mxu0 0.0
    %5240 = vmatprep.subr.mxu0 0.0
    %5241 = vmatpush1.xpose.msra.mxu0 0.0
    %5242 = vmatprep.subr.mxu0 0.0
    %5243 = vmatpush1.xpose.msra.mxu0 0.0
    %5244 = vmatprep.subr.mxu0 0.0
    %5245 = vmatpush1.xpose.msra.mxu0 0.0
    %5246 = vmatprep.subr.mxu0 0.0
    %5247 = vmatpush1.xpose.msra.mxu0 0.0
    %5248 = vmatprep.subr.mxu0 0.0
    %5249 = vmatpush1.xpose.msra.mxu0 0.0
    %5250 = vmatprep.subr.mxu0 0.0
    %5251 = vmatpush1.xpose.msra.mxu0 0.0
    %5252 = vmatprep.subr.mxu0 0.0
    %5253 = vmatpush1.xpose.msra.mxu0 0.0
    %5254 = vmatprep.subr.mxu0 0.0
    %5255 = vmatpush1.xpose.msra.mxu0 0.0
    %5256 = vmatprep.subr.mxu0 0.0
    %5257 = vmatpush1.xpose.msra.mxu0 0.0
    %5258 = vmatprep.subr.mxu0 0.0
    %5259 = vmatpush1.xpose.msra.mxu0 0.0
    %5260 = vmatprep.subr.mxu0 0.0
    %5261 = vmatpush1.xpose.msra.mxu0 0.0
    %5262 = vmatprep.subr.mxu0 0.0
    %5263 = vmatpush1.xpose.msra.mxu0 0.0
    %5264 = vmatprep.subr.mxu0 0.0
    %5265 = vmatpush1.xpose.msra.mxu0 0.0
    %5266 = vmatprep.subr.mxu0 0.0
    %5267 = vmatpush1.xpose.msra.mxu0 0.0
    %5268 = vmatprep.subr.mxu0 0.0
    %5269 = vmatpush1.xpose.msra.mxu0 0.0
    %5270 = vmatprep.subr.mxu0 0.0
    %5271 = vmatpush1.xpose.msra.mxu0 0.0
    %5272 = vmatprep.subr.mxu0 0.0
    %5273 = vmatpush1.xpose.msra.mxu0 0.0
    %5274 = vmatprep.subr.mxu0 0.0
    %5275 = vmatpush1.xpose.msra.mxu0 0.0
    %5276 = vmatprep.subr.mxu0 0.0
    %5277 = vmatpush1.xpose.msra.mxu0 0.0
    %5278 = vmatprep.subr.mxu0 0.0
    %5279 = vmatpush1.xpose.msra.mxu0 0.0
    %5280 = vmatprep.subr.mxu0 0.0
    %5281 = vmatpush1.xpose.msra.mxu0 0.0
    %5282 = vmatprep.subr.mxu0 0.0
    %5283 = vmatpush1.xpose.msra.mxu0 0.0
    %5284 = vmatprep.subr.mxu0 0.0
    %5285 = vmatpush1.xpose.msra.mxu0 0.0
    %5286 = vmatprep.subr.mxu0 0.0
    %5287 = vmatpush1.xpose.msra.mxu0 0.0
    %5288 = vmatprep.subr.mxu0 0.0
    %5289 = vmatpush1.xpose.msra.mxu0 0.0
    %5290 = vmatprep.subr.mxu0 0.0
    %5291 = vmatpush1.xpose.msra.mxu0 0.0
    %5292 = vmatprep.mubr.f32.mxu0 0.0
    %5293 = vmatmul.mubr.f32.gmra.mrb[0].mxu0 %v4672
    %v5294 = vpop.f32.mrb[0].mxu0
    %v5295 = vadd.f32 0.0, %v5294
    %v5296 = vpop.f32.mrb[0].mxu0
    %5297 = vdwg.mxu0
    %v5298 = vmul.f32 %v5295, 0.088388346
    %v5299 = vsel %vm1015, %v5298, -inf
    %5300 = vmax.xlane.f32.xlu0 %v5299
    %v5301 = vpop.xlane.xlu0 %5300
    %v5302 = vsub.f32 %v5298, %v5301
    %v5303 = vmul.f32 %v5302, 1.442695
    %v5304 = vpow.pop %v5303
    %v5305 = vsel %vm1015, %v5304, 0.0
    %5306 = vadd.xlane.f32.xlu0 %v5305
    %v5307 = vpop.xlane.xlu0 %5306
    %v5308 = vrcp.pop %v5307
    %v5309 = vmul.f32 %v5304, %v5308
    %v5311 = vsel %vm1015, %v5309, 0
    %5313 = vmatprep.subr.mxu0 0.0
    %5314 = vmatpush1.msra.mxu0 %v4758
    %5315 = vmatprep.subr.mxu0 0.0
    %5316 = vmatpush1.msra.mxu0 0.0
    %5317 = vmatprep.subr.mxu0 0.0
    %5318 = vmatpush1.msra.mxu0 0.0
    %5319 = vmatprep.subr.mxu0 0.0
    %5320 = vmatpush1.msra.mxu0 0.0
    %5321 = vmatprep.subr.mxu0 0.0
    %5322 = vmatpush1.msra.mxu0 0.0
    %5323 = vmatprep.subr.mxu0 0.0
    %5324 = vmatpush1.msra.mxu0 0.0
    %5325 = vmatprep.subr.mxu0 0.0
    %5326 = vmatpush1.msra.mxu0 0.0
    %5327 = vmatprep.subr.mxu0 0.0
    %5328 = vmatpush1.msra.mxu0 0.0
    %5329 = vmatprep.subr.mxu0 0.0
    %5330 = vmatpush1.msra.mxu0 0.0
    %5331 = vmatprep.subr.mxu0 0.0
    %5332 = vmatpush1.msra.mxu0 0.0
    %5333 = vmatprep.subr.mxu0 0.0
    %5334 = vmatpush1.msra.mxu0 0.0
    %5335 = vmatprep.subr.mxu0 0.0
    %5336 = vmatpush1.msra.mxu0 0.0
    %5337 = vmatprep.subr.mxu0 0.0
    %5338 = vmatpush1.msra.mxu0 0.0
    %5339 = vmatprep.subr.mxu0 0.0
    %5340 = vmatpush1.msra.mxu0 0.0
    %5341 = vmatprep.subr.mxu0 0.0
    %5342 = vmatpush1.msra.mxu0 0.0
    %5343 = vmatprep.subr.mxu0 0.0
    %5344 = vmatpush1.msra.mxu0 0.0
    %5345 = vmatprep.subr.mxu0 0.0
    %5346 = vmatpush1.msra.mxu0 0.0
    %5347 = vmatprep.subr.mxu0 0.0
    %5348 = vmatpush1.msra.mxu0 0.0
    %5349 = vmatprep.subr.mxu0 0.0
    %5350 = vmatpush1.msra.mxu0 0.0
    %5351 = vmatprep.subr.mxu0 0.0
    %5352 = vmatpush1.msra.mxu0 0.0
    %5353 = vmatprep.subr.mxu0 0.0
    %5354 = vmatpush1.msra.mxu0 0.0
    %5355 = vmatprep.subr.mxu0 0.0
    %5356 = vmatpush1.msra.mxu0 0.0
    %5357 = vmatprep.subr.mxu0 0.0
    %5358 = vmatpush1.msra.mxu0 0.0
    %5359 = vmatprep.subr.mxu0 0.0
    %5360 = vmatpush1.msra.mxu0 0.0
    %5361 = vmatprep.subr.mxu0 0.0
    %5362 = vmatpush1.msra.mxu0 0.0
    %5363 = vmatprep.subr.mxu0 0.0
    %5364 = vmatpush1.msra.mxu0 0.0
    %5365 = vmatprep.subr.mxu0 0.0
    %5366 = vmatpush1.msra.mxu0 0.0
    %5367 = vmatprep.subr.mxu0 0.0
    %5368 = vmatpush1.msra.mxu0 0.0
    %5369 = vmatprep.subr.mxu0 0.0
    %5370 = vmatpush1.msra.mxu0 0.0
    %5371 = vmatprep.subr.mxu0 0.0
    %5372 = vmatpush1.msra.mxu0 0.0
    %5373 = vmatprep.subr.mxu0 0.0
    %5374 = vmatpush1.msra.mxu0 0.0
    %5375 = vmatprep.subr.mxu0 0.0
    %5376 = vmatpush1.msra.mxu0 0.0
    %5377 = vmatprep.mubr.f32.mxu0 0.0
    %5378 = vmatmul.mubr.f32.gmra.mrb[0].mxu0 %v5311
    %v5379 = vpop.f32.mrb[0].mxu0
    %v5380 = vadd.f32 0.0, %v5379
    %v5381 = vpop.f32.mrb[0].mxu0
    %5382 = vdwg.mxu0
    %5383 = vst [vmem:[#allocation2 + $0x18] sm:$0xff] %v5380
    %v5384 = vld [vmem:[#allocation2] sm:$0xff]
    %v5385 = vld [vmem:[#allocation2 + $0x8] sm:$0xff]
    %v5386 = vld [vmem:[#allocation2 + $0x10] sm:$0xff]
    %v5387 = vld [vmem:[#allocation2 + $0x18] sm:$0xff]
    %s5388 = scalar_lea.vmem [#allocation9], 256
    %v5389 = vld [vmem:[%s5388] sm:$0xff]
    %v5390 = vld [vmem:[%s5388 + $0x8] sm:$0xff]
    %v5391 = vld [vmem:[%s5388 + $0x10] sm:$0xff]
    %v5392 = vld [vmem:[%s5388 + $0x18] sm:$0xff]
    %v5393 = vld [vmem:[%s5388 + $0x20] sm:$0xff]
    %v5394 = vld [vmem:[%s5388 + $0x28] sm:$0xff]
    %v5395 = vld [vmem:[%s5388 + $0x30] sm:$0xff]
    %v5396 = vld [vmem:[%s5388 + $0x38] sm:$0xff]
    %v5397 = vld [vmem:[%s5388 + $0x40] sm:$0xff]
    %v5398 = vld [vmem:[%s5388 + $0x48] sm:$0xff]
    %v5399 = vld [vmem:[%s5388 + $0x50] sm:$0xff]
    %v5400 = vld [vmem:[%s5388 + $0x58] sm:$0xff]
    %v5401 = vld [vmem:[%s5388 + $0x60] sm:$0xff]
    %v5402 = vld [vmem:[%s5388 + $0x68] sm:$0xff]
    %v5403 = vld [vmem:[%s5388 + $0x70] sm:$0xff]
    %v5404 = vld [vmem:[%s5388 + $0x78] sm:$0xff]
    %v5405 = vld [vmem:[%s5388 + $0x80] sm:$0xff]
    %v5406 = vld [vmem:[%s5388 + $0x88] sm:$0xff]
    %v5407 = vld [vmem:[%s5388 + $0x90] sm:$0xff]
    %v5408 = vld [vmem:[%s5388 + $0x98] sm:$0xff]
    %v5409 = vld [vmem:[%s5388 + $0xa0] sm:$0xff]
    %v5410 = vld [vmem:[%s5388 + $0xa8] sm:$0xff]
    %v5411 = vld [vmem:[%s5388 + $0xb0] sm:$0xff]
    %v5412 = vld [vmem:[%s5388 + $0xb8] sm:$0xff]
    %v5413 = vld [vmem:[%s5388 + $0xc0] sm:$0xff]
    %v5414 = vld [vmem:[%s5388 + $0xc8] sm:$0xff]
    %v5415 = vld [vmem:[%s5388 + $0xd0] sm:$0xff]
    %v5416 = vld [vmem:[%s5388 + $0xd8] sm:$0xff]
    %v5417 = vld [vmem:[%s5388 + $0xe0] sm:$0xff]
    %v5418 = vld [vmem:[%s5388 + $0xe8] sm:$0xff]
    %v5419 = vld [vmem:[%s5388 + $0xf0] sm:$0xff]
    %v5420 = vld [vmem:[%s5388 + $0xf8] sm:$0xff]
    %v5421 = vpack.c.bf16 %v5386, %v5384
    %v5422 = vpack.c.bf16 %v5387, %v5385
    %s5423 = scalar_lea.vmem %s6, 2
    %v5424 = vld [vmem:[%s5423] sm:$0x3]
    %v5426 = vlaneseq
    %v5427 = vshrl.u32 %v5426, 7
    %v5428 = vsub.s32 0, %v5427
    %v5429 = vrot.slane %v5424, %v5428
    %v5430 = vlaneseq
    %v5431 = vshrl.u32 %v5430, 7
    %v5432 = vsub.s32 1, %v5431
    %v5433 = vrot.slane %v5424, %v5432
    %v5468 = vunpack.c.l.b16 %v5389
    %v5469 = vunpack.c.h.b16 %v5389
    %v5470 = vunpack.c.l.b16 %v5390
    %v5471 = vunpack.c.h.b16 %v5390
    %v5472 = vunpack.c.l.b16 %v5391
    %v5473 = vunpack.c.h.b16 %v5391
    %v5474 = vunpack.c.l.b16 %v5392
    %v5475 = vunpack.c.h.b16 %v5392
    %v5476 = vunpack.c.l.b16 %v5393
    %v5477 = vunpack.c.h.b16 %v5393
    %v5478 = vunpack.c.l.b16 %v5394
    %v5479 = vunpack.c.h.b16 %v5394
    %v5480 = vunpack.c.l.b16 %v5395
    %v5481 = vunpack.c.h.b16 %v5395
    %v5482 = vunpack.c.l.b16 %v5396
    %v5483 = vunpack.c.h.b16 %v5396
    %v5484 = vunpack.c.l.b16 %v5397
    %v5485 = vunpack.c.h.b16 %v5397
    %v5486 = vunpack.c.l.b16 %v5398
    %v5487 = vunpack.c.h.b16 %v5398
    %v5488 = vunpack.c.l.b16 %v5399
    %v5489 = vunpack.c.h.b16 %v5399
    %v5490 = vunpack.c.l.b16 %v5400
    %v5491 = vunpack.c.h.b16 %v5400
    %v5492 = vunpack.c.l.b16 %v5401
    %v5493 = vunpack.c.h.b16 %v5401
    %v5494 = vunpack.c.l.b16 %v5402
    %v5495 = vunpack.c.h.b16 %v5402
    %v5496 = vunpack.c.l.b16 %v5403
    %v5497 = vunpack.c.h.b16 %v5403
    %v5498 = vunpack.c.l.b16 %v5404
    %v5499 = vunpack.c.h.b16 %v5404
    %v5500 = vunpack.c.l.b16 %v5405
    %v5501 = vunpack.c.h.b16 %v5405
    %v5502 = vunpack.c.l.b16 %v5406
    %v5503 = vunpack.c.h.b16 %v5406
    %v5504 = vunpack.c.l.b16 %v5407
    %v5505 = vunpack.c.h.b16 %v5407
    %v5506 = vunpack.c.l.b16 %v5408
    %v5507 = vunpack.c.h.b16 %v5408
    %v5508 = vunpack.c.l.b16 %v5409
    %v5509 = vunpack.c.h.b16 %v5409
    %v5510 = vunpack.c.l.b16 %v5410
    %v5511 = vunpack.c.h.b16 %v5410
    %v5512 = vunpack.c.l.b16 %v5411
    %v5513 = vunpack.c.h.b16 %v5411
    %v5514 = vunpack.c.l.b16 %v5412
    %v5515 = vunpack.c.h.b16 %v5412
    %v5516 = vunpack.c.l.b16 %v5413
    %v5517 = vunpack.c.h.b16 %v5413
    %v5518 = vunpack.c.l.b16 %v5414
    %v5519 = vunpack.c.h.b16 %v5414
    %v5520 = vunpack.c.l.b16 %v5415
    %v5521 = vunpack.c.h.b16 %v5415
    %v5522 = vunpack.c.l.b16 %v5416
    %v5523 = vunpack.c.h.b16 %v5416
    %v5524 = vunpack.c.l.b16 %v5417
    %v5525 = vunpack.c.h.b16 %v5417
    %v5526 = vunpack.c.l.b16 %v5418
    %v5527 = vunpack.c.h.b16 %v5418
    %v5528 = vunpack.c.l.b16 %v5419
    %v5529 = vunpack.c.h.b16 %v5419
    %v5530 = vunpack.c.l.b16 %v5420
    %v5531 = vunpack.c.h.b16 %v5420
    %v5532 = vpack.c.b16 %v5470, %v5468
    %v5533 = vpack.c.b16 %v5471, %v5469
    %v5534 = vpack.c.b16 %v5474, %v5472
    %v5535 = vpack.c.b16 %v5475, %v5473
    %v5536 = vpack.c.b16 %v5478, %v5476
    %v5537 = vpack.c.b16 %v5479, %v5477
    %v5538 = vpack.c.b16 %v5482, %v5480
    %v5539 = vpack.c.b16 %v5483, %v5481
    %v5540 = vpack.c.b16 %v5486, %v5484
    %v5541 = vpack.c.b16 %v5487, %v5485
    %v5542 = vpack.c.b16 %v5490, %v5488
    %v5543 = vpack.c.b16 %v5491, %v5489
    %v5544 = vpack.c.b16 %v5494, %v5492
    %v5545 = vpack.c.b16 %v5495, %v5493
    %v5546 = vpack.c.b16 %v5498, %v5496
    %v5547 = vpack.c.b16 %v5499, %v5497
    %v5548 = vpack.c.b16 %v5502, %v5500
    %v5549 = vpack.c.b16 %v5503, %v5501
    %v5550 = vpack.c.b16 %v5506, %v5504
    %v5551 = vpack.c.b16 %v5507, %v5505
    %v5552 = vpack.c.b16 %v5510, %v5508
    %v5553 = vpack.c.b16 %v5511, %v5509
    %v5554 = vpack.c.b16 %v5514, %v5512
    %v5555 = vpack.c.b16 %v5515, %v5513
    %v5556 = vpack.c.b16 %v5518, %v5516
    %v5557 = vpack.c.b16 %v5519, %v5517
    %v5558 = vpack.c.b16 %v5522, %v5520
    %v5559 = vpack.c.b16 %v5523, %v5521
    %v5560 = vpack.c.b16 %v5526, %v5524
    %v5561 = vpack.c.b16 %v5527, %v5525
    %v5562 = vpack.c.b16 %v5530, %v5528
    %v5563 = vpack.c.b16 %v5531, %v5529
    %5596 = vmatprep.subr.bf16.mxu0 %v5533
    %5597 = vmatpush1.bf16.msra.mxu0 %v5532
    %5598 = vmatprep.subr.bf16.mxu0 %v5535
    %5599 = vmatpush1.bf16.msra.mxu0 %v5534
    %5600 = vmatprep.subr.bf16.mxu0 %v5537
    %5601 = vmatpush1.bf16.msra.mxu0 %v5536
    %5602 = vmatprep.subr.bf16.mxu0 %v5539
    %5603 = vmatpush1.bf16.msra.mxu0 %v5538
    %5604 = vmatprep.subr.bf16.mxu0 %v5541
    %5605 = vmatpush1.bf16.msra.mxu0 %v5540
    %5606 = vmatprep.subr.bf16.mxu0 %v5543
    %5607 = vmatpush1.bf16.msra.mxu0 %v5542
    %5608 = vmatprep.subr.bf16.mxu0 %v5545
    %5609 = vmatpush1.bf16.msra.mxu0 %v5544
    %5610 = vmatprep.subr.bf16.mxu0 %v5547
    %5611 = vmatpush1.bf16.msra.mxu0 %v5546
    %5612 = vmatprep.subr.bf16.mxu0 %v5549
    %5613 = vmatpush1.bf16.msra.mxu0 %v5548
    %5614 = vmatprep.subr.bf16.mxu0 %v5551
    %5615 = vmatpush1.bf16.msra.mxu0 %v5550
    %5616 = vmatprep.subr.bf16.mxu0 %v5553
    %5617 = vmatpush1.bf16.msra.mxu0 %v5552
    %5618 = vmatprep.subr.bf16.mxu0 %v5555
    %5619 = vmatpush1.bf16.msra.mxu0 %v5554
    %5620 = vmatprep.subr.bf16.mxu0 %v5557
    %5621 = vmatpush1.bf16.msra.mxu0 %v5556
    %5622 = vmatprep.subr.bf16.mxu0 %v5559
    %5623 = vmatpush1.bf16.msra.mxu0 %v5558
    %5624 = vmatprep.subr.bf16.mxu0 %v5561
    %5625 = vmatpush1.bf16.msra.mxu0 %v5560
    %5626 = vmatprep.subr.bf16.mxu0 %v5563
    %5627 = vmatpush1.bf16.msra.mxu0 %v5562
    %5628 = vmatprep.mubr.bf16.mxu0 %v5422
    %5629 = vmatmul.mubr.bf16.gmra.mrb[0].mxu0 %v5421
    %v5630 = vpop.f32.mrb[0].mxu0
    %v5631 = vadd.f32 %v5429, %v5630
    %v5632 = vpop.f32.mrb[0].mxu0
    %v5633 = vadd.f32 %v5433, %v5632
    %v5634 = vpop.f32.mrb[0].mxu0
    %v5635 = vadd.f32 %v5429, %v5634
    %v5636 = vpop.f32.mrb[0].mxu0
    %v5637 = vadd.f32 %v5433, %v5636
    %5638 = vdwg.mxu0
    %v5639 = vadd.f32 %v3982, %v5631
    %v5640 = vadd.f32 %v3983, %v5633
    %v5641 = vadd.f32 %v3984, %v5635
    %v5642 = vadd.f32 %v3985, %v5637
    %s5643 = scalar_lea.vmem [#allocation11], 2
    %v5644 = vld [vmem:[%s5643] sm:$0x3]
    %s5645 = scalar_lea.vmem [#allocation12], 2
    %v5646 = vld [vmem:[%s5645] sm:$0x3]
    %v5647 = vadd.f32 %v5639, %v5640
    %5648 = vadd.xlane.f32.xlu0 %v5647
    %v5649 = vpop.xlane.xlu0 %5648
    %v5650 = vadd.f32 %v5641, %v5642
    %5651 = vadd.xlane.f32.xlu0 %v5650
    %v5652 = vpop.xlane.xlu0 %5651
    %v5653 = vmul.f32 %v5649, %v180
    %v5654 = vmul.f32 %v5652, %v180
    %v5655 = vsub.f32 %v5639, %v5653
    %v5656 = vsub.f32 %v5640, %v5653
    %v5657 = vsub.f32 %v5641, %v5654
    %v5658 = vsub.f32 %v5642, %v5654
    %v5659 = vmul.f32 %v5655, %v5655
    %v5660 = vmul.f32 %v5656, %v5656
    %v5661 = vmul.f32 %v5657, %v5657
    %v5662 = vmul.f32 %v5658, %v5658
    %v5663 = vadd.f32 %v5659, %v5660
    %5664 = vadd.xlane.f32.xlu0 %v5663
    %v5665 = vpop.xlane.xlu0 %5664
    %v5666 = vadd.f32 %v5661, %v5662
    %5667 = vadd.xlane.f32.xlu0 %v5666
    %v5668 = vpop.xlane.xlu0 %5667
    %v5669 = vmul.f32 %v5665, %v180
    %v5670 = vmul.f32 %v5668, %v180
    %v5671 = vadd.f32 %v5669, 1e-05
    %v5672 = vadd.f32 %v5670, 1e-05
    %v5673 = vrsqrt.pop %v5671
    %v5674 = vrsqrt.pop %v5672
    %v5675 = vmul.f32 %v5655, %v5673
    %v5676 = vmul.f32 %v5656, %v5673
    %v5677 = vmul.f32 %v5657, %v5674
    %v5678 = vmul.f32 %v5658, %v5674
    %v5680 = vlaneseq
    %v5681 = vshrl.u32 %v5680, 7
    %v5682 = vsub.s32 0, %v5681
    %v5683 = vrot.slane %v5644, %v5682
    %v5684 = vlaneseq
    %v5685 = vshrl.u32 %v5684, 7
    %v5686 = vsub.s32 1, %v5685
    %v5687 = vrot.slane %v5644, %v5686
    %v5690 = vmul.f32 %v5675, %v5683
    %v5691 = vmul.f32 %v5676, %v5687
    %v5692 = vmul.f32 %v5677, %v5683
    %v5693 = vmul.f32 %v5678, %v5687
    %v5695 = vlaneseq
    %v5696 = vshrl.u32 %v5695, 7
    %v5697 = vsub.s32 0, %v5696
    %v5698 = vrot.slane %v5646, %v5697
    %v5699 = vlaneseq
    %v5700 = vshrl.u32 %v5699, 7
    %v5701 = vsub.s32 1, %v5700
    %v5702 = vrot.slane %v5646, %v5701
    %v5705 = vadd.f32 %v5690, %v5698
    %v5706 = vadd.f32 %v5691, %v5702
    %v5707 = vadd.f32 %v5692, %v5698
    %v5708 = vadd.f32 %v5693, %v5702
    %s5709 = scalar_lea.vmem [#allocation14], 1024
    %v5710 = vld [vmem:[%s5709] sm:$0xff]
    %v5711 = vld [vmem:[%s5709 + $0x8] sm:$0xff]
    %v5712 = vld [vmem:[%s5709 + $0x10] sm:$0xff]
    %v5713 = vld [vmem:[%s5709 + $0x18] sm:$0xff]
    %v5714 = vld [vmem:[%s5709 + $0x20] sm:$0xff]
    %v5715 = vld [vmem:[%s5709 + $0x28] sm:$0xff]
    %v5716 = vld [vmem:[%s5709 + $0x30] sm:$0xff]
    %v5717 = vld [vmem:[%s5709 + $0x38] sm:$0xff]
    %v5718 = vld [vmem:[%s5709 + $0x40] sm:$0xff]
    %v5719 = vld [vmem:[%s5709 + $0x48] sm:$0xff]
    %v5720 = vld [vmem:[%s5709 + $0x50] sm:$0xff]
    %v5721 = vld [vmem:[%s5709 + $0x58] sm:$0xff]
    %v5722 = vld [vmem:[%s5709 + $0x60] sm:$0xff]
    %v5723 = vld [vmem:[%s5709 + $0x68] sm:$0xff]
    %v5724 = vld [vmem:[%s5709 + $0x70] sm:$0xff]
    %v5725 = vld [vmem:[%s5709 + $0x78] sm:$0xff]
    %v5726 = vld [vmem:[%s5709 + $0x80] sm:$0xff]
    %v5727 = vld [vmem:[%s5709 + $0x88] sm:$0xff]
    %v5728 = vld [vmem:[%s5709 + $0x90] sm:$0xff]
    %v5729 = vld [vmem:[%s5709 + $0x98] sm:$0xff]
    %v5730 = vld [vmem:[%s5709 + $0xa0] sm:$0xff]
    %v5731 = vld [vmem:[%s5709 + $0xa8] sm:$0xff]
    %v5732 = vld [vmem:[%s5709 + $0xb0] sm:$0xff]
    %v5733 = vld [vmem:[%s5709 + $0xb8] sm:$0xff]
    %v5734 = vld [vmem:[%s5709 + $0xc0] sm:$0xff]
    %v5735 = vld [vmem:[%s5709 + $0xc8] sm:$0xff]
    %v5736 = vld [vmem:[%s5709 + $0xd0] sm:$0xff]
    %v5737 = vld [vmem:[%s5709 + $0xd8] sm:$0xff]
    %v5738 = vld [vmem:[%s5709 + $0xe0] sm:$0xff]
    %v5739 = vld [vmem:[%s5709 + $0xe8] sm:$0xff]
    %v5740 = vld [vmem:[%s5709 + $0xf0] sm:$0xff]
    %v5741 = vld [vmem:[%s5709 + $0xf8] sm:$0xff]
    %v5742 = vld [vmem:[%s5709 + $0x100] sm:$0xff]
    %v5743 = vld [vmem:[%s5709 + $0x108] sm:$0xff]
    %v5744 = vld [vmem:[%s5709 + $0x110] sm:$0xff]
    %v5745 = vld [vmem:[%s5709 + $0x118] sm:$0xff]
    %v5746 = vld [vmem:[%s5709 + $0x120] sm:$0xff]
    %v5747 = vld [vmem:[%s5709 + $0x128] sm:$0xff]
    %v5748 = vld [vmem:[%s5709 + $0x130] sm:$0xff]
    %v5749 = vld [vmem:[%s5709 + $0x138] sm:$0xff]
    %v5750 = vld [vmem:[%s5709 + $0x140] sm:$0xff]
    %v5751 = vld [vmem:[%s5709 + $0x148] sm:$0xff]
    %v5752 = vld [vmem:[%s5709 + $0x150] sm:$0xff]
    %v5753 = vld [vmem:[%s5709 + $0x158] sm:$0xff]
    %v5754 = vld [vmem:[%s5709 + $0x160] sm:$0xff]
    %v5755 = vld [vmem:[%s5709 + $0x168] sm:$0xff]
    %v5756 = vld [vmem:[%s5709 + $0x170] sm:$0xff]
    %v5757 = vld [vmem:[%s5709 + $0x178] sm:$0xff]
    %v5758 = vld [vmem:[%s5709 + $0x180] sm:$0xff]
    %v5759 = vld [vmem:[%s5709 + $0x188] sm:$0xff]
    %v5760 = vld [vmem:[%s5709 + $0x190] sm:$0xff]
    %v5761 = vld [vmem:[%s5709 + $0x198] sm:$0xff]
    %v5762 = vld [vmem:[%s5709 + $0x1a0] sm:$0xff]
    %v5763 = vld [vmem:[%s5709 + $0x1a8] sm:$0xff]
    %v5764 = vld [vmem:[%s5709 + $0x1b0] sm:$0xff]
    %v5765 = vld [vmem:[%s5709 + $0x1b8] sm:$0xff]
    %v5766 = vld [vmem:[%s5709 + $0x1c0] sm:$0xff]
    %v5767 = vld [vmem:[%s5709 + $0x1c8] sm:$0xff]
    %v5768 = vld [vmem:[%s5709 + $0x1d0] sm:$0xff]
    %v5769 = vld [vmem:[%s5709 + $0x1d8] sm:$0xff]
    %v5770 = vld [vmem:[%s5709 + $0x1e0] sm:$0xff]
    %v5771 = vld [vmem:[%s5709 + $0x1e8] sm:$0xff]
    %v5772 = vld [vmem:[%s5709 + $0x1f0] sm:$0xff]
    %v5773 = vld [vmem:[%s5709 + $0x1f8] sm:$0xff]
    %v5774 = vld [vmem:[%s5709 + $0x200] sm:$0xff]
    %v5775 = vld [vmem:[%s5709 + $0x208] sm:$0xff]
    %v5776 = vld [vmem:[%s5709 + $0x210] sm:$0xff]
    %v5777 = vld [vmem:[%s5709 + $0x218] sm:$0xff]
    %v5778 = vld [vmem:[%s5709 + $0x220] sm:$0xff]
    %v5779 = vld [vmem:[%s5709 + $0x228] sm:$0xff]
    %v5780 = vld [vmem:[%s5709 + $0x230] sm:$0xff]
    %v5781 = vld [vmem:[%s5709 + $0x238] sm:$0xff]
    %v5782 = vld [vmem:[%s5709 + $0x240] sm:$0xff]
    %v5783 = vld [vmem:[%s5709 + $0x248] sm:$0xff]
    %v5784 = vld [vmem:[%s5709 + $0x250] sm:$0xff]
    %v5785 = vld [vmem:[%s5709 + $0x258] sm:$0xff]
    %v5786 = vld [vmem:[%s5709 + $0x260] sm:$0xff]
    %v5787 = vld [vmem:[%s5709 + $0x268] sm:$0xff]
    %v5788 = vld [vmem:[%s5709 + $0x270] sm:$0xff]
    %v5789 = vld [vmem:[%s5709 + $0x278] sm:$0xff]
    %v5790 = vld [vmem:[%s5709 + $0x280] sm:$0xff]
    %v5791 = vld [vmem:[%s5709 + $0x288] sm:$0xff]
    %v5792 = vld [vmem:[%s5709 + $0x290] sm:$0xff]
    %v5793 = vld [vmem:[%s5709 + $0x298] sm:$0xff]
    %v5794 = vld [vmem:[%s5709 + $0x2a0] sm:$0xff]
    %v5795 = vld [vmem:[%s5709 + $0x2a8] sm:$0xff]
    %v5796 = vld [vmem:[%s5709 + $0x2b0] sm:$0xff]
    %v5797 = vld [vmem:[%s5709 + $0x2b8] sm:$0xff]
    %v5798 = vld [vmem:[%s5709 + $0x2c0] sm:$0xff]
    %v5799 = vld [vmem:[%s5709 + $0x2c8] sm:$0xff]
    %v5800 = vld [vmem:[%s5709 + $0x2d0] sm:$0xff]
    %v5801 = vld [vmem:[%s5709 + $0x2d8] sm:$0xff]
    %v5802 = vld [vmem:[%s5709 + $0x2e0] sm:$0xff]
    %v5803 = vld [vmem:[%s5709 + $0x2e8] sm:$0xff]
    %v5804 = vld [vmem:[%s5709 + $0x2f0] sm:$0xff]
    %v5805 = vld [vmem:[%s5709 + $0x2f8] sm:$0xff]
    %v5806 = vld [vmem:[%s5709 + $0x300] sm:$0xff]
    %v5807 = vld [vmem:[%s5709 + $0x308] sm:$0xff]
    %v5808 = vld [vmem:[%s5709 + $0x310] sm:$0xff]
    %v5809 = vld [vmem:[%s5709 + $0x318] sm:$0xff]
    %v5810 = vld [vmem:[%s5709 + $0x320] sm:$0xff]
    %v5811 = vld [vmem:[%s5709 + $0x328] sm:$0xff]
    %v5812 = vld [vmem:[%s5709 + $0x330] sm:$0xff]
    %v5813 = vld [vmem:[%s5709 + $0x338] sm:$0xff]
    %v5814 = vld [vmem:[%s5709 + $0x340] sm:$0xff]
    %v5815 = vld [vmem:[%s5709 + $0x348] sm:$0xff]
    %v5816 = vld [vmem:[%s5709 + $0x350] sm:$0xff]
    %v5817 = vld [vmem:[%s5709 + $0x358] sm:$0xff]
    %v5818 = vld [vmem:[%s5709 + $0x360] sm:$0xff]
    %v5819 = vld [vmem:[%s5709 + $0x368] sm:$0xff]
    %v5820 = vld [vmem:[%s5709 + $0x370] sm:$0xff]
    %v5821 = vld [vmem:[%s5709 + $0x378] sm:$0xff]
    %v5822 = vld [vmem:[%s5709 + $0x380] sm:$0xff]
    %v5823 = vld [vmem:[%s5709 + $0x388] sm:$0xff]
    %v5824 = vld [vmem:[%s5709 + $0x390] sm:$0xff]
    %v5825 = vld [vmem:[%s5709 + $0x398] sm:$0xff]
    %v5826 = vld [vmem:[%s5709 + $0x3a0] sm:$0xff]
    %v5827 = vld [vmem:[%s5709 + $0x3a8] sm:$0xff]
    %v5828 = vld [vmem:[%s5709 + $0x3b0] sm:$0xff]
    %v5829 = vld [vmem:[%s5709 + $0x3b8] sm:$0xff]
    %v5830 = vld [vmem:[%s5709 + $0x3c0] sm:$0xff]
    %v5831 = vld [vmem:[%s5709 + $0x3c8] sm:$0xff]
    %v5832 = vld [vmem:[%s5709 + $0x3d0] sm:$0xff]
    %v5833 = vld [vmem:[%s5709 + $0x3d8] sm:$0xff]
    %v5834 = vld [vmem:[%s5709 + $0x3e0] sm:$0xff]
    %v5835 = vld [vmem:[%s5709 + $0x3e8] sm:$0xff]
    %v5836 = vld [vmem:[%s5709 + $0x3f0] sm:$0xff]
    %v5837 = vld [vmem:[%s5709 + $0x3f8] sm:$0xff]
    %v5838 = vpack.c.bf16 %v5707, %v5705
    %v5839 = vpack.c.bf16 %v5708, %v5706
    %s5840 = scalar_lea.vmem %s10, 8
    %v5841 = vld [vmem:[%s5840] sm:$0xff]
    %v5843 = vlaneseq
    %v5844 = vshrl.u32 %v5843, 7
    %v5845 = vsub.s32 0, %v5844
    %v5846 = vrot.slane %v5841, %v5845
    %v5847 = vlaneseq
    %v5848 = vshrl.u32 %v5847, 7
    %v5849 = vsub.s32 1, %v5848
    %v5850 = vrot.slane %v5841, %v5849
    %v5851 = vlaneseq
    %v5852 = vshrl.u32 %v5851, 7
    %v5853 = vsub.s32 2, %v5852
    %v5854 = vrot.slane %v5841, %v5853
    %v5855 = vlaneseq
    %v5856 = vshrl.u32 %v5855, 7
    %v5857 = vsub.s32 3, %v5856
    %v5858 = vrot.slane %v5841, %v5857
    %v5859 = vlaneseq
    %v5860 = vshrl.u32 %v5859, 7
    %v5861 = vsub.s32 4, %v5860
    %v5862 = vrot.slane %v5841, %v5861
    %v5863 = vlaneseq
    %v5864 = vshrl.u32 %v5863, 7
    %v5865 = vsub.s32 5, %v5864
    %v5866 = vrot.slane %v5841, %v5865
    %v5867 = vlaneseq
    %v5868 = vshrl.u32 %v5867, 7
    %v5869 = vsub.s32 6, %v5868
    %v5870 = vrot.slane %v5841, %v5869
    %v5871 = vlaneseq
    %v5872 = vshrl.u32 %v5871, 7
    %v5873 = vsub.s32 7, %v5872
    %v5874 = vrot.slane %v5841, %v5873
    %v6011 = vunpack.c.l.b16 %v5710
    %v6012 = vunpack.c.h.b16 %v5710
    %v6013 = vunpack.c.l.b16 %v5711
    %v6014 = vunpack.c.h.b16 %v5711
    %v6015 = vunpack.c.l.b16 %v5712
    %v6016 = vunpack.c.h.b16 %v5712
    %v6017 = vunpack.c.l.b16 %v5713
    %v6018 = vunpack.c.h.b16 %v5713
    %v6019 = vunpack.c.l.b16 %v5714
    %v6020 = vunpack.c.h.b16 %v5714
    %v6021 = vunpack.c.l.b16 %v5715
    %v6022 = vunpack.c.h.b16 %v5715
    %v6023 = vunpack.c.l.b16 %v5716
    %v6024 = vunpack.c.h.b16 %v5716
    %v6025 = vunpack.c.l.b16 %v5717
    %v6026 = vunpack.c.h.b16 %v5717
    %v6027 = vunpack.c.l.b16 %v5718
    %v6028 = vunpack.c.h.b16 %v5718
    %v6029 = vunpack.c.l.b16 %v5719
    %v6030 = vunpack.c.h.b16 %v5719
    %v6031 = vunpack.c.l.b16 %v5720
    %v6032 = vunpack.c.h.b16 %v5720
    %v6033 = vunpack.c.l.b16 %v5721
    %v6034 = vunpack.c.h.b16 %v5721
    %v6035 = vunpack.c.l.b16 %v5722
    %v6036 = vunpack.c.h.b16 %v5722
    %v6037 = vunpack.c.l.b16 %v5723
    %v6038 = vunpack.c.h.b16 %v5723
    %v6039 = vunpack.c.l.b16 %v5724
    %v6040 = vunpack.c.h.b16 %v5724
    %v6041 = vunpack.c.l.b16 %v5725
    %v6042 = vunpack.c.h.b16 %v5725
    %v6043 = vunpack.c.l.b16 %v5726
    %v6044 = vunpack.c.h.b16 %v5726
    %v6045 = vunpack.c.l.b16 %v5727
    %v6046 = vunpack.c.h.b16 %v5727
    %v6047 = vunpack.c.l.b16 %v5728
    %v6048 = vunpack.c.h.b16 %v5728
    %v6049 = vunpack.c.l.b16 %v5729
    %v6050 = vunpack.c.h.b16 %v5729
    %v6051 = vunpack.c.l.b16 %v5730
    %v6052 = vunpack.c.h.b16 %v5730
    %v6053 = vunpack.c.l.b16 %v5731
    %v6054 = vunpack.c.h.b16 %v5731
    %v6055 = vunpack.c.l.b16 %v5732
    %v6056 = vunpack.c.h.b16 %v5732
    %v6057 = vunpack.c.l.b16 %v5733
    %v6058 = vunpack.c.h.b16 %v5733
    %v6059 = vunpack.c.l.b16 %v5734
    %v6060 = vunpack.c.h.b16 %v5734
    %v6061 = vunpack.c.l.b16 %v5735
    %v6062 = vunpack.c.h.b16 %v5735
    %v6063 = vunpack.c.l.b16 %v5736
    %v6064 = vunpack.c.h.b16 %v5736
    %v6065 = vunpack.c.l.b16 %v5737
    %v6066 = vunpack.c.h.b16 %v5737
    %v6067 = vunpack.c.l.b16 %v5738
    %v6068 = vunpack.c.h.b16 %v5738
    %v6069 = vunpack.c.l.b16 %v5739
    %v6070 = vunpack.c.h.b16 %v5739
    %v6071 = vunpack.c.l.b16 %v5740
    %v6072 = vunpack.c.h.b16 %v5740
    %v6073 = vunpack.c.l.b16 %v5741
    %v6074 = vunpack.c.h.b16 %v5741
    %v6075 = vunpack.c.l.b16 %v5742
    %v6076 = vunpack.c.h.b16 %v5742
    %v6077 = vunpack.c.l.b16 %v5743
    %v6078 = vunpack.c.h.b16 %v5743
    %v6079 = vunpack.c.l.b16 %v5744
    %v6080 = vunpack.c.h.b16 %v5744
    %v6081 = vunpack.c.l.b16 %v5745
    %v6082 = vunpack.c.h.b16 %v5745
    %v6083 = vunpack.c.l.b16 %v5746
    %v6084 = vunpack.c.h.b16 %v5746
    %v6085 = vunpack.c.l.b16 %v5747
    %v6086 = vunpack.c.h.b16 %v5747
    %v6087 = vunpack.c.l.b16 %v5748
    %v6088 = vunpack.c.h.b16 %v5748
    %v6089 = vunpack.c.l.b16 %v5749
    %v6090 = vunpack.c.h.b16 %v5749
    %v6091 = vunpack.c.l.b16 %v5750
    %v6092 = vunpack.c.h.b16 %v5750
    %v6093 = vunpack.c.l.b16 %v5751
    %v6094 = vunpack.c.h.b16 %v5751
    %v6095 = vunpack.c.l.b16 %v5752
    %v6096 = vunpack.c.h.b16 %v5752
    %v6097 = vunpack.c.l.b16 %v5753
    %v6098 = vunpack.c.h.b16 %v5753
    %v6099 = vunpack.c.l.b16 %v5754
    %v6100 = vunpack.c.h.b16 %v5754
    %v6101 = vunpack.c.l.b16 %v5755
    %v6102 = vunpack.c.h.b16 %v5755
    %v6103 = vunpack.c.l.b16 %v5756
    %v6104 = vunpack.c.h.b16 %v5756
    %v6105 = vunpack.c.l.b16 %v5757
    %v6106 = vunpack.c.h.b16 %v5757
    %v6107 = vunpack.c.l.b16 %v5758
    %v6108 = vunpack.c.h.b16 %v5758
    %v6109 = vunpack.c.l.b16 %v5759
    %v6110 = vunpack.c.h.b16 %v5759
    %v6111 = vunpack.c.l.b16 %v5760
    %v6112 = vunpack.c.h.b16 %v5760
    %v6113 = vunpack.c.l.b16 %v5761
    %v6114 = vunpack.c.h.b16 %v5761
    %v6115 = vunpack.c.l.b16 %v5762
    %v6116 = vunpack.c.h.b16 %v5762
    %v6117 = vunpack.c.l.b16 %v5763
    %v6118 = vunpack.c.h.b16 %v5763
    %v6119 = vunpack.c.l.b16 %v5764
    %v6120 = vunpack.c.h.b16 %v5764
    %v6121 = vunpack.c.l.b16 %v5765
    %v6122 = vunpack.c.h.b16 %v5765
    %v6123 = vunpack.c.l.b16 %v5766
    %v6124 = vunpack.c.h.b16 %v5766
    %v6125 = vunpack.c.l.b16 %v5767
    %v6126 = vunpack.c.h.b16 %v5767
    %v6127 = vunpack.c.l.b16 %v5768
    %v6128 = vunpack.c.h.b16 %v5768
    %v6129 = vunpack.c.l.b16 %v5769
    %v6130 = vunpack.c.h.b16 %v5769
    %v6131 = vunpack.c.l.b16 %v5770
    %v6132 = vunpack.c.h.b16 %v5770
    %v6133 = vunpack.c.l.b16 %v5771
    %v6134 = vunpack.c.h.b16 %v5771
    %v6135 = vunpack.c.l.b16 %v5772
    %v6136 = vunpack.c.h.b16 %v5772
    %v6137 = vunpack.c.l.b16 %v5773
    %v6138 = vunpack.c.h.b16 %v5773
    %v6139 = vunpack.c.l.b16 %v5774
    %v6140 = vunpack.c.h.b16 %v5774
    %v6141 = vunpack.c.l.b16 %v5775
    %v6142 = vunpack.c.h.b16 %v5775
    %v6143 = vunpack.c.l.b16 %v5776
    %v6144 = vunpack.c.h.b16 %v5776
    %v6145 = vunpack.c.l.b16 %v5777
    %v6146 = vunpack.c.h.b16 %v5777
    %v6147 = vunpack.c.l.b16 %v5778
    %v6148 = vunpack.c.h.b16 %v5778
    %v6149 = vunpack.c.l.b16 %v5779
    %v6150 = vunpack.c.h.b16 %v5779
    %v6151 = vunpack.c.l.b16 %v5780
    %v6152 = vunpack.c.h.b16 %v5780
    %v6153 = vunpack.c.l.b16 %v5781
    %v6154 = vunpack.c.h.b16 %v5781
    %v6155 = vunpack.c.l.b16 %v5782
    %v6156 = vunpack.c.h.b16 %v5782
    %v6157 = vunpack.c.l.b16 %v5783
    %v6158 = vunpack.c.h.b16 %v5783
    %v6159 = vunpack.c.l.b16 %v5784
    %v6160 = vunpack.c.h.b16 %v5784
    %v6161 = vunpack.c.l.b16 %v5785
    %v6162 = vunpack.c.h.b16 %v5785
    %v6163 = vunpack.c.l.b16 %v5786
    %v6164 = vunpack.c.h.b16 %v5786
    %v6165 = vunpack.c.l.b16 %v5787
    %v6166 = vunpack.c.h.b16 %v5787
    %v6167 = vunpack.c.l.b16 %v5788
    %v6168 = vunpack.c.h.b16 %v5788
    %v6169 = vunpack.c.l.b16 %v5789
    %v6170 = vunpack.c.h.b16 %v5789
    %v6171 = vunpack.c.l.b16 %v5790
    %v6172 = vunpack.c.h.b16 %v5790
    %v6173 = vunpack.c.l.b16 %v5791
    %v6174 = vunpack.c.h.b16 %v5791
    %v6175 = vunpack.c.l.b16 %v5792
    %v6176 = vunpack.c.h.b16 %v5792
    %v6177 = vunpack.c.l.b16 %v5793
    %v6178 = vunpack.c.h.b16 %v5793
    %v6179 = vunpack.c.l.b16 %v5794
    %v6180 = vunpack.c.h.b16 %v5794
    %v6181 = vunpack.c.l.b16 %v5795
    %v6182 = vunpack.c.h.b16 %v5795
    %v6183 = vunpack.c.l.b16 %v5796
    %v6184 = vunpack.c.h.b16 %v5796
    %v6185 = vunpack.c.l.b16 %v5797
    %v6186 = vunpack.c.h.b16 %v5797
    %v6187 = vunpack.c.l.b16 %v5798
    %v6188 = vunpack.c.h.b16 %v5798
    %v6189 = vunpack.c.l.b16 %v5799
    %v6190 = vunpack.c.h.b16 %v5799
    %v6191 = vunpack.c.l.b16 %v5800
    %v6192 = vunpack.c.h.b16 %v5800
    %v6193 = vunpack.c.l.b16 %v5801
    %v6194 = vunpack.c.h.b16 %v5801
    %v6195 = vunpack.c.l.b16 %v5802
    %v6196 = vunpack.c.h.b16 %v5802
    %v6197 = vunpack.c.l.b16 %v5803
    %v6198 = vunpack.c.h.b16 %v5803
    %v6199 = vunpack.c.l.b16 %v5804
    %v6200 = vunpack.c.h.b16 %v5804
    %v6201 = vunpack.c.l.b16 %v5805
    %v6202 = vunpack.c.h.b16 %v5805
    %v6203 = vunpack.c.l.b16 %v5806
    %v6204 = vunpack.c.h.b16 %v5806
    %v6205 = vunpack.c.l.b16 %v5807
    %v6206 = vunpack.c.h.b16 %v5807
    %v6207 = vunpack.c.l.b16 %v5808
    %v6208 = vunpack.c.h.b16 %v5808
    %v6209 = vunpack.c.l.b16 %v5809
    %v6210 = vunpack.c.h.b16 %v5809
    %v6211 = vunpack.c.l.b16 %v5810
    %v6212 = vunpack.c.h.b16 %v5810
    %v6213 = vunpack.c.l.b16 %v5811
    %v6214 = vunpack.c.h.b16 %v5811
    %v6215 = vunpack.c.l.b16 %v5812
    %v6216 = vunpack.c.h.b16 %v5812
    %v6217 = vunpack.c.l.b16 %v5813
    %v6218 = vunpack.c.h.b16 %v5813
    %v6219 = vunpack.c.l.b16 %v5814
    %v6220 = vunpack.c.h.b16 %v5814
    %v6221 = vunpack.c.l.b16 %v5815
    %v6222 = vunpack.c.h.b16 %v5815
    %v6223 = vunpack.c.l.b16 %v5816
    %v6224 = vunpack.c.h.b16 %v5816
    %v6225 = vunpack.c.l.b16 %v5817
    %v6226 = vunpack.c.h.b16 %v5817
    %v6227 = vunpack.c.l.b16 %v5818
    %v6228 = vunpack.c.h.b16 %v5818
    %v6229 = vunpack.c.l.b16 %v5819
    %v6230 = vunpack.c.h.b16 %v5819
    %v6231 = vunpack.c.l.b16 %v5820
    %v6232 = vunpack.c.h.b16 %v5820
    %v6233 = vunpack.c.l.b16 %v5821
    %v6234 = vunpack.c.h.b16 %v5821
    %v6235 = vunpack.c.l.b16 %v5822
    %v6236 = vunpack.c.h.b16 %v5822
    %v6237 = vunpack.c.l.b16 %v5823
    %v6238 = vunpack.c.h.b16 %v5823
    %v6239 = vunpack.c.l.b16 %v5824
    %v6240 = vunpack.c.h.b16 %v5824
    %v6241 = vunpack.c.l.b16 %v5825
    %v6242 = vunpack.c.h.b16 %v5825
    %v6243 = vunpack.c.l.b16 %v5826
    %v6244 = vunpack.c.h.b16 %v5826
    %v6245 = vunpack.c.l.b16 %v5827
    %v6246 = vunpack.c.h.b16 %v5827
    %v6247 = vunpack.c.l.b16 %v5828
    %v6248 = vunpack.c.h.b16 %v5828
    %v6249 = vunpack.c.l.b16 %v5829
    %v6250 = vunpack.c.h.b16 %v5829
    %v6251 = vunpack.c.l.b16 %v5830
    %v6252 = vunpack.c.h.b16 %v5830
    %v6253 = vunpack.c.l.b16 %v5831
    %v6254 = vunpack.c.h.b16 %v5831
    %v6255 = vunpack.c.l.b16 %v5832
    %v6256 = vunpack.c.h.b16 %v5832
    %v6257 = vunpack.c.l.b16 %v5833
    %v6258 = vunpack.c.h.b16 %v5833
    %v6259 = vunpack.c.l.b16 %v5834
    %v6260 = vunpack.c.h.b16 %v5834
    %v6261 = vunpack.c.l.b16 %v5835
    %v6262 = vunpack.c.h.b16 %v5835
    %v6263 = vunpack.c.l.b16 %v5836
    %v6264 = vunpack.c.h.b16 %v5836
    %v6265 = vunpack.c.l.b16 %v5837
    %v6266 = vunpack.c.h.b16 %v5837
    %v6267 = vpack.c.b16 %v6019, %v6011
    %v6268 = vpack.c.b16 %v6020, %v6012
    %v6269 = vpack.c.b16 %v6021, %v6013
    %v6270 = vpack.c.b16 %v6022, %v6014
    %v6271 = vpack.c.b16 %v6023, %v6015
    %v6272 = vpack.c.b16 %v6024, %v6016
    %v6273 = vpack.c.b16 %v6025, %v6017
    %v6274 = vpack.c.b16 %v6026, %v6018
    %v6275 = vpack.c.b16 %v6035, %v6027
    %v6276 = vpack.c.b16 %v6036, %v6028
    %v6277 = vpack.c.b16 %v6037, %v6029
    %v6278 = vpack.c.b16 %v6038, %v6030
    %v6279 = vpack.c.b16 %v6039, %v6031
    %v6280 = vpack.c.b16 %v6040, %v6032
    %v6281 = vpack.c.b16 %v6041, %v6033
    %v6282 = vpack.c.b16 %v6042, %v6034
    %v6283 = vpack.c.b16 %v6051, %v6043
    %v6284 = vpack.c.b16 %v6052, %v6044
    %v6285 = vpack.c.b16 %v6053, %v6045
    %v6286 = vpack.c.b16 %v6054, %v6046
    %v6287 = vpack.c.b16 %v6055, %v6047
    %v6288 = vpack.c.b16 %v6056, %v6048
    %v6289 = vpack.c.b16 %v6057, %v6049
    %v6290 = vpack.c.b16 %v6058, %v6050
    %v6291 = vpack.c.b16 %v6067, %v6059
    %v6292 = vpack.c.b16 %v6068, %v6060
    %v6293 = vpack.c.b16 %v6069, %v6061
    %v6294 = vpack.c.b16 %v6070, %v6062
    %v6295 = vpack.c.b16 %v6071, %v6063
    %v6296 = vpack.c.b16 %v6072, %v6064
    %v6297 = vpack.c.b16 %v6073, %v6065
    %v6298 = vpack.c.b16 %v6074, %v6066
    %v6299 = vpack.c.b16 %v6083, %v6075
    %v6300 = vpack.c.b16 %v6084, %v6076
    %v6301 = vpack.c.b16 %v6085, %v6077
    %v6302 = vpack.c.b16 %v6086, %v6078
    %v6303 = vpack.c.b16 %v6087, %v6079
    %v6304 = vpack.c.b16 %v6088, %v6080
    %v6305 = vpack.c.b16 %v6089, %v6081
    %v6306 = vpack.c.b16 %v6090, %v6082
    %v6307 = vpack.c.b16 %v6099, %v6091
    %v6308 = vpack.c.b16 %v6100, %v6092
    %v6309 = vpack.c.b16 %v6101, %v6093
    %v6310 = vpack.c.b16 %v6102, %v6094
    %v6311 = vpack.c.b16 %v6103, %v6095
    %v6312 = vpack.c.b16 %v6104, %v6096
    %v6313 = vpack.c.b16 %v6105, %v6097
    %v6314 = vpack.c.b16 %v6106, %v6098
    %v6315 = vpack.c.b16 %v6115, %v6107
    %v6316 = vpack.c.b16 %v6116, %v6108
    %v6317 = vpack.c.b16 %v6117, %v6109
    %v6318 = vpack.c.b16 %v6118, %v6110
    %v6319 = vpack.c.b16 %v6119, %v6111
    %v6320 = vpack.c.b16 %v6120, %v6112
    %v6321 = vpack.c.b16 %v6121, %v6113
    %v6322 = vpack.c.b16 %v6122, %v6114
    %v6323 = vpack.c.b16 %v6131, %v6123
    %v6324 = vpack.c.b16 %v6132, %v6124
    %v6325 = vpack.c.b16 %v6133, %v6125
    %v6326 = vpack.c.b16 %v6134, %v6126
    %v6327 = vpack.c.b16 %v6135, %v6127
    %v6328 = vpack.c.b16 %v6136, %v6128
    %v6329 = vpack.c.b16 %v6137, %v6129
    %v6330 = vpack.c.b16 %v6138, %v6130
    %v6331 = vpack.c.b16 %v6147, %v6139
    %v6332 = vpack.c.b16 %v6148, %v6140
    %v6333 = vpack.c.b16 %v6149, %v6141
    %v6334 = vpack.c.b16 %v6150, %v6142
    %v6335 = vpack.c.b16 %v6151, %v6143
    %v6336 = vpack.c.b16 %v6152, %v6144
    %v6337 = vpack.c.b16 %v6153, %v6145
    %v6338 = vpack.c.b16 %v6154, %v6146
    %v6339 = vpack.c.b16 %v6163, %v6155
    %v6340 = vpack.c.b16 %v6164, %v6156
    %v6341 = vpack.c.b16 %v6165, %v6157
    %v6342 = vpack.c.b16 %v6166, %v6158
    %v6343 = vpack.c.b16 %v6167, %v6159
    %v6344 = vpack.c.b16 %v6168, %v6160
    %v6345 = vpack.c.b16 %v6169, %v6161
    %v6346 = vpack.c.b16 %v6170, %v6162
    %v6347 = vpack.c.b16 %v6179, %v6171
    %v6348 = vpack.c.b16 %v6180, %v6172
    %v6349 = vpack.c.b16 %v6181, %v6173
    %v6350 = vpack.c.b16 %v6182, %v6174
    %v6351 = vpack.c.b16 %v6183, %v6175
    %v6352 = vpack.c.b16 %v6184, %v6176
    %v6353 = vpack.c.b16 %v6185, %v6177
    %v6354 = vpack.c.b16 %v6186, %v6178
    %v6355 = vpack.c.b16 %v6195, %v6187
    %v6356 = vpack.c.b16 %v6196, %v6188
    %v6357 = vpack.c.b16 %v6197, %v6189
    %v6358 = vpack.c.b16 %v6198, %v6190
    %v6359 = vpack.c.b16 %v6199, %v6191
    %v6360 = vpack.c.b16 %v6200, %v6192
    %v6361 = vpack.c.b16 %v6201, %v6193
    %v6362 = vpack.c.b16 %v6202, %v6194
    %v6363 = vpack.c.b16 %v6211, %v6203
    %v6364 = vpack.c.b16 %v6212, %v6204
    %v6365 = vpack.c.b16 %v6213, %v6205
    %v6366 = vpack.c.b16 %v6214, %v6206
    %v6367 = vpack.c.b16 %v6215, %v6207
    %v6368 = vpack.c.b16 %v6216, %v6208
    %v6369 = vpack.c.b16 %v6217, %v6209
    %v6370 = vpack.c.b16 %v6218, %v6210
    %v6371 = vpack.c.b16 %v6227, %v6219
    %v6372 = vpack.c.b16 %v6228, %v6220
    %v6373 = vpack.c.b16 %v6229, %v6221
    %v6374 = vpack.c.b16 %v6230, %v6222
    %v6375 = vpack.c.b16 %v6231, %v6223
    %v6376 = vpack.c.b16 %v6232, %v6224
    %v6377 = vpack.c.b16 %v6233, %v6225
    %v6378 = vpack.c.b16 %v6234, %v6226
    %v6379 = vpack.c.b16 %v6243, %v6235
    %v6380 = vpack.c.b16 %v6244, %v6236
    %v6381 = vpack.c.b16 %v6245, %v6237
    %v6382 = vpack.c.b16 %v6246, %v6238
    %v6383 = vpack.c.b16 %v6247, %v6239
    %v6384 = vpack.c.b16 %v6248, %v6240
    %v6385 = vpack.c.b16 %v6249, %v6241
    %v6386 = vpack.c.b16 %v6250, %v6242
    %v6387 = vpack.c.b16 %v6259, %v6251
    %v6388 = vpack.c.b16 %v6260, %v6252
    %v6389 = vpack.c.b16 %v6261, %v6253
    %v6390 = vpack.c.b16 %v6262, %v6254
    %v6391 = vpack.c.b16 %v6263, %v6255
    %v6392 = vpack.c.b16 %v6264, %v6256
    %v6393 = vpack.c.b16 %v6265, %v6257
    %v6394 = vpack.c.b16 %v6266, %v6258
    %6523 = vmatprep.subr.bf16.mxu0 %v6268
    %6524 = vmatpush1.bf16.msra.mxu0 %v6267
    %6525 = vmatprep.subr.bf16.mxu0 %v6276
    %6526 = vmatpush1.bf16.msra.mxu0 %v6275
    %6527 = vmatprep.subr.bf16.mxu0 %v6284
    %6528 = vmatpush1.bf16.msra.mxu0 %v6283
    %6529 = vmatprep.subr.bf16.mxu0 %v6292
    %6530 = vmatpush1.bf16.msra.mxu0 %v6291
    %6531 = vmatprep.subr.bf16.mxu0 %v6300
    %6532 = vmatpush1.bf16.msra.mxu0 %v6299
    %6533 = vmatprep.subr.bf16.mxu0 %v6308
    %6534 = vmatpush1.bf16.msra.mxu0 %v6307
    %6535 = vmatprep.subr.bf16.mxu0 %v6316
    %6536 = vmatpush1.bf16.msra.mxu0 %v6315
    %6537 = vmatprep.subr.bf16.mxu0 %v6324
    %6538 = vmatpush1.bf16.msra.mxu0 %v6323
    %6539 = vmatprep.subr.bf16.mxu0 %v6332
    %6540 = vmatpush1.bf16.msra.mxu0 %v6331
    %6541 = vmatprep.subr.bf16.mxu0 %v6340
    %6542 = vmatpush1.bf16.msra.mxu0 %v6339
    %6543 = vmatprep.subr.bf16.mxu0 %v6348
    %6544 = vmatpush1.bf16.msra.mxu0 %v6347
    %6545 = vmatprep.subr.bf16.mxu0 %v6356
    %6546 = vmatpush1.bf16.msra.mxu0 %v6355
    %6547 = vmatprep.subr.bf16.mxu0 %v6364
    %6548 = vmatpush1.bf16.msra.mxu0 %v6363
    %6549 = vmatprep.subr.bf16.mxu0 %v6372
    %6550 = vmatpush1.bf16.msra.mxu0 %v6371
    %6551 = vmatprep.subr.bf16.mxu0 %v6380
    %6552 = vmatpush1.bf16.msra.mxu0 %v6379
    %6553 = vmatprep.subr.bf16.mxu0 %v6388
    %6554 = vmatpush1.bf16.msra.mxu0 %v6387
    %6555 = vmatprep.mubr.bf16.mxu0 %v5839
    %6556 = vmatmul.mubr.bf16.gmra.mrb[0].mxu0 %v5838
    %v6557 = vpop.f32.mrb[0].mxu0
    %v6558 = vadd.f32 %v5846, %v6557
    %v6559 = vpop.f32.mrb[0].mxu0
    %v6560 = vadd.f32 %v5850, %v6559
    %v6561 = vpop.f32.mrb[0].mxu0
    %v6562 = vadd.f32 %v5846, %v6561
    %v6563 = vpop.f32.mrb[0].mxu0
    %v6564 = vadd.f32 %v5850, %v6563
    %6565 = vdwg.mxu0
    %6566 = vmatprep.subr.bf16.mxu0 %v6270
    %6567 = vmatpush1.bf16.msra.mxu0 %v6269
    %6568 = vmatprep.subr.bf16.mxu0 %v6278
    %6569 = vmatpush1.bf16.msra.mxu0 %v6277
    %6570 = vmatprep.subr.bf16.mxu0 %v6286
    %6571 = vmatpush1.bf16.msra.mxu0 %v6285
    %6572 = vmatprep.subr.bf16.mxu0 %v6294
    %6573 = vmatpush1.bf16.msra.mxu0 %v6293
    %6574 = vmatprep.subr.bf16.mxu0 %v6302
    %6575 = vmatpush1.bf16.msra.mxu0 %v6301
    %6576 = vmatprep.subr.bf16.mxu0 %v6310
    %6577 = vmatpush1.bf16.msra.mxu0 %v6309
    %6578 = vmatprep.subr.bf16.mxu0 %v6318
    %6579 = vmatpush1.bf16.msra.mxu0 %v6317
    %6580 = vmatprep.subr.bf16.mxu0 %v6326
    %6581 = vmatpush1.bf16.msra.mxu0 %v6325
    %6582 = vmatprep.subr.bf16.mxu0 %v6334
    %6583 = vmatpush1.bf16.msra.mxu0 %v6333
    %6584 = vmatprep.subr.bf16.mxu0 %v6342
    %6585 = vmatpush1.bf16.msra.mxu0 %v6341
    %6586 = vmatprep.subr.bf16.mxu0 %v6350
    %6587 = vmatpush1.bf16.msra.mxu0 %v6349
    %6588 = vmatprep.subr.bf16.mxu0 %v6358
    %6589 = vmatpush1.bf16.msra.mxu0 %v6357
    %6590 = vmatprep.subr.bf16.mxu0 %v6366
    %6591 = vmatpush1.bf16.msra.mxu0 %v6365
    %6592 = vmatprep.subr.bf16.mxu0 %v6374
    %6593 = vmatpush1.bf16.msra.mxu0 %v6373
    %6594 = vmatprep.subr.bf16.mxu0 %v6382
    %6595 = vmatpush1.bf16.msra.mxu0 %v6381
    %6596 = vmatprep.subr.bf16.mxu0 %v6390
    %6597 = vmatpush1.bf16.msra.mxu0 %v6389
    %6598 = vmatprep.mubr.bf16.mxu0 %v5839
    %6599 = vmatmul.mubr.bf16.gmra.mrb[0].mxu0 %v5838
    %v6600 = vpop.f32.mrb[0].mxu0
    %v6601 = vadd.f32 %v5854, %v6600
    %v6602 = vpop.f32.mrb[0].mxu0
    %v6603 = vadd.f32 %v5858, %v6602
    %v6604 = vpop.f32.mrb[0].mxu0
    %v6605 = vadd.f32 %v5854, %v6604
    %v6606 = vpop.f32.mrb[0].mxu0
    %v6607 = vadd.f32 %v5858, %v6606
    %6608 = vdwg.mxu0
    %6609 = vmatprep.subr.bf16.mxu0 %v6272
    %6610 = vmatpush1.bf16.msra.mxu0 %v6271
    %6611 = vmatprep.subr.bf16.mxu0 %v6280
    %6612 = vmatpush1.bf16.msra.mxu0 %v6279
    %6613 = vmatprep.subr.bf16.mxu0 %v6288
    %6614 = vmatpush1.bf16.msra.mxu0 %v6287
    %6615 = vmatprep.subr.bf16.mxu0 %v6296
    %6616 = vmatpush1.bf16.msra.mxu0 %v6295
    %6617 = vmatprep.subr.bf16.mxu0 %v6304
    %6618 = vmatpush1.bf16.msra.mxu0 %v6303
    %6619 = vmatprep.subr.bf16.mxu0 %v6312
    %6620 = vmatpush1.bf16.msra.mxu0 %v6311
    %6621 = vmatprep.subr.bf16.mxu0 %v6320
    %6622 = vmatpush1.bf16.msra.mxu0 %v6319
    %6623 = vmatprep.subr.bf16.mxu0 %v6328
    %6624 = vmatpush1.bf16.msra.mxu0 %v6327
    %6625 = vmatprep.subr.bf16.mxu0 %v6336
    %6626 = vmatpush1.bf16.msra.mxu0 %v6335
    %6627 = vmatprep.subr.bf16.mxu0 %v6344
    %6628 = vmatpush1.bf16.msra.mxu0 %v6343
    %6629 = vmatprep.subr.bf16.mxu0 %v6352
    %6630 = vmatpush1.bf16.msra.mxu0 %v6351
    %6631 = vmatprep.subr.bf16.mxu0 %v6360
    %6632 = vmatpush1.bf16.msra.mxu0 %v6359
    %6633 = vmatprep.subr.bf16.mxu0 %v6368
    %6634 = vmatpush1.bf16.msra.mxu0 %v6367
    %6635 = vmatprep.subr.bf16.mxu0 %v6376
    %6636 = vmatpush1.bf16.msra.mxu0 %v6375
    %6637 = vmatprep.subr.bf16.mxu0 %v6384
    %6638 = vmatpush1.bf16.msra.mxu0 %v6383
    %6639 = vmatprep.subr.bf16.mxu0 %v6392
    %6640 = vmatpush1.bf16.msra.mxu0 %v6391
    %6641 = vmatprep.mubr.bf16.mxu0 %v5839
    %6642 = vmatmul.mubr.bf16.gmra.mrb[0].mxu0 %v5838
    %v6643 = vpop.f32.mrb[0].mxu0
    %v6644 = vadd.f32 %v5862, %v6643
    %v6645 = vpop.f32.mrb[0].mxu0
    %v6646 = vadd.f32 %v5866, %v6645
    %v6647 = vpop.f32.mrb[0].mxu0
    %v6648 = vadd.f32 %v5862, %v6647
    %v6649 = vpop.f32.mrb[0].mxu0
    %v6650 = vadd.f32 %v5866, %v6649
    %6651 = vdwg.mxu0
    %6652 = vmatprep.subr.bf16.mxu0 %v6274
    %6653 = vmatpush1.bf16.msra.mxu0 %v6273
    %6654 = vmatprep.subr.bf16.mxu0 %v6282
    %6655 = vmatpush1.bf16.msra.mxu0 %v6281
    %6656 = vmatprep.subr.bf16.mxu0 %v6290
    %6657 = vmatpush1.bf16.msra.mxu0 %v6289
    %6658 = vmatprep.subr.bf16.mxu0 %v6298
    %6659 = vmatpush1.bf16.msra.mxu0 %v6297
    %6660 = vmatprep.subr.bf16.mxu0 %v6306
    %6661 = vmatpush1.bf16.msra.mxu0 %v6305
    %6662 = vmatprep.subr.bf16.mxu0 %v6314
    %6663 = vmatpush1.bf16.msra.mxu0 %v6313
    %6664 = vmatprep.subr.bf16.mxu0 %v6322
    %6665 = vmatpush1.bf16.msra.mxu0 %v6321
    %6666 = vmatprep.subr.bf16.mxu0 %v6330
    %6667 = vmatpush1.bf16.msra.mxu0 %v6329
    %6668 = vmatprep.subr.bf16.mxu0 %v6338
    %6669 = vmatpush1.bf16.msra.mxu0 %v6337
    %6670 = vmatprep.subr.bf16.mxu0 %v6346
    %6671 = vmatpush1.bf16.msra.mxu0 %v6345
    %6672 = vmatprep.subr.bf16.mxu0 %v6354
    %6673 = vmatpush1.bf16.msra.mxu0 %v6353
    %6674 = vmatprep.subr.bf16.mxu0 %v6362
    %6675 = vmatpush1.bf16.msra.mxu0 %v6361
    %6676 = vmatprep.subr.bf16.mxu0 %v6370
    %6677 = vmatpush1.bf16.msra.mxu0 %v6369
    %6678 = vmatprep.subr.bf16.mxu0 %v6378
    %6679 = vmatpush1.bf16.msra.mxu0 %v6377
    %6680 = vmatprep.subr.bf16.mxu0 %v6386
    %6681 = vmatpush1.bf16.msra.mxu0 %v6385
    %6682 = vmatprep.subr.bf16.mxu0 %v6394
    %6683 = vmatpush1.bf16.msra.mxu0 %v6393
    %6684 = vmatprep.mubr.bf16.mxu0 %v5839
    %6685 = vmatmul.mubr.bf16.gmra.mrb[0].mxu0 %v5838
    %v6686 = vpop.f32.mrb[0].mxu0
    %v6687 = vadd.f32 %v5870, %v6686
    %v6688 = vpop.f32.mrb[0].mxu0
    %v6689 = vadd.f32 %v5874, %v6688
    %v6690 = vpop.f32.mrb[0].mxu0
    %v6691 = vadd.f32 %v5870, %v6690
    %v6692 = vpop.f32.mrb[0].mxu0
    %v6693 = vadd.f32 %v5874, %v6692
    %6694 = vdwg.mxu0
    %v6695 = vmul.f32 %v6558, 0.5
    %v6696 = vmul.f32 %v6560, 0.5
    %v6697 = vmul.f32 %v6601, 0.5
    %v6698 = vmul.f32 %v6603, 0.5
    %v6699 = vmul.f32 %v6644, 0.5
    %v6700 = vmul.f32 %v6646, 0.5
    %v6701 = vmul.f32 %v6687, 0.5
    %v6702 = vmul.f32 %v6689, 0.5
    %v6703 = vmul.f32 %v6562, 0.5
    %v6704 = vmul.f32 %v6564, 0.5
    %v6705 = vmul.f32 %v6605, 0.5
    %v6706 = vmul.f32 %v6607, 0.5
    %v6707 = vmul.f32 %v6648, 0.5
    %v6708 = vmul.f32 %v6650, 0.5
    %v6709 = vmul.f32 %v6691, 0.5
    %v6710 = vmul.f32 %v6693, 0.5
    %v6711 = vmul.f32 %v6558, 0.044715
    %v6712 = vmul.f32 %v6560, 0.044715
    %v6713 = vmul.f32 %v6601, 0.044715
    %v6714 = vmul.f32 %v6603, 0.044715
    %v6715 = vmul.f32 %v6644, 0.044715
    %v6716 = vmul.f32 %v6646, 0.044715
    %v6717 = vmul.f32 %v6687, 0.044715
    %v6718 = vmul.f32 %v6689, 0.044715
    %v6719 = vmul.f32 %v6562, 0.044715
    %v6720 = vmul.f32 %v6564, 0.044715
    %v6721 = vmul.f32 %v6605, 0.044715
    %v6722 = vmul.f32 %v6607, 0.044715
    %v6723 = vmul.f32 %v6648, 0.044715
    %v6724 = vmul.f32 %v6650, 0.044715
    %v6725 = vmul.f32 %v6691, 0.044715
    %v6726 = vmul.f32 %v6693, 0.044715
    %v6727 = vmul.f32 %v6711, %v6558
    %v6728 = vmul.f32 %v6712, %v6560
    %v6729 = vmul.f32 %v6713, %v6601
    %v6730 = vmul.f32 %v6714, %v6603
    %v6731 = vmul.f32 %v6715, %v6644
    %v6732 = vmul.f32 %v6716, %v6646
    %v6733 = vmul.f32 %v6717, %v6687
    %v6734 = vmul.f32 %v6718, %v6689
    %v6735 = vmul.f32 %v6719, %v6562
    %v6736 = vmul.f32 %v6720, %v6564
    %v6737 = vmul.f32 %v6721, %v6605
    %v6738 = vmul.f32 %v6722, %v6607
    %v6739 = vmul.f32 %v6723, %v6648
    %v6740 = vmul.f32 %v6724, %v6650
    %v6741 = vmul.f32 %v6725, %v6691
    %v6742 = vmul.f32 %v6726, %v6693
    %v6743 = vmul.f32 %v6727, %v6558
    %v6744 = vmul.f32 %v6728, %v6560
    %v6745 = vmul.f32 %v6729, %v6601
    %v6746 = vmul.f32 %v6730, %v6603
    %v6747 = vmul.f32 %v6731, %v6644
    %v6748 = vmul.f32 %v6732, %v6646
    %v6749 = vmul.f32 %v6733, %v6687
    %v6750 = vmul.f32 %v6734, %v6689
    %v6751 = vmul.f32 %v6735, %v6562
    %v6752 = vmul.f32 %v6736, %v6564
    %v6753 = vmul.f32 %v6737, %v6605
    %v6754 = vmul.f32 %v6738, %v6607
    %v6755 = vmul.f32 %v6739, %v6648
    %v6756 = vmul.f32 %v6740, %v6650
    %v6757 = vmul.f32 %v6741, %v6691
    %v6758 = vmul.f32 %v6742, %v6693
    %v6759 = vadd.f32 %v6558, %v6743
    %v6760 = vadd.f32 %v6560, %v6744
    %v6761 = vadd.f32 %v6601, %v6745
    %v6762 = vadd.f32 %v6603, %v6746
    %v6763 = vadd.f32 %v6644, %v6747
    %v6764 = vadd.f32 %v6646, %v6748
    %v6765 = vadd.f32 %v6687, %v6749
    %v6766 = vadd.f32 %v6689, %v6750
    %v6767 = vadd.f32 %v6562, %v6751
    %v6768 = vadd.f32 %v6564, %v6752
    %v6769 = vadd.f32 %v6605, %v6753
    %v6770 = vadd.f32 %v6607, %v6754
    %v6771 = vadd.f32 %v6648, %v6755
    %v6772 = vadd.f32 %v6650, %v6756
    %v6773 = vadd.f32 %v6691, %v6757
    %v6774 = vadd.f32 %v6693, %v6758
    %v6775 = vmul.f32 %v6759, 0.7978846
    %v6776 = vmul.f32 %v6760, 0.7978846
    %v6777 = vmul.f32 %v6761, 0.7978846
    %v6778 = vmul.f32 %v6762, 0.7978846
    %v6779 = vmul.f32 %v6763, 0.7978846
    %v6780 = vmul.f32 %v6764, 0.7978846
    %v6781 = vmul.f32 %v6765, 0.7978846
    %v6782 = vmul.f32 %v6766, 0.7978846
    %v6783 = vmul.f32 %v6767, 0.7978846
    %v6784 = vmul.f32 %v6768, 0.7978846
    %v6785 = vmul.f32 %v6769, 0.7978846
    %v6786 = vmul.f32 %v6770, 0.7978846
    %v6787 = vmul.f32 %v6771, 0.7978846
    %v6788 = vmul.f32 %v6772, 0.7978846
    %v6789 = vmul.f32 %v6773, 0.7978846
    %v6790 = vmul.f32 %v6774, 0.7978846
    %v6791 = vtanh.pop %v6775
    %v6792 = vtanh.pop %v6776
    %v6793 = vtanh.pop %v6777
    %v6794 = vtanh.pop %v6778
    %v6795 = vtanh.pop %v6779
    %v6796 = vtanh.pop %v6780
    %v6797 = vtanh.pop %v6781
    %v6798 = vtanh.pop %v6782
    %v6799 = vtanh.pop %v6783
    %v6800 = vtanh.pop %v6784
    %v6801 = vtanh.pop %v6785
    %v6802 = vtanh.pop %v6786
    %v6803 = vtanh.pop %v6787
    %v6804 = vtanh.pop %v6788
    %v6805 = vtanh.pop %v6789
    %v6806 = vtanh.pop %v6790
    %v6807 = vadd.f32 %v6791, 1.0
    %v6808 = vadd.f32 %v6792, 1.0
    %v6809 = vadd.f32 %v6793, 1.0
    %v6810 = vadd.f32 %v6794, 1.0
    %v6811 = vadd.f32 %v6795, 1.0
    %v6812 = vadd.f32 %v6796, 1.0
    %v6813 = vadd.f32 %v6797, 1.0
    %v6814 = vadd.f32 %v6798, 1.0
    %v6815 = vadd.f32 %v6799, 1.0
    %v6816 = vadd.f32 %v6800, 1.0
    %v6817 = vadd.f32 %v6801, 1.0
    %v6818 = vadd.f32 %v6802, 1.0
    %v6819 = vadd.f32 %v6803, 1.0
    %v6820 = vadd.f32 %v6804, 1.0
    %v6821 = vadd.f32 %v6805, 1.0
    %v6822 = vadd.f32 %v6806, 1.0
    %v6823 = vmul.f32 %v6695, %v6807
    %v6824 = vmul.f32 %v6696, %v6808
    %v6825 = vmul.f32 %v6697, %v6809
    %v6826 = vmul.f32 %v6698, %v6810
    %v6827 = vmul.f32 %v6699, %v6811
    %v6828 = vmul.f32 %v6700, %v6812
    %v6829 = vmul.f32 %v6701, %v6813
    %v6830 = vmul.f32 %v6702, %v6814
    %v6831 = vmul.f32 %v6703, %v6815
    %v6832 = vmul.f32 %v6704, %v6816
    %v6833 = vmul.f32 %v6705, %v6817
    %v6834 = vmul.f32 %v6706, %v6818
    %v6835 = vmul.f32 %v6707, %v6819
    %v6836 = vmul.f32 %v6708, %v6820
    %v6837 = vmul.f32 %v6709, %v6821
    %v6838 = vmul.f32 %v6710, %v6822
    %s6839 = scalar_lea.vmem [#allocation15], 1024
    %v6840 = vld [vmem:[%s6839] sm:$0xff]
    %v6841 = vld [vmem:[%s6839 + $0x8] sm:$0xff]
    %v6842 = vld [vmem:[%s6839 + $0x10] sm:$0xff]
    %v6843 = vld [vmem:[%s6839 + $0x18] sm:$0xff]
    %v6844 = vld [vmem:[%s6839 + $0x20] sm:$0xff]
    %v6845 = vld [vmem:[%s6839 + $0x28] sm:$0xff]
    %v6846 = vld [vmem:[%s6839 + $0x30] sm:$0xff]
    %v6847 = vld [vmem:[%s6839 + $0x38] sm:$0xff]
    %v6848 = vld [vmem:[%s6839 + $0x40] sm:$0xff]
    %v6849 = vld [vmem:[%s6839 + $0x48] sm:$0xff]
    %v6850 = vld [vmem:[%s6839 + $0x50] sm:$0xff]
    %v6851 = vld [vmem:[%s6839 + $0x58] sm:$0xff]
    %v6852 = vld [vmem:[%s6839 + $0x60] sm:$0xff]
    %v6853 = vld [vmem:[%s6839 + $0x68] sm:$0xff]
    %v6854 = vld [vmem:[%s6839 + $0x70] sm:$0xff]
    %v6855 = vld [vmem:[%s6839 + $0x78] sm:$0xff]
    %v6856 = vld [vmem:[%s6839 + $0x80] sm:$0xff]
    %v6857 = vld [vmem:[%s6839 + $0x88] sm:$0xff]
    %v6858 = vld [vmem:[%s6839 + $0x90] sm:$0xff]
    %v6859 = vld [vmem:[%s6839 + $0x98] sm:$0xff]
    %v6860 = vld [vmem:[%s6839 + $0xa0] sm:$0xff]
    %v6861 = vld [vmem:[%s6839 + $0xa8] sm:$0xff]
    %v6862 = vld [vmem:[%s6839 + $0xb0] sm:$0xff]
    %v6863 = vld [vmem:[%s6839 + $0xb8] sm:$0xff]
    %v6864 = vld [vmem:[%s6839 + $0xc0] sm:$0xff]
    %v6865 = vld [vmem:[%s6839 + $0xc8] sm:$0xff]
    %v6866 = vld [vmem:[%s6839 + $0xd0] sm:$0xff]
    %v6867 = vld [vmem:[%s6839 + $0xd8] sm:$0xff]
    %v6868 = vld [vmem:[%s6839 + $0xe0] sm:$0xff]
    %v6869 = vld [vmem:[%s6839 + $0xe8] sm:$0xff]
    %v6870 = vld [vmem:[%s6839 + $0xf0] sm:$0xff]
    %v6871 = vld [vmem:[%s6839 + $0xf8] sm:$0xff]
    %v6872 = vld [vmem:[%s6839 + $0x100] sm:$0xff]
    %v6873 = vld [vmem:[%s6839 + $0x108] sm:$0xff]
    %v6874 = vld [vmem:[%s6839 + $0x110] sm:$0xff]
    %v6875 = vld [vmem:[%s6839 + $0x118] sm:$0xff]
    %v6876 = vld [vmem:[%s6839 + $0x120] sm:$0xff]
    %v6877 = vld [vmem:[%s6839 + $0x128] sm:$0xff]
    %v6878 = vld [vmem:[%s6839 + $0x130] sm:$0xff]
    %v6879 = vld [vmem:[%s6839 + $0x138] sm:$0xff]
    %v6880 = vld [vmem:[%s6839 + $0x140] sm:$0xff]
    %v6881 = vld [vmem:[%s6839 + $0x148] sm:$0xff]
    %v6882 = vld [vmem:[%s6839 + $0x150] sm:$0xff]
    %v6883 = vld [vmem:[%s6839 + $0x158] sm:$0xff]
    %v6884 = vld [vmem:[%s6839 + $0x160] sm:$0xff]
    %v6885 = vld [vmem:[%s6839 + $0x168] sm:$0xff]
    %v6886 = vld [vmem:[%s6839 + $0x170] sm:$0xff]
    %v6887 = vld [vmem:[%s6839 + $0x178] sm:$0xff]
    %v6888 = vld [vmem:[%s6839 + $0x180] sm:$0xff]
    %v6889 = vld [vmem:[%s6839 + $0x188] sm:$0xff]
    %v6890 = vld [vmem:[%s6839 + $0x190] sm:$0xff]
    %v6891 = vld [vmem:[%s6839 + $0x198] sm:$0xff]
    %v6892 = vld [vmem:[%s6839 + $0x1a0] sm:$0xff]
    %v6893 = vld [vmem:[%s6839 + $0x1a8] sm:$0xff]
    %v6894 = vld [vmem:[%s6839 + $0x1b0] sm:$0xff]
    %v6895 = vld [vmem:[%s6839 + $0x1b8] sm:$0xff]
    %v6896 = vld [vmem:[%s6839 + $0x1c0] sm:$0xff]
    %v6897 = vld [vmem:[%s6839 + $0x1c8] sm:$0xff]
    %v6898 = vld [vmem:[%s6839 + $0x1d0] sm:$0xff]
    %v6899 = vld [vmem:[%s6839 + $0x1d8] sm:$0xff]
    %v6900 = vld [vmem:[%s6839 + $0x1e0] sm:$0xff]
    %v6901 = vld [vmem:[%s6839 + $0x1e8] sm:$0xff]
    %v6902 = vld [vmem:[%s6839 + $0x1f0] sm:$0xff]
    %v6903 = vld [vmem:[%s6839 + $0x1f8] sm:$0xff]
    %v6904 = vld [vmem:[%s6839 + $0x200] sm:$0xff]
    %v6905 = vld [vmem:[%s6839 + $0x208] sm:$0xff]
    %v6906 = vld [vmem:[%s6839 + $0x210] sm:$0xff]
    %v6907 = vld [vmem:[%s6839 + $0x218] sm:$0xff]
    %v6908 = vld [vmem:[%s6839 + $0x220] sm:$0xff]
    %v6909 = vld [vmem:[%s6839 + $0x228] sm:$0xff]
    %v6910 = vld [vmem:[%s6839 + $0x230] sm:$0xff]
    %v6911 = vld [vmem:[%s6839 + $0x238] sm:$0xff]
    %v6912 = vld [vmem:[%s6839 + $0x240] sm:$0xff]
    %v6913 = vld [vmem:[%s6839 + $0x248] sm:$0xff]
    %v6914 = vld [vmem:[%s6839 + $0x250] sm:$0xff]
    %v6915 = vld [vmem:[%s6839 + $0x258] sm:$0xff]
    %v6916 = vld [vmem:[%s6839 + $0x260] sm:$0xff]
    %v6917 = vld [vmem:[%s6839 + $0x268] sm:$0xff]
    %v6918 = vld [vmem:[%s6839 + $0x270] sm:$0xff]
    %v6919 = vld [vmem:[%s6839 + $0x278] sm:$0xff]
    %v6920 = vld [vmem:[%s6839 + $0x280] sm:$0xff]
    %v6921 = vld [vmem:[%s6839 + $0x288] sm:$0xff]
    %v6922 = vld [vmem:[%s6839 + $0x290] sm:$0xff]
    %v6923 = vld [vmem:[%s6839 + $0x298] sm:$0xff]
    %v6924 = vld [vmem:[%s6839 + $0x2a0] sm:$0xff]
    %v6925 = vld [vmem:[%s6839 + $0x2a8] sm:$0xff]
    %v6926 = vld [vmem:[%s6839 + $0x2b0] sm:$0xff]
    %v6927 = vld [vmem:[%s6839 + $0x2b8] sm:$0xff]
    %v6928 = vld [vmem:[%s6839 + $0x2c0] sm:$0xff]
    %v6929 = vld [vmem:[%s6839 + $0x2c8] sm:$0xff]
    %v6930 = vld [vmem:[%s6839 + $0x2d0] sm:$0xff]
    %v6931 = vld [vmem:[%s6839 + $0x2d8] sm:$0xff]
    %v6932 = vld [vmem:[%s6839 + $0x2e0] sm:$0xff]
    %v6933 = vld [vmem:[%s6839 + $0x2e8] sm:$0xff]
    %v6934 = vld [vmem:[%s6839 + $0x2f0] sm:$0xff]
    %v6935 = vld [vmem:[%s6839 + $0x2f8] sm:$0xff]
    %v6936 = vld [vmem:[%s6839 + $0x300] sm:$0xff]
    %v6937 = vld [vmem:[%s6839 + $0x308] sm:$0xff]
    %v6938 = vld [vmem:[%s6839 + $0x310] sm:$0xff]
    %v6939 = vld [vmem:[%s6839 + $0x318] sm:$0xff]
    %v6940 = vld [vmem:[%s6839 + $0x320] sm:$0xff]
    %v6941 = vld [vmem:[%s6839 + $0x328] sm:$0xff]
    %v6942 = vld [vmem:[%s6839 + $0x330] sm:$0xff]
    %v6943 = vld [vmem:[%s6839 + $0x338] sm:$0xff]
    %v6944 = vld [vmem:[%s6839 + $0x340] sm:$0xff]
    %v6945 = vld [vmem:[%s6839 + $0x348] sm:$0xff]
    %v6946 = vld [vmem:[%s6839 + $0x350] sm:$0xff]
    %v6947 = vld [vmem:[%s6839 + $0x358] sm:$0xff]
    %v6948 = vld [vmem:[%s6839 + $0x360] sm:$0xff]
    %v6949 = vld [vmem:[%s6839 + $0x368] sm:$0xff]
    %v6950 = vld [vmem:[%s6839 + $0x370] sm:$0xff]
    %v6951 = vld [vmem:[%s6839 + $0x378] sm:$0xff]
    %v6952 = vld [vmem:[%s6839 + $0x380] sm:$0xff]
    %v6953 = vld [vmem:[%s6839 + $0x388] sm:$0xff]
    %v6954 = vld [vmem:[%s6839 + $0x390] sm:$0xff]
    %v6955 = vld [vmem:[%s6839 + $0x398] sm:$0xff]
    %v6956 = vld [vmem:[%s6839 + $0x3a0] sm:$0xff]
    %v6957 = vld [vmem:[%s6839 + $0x3a8] sm:$0xff]
    %v6958 = vld [vmem:[%s6839 + $0x3b0] sm:$0xff]
    %v6959 = vld [vmem:[%s6839 + $0x3b8] sm:$0xff]
    %v6960 = vld [vmem:[%s6839 + $0x3c0] sm:$0xff]
    %v6961 = vld [vmem:[%s6839 + $0x3c8] sm:$0xff]
    %v6962 = vld [vmem:[%s6839 + $0x3d0] sm:$0xff]
    %v6963 = vld [vmem:[%s6839 + $0x3d8] sm:$0xff]
    %v6964 = vld [vmem:[%s6839 + $0x3e0] sm:$0xff]
    %v6965 = vld [vmem:[%s6839 + $0x3e8] sm:$0xff]
    %v6966 = vld [vmem:[%s6839 + $0x3f0] sm:$0xff]
    %v6967 = vld [vmem:[%s6839 + $0x3f8] sm:$0xff]
    %v6968 = vpack.c.bf16 %v6831, %v6823
    %v6969 = vpack.c.bf16 %v6832, %v6824
    %v6970 = vpack.c.bf16 %v6833, %v6825
    %v6971 = vpack.c.bf16 %v6834, %v6826
    %v6972 = vpack.c.bf16 %v6835, %v6827
    %v6973 = vpack.c.bf16 %v6836, %v6828
    %v6974 = vpack.c.bf16 %v6837, %v6829
    %v6975 = vpack.c.bf16 %v6838, %v6830
    %v7104 = vunpack.c.l.b16 %v6840
    %v7105 = vunpack.c.h.b16 %v6840
    %v7106 = vunpack.c.l.b16 %v6841
    %v7107 = vunpack.c.h.b16 %v6841
    %v7108 = vunpack.c.l.b16 %v6842
    %v7109 = vunpack.c.h.b16 %v6842
    %v7110 = vunpack.c.l.b16 %v6843
    %v7111 = vunpack.c.h.b16 %v6843
    %v7112 = vunpack.c.l.b16 %v6844
    %v7113 = vunpack.c.h.b16 %v6844
    %v7114 = vunpack.c.l.b16 %v6845
    %v7115 = vunpack.c.h.b16 %v6845
    %v7116 = vunpack.c.l.b16 %v6846
    %v7117 = vunpack.c.h.b16 %v6846
    %v7118 = vunpack.c.l.b16 %v6847
    %v7119 = vunpack.c.h.b16 %v6847
    %v7120 = vunpack.c.l.b16 %v6848
    %v7121 = vunpack.c.h.b16 %v6848
    %v7122 = vunpack.c.l.b16 %v6849
    %v7123 = vunpack.c.h.b16 %v6849
    %v7124 = vunpack.c.l.b16 %v6850
    %v7125 = vunpack.c.h.b16 %v6850
    %v7126 = vunpack.c.l.b16 %v6851
    %v7127 = vunpack.c.h.b16 %v6851
    %v7128 = vunpack.c.l.b16 %v6852
    %v7129 = vunpack.c.h.b16 %v6852
    %v7130 = vunpack.c.l.b16 %v6853
    %v7131 = vunpack.c.h.b16 %v6853
    %v7132 = vunpack.c.l.b16 %v6854
    %v7133 = vunpack.c.h.b16 %v6854
    %v7134 = vunpack.c.l.b16 %v6855
    %v7135 = vunpack.c.h.b16 %v6855
    %v7136 = vunpack.c.l.b16 %v6856
    %v7137 = vunpack.c.h.b16 %v6856
    %v7138 = vunpack.c.l.b16 %v6857
    %v7139 = vunpack.c.h.b16 %v6857
    %v7140 = vunpack.c.l.b16 %v6858
    %v7141 = vunpack.c.h.b16 %v6858
    %v7142 = vunpack.c.l.b16 %v6859
    %v7143 = vunpack.c.h.b16 %v6859
    %v7144 = vunpack.c.l.b16 %v6860
    %v7145 = vunpack.c.h.b16 %v6860
    %v7146 = vunpack.c.l.b16 %v6861
    %v7147 = vunpack.c.h.b16 %v6861
    %v7148 = vunpack.c.l.b16 %v6862
    %v7149 = vunpack.c.h.b16 %v6862
    %v7150 = vunpack.c.l.b16 %v6863
    %v7151 = vunpack.c.h.b16 %v6863
    %v7152 = vunpack.c.l.b16 %v6864
    %v7153 = vunpack.c.h.b16 %v6864
    %v7154 = vunpack.c.l.b16 %v6865
    %v7155 = vunpack.c.h.b16 %v6865
    %v7156 = vunpack.c.l.b16 %v6866
    %v7157 = vunpack.c.h.b16 %v6866
    %v7158 = vunpack.c.l.b16 %v6867
    %v7159 = vunpack.c.h.b16 %v6867
    %v7160 = vunpack.c.l.b16 %v6868
    %v7161 = vunpack.c.h.b16 %v6868
    %v7162 = vunpack.c.l.b16 %v6869
    %v7163 = vunpack.c.h.b16 %v6869
    %v7164 = vunpack.c.l.b16 %v6870
    %v7165 = vunpack.c.h.b16 %v6870
    %v7166 = vunpack.c.l.b16 %v6871
    %v7167 = vunpack.c.h.b16 %v6871
    %v7168 = vunpack.c.l.b16 %v6872
    %v7169 = vunpack.c.h.b16 %v6872
    %v7170 = vunpack.c.l.b16 %v6873
    %v7171 = vunpack.c.h.b16 %v6873
    %v7172 = vunpack.c.l.b16 %v6874
    %v7173 = vunpack.c.h.b16 %v6874
    %v7174 = vunpack.c.l.b16 %v6875
    %v7175 = vunpack.c.h.b16 %v6875
    %v7176 = vunpack.c.l.b16 %v6876
    %v7177 = vunpack.c.h.b16 %v6876
    %v7178 = vunpack.c.l.b16 %v6877
    %v7179 = vunpack.c.h.b16 %v6877
    %v7180 = vunpack.c.l.b16 %v6878
    %v7181 = vunpack.c.h.b16 %v6878
    %v7182 = vunpack.c.l.b16 %v6879
    %v7183 = vunpack.c.h.b16 %v6879
    %v7184 = vunpack.c.l.b16 %v6880
    %v7185 = vunpack.c.h.b16 %v6880
    %v7186 = vunpack.c.l.b16 %v6881
    %v7187 = vunpack.c.h.b16 %v6881
    %v7188 = vunpack.c.l.b16 %v6882
    %v7189 = vunpack.c.h.b16 %v6882
    %v7190 = vunpack.c.l.b16 %v6883
    %v7191 = vunpack.c.h.b16 %v6883
    %v7192 = vunpack.c.l.b16 %v6884
    %v7193 = vunpack.c.h.b16 %v6884
    %v7194 = vunpack.c.l.b16 %v6885
    %v7195 = vunpack.c.h.b16 %v6885
    %v7196 = vunpack.c.l.b16 %v6886
    %v7197 = vunpack.c.h.b16 %v6886
    %v7198 = vunpack.c.l.b16 %v6887
    %v7199 = vunpack.c.h.b16 %v6887
    %v7200 = vunpack.c.l.b16 %v6888
    %v7201 = vunpack.c.h.b16 %v6888
    %v7202 = vunpack.c.l.b16 %v6889
    %v7203 = vunpack.c.h.b16 %v6889
    %v7204 = vunpack.c.l.b16 %v6890
    %v7205 = vunpack.c.h.b16 %v6890
    %v7206 = vunpack.c.l.b16 %v6891
    %v7207 = vunpack.c.h.b16 %v6891
    %v7208 = vunpack.c.l.b16 %v6892
    %v7209 = vunpack.c.h.b16 %v6892
    %v7210 = vunpack.c.l.b16 %v6893
    %v7211 = vunpack.c.h.b16 %v6893
    %v7212 = vunpack.c.l.b16 %v6894
    %v7213 = vunpack.c.h.b16 %v6894
    %v7214 = vunpack.c.l.b16 %v6895
    %v7215 = vunpack.c.h.b16 %v6895
    %v7216 = vunpack.c.l.b16 %v6896
    %v7217 = vunpack.c.h.b16 %v6896
    %v7218 = vunpack.c.l.b16 %v6897
    %v7219 = vunpack.c.h.b16 %v6897
    %v7220 = vunpack.c.l.b16 %v6898
    %v7221 = vunpack.c.h.b16 %v6898
    %v7222 = vunpack.c.l.b16 %v6899
    %v7223 = vunpack.c.h.b16 %v6899
    %v7224 = vunpack.c.l.b16 %v6900
    %v7225 = vunpack.c.h.b16 %v6900
    %v7226 = vunpack.c.l.b16 %v6901
    %v7227 = vunpack.c.h.b16 %v6901
    %v7228 = vunpack.c.l.b16 %v6902
    %v7229 = vunpack.c.h.b16 %v6902
    %v7230 = vunpack.c.l.b16 %v6903
    %v7231 = vunpack.c.h.b16 %v6903
    %v7232 = vunpack.c.l.b16 %v6904
    %v7233 = vunpack.c.h.b16 %v6904
    %v7234 = vunpack.c.l.b16 %v6905
    %v7235 = vunpack.c.h.b16 %v6905
    %v7236 = vunpack.c.l.b16 %v6906
    %v7237 = vunpack.c.h.b16 %v6906
    %v7238 = vunpack.c.l.b16 %v6907
    %v7239 = vunpack.c.h.b16 %v6907
    %v7240 = vunpack.c.l.b16 %v6908
    %v7241 = vunpack.c.h.b16 %v6908
    %v7242 = vunpack.c.l.b16 %v6909
    %v7243 = vunpack.c.h.b16 %v6909
    %v7244 = vunpack.c.l.b16 %v6910
    %v7245 = vunpack.c.h.b16 %v6910
    %v7246 = vunpack.c.l.b16 %v6911
    %v7247 = vunpack.c.h.b16 %v6911
    %v7248 = vunpack.c.l.b16 %v6912
    %v7249 = vunpack.c.h.b16 %v6912
    %v7250 = vunpack.c.l.b16 %v6913
    %v7251 = vunpack.c.h.b16 %v6913
    %v7252 = vunpack.c.l.b16 %v6914
    %v7253 = vunpack.c.h.b16 %v6914
    %v7254 = vunpack.c.l.b16 %v6915
    %v7255 = vunpack.c.h.b16 %v6915
    %v7256 = vunpack.c.l.b16 %v6916
    %v7257 = vunpack.c.h.b16 %v6916
    %v7258 = vunpack.c.l.b16 %v6917
    %v7259 = vunpack.c.h.b16 %v6917
    %v7260 = vunpack.c.l.b16 %v6918
    %v7261 = vunpack.c.h.b16 %v6918
    %v7262 = vunpack.c.l.b16 %v6919
    %v7263 = vunpack.c.h.b16 %v6919
    %v7264 = vunpack.c.l.b16 %v6920
    %v7265 = vunpack.c.h.b16 %v6920
    %v7266 = vunpack.c.l.b16 %v6921
    %v7267 = vunpack.c.h.b16 %v6921
    %v7268 = vunpack.c.l.b16 %v6922
    %v7269 = vunpack.c.h.b16 %v6922
    %v7270 = vunpack.c.l.b16 %v6923
    %v7271 = vunpack.c.h.b16 %v6923
    %v7272 = vunpack.c.l.b16 %v6924
    %v7273 = vunpack.c.h.b16 %v6924
    %v7274 = vunpack.c.l.b16 %v6925
    %v7275 = vunpack.c.h.b16 %v6925
    %v7276 = vunpack.c.l.b16 %v6926
    %v7277 = vunpack.c.h.b16 %v6926
    %v7278 = vunpack.c.l.b16 %v6927
    %v7279 = vunpack.c.h.b16 %v6927
    %v7280 = vunpack.c.l.b16 %v6928
    %v7281 = vunpack.c.h.b16 %v6928
    %v7282 = vunpack.c.l.b16 %v6929
    %v7283 = vunpack.c.h.b16 %v6929
    %v7284 = vunpack.c.l.b16 %v6930
    %v7285 = vunpack.c.h.b16 %v6930
    %v7286 = vunpack.c.l.b16 %v6931
    %v7287 = vunpack.c.h.b16 %v6931
    %v7288 = vunpack.c.l.b16 %v6932
    %v7289 = vunpack.c.h.b16 %v6932
    %v7290 = vunpack.c.l.b16 %v6933
    %v7291 = vunpack.c.h.b16 %v6933
    %v7292 = vunpack.c.l.b16 %v6934
    %v7293 = vunpack.c.h.b16 %v6934
    %v7294 = vunpack.c.l.b16 %v6935
    %v7295 = vunpack.c.h.b16 %v6935
    %v7296 = vunpack.c.l.b16 %v6936
    %v7297 = vunpack.c.h.b16 %v6936
    %v7298 = vunpack.c.l.b16 %v6937
    %v7299 = vunpack.c.h.b16 %v6937
    %v7300 = vunpack.c.l.b16 %v6938
    %v7301 = vunpack.c.h.b16 %v6938
    %v7302 = vunpack.c.l.b16 %v6939
    %v7303 = vunpack.c.h.b16 %v6939
    %v7304 = vunpack.c.l.b16 %v6940
    %v7305 = vunpack.c.h.b16 %v6940
    %v7306 = vunpack.c.l.b16 %v6941
    %v7307 = vunpack.c.h.b16 %v6941
    %v7308 = vunpack.c.l.b16 %v6942
    %v7309 = vunpack.c.h.b16 %v6942
    %v7310 = vunpack.c.l.b16 %v6943
    %v7311 = vunpack.c.h.b16 %v6943
    %v7312 = vunpack.c.l.b16 %v6944
    %v7313 = vunpack.c.h.b16 %v6944
    %v7314 = vunpack.c.l.b16 %v6945
    %v7315 = vunpack.c.h.b16 %v6945
    %v7316 = vunpack.c.l.b16 %v6946
    %v7317 = vunpack.c.h.b16 %v6946
    %v7318 = vunpack.c.l.b16 %v6947
    %v7319 = vunpack.c.h.b16 %v6947
    %v7320 = vunpack.c.l.b16 %v6948
    %v7321 = vunpack.c.h.b16 %v6948
    %v7322 = vunpack.c.l.b16 %v6949
    %v7323 = vunpack.c.h.b16 %v6949
    %v7324 = vunpack.c.l.b16 %v6950
    %v7325 = vunpack.c.h.b16 %v6950
    %v7326 = vunpack.c.l.b16 %v6951
    %v7327 = vunpack.c.h.b16 %v6951
    %v7328 = vunpack.c.l.b16 %v6952
    %v7329 = vunpack.c.h.b16 %v6952
    %v7330 = vunpack.c.l.b16 %v6953
    %v7331 = vunpack.c.h.b16 %v6953
    %v7332 = vunpack.c.l.b16 %v6954
    %v7333 = vunpack.c.h.b16 %v6954
    %v7334 = vunpack.c.l.b16 %v6955
    %v7335 = vunpack.c.h.b16 %v6955
    %v7336 = vunpack.c.l.b16 %v6956
    %v7337 = vunpack.c.h.b16 %v6956
    %v7338 = vunpack.c.l.b16 %v6957
    %v7339 = vunpack.c.h.b16 %v6957
    %v7340 = vunpack.c.l.b16 %v6958
    %v7341 = vunpack.c.h.b16 %v6958
    %v7342 = vunpack.c.l.b16 %v6959
    %v7343 = vunpack.c.h.b16 %v6959
    %v7344 = vunpack.c.l.b16 %v6960
    %v7345 = vunpack.c.h.b16 %v6960
    %v7346 = vunpack.c.l.b16 %v6961
    %v7347 = vunpack.c.h.b16 %v6961
    %v7348 = vunpack.c.l.b16 %v6962
    %v7349 = vunpack.c.h.b16 %v6962
    %v7350 = vunpack.c.l.b16 %v6963
    %v7351 = vunpack.c.h.b16 %v6963
    %v7352 = vunpack.c.l.b16 %v6964
    %v7353 = vunpack.c.h.b16 %v6964
    %v7354 = vunpack.c.l.b16 %v6965
    %v7355 = vunpack.c.h.b16 %v6965
    %v7356 = vunpack.c.l.b16 %v6966
    %v7357 = vunpack.c.h.b16 %v6966
    %v7358 = vunpack.c.l.b16 %v6967
    %v7359 = vunpack.c.h.b16 %v6967
    %v7360 = vpack.c.b16 %v7106, %v7104
    %v7361 = vpack.c.b16 %v7107, %v7105
    %v7362 = vpack.c.b16 %v7110, %v7108
    %v7363 = vpack.c.b16 %v7111, %v7109
    %v7364 = vpack.c.b16 %v7114, %v7112
    %v7365 = vpack.c.b16 %v7115, %v7113
    %v7366 = vpack.c.b16 %v7118, %v7116
    %v7367 = vpack.c.b16 %v7119, %v7117
    %v7368 = vpack.c.b16 %v7122, %v7120
    %v7369 = vpack.c.b16 %v7123, %v7121
    %v7370 = vpack.c.b16 %v7126, %v7124
    %v7371 = vpack.c.b16 %v7127, %v7125
    %v7372 = vpack.c.b16 %v7130, %v7128
    %v7373 = vpack.c.b16 %v7131, %v7129
    %v7374 = vpack.c.b16 %v7134, %v7132
    %v7375 = vpack.c.b16 %v7135, %v7133
    %v7376 = vpack.c.b16 %v7138, %v7136
    %v7377 = vpack.c.b16 %v7139, %v7137
    %v7378 = vpack.c.b16 %v7142, %v7140
    %v7379 = vpack.c.b16 %v7143, %v7141
    %v7380 = vpack.c.b16 %v7146, %v7144
    %v7381 = vpack.c.b16 %v7147, %v7145
    %v7382 = vpack.c.b16 %v7150, %v7148
    %v7383 = vpack.c.b16 %v7151, %v7149
    %v7384 = vpack.c.b16 %v7154, %v7152
    %v7385 = vpack.c.b16 %v7155, %v7153
    %v7386 = vpack.c.b16 %v7158, %v7156
    %v7387 = vpack.c.b16 %v7159, %v7157
    %v7388 = vpack.c.b16 %v7162, %v7160
    %v7389 = vpack.c.b16 %v7163, %v7161
    %v7390 = vpack.c.b16 %v7166, %v7164
    %v7391 = vpack.c.b16 %v7167, %v7165
    %v7392 = vpack.c.b16 %v7170, %v7168
    %v7393 = vpack.c.b16 %v7171, %v7169
    %v7394 = vpack.c.b16 %v7174, %v7172
    %v7395 = vpack.c.b16 %v7175, %v7173
    %v7396 = vpack.c.b16 %v7178, %v7176
    %v7397 = vpack.c.b16 %v7179, %v7177
    %v7398 = vpack.c.b16 %v7182, %v7180
    %v7399 = vpack.c.b16 %v7183, %v7181
    %v7400 = vpack.c.b16 %v7186, %v7184
    %v7401 = vpack.c.b16 %v7187, %v7185
    %v7402 = vpack.c.b16 %v7190, %v7188
    %v7403 = vpack.c.b16 %v7191, %v7189
    %v7404 = vpack.c.b16 %v7194, %v7192
    %v7405 = vpack.c.b16 %v7195, %v7193
    %v7406 = vpack.c.b16 %v7198, %v7196
    %v7407 = vpack.c.b16 %v7199, %v7197
    %v7408 = vpack.c.b16 %v7202, %v7200
    %v7409 = vpack.c.b16 %v7203, %v7201
    %v7410 = vpack.c.b16 %v7206, %v7204
    %v7411 = vpack.c.b16 %v7207, %v7205
    %v7412 = vpack.c.b16 %v7210, %v7208
    %v7413 = vpack.c.b16 %v7211, %v7209
    %v7414 = vpack.c.b16 %v7214, %v7212
    %v7415 = vpack.c.b16 %v7215, %v7213
    %v7416 = vpack.c.b16 %v7218, %v7216
    %v7417 = vpack.c.b16 %v7219, %v7217
    %v7418 = vpack.c.b16 %v7222, %v7220
    %v7419 = vpack.c.b16 %v7223, %v7221
    %v7420 = vpack.c.b16 %v7226, %v7224
    %v7421 = vpack.c.b16 %v7227, %v7225
    %v7422 = vpack.c.b16 %v7230, %v7228
    %v7423 = vpack.c.b16 %v7231, %v7229
    %v7424 = vpack.c.b16 %v7234, %v7232
    %v7425 = vpack.c.b16 %v7235, %v7233
    %v7426 = vpack.c.b16 %v7238, %v7236
    %v7427 = vpack.c.b16 %v7239, %v7237
    %v7428 = vpack.c.b16 %v7242, %v7240
    %v7429 = vpack.c.b16 %v7243, %v7241
    %v7430 = vpack.c.b16 %v7246, %v7244
    %v7431 = vpack.c.b16 %v7247, %v7245
    %v7432 = vpack.c.b16 %v7250, %v7248
    %v7433 = vpack.c.b16 %v7251, %v7249
    %v7434 = vpack.c.b16 %v7254, %v7252
    %v7435 = vpack.c.b16 %v7255, %v7253
    %v7436 = vpack.c.b16 %v7258, %v7256
    %v7437 = vpack.c.b16 %v7259, %v7257
    %v7438 = vpack.c.b16 %v7262, %v7260
    %v7439 = vpack.c.b16 %v7263, %v7261
    %v7440 = vpack.c.b16 %v7266, %v7264
    %v7441 = vpack.c.b16 %v7267, %v7265
    %v7442 = vpack.c.b16 %v7270, %v7268
    %v7443 = vpack.c.b16 %v7271, %v7269
    %v7444 = vpack.c.b16 %v7274, %v7272
    %v7445 = vpack.c.b16 %v7275, %v7273
    %v7446 = vpack.c.b16 %v7278, %v7276
    %v7447 = vpack.c.b16 %v7279, %v7277
    %v7448 = vpack.c.b16 %v7282, %v7280
    %v7449 = vpack.c.b16 %v7283, %v7281
    %v7450 = vpack.c.b16 %v7286, %v7284
    %v7451 = vpack.c.b16 %v7287, %v7285
    %v7452 = vpack.c.b16 %v7290, %v7288
    %v7453 = vpack.c.b16 %v7291, %v7289
    %v7454 = vpack.c.b16 %v7294, %v7292
    %v7455 = vpack.c.b16 %v7295, %v7293
    %v7456 = vpack.c.b16 %v7298, %v7296
    %v7457 = vpack.c.b16 %v7299, %v7297
    %v7458 = vpack.c.b16 %v7302, %v7300
    %v7459 = vpack.c.b16 %v7303, %v7301
    %v7460 = vpack.c.b16 %v7306, %v7304
    %v7461 = vpack.c.b16 %v7307, %v7305
    %v7462 = vpack.c.b16 %v7310, %v7308
    %v7463 = vpack.c.b16 %v7311, %v7309
    %v7464 = vpack.c.b16 %v7314, %v7312
    %v7465 = vpack.c.b16 %v7315, %v7313
    %v7466 = vpack.c.b16 %v7318, %v7316
    %v7467 = vpack.c.b16 %v7319, %v7317
    %v7468 = vpack.c.b16 %v7322, %v7320
    %v7469 = vpack.c.b16 %v7323, %v7321
    %v7470 = vpack.c.b16 %v7326, %v7324
    %v7471 = vpack.c.b16 %v7327, %v7325
    %v7472 = vpack.c.b16 %v7330, %v7328
    %v7473 = vpack.c.b16 %v7331, %v7329
    %v7474 = vpack.c.b16 %v7334, %v7332
    %v7475 = vpack.c.b16 %v7335, %v7333
    %v7476 = vpack.c.b16 %v7338, %v7336
    %v7477 = vpack.c.b16 %v7339, %v7337
    %v7478 = vpack.c.b16 %v7342, %v7340
    %v7479 = vpack.c.b16 %v7343, %v7341
    %v7480 = vpack.c.b16 %v7346, %v7344
    %v7481 = vpack.c.b16 %v7347, %v7345
    %v7482 = vpack.c.b16 %v7350, %v7348
    %v7483 = vpack.c.b16 %v7351, %v7349
    %v7484 = vpack.c.b16 %v7354, %v7352
    %v7485 = vpack.c.b16 %v7355, %v7353
    %v7486 = vpack.c.b16 %v7358, %v7356
    %v7487 = vpack.c.b16 %v7359, %v7357
    %7616 = vmatprep.subr.bf16.mxu0 %v7361
    %7617 = vmatpush1.bf16.msra.mxu0 %v7360
    %7618 = vmatprep.subr.bf16.mxu0 %v7363
    %7619 = vmatpush1.bf16.msra.mxu0 %v7362
    %7620 = vmatprep.subr.bf16.mxu0 %v7365
    %7621 = vmatpush1.bf16.msra.mxu0 %v7364
    %7622 = vmatprep.subr.bf16.mxu0 %v7367
    %7623 = vmatpush1.bf16.msra.mxu0 %v7366
    %7624 = vmatprep.subr.bf16.mxu0 %v7369
    %7625 = vmatpush1.bf16.msra.mxu0 %v7368
    %7626 = vmatprep.subr.bf16.mxu0 %v7371
    %7627 = vmatpush1.bf16.msra.mxu0 %v7370
    %7628 = vmatprep.subr.bf16.mxu0 %v7373
    %7629 = vmatpush1.bf16.msra.mxu0 %v7372
    %7630 = vmatprep.subr.bf16.mxu0 %v7375
    %7631 = vmatpush1.bf16.msra.mxu0 %v7374
    %7632 = vmatprep.subr.bf16.mxu0 %v7377
    %7633 = vmatpush1.bf16.msra.mxu0 %v7376
    %7634 = vmatprep.subr.bf16.mxu0 %v7379
    %7635 = vmatpush1.bf16.msra.mxu0 %v7378
    %7636 = vmatprep.subr.bf16.mxu0 %v7381
    %7637 = vmatpush1.bf16.msra.mxu0 %v7380
    %7638 = vmatprep.subr.bf16.mxu0 %v7383
    %7639 = vmatpush1.bf16.msra.mxu0 %v7382
    %7640 = vmatprep.subr.bf16.mxu0 %v7385
    %7641 = vmatpush1.bf16.msra.mxu0 %v7384
    %7642 = vmatprep.subr.bf16.mxu0 %v7387
    %7643 = vmatpush1.bf16.msra.mxu0 %v7386
    %7644 = vmatprep.subr.bf16.mxu0 %v7389
    %7645 = vmatpush1.bf16.msra.mxu0 %v7388
    %7646 = vmatprep.subr.bf16.mxu0 %v7391
    %7647 = vmatpush1.bf16.msra.mxu0 %v7390
    %7648 = vmatprep.mubr.bf16.mxu0 %v6969
    %7649 = vmatmul.mubr.bf16.gmra.mrb[0].mxu0 %v6968
    %v7650 = vpop.f32.mrb[0].mxu0
    %v7651 = vadd.f32 0.0, %v7650
    %v7652 = vpop.f32.mrb[0].mxu0
    %v7653 = vadd.f32 0.0, %v7652
    %v7654 = vpop.f32.mrb[0].mxu0
    %v7655 = vadd.f32 0.0, %v7654
    %v7656 = vpop.f32.mrb[0].mxu0
    %v7657 = vadd.f32 0.0, %v7656
    %7658 = vdwg.mxu0
    %7659 = vmatprep.subr.bf16.mxu0 %v7393
    %7660 = vmatpush1.bf16.msra.mxu0 %v7392
    %7661 = vmatprep.subr.bf16.mxu0 %v7395
    %7662 = vmatpush1.bf16.msra.mxu0 %v7394
    %7663 = vmatprep.subr.bf16.mxu0 %v7397
    %7664 = vmatpush1.bf16.msra.mxu0 %v7396
    %7665 = vmatprep.subr.bf16.mxu0 %v7399
    %7666 = vmatpush1.bf16.msra.mxu0 %v7398
    %7667 = vmatprep.subr.bf16.mxu0 %v7401
    %7668 = vmatpush1.bf16.msra.mxu0 %v7400
    %7669 = vmatprep.subr.bf16.mxu0 %v7403
    %7670 = vmatpush1.bf16.msra.mxu0 %v7402
    %7671 = vmatprep.subr.bf16.mxu0 %v7405
    %7672 = vmatpush1.bf16.msra.mxu0 %v7404
    %7673 = vmatprep.subr.bf16.mxu0 %v7407
    %7674 = vmatpush1.bf16.msra.mxu0 %v7406
    %7675 = vmatprep.subr.bf16.mxu0 %v7409
    %7676 = vmatpush1.bf16.msra.mxu0 %v7408
    %7677 = vmatprep.subr.bf16.mxu0 %v7411
    %7678 = vmatpush1.bf16.msra.mxu0 %v7410
    %7679 = vmatprep.subr.bf16.mxu0 %v7413
    %7680 = vmatpush1.bf16.msra.mxu0 %v7412
    %7681 = vmatprep.subr.bf16.mxu0 %v7415
    %7682 = vmatpush1.bf16.msra.mxu0 %v7414
    %7683 = vmatprep.subr.bf16.mxu0 %v7417
    %7684 = vmatpush1.bf16.msra.mxu0 %v7416
    %7685 = vmatprep.subr.bf16.mxu0 %v7419
    %7686 = vmatpush1.bf16.msra.mxu0 %v7418
    %7687 = vmatprep.subr.bf16.mxu0 %v7421
    %7688 = vmatpush1.bf16.msra.mxu0 %v7420
    %7689 = vmatprep.subr.bf16.mxu0 %v7423
    %7690 = vmatpush1.bf16.msra.mxu0 %v7422
    %7691 = vmatprep.mubr.bf16.mxu0 %v6971
    %7692 = vmatmul.mubr.bf16.gmra.mrb[0].mxu0 %v6970
    %v7693 = vpop.f32.mrb[0].mxu0
    %v7694 = vadd.f32 %v7651, %v7693
    %v7695 = vpop.f32.mrb[0].mxu0
    %v7696 = vadd.f32 %v7653, %v7695
    %v7697 = vpop.f32.mrb[0].mxu0
    %v7698 = vadd.f32 %v7655, %v7697
    %v7699 = vpop.f32.mrb[0].mxu0
    %v7700 = vadd.f32 %v7657, %v7699
    %7701 = vdwg.mxu0
    %7702 = vmatprep.subr.bf16.mxu0 %v7425
    %7703 = vmatpush1.bf16.msra.mxu0 %v7424
    %7704 = vmatprep.subr.bf16.mxu0 %v7427
    %7705 = vmatpush1.bf16.msra.mxu0 %v7426
    %7706 = vmatprep.subr.bf16.mxu0 %v7429
    %7707 = vmatpush1.bf16.msra.mxu0 %v7428
    %7708 = vmatprep.subr.bf16.mxu0 %v7431
    %7709 = vmatpush1.bf16.msra.mxu0 %v7430
    %7710 = vmatprep.subr.bf16.mxu0 %v7433
    %7711 = vmatpush1.bf16.msra.mxu0 %v7432
    %7712 = vmatprep.subr.bf16.mxu0 %v7435
    %7713 = vmatpush1.bf16.msra.mxu0 %v7434
    %7714 = vmatprep.subr.bf16.mxu0 %v7437
    %7715 = vmatpush1.bf16.msra.mxu0 %v7436
    %7716 = vmatprep.subr.bf16.mxu0 %v7439
    %7717 = vmatpush1.bf16.msra.mxu0 %v7438
    %7718 = vmatprep.subr.bf16.mxu0 %v7441
    %7719 = vmatpush1.bf16.msra.mxu0 %v7440
    %7720 = vmatprep.subr.bf16.mxu0 %v7443
    %7721 = vmatpush1.bf16.msra.mxu0 %v7442
    %7722 = vmatprep.subr.bf16.mxu0 %v7445
    %7723 = vmatpush1.bf16.msra.mxu0 %v7444
    %7724 = vmatprep.subr.bf16.mxu0 %v7447
    %7725 = vmatpush1.bf16.msra.mxu0 %v7446
    %7726 = vmatprep.subr.bf16.mxu0 %v7449
    %7727 = vmatpush1.bf16.msra.mxu0 %v7448
    %7728 = vmatprep.subr.bf16.mxu0 %v7451
    %7729 = vmatpush1.bf16.msra.mxu0 %v7450
    %7730 = vmatprep.subr.bf16.mxu0 %v7453
    %7731 = vmatpush1.bf16.msra.mxu0 %v7452
    %7732 = vmatprep.subr.bf16.mxu0 %v7455
    %7733 = vmatpush1.bf16.msra.mxu0 %v7454
    %7734 = vmatprep.mubr.bf16.mxu0 %v6973
    %7735 = vmatmul.mubr.bf16.gmra.mrb[0].mxu0 %v6972
    %v7736 = vpop.f32.mrb[0].mxu0
    %v7737 = vadd.f32 %v7694, %v7736
    %v7738 = vpop.f32.mrb[0].mxu0
    %v7739 = vadd.f32 %v7696, %v7738
    %v7740 = vpop.f32.mrb[0].mxu0
    %v7741 = vadd.f32 %v7698, %v7740
    %v7742 = vpop.f32.mrb[0].mxu0
    %v7743 = vadd.f32 %v7700, %v7742
    %7744 = vdwg.mxu0
    %7745 = vmatprep.subr.bf16.mxu0 %v7457
    %7746 = vmatpush1.bf16.msra.mxu0 %v7456
    %7747 = vmatprep.subr.bf16.mxu0 %v7459
    %7748 = vmatpush1.bf16.msra.mxu0 %v7458
    %7749 = vmatprep.subr.bf16.mxu0 %v7461
    %7750 = vmatpush1.bf16.msra.mxu0 %v7460
    %7751 = vmatprep.subr.bf16.mxu0 %v7463
    %7752 = vmatpush1.bf16.msra.mxu0 %v7462
    %7753 = vmatprep.subr.bf16.mxu0 %v7465
    %7754 = vmatpush1.bf16.msra.mxu0 %v7464
    %7755 = vmatprep.subr.bf16.mxu0 %v7467
    %7756 = vmatpush1.bf16.msra.mxu0 %v7466
    %7757 = vmatprep.subr.bf16.mxu0 %v7469
    %7758 = vmatpush1.bf16.msra.mxu0 %v7468
    %7759 = vmatprep.subr.bf16.mxu0 %v7471
    %7760 = vmatpush1.bf16.msra.mxu0 %v7470
    %7761 = vmatprep.subr.bf16.mxu0 %v7473
    %7762 = vmatpush1.bf16.msra.mxu0 %v7472
    %7763 = vmatprep.subr.bf16.mxu0 %v7475
    %7764 = vmatpush1.bf16.msra.mxu0 %v7474
    %7765 = vmatprep.subr.bf16.mxu0 %v7477
    %7766 = vmatpush1.bf16.msra.mxu0 %v7476
    %7767 = vmatprep.subr.bf16.mxu0 %v7479
    %7768 = vmatpush1.bf16.msra.mxu0 %v7478
    %7769 = vmatprep.subr.bf16.mxu0 %v7481
    %7770 = vmatpush1.bf16.msra.mxu0 %v7480
    %7771 = vmatprep.subr.bf16.mxu0 %v7483
    %7772 = vmatpush1.bf16.msra.mxu0 %v7482
    %7773 = vmatprep.subr.bf16.mxu0 %v7485
    %7774 = vmatpush1.bf16.msra.mxu0 %v7484
    %7775 = vmatprep.subr.bf16.mxu0 %v7487
    %7776 = vmatpush1.bf16.msra.mxu0 %v7486
    %7777 = vmatprep.mubr.bf16.mxu0 %v6975
    %7778 = vmatmul.mubr.bf16.gmra.mrb[0].mxu0 %v6974
    %v7779 = vpop.f32.mrb[0].mxu0
    %v7780 = vadd.f32 %v7737, %v7779
    %v7781 = vpop.f32.mrb[0].mxu0
    %v7782 = vadd.f32 %v7739, %v7781
    %v7783 = vpop.f32.mrb[0].mxu0
    %v7784 = vadd.f32 %v7741, %v7783
    %v7785 = vpop.f32.mrb[0].mxu0
    %v7786 = vadd.f32 %v7743, %v7785
    %7787 = vdwg.mxu0
    %v7788 = vadd.f32 %v5639, %v7780
    %v7789 = vadd.f32 %v5640, %v7782
    %v7790 = vadd.f32 %v5641, %v7784
    %v7791 = vadd.f32 %v5642, %v7786
    %s7792 = scalar_lea.vmem %s12, 2
    %v7793 = vld [vmem:[%s7792] sm:$0x3]
    %v7795 = vlaneseq
    %v7796 = vshrl.u32 %v7795, 7
    %v7797 = vsub.s32 0, %v7796
    %v7798 = vrot.slane %v7793, %v7797
    %v7799 = vlaneseq
    %v7800 = vshrl.u32 %v7799, 7
    %v7801 = vsub.s32 1, %v7800
    %v7802 = vrot.slane %v7793, %v7801
    %v7805 = vadd.f32 %v7788, %v7798
    %v7806 = vadd.f32 %v7789, %v7802
    %v7807 = vadd.f32 %v7790, %v7798
    %v7808 = vadd.f32 %v7791, %v7802
    %v7809 = vld [vmem:[%s13] sm:$0x3]
    %v7810 = vld [vmem:[%s14] sm:$0x3]
    %v7811 = vadd.f32 %v7805, %v7806
    %7812 = vadd.xlane.f32.xlu0 %v7811
    %v7813 = vpop.xlane.xlu0 %7812
    %v7814 = vadd.f32 %v7807, %v7808
    %7815 = vadd.xlane.f32.xlu0 %v7814
    %v7816 = vpop.xlane.xlu0 %7815
    %v7817 = vmul.f32 %v7813, %v180
    %v7818 = vmul.f32 %v7816, %v180
    %v7819 = vsub.f32 %v7805, %v7817
    %v7820 = vsub.f32 %v7806, %v7817
    %v7821 = vsub.f32 %v7807, %v7818
    %v7822 = vsub.f32 %v7808, %v7818
    %v7823 = vmul.f32 %v7819, %v7819
    %v7824 = vmul.f32 %v7820, %v7820
    %v7825 = vmul.f32 %v7821, %v7821
    %v7826 = vmul.f32 %v7822, %v7822
    %v7827 = vadd.f32 %v7823, %v7824
    %7828 = vadd.xlane.f32.xlu0 %v7827
    %v7829 = vpop.xlane.xlu0 %7828
    %v7830 = vadd.f32 %v7825, %v7826
    %7831 = vadd.xlane.f32.xlu0 %v7830
    %v7832 = vpop.xlane.xlu0 %7831
    %v7833 = vmul.f32 %v7829, %v180
    %v7834 = vmul.f32 %v7832, %v180
    %v7835 = vadd.f32 %v7833, 1e-05
    %v7836 = vadd.f32 %v7834, 1e-05
    %v7837 = vrsqrt.pop %v7835
    %v7838 = vrsqrt.pop %v7836
    %v7839 = vmul.f32 %v7819, %v7837
    %v7840 = vmul.f32 %v7820, %v7837
    %v7841 = vmul.f32 %v7821, %v7838
    %v7842 = vmul.f32 %v7822, %v7838
    %v7844 = vlaneseq
    %v7845 = vshrl.u32 %v7844, 7
    %v7846 = vsub.s32 0, %v7845
    %v7847 = vrot.slane %v7809, %v7846
    %v7848 = vlaneseq
    %v7849 = vshrl.u32 %v7848, 7
    %v7850 = vsub.s32 1, %v7849
    %v7851 = vrot.slane %v7809, %v7850
    %v7854 = vmul.f32 %v7839, %v7847
    %v7855 = vmul.f32 %v7840, %v7851
    %v7856 = vmul.f32 %v7841, %v7847
    %v7857 = vmul.f32 %v7842, %v7851
    %v7859 = vlaneseq
    %v7860 = vshrl.u32 %v7859, 7
    %v7861 = vsub.s32 0, %v7860
    %v7862 = vrot.slane %v7810, %v7861
    %v7863 = vlaneseq
    %v7864 = vshrl.u32 %v7863, 7
    %v7865 = vsub.s32 1, %v7864
    %v7866 = vrot.slane %v7810, %v7865
    %v7869 = vadd.f32 %v7854, %v7862
    %v7870 = vadd.f32 %v7855, %v7866
    %v7871 = vadd.f32 %v7856, %v7862
    %v7872 = vadd.f32 %v7857, %v7866
    %7873 = vst [vmem:[#allocation17] sm:$0xff] %v7869
    %7874 = vst [vmem:[#allocation17 + $0x8] sm:$0xff] %v7870
    %7875 = vst [vmem:[#allocation17 + $0x10] sm:$0xff] %v7871
    %7876 = vst [vmem:[#allocation17 + $0x18] sm:$0xff] %v7872
    // Predicated region
    $region94: #{tpu_custom_call.1} parent=1 // pred_check
      _
    $region95: #{tpu_custom_call.1} parent=1 // pred_check_branch
      %7878 = sbr.rel (0) target = $region97
    $region96: #{tpu_custom_call.1} parent=1 // pred_region
      %s7880 = ssub.s32 512, 512
      %7881 = vsyncadd [#allocation5], %s7880
      %s7882 = sshll.u32 [#allocation17], 4
      %s7883 = int_to_ptr.vmem [resolvable:$true] %s7882
      %7888 = dma.vmem_to_hbm [thread:$0]  %s7883, 512, %s15, [#allocation5], 256, 256, 16
    $region97: #{tpu_custom_call.1} parent=1 // pred_fallthru
      _
    // Predicated region
    $region98: #{tpu_custom_call.1} parent=1 // pred_check
      _
    $region99: #{tpu_custom_call.1} parent=1 // pred_check_branch
      %7890 = sbr.rel (0) target = $region101
    $region100: #{tpu_custom_call.1} parent=1 // pred_region
      %7891 = dma.done [#allocation5], 512
    $region101: #{tpu_custom_call.1} parent=1 // pred_fallthru
      _
    %7892 = vsyncpa [#allocation4], 1
    %7893 = vsyncpa [#allocation7], 1
    %7894 = vsyncpa [#allocation10], 1
    %7895 = vsyncpa [#allocation13], 1
    %7896 = vsyncpa [#allocation16], 1
    %7897 = vsyncpa [#allocation5], 1

</llo_original>
